<compile_context>
chip_gen: v7x
topology: tpu7x:2x2x1
jax: 0.10.0
libtpu: 0.0.40
codegen_flags: <defaults>
</compile_context>

<pallas_src>
import functools

import jax
import jax.numpy as jnp
from jax.experimental import pallas as pl
from jax.experimental.pallas import tpu as pltpu


# ----------------------------------------------------------------------------
# Fused forward kernel (one grid point, everything VMEM-resident)
# ----------------------------------------------------------------------------
def _lenet_fused_kernel(p1_ref, w1_ref, b1_ref, w2_ref, b2_ref,
                        wf1_ref, bf1_ref, wf2_ref, bf2_ref, wf3_ref, bf3_ref,
                        out_ref, pool1_ext_ref, a2_ext_ref, *, n_batch):
    f32 = jnp.float32
    m = n_batch * 64                      # rows = (n, i, j) over the pooled 8x8 grid

    # ---- conv1 (5x5, pad 2) + ReLU + 2x2/2 max-pool -------------------------
    # p1_ref[k] holds the conv1 im2col patches of the output pixels belonging
    # to pool-window position k=(wi,wj); pool1 = max_k relu(P1_k @ W1 + b1).
    w1 = w1_ref[...]                      # (25, 6)
    b1 = b1_ref[...]                      # (1, 6)
    pool1 = None
    for k in range(4):
        a = jnp.maximum(
            jnp.dot(p1_ref[k], w1, preferred_element_type=f32) + b1, 0.0)
        pool1 = a if pool1 is None else jnp.maximum(pool1, a)
    # pool1: (m, 6); row n*64 + i*8 + j == pooled pixel (i, j) of sample n.

    # ---- conv2 (5x5, valid) + ReLU: in-kernel im2col via shifted slabs ------
    pool1_ext_ref[0:m, :] = pool1
    pool1_ext_ref[m:m + 36, :] = jnp.zeros((36, 6), f32)
    acc = jnp.zeros((m, 16), f32)
    for di in range(5):
        for dj in range(5):
            t = di * 5 + dj               # tap index into stacked conv2 weights
            d = di * 8 + dj               # within-sample row shift on the 8x8 grid
            acc = acc + jnp.dot(pool1_ext_ref[d:d + m, :], w2_ref[t],
                                preferred_element_type=f32)
    a2 = jnp.maximum(acc + b2_ref[...], 0.0)      # (m, 16); rows with i,j < 4 valid

    # ---- 2x2/2 max-pool over the 4x4 conv2 output ---------------------------
    a2_ext_ref[0:m, :] = a2
    a2_ext_ref[m:m + 9, :] = jnp.zeros((9, 16), f32)
    p2 = jnp.maximum(
        jnp.maximum(a2_ext_ref[0:m, :], a2_ext_ref[1:m + 1, :]),
        jnp.maximum(a2_ext_ref[8:m + 8, :], a2_ext_ref[9:m + 9, :]))
    # pooled value for (n, h, w) sits at row n*64 + h*16 + w*2  (h, w in {0, 1})

    # ---- fc1: flatten + row-gather folded into 4 one-hot-select matmuls -----
    row_ids = jax.lax.broadcasted_iota(jnp.int32, (n_batch, m), 1)
    samp_base = jax.lax.broadcasted_iota(jnp.int32, (n_batch, m), 0) * 64
    y1 = jnp.zeros((n_batch, 120), f32)
    for k, off in enumerate((0, 2, 16, 18)):      # k = h*2 + w
        sel = jnp.where(row_ids == samp_base + off, 1.0, 0.0).astype(f32)
        rows = jnp.dot(sel, p2, preferred_element_type=f32)        # (n_batch, 16)
        y1 = y1 + jnp.dot(rows, wf1_ref[k], preferred_element_type=f32)
    y1 = jnp.maximum(y1 + bf1_ref[...], 0.0)                       # (n_batch, 120)

    # ---- fc2 + ReLU, fc3 -----------------------------------------------------
    y2 = jnp.maximum(
        jnp.dot(y1, wf2_ref[...], preferred_element_type=f32) + bf2_ref[...], 0.0)
    y3 = jnp.dot(y2, wf3_ref[...], preferred_element_type=f32) + bf3_ref[...]
    out_ref[...] = y3.astype(out_ref.dtype)


def _whole_spec(shape):
    zeros = (0,) * len(shape)
    return pl.BlockSpec(tuple(shape), lambda i: zeros)


def _fused_forward(p1, pp):
    n_batch = p1.shape[1] // 64
    m = n_batch * 64
    operands = (p1, pp["w1"], pp["b1"], pp["w2"], pp["b2"],
                pp["wf1"], pp["bf1"], pp["wf2"], pp["bf2"], pp["wf3"], pp["bf3"])
    return pl.pallas_call(
        functools.partial(_lenet_fused_kernel, n_batch=n_batch),
        out_shape=jax.ShapeDtypeStruct((n_batch, 10), jnp.float32),
        grid=(1,),
        in_specs=[_whole_spec(op.shape) for op in operands],
        out_specs=pl.BlockSpec((n_batch, 10), lambda i: (0, 0)),
        scratch_shapes=[
            pltpu.VMEM((m + 36, 6), jnp.float32),   # zero-padded pool1 for conv2 taps
            pltpu.VMEM((m + 9, 16), jnp.float32),   # zero-padded conv2 out for pool2
        ],
        compiler_params=pltpu.CompilerParams(dimension_semantics=("arbitrary",)),
    )(*operands)


# ----------------------------------------------------------------------------
# Wrapper-side input prep (conv1 im2col on the raw 16x16 input, grouped so that
# pool1 becomes a max over 4 matmul results inside the kernel)
# ----------------------------------------------------------------------------
def _conv1_patches(x):
    """x: (N, 1, 16, 16) -> (4, N*64, 25); group k=(wi,wj), rows (n, oi, oj)."""
    n = x.shape[0]
    xp = jnp.pad(x[:, 0], ((0, 0), (2, 2), (2, 2)))            # (N, 20, 20)
    taps = [xp[:, di:di + 16, dj:dj + 16] for di in range(5) for dj in range(5)]
    pat = jnp.stack(taps, axis=-1)                             # (N, 16, 16, 25)
    pat = pat.reshape(n, 8, 2, 8, 2, 25)                       # (n, oi, wi, oj, wj, t)
    pat = pat.transpose(2, 4, 0, 1, 3, 5)                      # (wi, wj, n, oi, oj, t)
    return pat.reshape(4, n * 64, 25)


@jax.jit
def net_forward(x, pp):
    p1 = _conv1_patches(x.astype(jnp.float32))
    return _fused_forward(p1, pp)


# ----------------------------------------------------------------------------
# Parameter init + one-time layout prep (all transposes/reshapes hoisted here)
# ----------------------------------------------------------------------------
def init_params(key):
    def uni(key, shape, fan_in):
        bound = 1.0 / jnp.sqrt(float(fan_in))
        return jax.random.uniform(key, shape, jnp.float32, -bound, bound)

    ks = jax.random.split(key, 10)
    return {
        "conv1_w": uni(ks[0], (6, 1, 5, 5), 1 * 5 * 5),
        "conv1_b": uni(ks[1], (6,), 1 * 5 * 5),
        "conv2_w": uni(ks[2], (16, 6, 5, 5), 6 * 5 * 5),
        "conv2_b": uni(ks[3], (16,), 6 * 5 * 5),
        "fc1_w": uni(ks[4], (120, 64), 64),
        "fc1_b": uni(ks[5], (120,), 64),
        "fc2_w": uni(ks[6], (84, 120), 120),
        "fc2_b": uni(ks[7], (84,), 120),
        "fc3_w": uni(ks[8], (10, 84), 84),
        "fc3_b": uni(ks[9], (10,), 84),
    }


def prepare_params(p):
    """One-time weight layout prep for the fused kernel (kept out of hot path)."""
    w1 = p["conv1_w"].reshape(6, 25).T                               # (25, 6)   [t, co]
    b1 = p["conv1_b"].reshape(1, 6)
    w2 = p["conv2_w"].transpose(2, 3, 1, 0).reshape(25, 6, 16)       # [t, ci, co]
    b2 = p["conv2_b"].reshape(1, 16)
    # fc1 input in PyTorch is the NCHW flatten (c*4 + h*2 + w); the kernel
    # gathers pool2 as (h, w)-major / channel-minor -> permute rows to match.
    wf1 = (p["fc1_w"].T.reshape(16, 2, 2, 120)
           .transpose(1, 2, 0, 3).reshape(4, 16, 120))               # [h*2+w, c, o]
    bf1 = p["fc1_b"].reshape(1, 120)
    wf2 = p["fc2_w"].T                                               # (120, 84)
    bf2 = p["fc2_b"].reshape(1, 84)
    wf3 = p["fc3_w"].T                                               # (84, 10)
    bf3 = p["fc3_b"].reshape(1, 10)
    return dict(w1=w1, b1=b1, w2=w2, b2=b2, wf1=wf1, bf1=bf1,
                wf2=wf2, bf2=bf2, wf3=wf3, bf3=bf3)


# ----------------------------------------------------------------------------
# Pure-JAX reference (on the raw PyTorch-layout parameters)
# ----------------------------------------------------------------------------
def net_forward_ref(x, p):
    dn = ("NCHW", "OIHW", "NCHW")
    y = jax.lax.conv_general_dilated(x, p["conv1_w"], (1, 1), ((2, 2), (2, 2)),
                                     dimension_numbers=dn)
    y = jnp.maximum(y + p["conv1_b"][None, :, None, None], 0.0)
    y = jax.lax.reduce_window(y, -jnp.inf, jax.lax.max,
                              (1, 1, 2, 2), (1, 1, 2, 2), "VALID")
    y = jax.lax.conv_general_dilated(y, p["conv2_w"], (1, 1), "VALID",
                                     dimension_numbers=dn)
    y = jnp.maximum(y + p["conv2_b"][None, :, None, None], 0.0)
    y = jax.lax.reduce_window(y, -jnp.inf, jax.lax.max,
                              (1, 1, 2, 2), (1, 1, 2, 2), "VALID")
    y = y.reshape(y.shape[0], -1)
    y = jnp.maximum(y @ p["fc1_w"].T + p["fc1_b"], 0.0)
    y = jnp.maximum(y @ p["fc2_w"].T + p["fc2_b"], 0.0)
    y = y @ p["fc3_w"].T + p["fc3_b"]
    return y


if __name__ == "__main__":
    key = jax.random.PRNGKey(0)
    kx, kp = jax.random.split(key)
    # LeNet geometry implied by fc1 = Linear(16*2*2, 120) -> input is 1x16x16.
    x = jax.random.normal(kx, (2, 1, 16, 16), dtype=jnp.float32)
    params = init_params(kp)
    prepped = prepare_params(params)          # one-time layout prep

    out = jax.block_until_ready(net_forward(x, prepped))
    ref = jax.block_until_ready(net_forward_ref(x, params))

    assert out.shape == (2, 10), out.shape
    assert jnp.allclose(out, ref, atol=1e-4, rtol=1e-4), "mismatch vs reference"
    print("KERNEL_OK")
</pallas_src>

<mosaic_0001>
module attributes {stable_mosaic.version = 11 : i64} {
  func.func @_lenet_fused_kernel(%arg0: i32, %arg1: memref<4x128x25xf32, #tpu.memory_space<vmem>>, %arg2: memref<25x6xf32, #tpu.memory_space<vmem>>, %arg3: memref<1x6xf32, #tpu.memory_space<vmem>>, %arg4: memref<25x6x16xf32, #tpu.memory_space<vmem>>, %arg5: memref<1x16xf32, #tpu.memory_space<vmem>>, %arg6: memref<4x16x120xf32, #tpu.memory_space<vmem>>, %arg7: memref<1x120xf32, #tpu.memory_space<vmem>>, %arg8: memref<120x84xf32, #tpu.memory_space<vmem>>, %arg9: memref<1x84xf32, #tpu.memory_space<vmem>>, %arg10: memref<84x10xf32, #tpu.memory_space<vmem>>, %arg11: memref<1x10xf32, #tpu.memory_space<vmem>>, %arg12: memref<2x10xf32, #tpu.memory_space<vmem>>, %arg13: memref<164x6xf32, #tpu.memory_space<vmem>>, %arg14: memref<137x16xf32, #tpu.memory_space<vmem>>) attributes {dimension_semantics = [#tpu.dimension_semantics<arbitrary>], iteration_bounds = array<i64: 1>, scalar_prefetch = 0 : i64, scratch_operands = 2 : i64, tpu.core_type = #tpu.core_type<tc>, window_params = [{pipeline_mode = #tpu.pipeline_mode<synchronous>, transform_indices = @transform_0, window_bounds = array<i64: 4, 128, 25>}, {pipeline_mode = #tpu.pipeline_mode<synchronous>, transform_indices = @transform_1, window_bounds = array<i64: 25, 6>}, {pipeline_mode = #tpu.pipeline_mode<synchronous>, transform_indices = @transform_2, window_bounds = array<i64: 1, 6>}, {pipeline_mode = #tpu.pipeline_mode<synchronous>, transform_indices = @transform_3, window_bounds = array<i64: 25, 6, 16>}, {pipeline_mode = #tpu.pipeline_mode<synchronous>, transform_indices = @transform_4, window_bounds = array<i64: 1, 16>}, {pipeline_mode = #tpu.pipeline_mode<synchronous>, transform_indices = @transform_5, window_bounds = array<i64: 4, 16, 120>}, {pipeline_mode = #tpu.pipeline_mode<synchronous>, transform_indices = @transform_6, window_bounds = array<i64: 1, 120>}, {pipeline_mode = #tpu.pipeline_mode<synchronous>, transform_indices = @transform_7, window_bounds = array<i64: 120, 84>}, {pipeline_mode = #tpu.pipeline_mode<synchronous>, transform_indices = @transform_8, window_bounds = array<i64: 1, 84>}, {pipeline_mode = #tpu.pipeline_mode<synchronous>, transform_indices = @transform_9, window_bounds = array<i64: 84, 10>}, {pipeline_mode = #tpu.pipeline_mode<synchronous>, transform_indices = @transform_10, window_bounds = array<i64: 1, 10>}, {pipeline_mode = #tpu.pipeline_mode<synchronous>, transform_indices = @transform_11, window_bounds = array<i64: 2, 10>}]} {
    %c0 = arith.constant 0 : index
    %c0_0 = arith.constant 0 : index
    %0 = vector.load %arg2[%c0, %c0_0] : memref<25x6xf32, #tpu.memory_space<vmem>>, vector<25x6xf32>
    %c0_1 = arith.constant 0 : index
    %c0_2 = arith.constant 0 : index
    %1 = vector.load %arg3[%c0_1, %c0_2] : memref<1x6xf32, #tpu.memory_space<vmem>>, vector<1x6xf32>
    %c0_3 = arith.constant 0 : index
    %c0_4 = arith.constant 0 : index
    %c0_5 = arith.constant 0 : index
    %2 = vector.load %arg1[%c0_3, %c0_4, %c0_5] : memref<4x128x25xf32, #tpu.memory_space<vmem>>, vector<1x128x25xf32>
    %3 = vector.shape_cast %2 : vector<1x128x25xf32> to vector<128x25xf32>
    %cst = arith.constant dense<0.000000e+00> : vector<128x6xf32>
    %4 = tpu.matmul %3, %0, %cst {dimension_numbers = #tpu.dot_dimension_numbers<[1], [0], [0], [1], [0, 0, 1, 1], [], []>} : vector<128x25xf32>, vector<25x6xf32>, vector<128x6xf32> -> vector<128x6xf32>
    %5 = vector.broadcast %1 : vector<1x6xf32> to vector<128x6xf32>
    %6 = arith.addf %4, %5 : vector<128x6xf32>
    %cst_6 = arith.constant 0.000000e+00 : f32
    %7 = vector.broadcast %cst_6 : f32 to vector<128x6xf32>
    %8 = arith.maximumf %6, %7 : vector<128x6xf32>
    %c1 = arith.constant 1 : index
    %c0_7 = arith.constant 0 : index
    %c0_8 = arith.constant 0 : index
    %9 = vector.load %arg1[%c1, %c0_7, %c0_8] : memref<4x128x25xf32, #tpu.memory_space<vmem>>, vector<1x128x25xf32>
    %10 = vector.shape_cast %9 : vector<1x128x25xf32> to vector<128x25xf32>
    %cst_9 = arith.constant dense<0.000000e+00> : vector<128x6xf32>
    %11 = tpu.matmul %10, %0, %cst_9 {dimension_numbers = #tpu.dot_dimension_numbers<[1], [0], [0], [1], [0, 0, 1, 1], [], []>} : vector<128x25xf32>, vector<25x6xf32>, vector<128x6xf32> -> vector<128x6xf32>
    %12 = vector.broadcast %1 : vector<1x6xf32> to vector<128x6xf32>
    %13 = arith.addf %11, %12 : vector<128x6xf32>
    %cst_10 = arith.constant 0.000000e+00 : f32
    %14 = vector.broadcast %cst_10 : f32 to vector<128x6xf32>
    %15 = arith.maximumf %13, %14 : vector<128x6xf32>
    %16 = arith.maximumf %8, %15 : vector<128x6xf32>
    %c2 = arith.constant 2 : index
    %c0_11 = arith.constant 0 : index
    %c0_12 = arith.constant 0 : index
    %17 = vector.load %arg1[%c2, %c0_11, %c0_12] : memref<4x128x25xf32, #tpu.memory_space<vmem>>, vector<1x128x25xf32>
    %18 = vector.shape_cast %17 : vector<1x128x25xf32> to vector<128x25xf32>
    %cst_13 = arith.constant dense<0.000000e+00> : vector<128x6xf32>
    %19 = tpu.matmul %18, %0, %cst_13 {dimension_numbers = #tpu.dot_dimension_numbers<[1], [0], [0], [1], [0, 0, 1, 1], [], []>} : vector<128x25xf32>, vector<25x6xf32>, vector<128x6xf32> -> vector<128x6xf32>
    %20 = vector.broadcast %1 : vector<1x6xf32> to vector<128x6xf32>
    %21 = arith.addf %19, %20 : vector<128x6xf32>
    %cst_14 = arith.constant 0.000000e+00 : f32
    %22 = vector.broadcast %cst_14 : f32 to vector<128x6xf32>
    %23 = arith.maximumf %21, %22 : vector<128x6xf32>
    %24 = arith.maximumf %16, %23 : vector<128x6xf32>
    %c3 = arith.constant 3 : index
    %c0_15 = arith.constant 0 : index
    %c0_16 = arith.constant 0 : index
    %25 = vector.load %arg1[%c3, %c0_15, %c0_16] : memref<4x128x25xf32, #tpu.memory_space<vmem>>, vector<1x128x25xf32>
    %26 = vector.shape_cast %25 : vector<1x128x25xf32> to vector<128x25xf32>
    %cst_17 = arith.constant dense<0.000000e+00> : vector<128x6xf32>
    %27 = tpu.matmul %26, %0, %cst_17 {dimension_numbers = #tpu.dot_dimension_numbers<[1], [0], [0], [1], [0, 0, 1, 1], [], []>} : vector<128x25xf32>, vector<25x6xf32>, vector<128x6xf32> -> vector<128x6xf32>
    %28 = vector.broadcast %1 : vector<1x6xf32> to vector<128x6xf32>
    %29 = arith.addf %27, %28 : vector<128x6xf32>
    %cst_18 = arith.constant 0.000000e+00 : f32
    %30 = vector.broadcast %cst_18 : f32 to vector<128x6xf32>
    %31 = arith.maximumf %29, %30 : vector<128x6xf32>
    %32 = arith.maximumf %24, %31 : vector<128x6xf32>
    %c0_19 = arith.constant 0 : index
    %c0_20 = arith.constant 0 : index
    %33 = vector.load %arg13[%c0_19, %c0_20] : memref<164x6xf32, #tpu.memory_space<vmem>>, vector<128x6xf32>
    tpu.vector_store %arg13[%c0_19, %c0_20], %32 {strides = array<i32>} : memref<164x6xf32, #tpu.memory_space<vmem>>, vector<128x6xf32>,
    %cst_21 = arith.constant 0.000000e+00 : f32
    %34 = vector.broadcast %cst_21 : f32 to vector<36x6xf32>
    %c128 = arith.constant 128 : index
    %c0_22 = arith.constant 0 : index
    %35 = vector.load %arg13[%c128, %c0_22] : memref<164x6xf32, #tpu.memory_space<vmem>>, vector<36x6xf32>
    tpu.vector_store %arg13[%c128, %c0_22], %34 {strides = array<i32>} : memref<164x6xf32, #tpu.memory_space<vmem>>, vector<36x6xf32>,
    %cst_23 = arith.constant 0.000000e+00 : f32
    %36 = vector.broadcast %cst_23 : f32 to vector<128x16xf32>
    %c0_24 = arith.constant 0 : index
    %c0_25 = arith.constant 0 : index
    %37 = vector.load %arg13[%c0_24, %c0_25] : memref<164x6xf32, #tpu.memory_space<vmem>>, vector<128x6xf32>
    %c0_26 = arith.constant 0 : index
    %c0_27 = arith.constant 0 : index
    %c0_28 = arith.constant 0 : index
    %38 = vector.load %arg4[%c0_26, %c0_27, %c0_28] : memref<25x6x16xf32, #tpu.memory_space<vmem>>, vector<1x6x16xf32>
    %39 = vector.shape_cast %38 : vector<1x6x16xf32> to vector<6x16xf32>
    %cst_29 = arith.constant dense<0.000000e+00> : vector<128x16xf32>
    %40 = tpu.matmul %37, %39, %cst_29 {dimension_numbers = #tpu.dot_dimension_numbers<[1], [0], [0], [1], [0, 0, 1, 1], [], []>} : vector<128x6xf32>, vector<6x16xf32>, vector<128x16xf32> -> vector<128x16xf32>
    %41 = arith.addf %36, %40 : vector<128x16xf32>
    %c1_30 = arith.constant 1 : index
    %c0_31 = arith.constant 0 : index
    %42 = vector.load %arg13[%c1_30, %c0_31] : memref<164x6xf32, #tpu.memory_space<vmem>>, vector<128x6xf32>
    %c1_32 = arith.constant 1 : index
    %c0_33 = arith.constant 0 : index
    %c0_34 = arith.constant 0 : index
    %43 = vector.load %arg4[%c1_32, %c0_33, %c0_34] : memref<25x6x16xf32, #tpu.memory_space<vmem>>, vector<1x6x16xf32>
    %44 = vector.shape_cast %43 : vector<1x6x16xf32> to vector<6x16xf32>
    %cst_35 = arith.constant dense<0.000000e+00> : vector<128x16xf32>
    %45 = tpu.matmul %42, %44, %cst_35 {dimension_numbers = #tpu.dot_dimension_numbers<[1], [0], [0], [1], [0, 0, 1, 1], [], []>} : vector<128x6xf32>, vector<6x16xf32>, vector<128x16xf32> -> vector<128x16xf32>
    %46 = arith.addf %41, %45 : vector<128x16xf32>
    %c2_36 = arith.constant 2 : index
    %c0_37 = arith.constant 0 : index
    %47 = vector.load %arg13[%c2_36, %c0_37] : memref<164x6xf32, #tpu.memory_space<vmem>>, vector<128x6xf32>
    %c2_38 = arith.constant 2 : index
    %c0_39 = arith.constant 0 : index
    %c0_40 = arith.constant 0 : index
    %48 = vector.load %arg4[%c2_38, %c0_39, %c0_40] : memref<25x6x16xf32, #tpu.memory_space<vmem>>, vector<1x6x16xf32>
    %49 = vector.shape_cast %48 : vector<1x6x16xf32> to vector<6x16xf32>
    %cst_41 = arith.constant dense<0.000000e+00> : vector<128x16xf32>
    %50 = tpu.matmul %47, %49, %cst_41 {dimension_numbers = #tpu.dot_dimension_numbers<[1], [0], [0], [1], [0, 0, 1, 1], [], []>} : vector<128x6xf32>, vector<6x16xf32>, vector<128x16xf32> -> vector<128x16xf32>
    %51 = arith.addf %46, %50 : vector<128x16xf32>
    %c3_42 = arith.constant 3 : index
    %c0_43 = arith.constant 0 : index
    %52 = vector.load %arg13[%c3_42, %c0_43] : memref<164x6xf32, #tpu.memory_space<vmem>>, vector<128x6xf32>
    %c3_44 = arith.constant 3 : index
    %c0_45 = arith.constant 0 : index
    %c0_46 = arith.constant 0 : index
    %53 = vector.load %arg4[%c3_44, %c0_45, %c0_46] : memref<25x6x16xf32, #tpu.memory_space<vmem>>, vector<1x6x16xf32>
    %54 = vector.shape_cast %53 : vector<1x6x16xf32> to vector<6x16xf32>
    %cst_47 = arith.constant dense<0.000000e+00> : vector<128x16xf32>
    %55 = tpu.matmul %52, %54, %cst_47 {dimension_numbers = #tpu.dot_dimension_numbers<[1], [0], [0], [1], [0, 0, 1, 1], [], []>} : vector<128x6xf32>, vector<6x16xf32>, vector<128x16xf32> -> vector<128x16xf32>
    %56 = arith.addf %51, %55 : vector<128x16xf32>
    %c4 = arith.constant 4 : index
    %c0_48 = arith.constant 0 : index
    %57 = vector.load %arg13[%c4, %c0_48] : memref<164x6xf32, #tpu.memory_space<vmem>>, vector<128x6xf32>
    %c4_49 = arith.constant 4 : index
    %c0_50 = arith.constant 0 : index
    %c0_51 = arith.constant 0 : index
    %58 = vector.load %arg4[%c4_49, %c0_50, %c0_51] : memref<25x6x16xf32, #tpu.memory_space<vmem>>, vector<1x6x16xf32>
    %59 = vector.shape_cast %58 : vector<1x6x16xf32> to vector<6x16xf32>
    %cst_52 = arith.constant dense<0.000000e+00> : vector<128x16xf32>
    %60 = tpu.matmul %57, %59, %cst_52 {dimension_numbers = #tpu.dot_dimension_numbers<[1], [0], [0], [1], [0, 0, 1, 1], [], []>} : vector<128x6xf32>, vector<6x16xf32>, vector<128x16xf32> -> vector<128x16xf32>
    %61 = arith.addf %56, %60 : vector<128x16xf32>
    %c8 = arith.constant 8 : index
    %c0_53 = arith.constant 0 : index
    %62 = vector.load %arg13[%c8, %c0_53] : memref<164x6xf32, #tpu.memory_space<vmem>>, vector<128x6xf32>
    %c5 = arith.constant 5 : index
    %c0_54 = arith.constant 0 : index
    %c0_55 = arith.constant 0 : index
    %63 = vector.load %arg4[%c5, %c0_54, %c0_55] : memref<25x6x16xf32, #tpu.memory_space<vmem>>, vector<1x6x16xf32>
    %64 = vector.shape_cast %63 : vector<1x6x16xf32> to vector<6x16xf32>
    %cst_56 = arith.constant dense<0.000000e+00> : vector<128x16xf32>
    %65 = tpu.matmul %62, %64, %cst_56 {dimension_numbers = #tpu.dot_dimension_numbers<[1], [0], [0], [1], [0, 0, 1, 1], [], []>} : vector<128x6xf32>, vector<6x16xf32>, vector<128x16xf32> -> vector<128x16xf32>
    %66 = arith.addf %61, %65 : vector<128x16xf32>
    %c9 = arith.constant 9 : index
    %c0_57 = arith.constant 0 : index
    %67 = vector.load %arg13[%c9, %c0_57] : memref<164x6xf32, #tpu.memory_space<vmem>>, vector<128x6xf32>
    %c6 = arith.constant 6 : index
    %c0_58 = arith.constant 0 : index
    %c0_59 = arith.constant 0 : index
    %68 = vector.load %arg4[%c6, %c0_58, %c0_59] : memref<25x6x16xf32, #tpu.memory_space<vmem>>, vector<1x6x16xf32>
    %69 = vector.shape_cast %68 : vector<1x6x16xf32> to vector<6x16xf32>
    %cst_60 = arith.constant dense<0.000000e+00> : vector<128x16xf32>
    %70 = tpu.matmul %67, %69, %cst_60 {dimension_numbers = #tpu.dot_dimension_numbers<[1], [0], [0], [1], [0, 0, 1, 1], [], []>} : vector<128x6xf32>, vector<6x16xf32>, vector<128x16xf32> -> vector<128x16xf32>
    %71 = arith.addf %66, %70 : vector<128x16xf32>
    %c10 = arith.constant 10 : index
    %c0_61 = arith.constant 0 : index
    %72 = vector.load %arg13[%c10, %c0_61] : memref<164x6xf32, #tpu.memory_space<vmem>>, vector<128x6xf32>
    %c7 = arith.constant 7 : index
    %c0_62 = arith.constant 0 : index
    %c0_63 = arith.constant 0 : index
    %73 = vector.load %arg4[%c7, %c0_62, %c0_63] : memref<25x6x16xf32, #tpu.memory_space<vmem>>, vector<1x6x16xf32>
    %74 = vector.shape_cast %73 : vector<1x6x16xf32> to vector<6x16xf32>
    %cst_64 = arith.constant dense<0.000000e+00> : vector<128x16xf32>
    %75 = tpu.matmul %72, %74, %cst_64 {dimension_numbers = #tpu.dot_dimension_numbers<[1], [0], [0], [1], [0, 0, 1, 1], [], []>} : vector<128x6xf32>, vector<6x16xf32>, vector<128x16xf32> -> vector<128x16xf32>
    %76 = arith.addf %71, %75 : vector<128x16xf32>
    %c11 = arith.constant 11 : index
    %c0_65 = arith.constant 0 : index
    %77 = vector.load %arg13[%c11, %c0_65] : memref<164x6xf32, #tpu.memory_space<vmem>>, vector<128x6xf32>
    %c8_66 = arith.constant 8 : index
    %c0_67 = arith.constant 0 : index
    %c0_68 = arith.constant 0 : index
    %78 = vector.load %arg4[%c8_66, %c0_67, %c0_68] : memref<25x6x16xf32, #tpu.memory_space<vmem>>, vector<1x6x16xf32>
    %79 = vector.shape_cast %78 : vector<1x6x16xf32> to vector<6x16xf32>
    %cst_69 = arith.constant dense<0.000000e+00> : vector<128x16xf32>
    %80 = tpu.matmul %77, %79, %cst_69 {dimension_numbers = #tpu.dot_dimension_numbers<[1], [0], [0], [1], [0, 0, 1, 1], [], []>} : vector<128x6xf32>, vector<6x16xf32>, vector<128x16xf32> -> vector<128x16xf32>
    %81 = arith.addf %76, %80 : vector<128x16xf32>
    %c12 = arith.constant 12 : index
    %c0_70 = arith.constant 0 : index
    %82 = vector.load %arg13[%c12, %c0_70] : memref<164x6xf32, #tpu.memory_space<vmem>>, vector<128x6xf32>
    %c9_71 = arith.constant 9 : index
    %c0_72 = arith.constant 0 : index
    %c0_73 = arith.constant 0 : index
    %83 = vector.load %arg4[%c9_71, %c0_72, %c0_73] : memref<25x6x16xf32, #tpu.memory_space<vmem>>, vector<1x6x16xf32>
    %84 = vector.shape_cast %83 : vector<1x6x16xf32> to vector<6x16xf32>
    %cst_74 = arith.constant dense<0.000000e+00> : vector<128x16xf32>
    %85 = tpu.matmul %82, %84, %cst_74 {dimension_numbers = #tpu.dot_dimension_numbers<[1], [0], [0], [1], [0, 0, 1, 1], [], []>} : vector<128x6xf32>, vector<6x16xf32>, vector<128x16xf32> -> vector<128x16xf32>
    %86 = arith.addf %81, %85 : vector<128x16xf32>
    %c16 = arith.constant 16 : index
    %c0_75 = arith.constant 0 : index
    %87 = vector.load %arg13[%c16, %c0_75] : memref<164x6xf32, #tpu.memory_space<vmem>>, vector<128x6xf32>
    %c10_76 = arith.constant 10 : index
    %c0_77 = arith.constant 0 : index
    %c0_78 = arith.constant 0 : index
    %88 = vector.load %arg4[%c10_76, %c0_77, %c0_78] : memref<25x6x16xf32, #tpu.memory_space<vmem>>, vector<1x6x16xf32>
    %89 = vector.shape_cast %88 : vector<1x6x16xf32> to vector<6x16xf32>
    %cst_79 = arith.constant dense<0.000000e+00> : vector<128x16xf32>
    %90 = tpu.matmul %87, %89, %cst_79 {dimension_numbers = #tpu.dot_dimension_numbers<[1], [0], [0], [1], [0, 0, 1, 1], [], []>} : vector<128x6xf32>, vector<6x16xf32>, vector<128x16xf32> -> vector<128x16xf32>
    %91 = arith.addf %86, %90 : vector<128x16xf32>
    %c17 = arith.constant 17 : index
    %c0_80 = arith.constant 0 : index
    %92 = vector.load %arg13[%c17, %c0_80] : memref<164x6xf32, #tpu.memory_space<vmem>>, vector<128x6xf32>
    %c11_81 = arith.constant 11 : index
    %c0_82 = arith.constant 0 : index
    %c0_83 = arith.constant 0 : index
    %93 = vector.load %arg4[%c11_81, %c0_82, %c0_83] : memref<25x6x16xf32, #tpu.memory_space<vmem>>, vector<1x6x16xf32>
    %94 = vector.shape_cast %93 : vector<1x6x16xf32> to vector<6x16xf32>
    %cst_84 = arith.constant dense<0.000000e+00> : vector<128x16xf32>
    %95 = tpu.matmul %92, %94, %cst_84 {dimension_numbers = #tpu.dot_dimension_numbers<[1], [0], [0], [1], [0, 0, 1, 1], [], []>} : vector<128x6xf32>, vector<6x16xf32>, vector<128x16xf32> -> vector<128x16xf32>
    %96 = arith.addf %91, %95 : vector<128x16xf32>
    %c18 = arith.constant 18 : index
    %c0_85 = arith.constant 0 : index
    %97 = vector.load %arg13[%c18, %c0_85] : memref<164x6xf32, #tpu.memory_space<vmem>>, vector<128x6xf32>
    %c12_86 = arith.constant 12 : index
    %c0_87 = arith.constant 0 : index
    %c0_88 = arith.constant 0 : index
    %98 = vector.load %arg4[%c12_86, %c0_87, %c0_88] : memref<25x6x16xf32, #tpu.memory_space<vmem>>, vector<1x6x16xf32>
    %99 = vector.shape_cast %98 : vector<1x6x16xf32> to vector<6x16xf32>
    %cst_89 = arith.constant dense<0.000000e+00> : vector<128x16xf32>
    %100 = tpu.matmul %97, %99, %cst_89 {dimension_numbers = #tpu.dot_dimension_numbers<[1], [0], [0], [1], [0, 0, 1, 1], [], []>} : vector<128x6xf32>, vector<6x16xf32>, vector<128x16xf32> -> vector<128x16xf32>
    %101 = arith.addf %96, %100 : vector<128x16xf32>
    %c19 = arith.constant 19 : index
    %c0_90 = arith.constant 0 : index
    %102 = vector.load %arg13[%c19, %c0_90] : memref<164x6xf32, #tpu.memory_space<vmem>>, vector<128x6xf32>
    %c13 = arith.constant 13 : index
    %c0_91 = arith.constant 0 : index
    %c0_92 = arith.constant 0 : index
    %103 = vector.load %arg4[%c13, %c0_91, %c0_92] : memref<25x6x16xf32, #tpu.memory_space<vmem>>, vector<1x6x16xf32>
    %104 = vector.shape_cast %103 : vector<1x6x16xf32> to vector<6x16xf32>
    %cst_93 = arith.constant dense<0.000000e+00> : vector<128x16xf32>
    %105 = tpu.matmul %102, %104, %cst_93 {dimension_numbers = #tpu.dot_dimension_numbers<[1], [0], [0], [1], [0, 0, 1, 1], [], []>} : vector<128x6xf32>, vector<6x16xf32>, vector<128x16xf32> -> vector<128x16xf32>
    %106 = arith.addf %101, %105 : vector<128x16xf32>
    %c20 = arith.constant 20 : index
    %c0_94 = arith.constant 0 : index
    %107 = vector.load %arg13[%c20, %c0_94] : memref<164x6xf32, #tpu.memory_space<vmem>>, vector<128x6xf32>
    %c14 = arith.constant 14 : index
    %c0_95 = arith.constant 0 : index
    %c0_96 = arith.constant 0 : index
    %108 = vector.load %arg4[%c14, %c0_95, %c0_96] : memref<25x6x16xf32, #tpu.memory_space<vmem>>, vector<1x6x16xf32>
    %109 = vector.shape_cast %108 : vector<1x6x16xf32> to vector<6x16xf32>
    %cst_97 = arith.constant dense<0.000000e+00> : vector<128x16xf32>
    %110 = tpu.matmul %107, %109, %cst_97 {dimension_numbers = #tpu.dot_dimension_numbers<[1], [0], [0], [1], [0, 0, 1, 1], [], []>} : vector<128x6xf32>, vector<6x16xf32>, vector<128x16xf32> -> vector<128x16xf32>
    %111 = arith.addf %106, %110 : vector<128x16xf32>
    %c24 = arith.constant 24 : index
    %c0_98 = arith.constant 0 : index
    %112 = vector.load %arg13[%c24, %c0_98] : memref<164x6xf32, #tpu.memory_space<vmem>>, vector<128x6xf32>
    %c15 = arith.constant 15 : index
    %c0_99 = arith.constant 0 : index
    %c0_100 = arith.constant 0 : index
    %113 = vector.load %arg4[%c15, %c0_99, %c0_100] : memref<25x6x16xf32, #tpu.memory_space<vmem>>, vector<1x6x16xf32>
    %114 = vector.shape_cast %113 : vector<1x6x16xf32> to vector<6x16xf32>
    %cst_101 = arith.constant dense<0.000000e+00> : vector<128x16xf32>
    %115 = tpu.matmul %112, %114, %cst_101 {dimension_numbers = #tpu.dot_dimension_numbers<[1], [0], [0], [1], [0, 0, 1, 1], [], []>} : vector<128x6xf32>, vector<6x16xf32>, vector<128x16xf32> -> vector<128x16xf32>
    %116 = arith.addf %111, %115 : vector<128x16xf32>
    %c25 = arith.constant 25 : index
    %c0_102 = arith.constant 0 : index
    %117 = vector.load %arg13[%c25, %c0_102] : memref<164x6xf32, #tpu.memory_space<vmem>>, vector<128x6xf32>
    %c16_103 = arith.constant 16 : index
    %c0_104 = arith.constant 0 : index
    %c0_105 = arith.constant 0 : index
    %118 = vector.load %arg4[%c16_103, %c0_104, %c0_105] : memref<25x6x16xf32, #tpu.memory_space<vmem>>, vector<1x6x16xf32>
    %119 = vector.shape_cast %118 : vector<1x6x16xf32> to vector<6x16xf32>
    %cst_106 = arith.constant dense<0.000000e+00> : vector<128x16xf32>
    %120 = tpu.matmul %117, %119, %cst_106 {dimension_numbers = #tpu.dot_dimension_numbers<[1], [0], [0], [1], [0, 0, 1, 1], [], []>} : vector<128x6xf32>, vector<6x16xf32>, vector<128x16xf32> -> vector<128x16xf32>
    %121 = arith.addf %116, %120 : vector<128x16xf32>
    %c26 = arith.constant 26 : index
    %c0_107 = arith.constant 0 : index
    %122 = vector.load %arg13[%c26, %c0_107] : memref<164x6xf32, #tpu.memory_space<vmem>>, vector<128x6xf32>
    %c17_108 = arith.constant 17 : index
    %c0_109 = arith.constant 0 : index
    %c0_110 = arith.constant 0 : index
    %123 = vector.load %arg4[%c17_108, %c0_109, %c0_110] : memref<25x6x16xf32, #tpu.memory_space<vmem>>, vector<1x6x16xf32>
    %124 = vector.shape_cast %123 : vector<1x6x16xf32> to vector<6x16xf32>
    %cst_111 = arith.constant dense<0.000000e+00> : vector<128x16xf32>
    %125 = tpu.matmul %122, %124, %cst_111 {dimension_numbers = #tpu.dot_dimension_numbers<[1], [0], [0], [1], [0, 0, 1, 1], [], []>} : vector<128x6xf32>, vector<6x16xf32>, vector<128x16xf32> -> vector<128x16xf32>
    %126 = arith.addf %121, %125 : vector<128x16xf32>
    %c27 = arith.constant 27 : index
    %c0_112 = arith.constant 0 : index
    %127 = vector.load %arg13[%c27, %c0_112] : memref<164x6xf32, #tpu.memory_space<vmem>>, vector<128x6xf32>
    %c18_113 = arith.constant 18 : index
    %c0_114 = arith.constant 0 : index
    %c0_115 = arith.constant 0 : index
    %128 = vector.load %arg4[%c18_113, %c0_114, %c0_115] : memref<25x6x16xf32, #tpu.memory_space<vmem>>, vector<1x6x16xf32>
    %129 = vector.shape_cast %128 : vector<1x6x16xf32> to vector<6x16xf32>
    %cst_116 = arith.constant dense<0.000000e+00> : vector<128x16xf32>
    %130 = tpu.matmul %127, %129, %cst_116 {dimension_numbers = #tpu.dot_dimension_numbers<[1], [0], [0], [1], [0, 0, 1, 1], [], []>} : vector<128x6xf32>, vector<6x16xf32>, vector<128x16xf32> -> vector<128x16xf32>
    %131 = arith.addf %126, %130 : vector<128x16xf32>
    %c28 = arith.constant 28 : index
    %c0_117 = arith.constant 0 : index
    %132 = vector.load %arg13[%c28, %c0_117] : memref<164x6xf32, #tpu.memory_space<vmem>>, vector<128x6xf32>
    %c19_118 = arith.constant 19 : index
    %c0_119 = arith.constant 0 : index
    %c0_120 = arith.constant 0 : index
    %133 = vector.load %arg4[%c19_118, %c0_119, %c0_120] : memref<25x6x16xf32, #tpu.memory_space<vmem>>, vector<1x6x16xf32>
    %134 = vector.shape_cast %133 : vector<1x6x16xf32> to vector<6x16xf32>
    %cst_121 = arith.constant dense<0.000000e+00> : vector<128x16xf32>
    %135 = tpu.matmul %132, %134, %cst_121 {dimension_numbers = #tpu.dot_dimension_numbers<[1], [0], [0], [1], [0, 0, 1, 1], [], []>} : vector<128x6xf32>, vector<6x16xf32>, vector<128x16xf32> -> vector<128x16xf32>
    %136 = arith.addf %131, %135 : vector<128x16xf32>
    %c32 = arith.constant 32 : index
    %c0_122 = arith.constant 0 : index
    %137 = vector.load %arg13[%c32, %c0_122] : memref<164x6xf32, #tpu.memory_space<vmem>>, vector<128x6xf32>
    %c20_123 = arith.constant 20 : index
    %c0_124 = arith.constant 0 : index
    %c0_125 = arith.constant 0 : index
    %138 = vector.load %arg4[%c20_123, %c0_124, %c0_125] : memref<25x6x16xf32, #tpu.memory_space<vmem>>, vector<1x6x16xf32>
    %139 = vector.shape_cast %138 : vector<1x6x16xf32> to vector<6x16xf32>
    %cst_126 = arith.constant dense<0.000000e+00> : vector<128x16xf32>
    %140 = tpu.matmul %137, %139, %cst_126 {dimension_numbers = #tpu.dot_dimension_numbers<[1], [0], [0], [1], [0, 0, 1, 1], [], []>} : vector<128x6xf32>, vector<6x16xf32>, vector<128x16xf32> -> vector<128x16xf32>
    %141 = arith.addf %136, %140 : vector<128x16xf32>
    %c33 = arith.constant 33 : index
    %c0_127 = arith.constant 0 : index
    %142 = vector.load %arg13[%c33, %c0_127] : memref<164x6xf32, #tpu.memory_space<vmem>>, vector<128x6xf32>
    %c21 = arith.constant 21 : index
    %c0_128 = arith.constant 0 : index
    %c0_129 = arith.constant 0 : index
    %143 = vector.load %arg4[%c21, %c0_128, %c0_129] : memref<25x6x16xf32, #tpu.memory_space<vmem>>, vector<1x6x16xf32>
    %144 = vector.shape_cast %143 : vector<1x6x16xf32> to vector<6x16xf32>
    %cst_130 = arith.constant dense<0.000000e+00> : vector<128x16xf32>
    %145 = tpu.matmul %142, %144, %cst_130 {dimension_numbers = #tpu.dot_dimension_numbers<[1], [0], [0], [1], [0, 0, 1, 1], [], []>} : vector<128x6xf32>, vector<6x16xf32>, vector<128x16xf32> -> vector<128x16xf32>
    %146 = arith.addf %141, %145 : vector<128x16xf32>
    %c34 = arith.constant 34 : index
    %c0_131 = arith.constant 0 : index
    %147 = vector.load %arg13[%c34, %c0_131] : memref<164x6xf32, #tpu.memory_space<vmem>>, vector<128x6xf32>
    %c22 = arith.constant 22 : index
    %c0_132 = arith.constant 0 : index
    %c0_133 = arith.constant 0 : index
    %148 = vector.load %arg4[%c22, %c0_132, %c0_133] : memref<25x6x16xf32, #tpu.memory_space<vmem>>, vector<1x6x16xf32>
    %149 = vector.shape_cast %148 : vector<1x6x16xf32> to vector<6x16xf32>
    %cst_134 = arith.constant dense<0.000000e+00> : vector<128x16xf32>
    %150 = tpu.matmul %147, %149, %cst_134 {dimension_numbers = #tpu.dot_dimension_numbers<[1], [0], [0], [1], [0, 0, 1, 1], [], []>} : vector<128x6xf32>, vector<6x16xf32>, vector<128x16xf32> -> vector<128x16xf32>
    %151 = arith.addf %146, %150 : vector<128x16xf32>
    %c35 = arith.constant 35 : index
    %c0_135 = arith.constant 0 : index
    %152 = vector.load %arg13[%c35, %c0_135] : memref<164x6xf32, #tpu.memory_space<vmem>>, vector<128x6xf32>
    %c23 = arith.constant 23 : index
    %c0_136 = arith.constant 0 : index
    %c0_137 = arith.constant 0 : index
    %153 = vector.load %arg4[%c23, %c0_136, %c0_137] : memref<25x6x16xf32, #tpu.memory_space<vmem>>, vector<1x6x16xf32>
    %154 = vector.shape_cast %153 : vector<1x6x16xf32> to vector<6x16xf32>
    %cst_138 = arith.constant dense<0.000000e+00> : vector<128x16xf32>
    %155 = tpu.matmul %152, %154, %cst_138 {dimension_numbers = #tpu.dot_dimension_numbers<[1], [0], [0], [1], [0, 0, 1, 1], [], []>} : vector<128x6xf32>, vector<6x16xf32>, vector<128x16xf32> -> vector<128x16xf32>
    %156 = arith.addf %151, %155 : vector<128x16xf32>
    %c36 = arith.constant 36 : index
    %c0_139 = arith.constant 0 : index
    %157 = vector.load %arg13[%c36, %c0_139] : memref<164x6xf32, #tpu.memory_space<vmem>>, vector<128x6xf32>
    %c24_140 = arith.constant 24 : index
    %c0_141 = arith.constant 0 : index
    %c0_142 = arith.constant 0 : index
    %158 = vector.load %arg4[%c24_140, %c0_141, %c0_142] : memref<25x6x16xf32, #tpu.memory_space<vmem>>, vector<1x6x16xf32>
    %159 = vector.shape_cast %158 : vector<1x6x16xf32> to vector<6x16xf32>
    %cst_143 = arith.constant dense<0.000000e+00> : vector<128x16xf32>
    %160 = tpu.matmul %157, %159, %cst_143 {dimension_numbers = #tpu.dot_dimension_numbers<[1], [0], [0], [1], [0, 0, 1, 1], [], []>} : vector<128x6xf32>, vector<6x16xf32>, vector<128x16xf32> -> vector<128x16xf32>
    %161 = arith.addf %156, %160 : vector<128x16xf32>
    %c0_144 = arith.constant 0 : index
    %c0_145 = arith.constant 0 : index
    %162 = vector.load %arg5[%c0_144, %c0_145] : memref<1x16xf32, #tpu.memory_space<vmem>>, vector<1x16xf32>
    %163 = vector.broadcast %162 : vector<1x16xf32> to vector<128x16xf32>
    %164 = arith.addf %161, %163 : vector<128x16xf32>
    %cst_146 = arith.constant 0.000000e+00 : f32
    %165 = vector.broadcast %cst_146 : f32 to vector<128x16xf32>
    %166 = arith.maximumf %164, %165 : vector<128x16xf32>
    %c0_147 = arith.constant 0 : index
    %c0_148 = arith.constant 0 : index
    %167 = vector.load %arg14[%c0_147, %c0_148] : memref<137x16xf32, #tpu.memory_space<vmem>>, vector<128x16xf32>
    tpu.vector_store %arg14[%c0_147, %c0_148], %166 {strides = array<i32>} : memref<137x16xf32, #tpu.memory_space<vmem>>, vector<128x16xf32>,
    %cst_149 = arith.constant 0.000000e+00 : f32
    %168 = vector.broadcast %cst_149 : f32 to vector<9x16xf32>
    %c128_150 = arith.constant 128 : index
    %c0_151 = arith.constant 0 : index
    %169 = vector.load %arg14[%c128_150, %c0_151] : memref<137x16xf32, #tpu.memory_space<vmem>>, vector<9x16xf32>
    tpu.vector_store %arg14[%c128_150, %c0_151], %168 {strides = array<i32>} : memref<137x16xf32, #tpu.memory_space<vmem>>, vector<9x16xf32>,
    %c0_152 = arith.constant 0 : index
    %c0_153 = arith.constant 0 : index
    %170 = vector.load %arg14[%c0_152, %c0_153] : memref<137x16xf32, #tpu.memory_space<vmem>>, vector<128x16xf32>
    %c1_154 = arith.constant 1 : index
    %c0_155 = arith.constant 0 : index
    %171 = vector.load %arg14[%c1_154, %c0_155] : memref<137x16xf32, #tpu.memory_space<vmem>>, vector<128x16xf32>
    %172 = arith.maximumf %170, %171 : vector<128x16xf32>
    %c8_156 = arith.constant 8 : index
    %c0_157 = arith.constant 0 : index
    %173 = vector.load %arg14[%c8_156, %c0_157] : memref<137x16xf32, #tpu.memory_space<vmem>>, vector<128x16xf32>
    %c9_158 = arith.constant 9 : index
    %c0_159 = arith.constant 0 : index
    %174 = vector.load %arg14[%c9_158, %c0_159] : memref<137x16xf32, #tpu.memory_space<vmem>>, vector<128x16xf32>
    %175 = arith.maximumf %173, %174 : vector<128x16xf32>
    %176 = arith.maximumf %172, %175 : vector<128x16xf32>
    %177 = tpu.iota {dimensions = array<i32: 1>} : vector<2x128xi32>
    %178 = tpu.iota {dimensions = array<i32: 0>} : vector<2x128xi32>
    %c64_i32 = arith.constant 64 : i32
    %179 = vector.broadcast %c64_i32 : i32 to vector<2x128xi32>
    %180 = arith.muli %178, %179 : vector<2x128xi32>
    %cst_160 = arith.constant 0.000000e+00 : f32
    %181 = vector.broadcast %cst_160 : f32 to vector<2x120xf32>
    %c0_i32 = arith.constant 0 : i32
    %182 = vector.broadcast %c0_i32 : i32 to vector<2x128xi32>
    %183 = arith.addi %180, %182 : vector<2x128xi32>
    %184 = arith.cmpi eq, %177, %183 : vector<2x128xi32>
    %cst_161 = arith.constant 1.000000e+00 : f32
    %cst_162 = arith.constant 0.000000e+00 : f32
    %185 = vector.broadcast %cst_161 : f32 to vector<2x128xf32>
    %186 = vector.broadcast %cst_162 : f32 to vector<2x128xf32>
    %187 = arith.select %184, %185, %186 : vector<2x128xi1>, vector<2x128xf32>
    %cst_163 = arith.constant dense<0.000000e+00> : vector<2x16xf32>
    %188 = tpu.matmul %187, %176, %cst_163 {dimension_numbers = #tpu.dot_dimension_numbers<[1], [0], [0], [1], [0, 0, 1, 1], [], []>} : vector<2x128xf32>, vector<128x16xf32>, vector<2x16xf32> -> vector<2x16xf32>
    %c0_164 = arith.constant 0 : index
    %c0_165 = arith.constant 0 : index
    %c0_166 = arith.constant 0 : index
    %189 = vector.load %arg6[%c0_164, %c0_165, %c0_166] : memref<4x16x120xf32, #tpu.memory_space<vmem>>, vector<1x16x120xf32>
    %190 = vector.shape_cast %189 : vector<1x16x120xf32> to vector<16x120xf32>
    %cst_167 = arith.constant dense<0.000000e+00> : vector<2x120xf32>
    %191 = tpu.matmul %188, %190, %cst_167 {dimension_numbers = #tpu.dot_dimension_numbers<[1], [0], [0], [1], [0, 0, 1, 1], [], []>} : vector<2x16xf32>, vector<16x120xf32>, vector<2x120xf32> -> vector<2x120xf32>
    %192 = arith.addf %181, %191 : vector<2x120xf32>
    %c2_i32 = arith.constant 2 : i32
    %193 = vector.broadcast %c2_i32 : i32 to vector<2x128xi32>
    %194 = arith.addi %180, %193 : vector<2x128xi32>
    %195 = arith.cmpi eq, %177, %194 : vector<2x128xi32>
    %cst_168 = arith.constant 1.000000e+00 : f32
    %cst_169 = arith.constant 0.000000e+00 : f32
    %196 = vector.broadcast %cst_168 : f32 to vector<2x128xf32>
    %197 = vector.broadcast %cst_169 : f32 to vector<2x128xf32>
    %198 = arith.select %195, %196, %197 : vector<2x128xi1>, vector<2x128xf32>
    %cst_170 = arith.constant dense<0.000000e+00> : vector<2x16xf32>
    %199 = tpu.matmul %198, %176, %cst_170 {dimension_numbers = #tpu.dot_dimension_numbers<[1], [0], [0], [1], [0, 0, 1, 1], [], []>} : vector<2x128xf32>, vector<128x16xf32>, vector<2x16xf32> -> vector<2x16xf32>
    %c1_171 = arith.constant 1 : index
    %c0_172 = arith.constant 0 : index
    %c0_173 = arith.constant 0 : index
    %200 = vector.load %arg6[%c1_171, %c0_172, %c0_173] : memref<4x16x120xf32, #tpu.memory_space<vmem>>, vector<1x16x120xf32>
    %201 = vector.shape_cast %200 : vector<1x16x120xf32> to vector<16x120xf32>
    %cst_174 = arith.constant dense<0.000000e+00> : vector<2x120xf32>
    %202 = tpu.matmul %199, %201, %cst_174 {dimension_numbers = #tpu.dot_dimension_numbers<[1], [0], [0], [1], [0, 0, 1, 1], [], []>} : vector<2x16xf32>, vector<16x120xf32>, vector<2x120xf32> -> vector<2x120xf32>
    %203 = arith.addf %192, %202 : vector<2x120xf32>
    %c16_i32 = arith.constant 16 : i32
    %204 = vector.broadcast %c16_i32 : i32 to vector<2x128xi32>
    %205 = arith.addi %180, %204 : vector<2x128xi32>
    %206 = arith.cmpi eq, %177, %205 : vector<2x128xi32>
    %cst_175 = arith.constant 1.000000e+00 : f32
    %cst_176 = arith.constant 0.000000e+00 : f32
    %207 = vector.broadcast %cst_175 : f32 to vector<2x128xf32>
    %208 = vector.broadcast %cst_176 : f32 to vector<2x128xf32>
    %209 = arith.select %206, %207, %208 : vector<2x128xi1>, vector<2x128xf32>
    %cst_177 = arith.constant dense<0.000000e+00> : vector<2x16xf32>
    %210 = tpu.matmul %209, %176, %cst_177 {dimension_numbers = #tpu.dot_dimension_numbers<[1], [0], [0], [1], [0, 0, 1, 1], [], []>} : vector<2x128xf32>, vector<128x16xf32>, vector<2x16xf32> -> vector<2x16xf32>
    %c2_178 = arith.constant 2 : index
    %c0_179 = arith.constant 0 : index
    %c0_180 = arith.constant 0 : index
    %211 = vector.load %arg6[%c2_178, %c0_179, %c0_180] : memref<4x16x120xf32, #tpu.memory_space<vmem>>, vector<1x16x120xf32>
    %212 = vector.shape_cast %211 : vector<1x16x120xf32> to vector<16x120xf32>
    %cst_181 = arith.constant dense<0.000000e+00> : vector<2x120xf32>
    %213 = tpu.matmul %210, %212, %cst_181 {dimension_numbers = #tpu.dot_dimension_numbers<[1], [0], [0], [1], [0, 0, 1, 1], [], []>} : vector<2x16xf32>, vector<16x120xf32>, vector<2x120xf32> -> vector<2x120xf32>
    %214 = arith.addf %203, %213 : vector<2x120xf32>
    %c18_i32 = arith.constant 18 : i32
    %215 = vector.broadcast %c18_i32 : i32 to vector<2x128xi32>
    %216 = arith.addi %180, %215 : vector<2x128xi32>
    %217 = arith.cmpi eq, %177, %216 : vector<2x128xi32>
    %cst_182 = arith.constant 1.000000e+00 : f32
    %cst_183 = arith.constant 0.000000e+00 : f32
    %218 = vector.broadcast %cst_182 : f32 to vector<2x128xf32>
    %219 = vector.broadcast %cst_183 : f32 to vector<2x128xf32>
    %220 = arith.select %217, %218, %219 : vector<2x128xi1>, vector<2x128xf32>
    %cst_184 = arith.constant dense<0.000000e+00> : vector<2x16xf32>
    %221 = tpu.matmul %220, %176, %cst_184 {dimension_numbers = #tpu.dot_dimension_numbers<[1], [0], [0], [1], [0, 0, 1, 1], [], []>} : vector<2x128xf32>, vector<128x16xf32>, vector<2x16xf32> -> vector<2x16xf32>
    %c3_185 = arith.constant 3 : index
    %c0_186 = arith.constant 0 : index
    %c0_187 = arith.constant 0 : index
    %222 = vector.load %arg6[%c3_185, %c0_186, %c0_187] : memref<4x16x120xf32, #tpu.memory_space<vmem>>, vector<1x16x120xf32>
    %223 = vector.shape_cast %222 : vector<1x16x120xf32> to vector<16x120xf32>
    %cst_188 = arith.constant dense<0.000000e+00> : vector<2x120xf32>
    %224 = tpu.matmul %221, %223, %cst_188 {dimension_numbers = #tpu.dot_dimension_numbers<[1], [0], [0], [1], [0, 0, 1, 1], [], []>} : vector<2x16xf32>, vector<16x120xf32>, vector<2x120xf32> -> vector<2x120xf32>
    %225 = arith.addf %214, %224 : vector<2x120xf32>
    %c0_189 = arith.constant 0 : index
    %c0_190 = arith.constant 0 : index
    %226 = vector.load %arg7[%c0_189, %c0_190] : memref<1x120xf32, #tpu.memory_space<vmem>>, vector<1x120xf32>
    %227 = vector.broadcast %226 : vector<1x120xf32> to vector<2x120xf32>
    %228 = arith.addf %225, %227 : vector<2x120xf32>
    %cst_191 = arith.constant 0.000000e+00 : f32
    %229 = vector.broadcast %cst_191 : f32 to vector<2x120xf32>
    %230 = arith.maximumf %228, %229 : vector<2x120xf32>
    %c0_192 = arith.constant 0 : index
    %c0_193 = arith.constant 0 : index
    %231 = vector.load %arg8[%c0_192, %c0_193] : memref<120x84xf32, #tpu.memory_space<vmem>>, vector<120x84xf32>
    %cst_194 = arith.constant dense<0.000000e+00> : vector<2x84xf32>
    %232 = tpu.matmul %230, %231, %cst_194 {dimension_numbers = #tpu.dot_dimension_numbers<[1], [0], [0], [1], [0, 0, 1, 1], [], []>} : vector<2x120xf32>, vector<120x84xf32>, vector<2x84xf32> -> vector<2x84xf32>
    %c0_195 = arith.constant 0 : index
    %c0_196 = arith.constant 0 : index
    %233 = vector.load %arg9[%c0_195, %c0_196] : memref<1x84xf32, #tpu.memory_space<vmem>>, vector<1x84xf32>
    %234 = vector.broadcast %233 : vector<1x84xf32> to vector<2x84xf32>
    %235 = arith.addf %232, %234 : vector<2x84xf32>
    %cst_197 = arith.constant 0.000000e+00 : f32
    %236 = vector.broadcast %cst_197 : f32 to vector<2x84xf32>
    %237 = arith.maximumf %235, %236 : vector<2x84xf32>
    %c0_198 = arith.constant 0 : index
    %c0_199 = arith.constant 0 : index
    %238 = vector.load %arg10[%c0_198, %c0_199] : memref<84x10xf32, #tpu.memory_space<vmem>>, vector<84x10xf32>
    %cst_200 = arith.constant dense<0.000000e+00> : vector<2x10xf32>
    %239 = tpu.matmul %237, %238, %cst_200 {dimension_numbers = #tpu.dot_dimension_numbers<[1], [0], [0], [1], [0, 0, 1, 1], [], []>} : vector<2x84xf32>, vector<84x10xf32>, vector<2x10xf32> -> vector<2x10xf32>
    %c0_201 = arith.constant 0 : index
    %c0_202 = arith.constant 0 : index
    %240 = vector.load %arg11[%c0_201, %c0_202] : memref<1x10xf32, #tpu.memory_space<vmem>>, vector<1x10xf32>
    %241 = vector.broadcast %240 : vector<1x10xf32> to vector<2x10xf32>
    %242 = arith.addf %239, %241 : vector<2x10xf32>
    %c0_203 = arith.constant 0 : index
    %c0_204 = arith.constant 0 : index
    %243 = vector.load %arg12[%c0_203, %c0_204] : memref<2x10xf32, #tpu.memory_space<vmem>>, vector<2x10xf32>
    tpu.vector_store %arg12[%c0_203, %c0_204], %242 {strides = array<i32>} : memref<2x10xf32, #tpu.memory_space<vmem>>, vector<2x10xf32>,
    return
  }
  func.func @transform_0(%arg0: i32) -> (i32, i32, i32) {
    %c0_i32 = arith.constant 0 : i32
    %c0_i32_0 = arith.constant 0 : i32
    %c0_i32_1 = arith.constant 0 : i32
    %c0_i32_2 = arith.constant 0 : i32
    return %c0_i32, %c0_i32_0, %c0_i32_1 : i32, i32, i32
  }
  func.func @transform_1(%arg0: i32) -> (i32, i32) {
    %c0_i32 = arith.constant 0 : i32
    %c0_i32_0 = arith.constant 0 : i32
    %c0_i32_1 = arith.constant 0 : i32
    return %c0_i32, %c0_i32_0 : i32, i32
  }
  func.func @transform_2(%arg0: i32) -> (i32, i32) {
    %c0_i32 = arith.constant 0 : i32
    %c0_i32_0 = arith.constant 0 : i32
    %c0_i32_1 = arith.constant 0 : i32
    return %c0_i32, %c0_i32_0 : i32, i32
  }
  func.func @transform_3(%arg0: i32) -> (i32, i32, i32) {
    %c0_i32 = arith.constant 0 : i32
    %c0_i32_0 = arith.constant 0 : i32
    %c0_i32_1 = arith.constant 0 : i32
    %c0_i32_2 = arith.constant 0 : i32
    return %c0_i32, %c0_i32_0, %c0_i32_1 : i32, i32, i32
  }
  func.func @transform_4(%arg0: i32) -> (i32, i32) {
    %c0_i32 = arith.constant 0 : i32
    %c0_i32_0 = arith.constant 0 : i32
    %c0_i32_1 = arith.constant 0 : i32
    return %c0_i32, %c0_i32_0 : i32, i32
  }
  func.func @transform_5(%arg0: i32) -> (i32, i32, i32) {
    %c0_i32 = arith.constant 0 : i32
    %c0_i32_0 = arith.constant 0 : i32
    %c0_i32_1 = arith.constant 0 : i32
    %c0_i32_2 = arith.constant 0 : i32
    return %c0_i32, %c0_i32_0, %c0_i32_1 : i32, i32, i32
  }
  func.func @transform_6(%arg0: i32) -> (i32, i32) {
    %c0_i32 = arith.constant 0 : i32
    %c0_i32_0 = arith.constant 0 : i32
    %c0_i32_1 = arith.constant 0 : i32
    return %c0_i32, %c0_i32_0 : i32, i32
  }
  func.func @transform_7(%arg0: i32) -> (i32, i32) {
    %c0_i32 = arith.constant 0 : i32
    %c0_i32_0 = arith.constant 0 : i32
    %c0_i32_1 = arith.constant 0 : i32
    return %c0_i32, %c0_i32_0 : i32, i32
  }
  func.func @transform_8(%arg0: i32) -> (i32, i32) {
    %c0_i32 = arith.constant 0 : i32
    %c0_i32_0 = arith.constant 0 : i32
    %c0_i32_1 = arith.constant 0 : i32
    return %c0_i32, %c0_i32_0 : i32, i32
  }
  func.func @transform_9(%arg0: i32) -> (i32, i32) {
    %c0_i32 = arith.constant 0 : i32
    %c0_i32_0 = arith.constant 0 : i32
    %c0_i32_1 = arith.constant 0 : i32
    return %c0_i32, %c0_i32_0 : i32, i32
  }
  func.func @transform_10(%arg0: i32) -> (i32, i32) {
    %c0_i32 = arith.constant 0 : i32
    %c0_i32_0 = arith.constant 0 : i32
    %c0_i32_1 = arith.constant 0 : i32
    return %c0_i32, %c0_i32_0 : i32, i32
  }
  func.func @transform_11(%arg0: i32) -> (i32, i32) {
    %c0_i32 = arith.constant 0 : i32
    %c0_i32_0 = arith.constant 0 : i32
    %c0_i32_1 = arith.constant 0 : i32
    return %c0_i32, %c0_i32_0 : i32, i32
  }
}

</mosaic_0001>

<llo_original>
// kernel: net_forward.1
$region0: #{net_forward.1}
  #allocation0 [shape = 'u32[]', space=smem, size = 0x4, offset = 0x4, fixed_abs, tag = 'smem constant byte address 0x4 - core index']
  #allocation1 [shape = 'u32[144,128]{1,0:T(1,128)}', space=vmem, size = 0x12000, scoped, tag = 'internal scratch']
  #allocation2 [shape = 'f32[164,6]{1,0:T(8,128)}', space=vmem, size = 0x15000, scoped, tag = 'scratch operand']
  #allocation3 [shape = 'f32[137,16]{1,0:T(8,128)}', space=vmem, size = 0x12000, scoped, tag = 'scratch operand']
  %s0 = inlined_call_operand.vmem [shape: f32[4,128,25], index: 0, kind: input, shape index: {}]
  %s1 = inlined_call_operand.vmem [shape: f32[25,6], index: 1, kind: input, shape index: {}]
  %s2 = inlined_call_operand.vmem [shape: f32[1,6], index: 2, kind: input, shape index: {}]
  %s3 = inlined_call_operand.vmem [shape: f32[25,6,16], index: 3, kind: input, shape index: {}]
  %s4 = inlined_call_operand.vmem [shape: f32[1,16], index: 4, kind: input, shape index: {}]
  %s5 = inlined_call_operand.vmem [shape: f32[4,16,120], index: 5, kind: input, shape index: {}]
  %s6 = inlined_call_operand.vmem [shape: f32[1,120], index: 6, kind: input, shape index: {}]
  %s7 = inlined_call_operand.vmem [shape: f32[120,84], index: 7, kind: input, shape index: {}]
  %s8 = inlined_call_operand.vmem [shape: f32[1,84], index: 8, kind: input, shape index: {}]
  %s9 = inlined_call_operand.vmem [shape: f32[84,10], index: 9, kind: input, shape index: {}]
  %s10 = inlined_call_operand.vmem [shape: f32[1,10], index: 10, kind: input, shape index: {}]
  %s11 = inlined_call_operand.hbm [shape: f32[2,10], index: 11, kind: output, shape index: {}]
  %s12 = sld [smem:[#allocation0]]
  $region54: #{net_forward.1} parent=0
    _
  %s14 = ssub.s32 1, %s12
  %s15 = scalar_select 0, %s14, %s12
  $region1: #{net_forward.1} parent=0
    #allocation4 [shape = 'u8[1024]{0}', space=vmem, size = 0x400, scoped, tag = 'output window, operand 0, single buffered']
    #allocation5 [shape = 's32[1]{0}', space=sflag, size = 0x4, scoped, tag = 'scoped memory for net_forward.1']
    %16 = vsyncpa [#allocation5], 0
    // Predicated region
    $region2: #{net_forward.1} parent=1 // pred_check
      _
    $region3: #{net_forward.1} parent=1 // pred_check_branch
      %18 = sbr.rel (0) target = $region5
    $region4: #{net_forward.1} parent=1 // pred_region
      _
    $region5: #{net_forward.1} parent=1 // pred_fallthru
      _
    // Predicated region
    $region6: #{net_forward.1} parent=1 // pred_check
      _
    $region7: #{net_forward.1} parent=1 // pred_check_branch
      %20 = sbr.rel (0) target = $region9
    $region8: #{net_forward.1} parent=1 // pred_region
      _
    $region9: #{net_forward.1} parent=1 // pred_fallthru
      _
    // Predicated region
    $region10: #{net_forward.1} parent=1 // pred_check
      _
    $region11: #{net_forward.1} parent=1 // pred_check_branch
      %22 = sbr.rel (0) target = $region13
    $region12: #{net_forward.1} parent=1 // pred_region
      _
    $region13: #{net_forward.1} parent=1 // pred_fallthru
      _
    // Predicated region
    $region14: #{net_forward.1} parent=1 // pred_check
      _
    $region15: #{net_forward.1} parent=1 // pred_check_branch
      %24 = sbr.rel (0) target = $region17
    $region16: #{net_forward.1} parent=1 // pred_region
      _
    $region17: #{net_forward.1} parent=1 // pred_fallthru
      _
    // Predicated region
    $region18: #{net_forward.1} parent=1 // pred_check
      _
    $region19: #{net_forward.1} parent=1 // pred_check_branch
      %26 = sbr.rel (0) target = $region21
    $region20: #{net_forward.1} parent=1 // pred_region
      _
    $region21: #{net_forward.1} parent=1 // pred_fallthru
      _
    // Predicated region
    $region22: #{net_forward.1} parent=1 // pred_check
      _
    $region23: #{net_forward.1} parent=1 // pred_check_branch
      %28 = sbr.rel (0) target = $region25
    $region24: #{net_forward.1} parent=1 // pred_region
      _
    $region25: #{net_forward.1} parent=1 // pred_fallthru
      _
    // Predicated region
    $region26: #{net_forward.1} parent=1 // pred_check
      _
    $region27: #{net_forward.1} parent=1 // pred_check_branch
      %30 = sbr.rel (0) target = $region29
    $region28: #{net_forward.1} parent=1 // pred_region
      _
    $region29: #{net_forward.1} parent=1 // pred_fallthru
      _
    // Predicated region
    $region30: #{net_forward.1} parent=1 // pred_check
      _
    $region31: #{net_forward.1} parent=1 // pred_check_branch
      %32 = sbr.rel (0) target = $region33
    $region32: #{net_forward.1} parent=1 // pred_region
      _
    $region33: #{net_forward.1} parent=1 // pred_fallthru
      _
    // Predicated region
    $region34: #{net_forward.1} parent=1 // pred_check
      _
    $region35: #{net_forward.1} parent=1 // pred_check_branch
      %34 = sbr.rel (0) target = $region37
    $region36: #{net_forward.1} parent=1 // pred_region
      _
    $region37: #{net_forward.1} parent=1 // pred_fallthru
      _
    // Predicated region
    $region38: #{net_forward.1} parent=1 // pred_check
      _
    $region39: #{net_forward.1} parent=1 // pred_check_branch
      %36 = sbr.rel (0) target = $region41
    $region40: #{net_forward.1} parent=1 // pred_region
      _
    $region41: #{net_forward.1} parent=1 // pred_fallthru
      _
    // Predicated region
    $region42: #{net_forward.1} parent=1 // pred_check
      _
    $region43: #{net_forward.1} parent=1 // pred_check_branch
      %38 = sbr.rel (0) target = $region45
    $region44: #{net_forward.1} parent=1 // pred_region
      _
    $region45: #{net_forward.1} parent=1 // pred_fallthru
      _
    %v39 = vld [vmem:[%s1] sm:$0xff]
    %v40 = vld [vmem:[%s1 + $0x8] sm:$0xff]
    %v41 = vld [vmem:[%s1 + $0x10] sm:$0xff]
    %v42 = vld [vmem:[%s1 + $0x18] sm:$0x1]
    %v43 = vld [vmem:[%s2] sm:$0x1]
    %v44 = vld [vmem:[%s0] sm:$0xff]
    %v45 = vld [vmem:[%s0 + $0x8] sm:$0xff]
    %v46 = vld [vmem:[%s0 + $0x10] sm:$0xff]
    %v47 = vld [vmem:[%s0 + $0x18] sm:$0xff]
    %v48 = vld [vmem:[%s0 + $0x20] sm:$0xff]
    %v49 = vld [vmem:[%s0 + $0x28] sm:$0xff]
    %v50 = vld [vmem:[%s0 + $0x30] sm:$0xff]
    %v51 = vld [vmem:[%s0 + $0x38] sm:$0xff]
    %v52 = vld [vmem:[%s0 + $0x40] sm:$0xff]
    %v53 = vld [vmem:[%s0 + $0x48] sm:$0xff]
    %v54 = vld [vmem:[%s0 + $0x50] sm:$0xff]
    %v55 = vld [vmem:[%s0 + $0x58] sm:$0xff]
    %v56 = vld [vmem:[%s0 + $0x60] sm:$0xff]
    %v57 = vld [vmem:[%s0 + $0x68] sm:$0xff]
    %v58 = vld [vmem:[%s0 + $0x70] sm:$0xff]
    %v59 = vld [vmem:[%s0 + $0x78] sm:$0xff]
    %v61 = vlaneseq
    %v62 = vshrl.u32 %v61, 7
    %v63 = vsub.s32 0, %v62
    %v64 = vrot.slane %v43, %v63
    %vm66 = vcmask 203776
    %v68 = vsel %vm66, %v44, 0
    %v71 = vsel %vm66, %v45, 0
    %v74 = vsel %vm66, %v46, 0
    %v77 = vsel %vm66, %v47, 0
    %v80 = vsel %vm66, %v48, 0
    %v83 = vsel %vm66, %v49, 0
    %v86 = vsel %vm66, %v50, 0
    %v89 = vsel %vm66, %v51, 0
    %v92 = vsel %vm66, %v52, 0
    %v95 = vsel %vm66, %v53, 0
    %v98 = vsel %vm66, %v54, 0
    %v101 = vsel %vm66, %v55, 0
    %v104 = vsel %vm66, %v56, 0
    %v107 = vsel %vm66, %v57, 0
    %v110 = vsel %vm66, %v58, 0
    %v113 = vsel %vm66, %v59, 0
    %vm115 = vcmask 1040384
    %v117 = vsel %vm115, %v42, 0
    %119 = vmatprep.subr.mxu0 0.0
    %120 = vmatpush1.msra.mxu0 %v39
    %121 = vmatprep.subr.mxu0 0.0
    %122 = vmatpush1.msra.mxu0 %v40
    %123 = vmatprep.subr.mxu0 0.0
    %124 = vmatpush1.msra.mxu0 %v41
    %125 = vmatprep.subr.mxu0 0.0
    %126 = vmatpush1.msra.mxu0 %v117
    %127 = vmatprep.subr.mxu0 0.0
    %128 = vmatpush1.msra.mxu0 0.0
    %129 = vmatprep.subr.mxu0 0.0
    %130 = vmatpush1.msra.mxu0 0.0
    %131 = vmatprep.subr.mxu0 0.0
    %132 = vmatpush1.msra.mxu0 0.0
    %133 = vmatprep.subr.mxu0 0.0
    %134 = vmatpush1.msra.mxu0 0.0
    %135 = vmatprep.subr.mxu0 0.0
    %136 = vmatpush1.msra.mxu0 0.0
    %137 = vmatprep.subr.mxu0 0.0
    %138 = vmatpush1.msra.mxu0 0.0
    %139 = vmatprep.subr.mxu0 0.0
    %140 = vmatpush1.msra.mxu0 0.0
    %141 = vmatprep.subr.mxu0 0.0
    %142 = vmatpush1.msra.mxu0 0.0
    %143 = vmatprep.subr.mxu0 0.0
    %144 = vmatpush1.msra.mxu0 0.0
    %145 = vmatprep.subr.mxu0 0.0
    %146 = vmatpush1.msra.mxu0 0.0
    %147 = vmatprep.subr.mxu0 0.0
    %148 = vmatpush1.msra.mxu0 0.0
    %149 = vmatprep.subr.mxu0 0.0
    %150 = vmatpush1.msra.mxu0 0.0
    %151 = vmatprep.subr.mxu0 0.0
    %152 = vmatpush1.msra.mxu0 0.0
    %153 = vmatprep.subr.mxu0 0.0
    %154 = vmatpush1.msra.mxu0 0.0
    %155 = vmatprep.subr.mxu0 0.0
    %156 = vmatpush1.msra.mxu0 0.0
    %157 = vmatprep.subr.mxu0 0.0
    %158 = vmatpush1.msra.mxu0 0.0
    %159 = vmatprep.subr.mxu0 0.0
    %160 = vmatpush1.msra.mxu0 0.0
    %161 = vmatprep.subr.mxu0 0.0
    %162 = vmatpush1.msra.mxu0 0.0
    %163 = vmatprep.subr.mxu0 0.0
    %164 = vmatpush1.msra.mxu0 0.0
    %165 = vmatprep.subr.mxu0 0.0
    %166 = vmatpush1.msra.mxu0 0.0
    %167 = vmatprep.subr.mxu0 0.0
    %168 = vmatpush1.msra.mxu0 0.0
    %169 = vmatprep.subr.mxu0 0.0
    %170 = vmatpush1.msra.mxu0 0.0
    %171 = vmatprep.subr.mxu0 0.0
    %172 = vmatpush1.msra.mxu0 0.0
    %173 = vmatprep.subr.mxu0 0.0
    %174 = vmatpush1.msra.mxu0 0.0
    %175 = vmatprep.subr.mxu0 0.0
    %176 = vmatpush1.msra.mxu0 0.0
    %177 = vmatprep.subr.mxu0 0.0
    %178 = vmatpush1.msra.mxu0 0.0
    %179 = vmatprep.subr.mxu0 0.0
    %180 = vmatpush1.msra.mxu0 0.0
    %181 = vmatprep.subr.mxu0 0.0
    %182 = vmatpush1.msra.mxu0 0.0
    %183 = vmatprep.mubr.f32.mxu0 0.0
    %184 = vmatmul.mubr.f32.gmra.mrb[0].mxu0 %v68
    %v185 = vpop.f32.mrb[0].mxu0
    %v186 = vadd.f32 %v64, %v185
    %v187 = vpop.f32.mrb[0].mxu0
    %188 = vmatprep.mubr.f32.mxu0 0.0
    %189 = vmatmul.mubr.f32.gmra.mrb[0].mxu0 %v71
    %v190 = vpop.f32.mrb[0].mxu0
    %v191 = vadd.f32 %v64, %v190
    %v192 = vpop.f32.mrb[0].mxu0
    %193 = vmatprep.mubr.f32.mxu0 0.0
    %194 = vmatmul.mubr.f32.gmra.mrb[0].mxu0 %v74
    %v195 = vpop.f32.mrb[0].mxu0
    %v196 = vadd.f32 %v64, %v195
    %v197 = vpop.f32.mrb[0].mxu0
    %198 = vmatprep.mubr.f32.mxu0 0.0
    %199 = vmatmul.mubr.f32.gmra.mrb[0].mxu0 %v77
    %v200 = vpop.f32.mrb[0].mxu0
    %v201 = vadd.f32 %v64, %v200
    %v202 = vpop.f32.mrb[0].mxu0
    %203 = vmatprep.mubr.f32.mxu0 0.0
    %204 = vmatmul.mubr.f32.gmra.mrb[0].mxu0 %v80
    %v205 = vpop.f32.mrb[0].mxu0
    %v206 = vadd.f32 %v64, %v205
    %v207 = vpop.f32.mrb[0].mxu0
    %208 = vmatprep.mubr.f32.mxu0 0.0
    %209 = vmatmul.mubr.f32.gmra.mrb[0].mxu0 %v83
    %v210 = vpop.f32.mrb[0].mxu0
    %v211 = vadd.f32 %v64, %v210
    %v212 = vpop.f32.mrb[0].mxu0
    %213 = vmatprep.mubr.f32.mxu0 0.0
    %214 = vmatmul.mubr.f32.gmra.mrb[0].mxu0 %v86
    %v215 = vpop.f32.mrb[0].mxu0
    %v216 = vadd.f32 %v64, %v215
    %v217 = vpop.f32.mrb[0].mxu0
    %218 = vmatprep.mubr.f32.mxu0 0.0
    %219 = vmatmul.mubr.f32.gmra.mrb[0].mxu0 %v89
    %v220 = vpop.f32.mrb[0].mxu0
    %v221 = vadd.f32 %v64, %v220
    %v222 = vpop.f32.mrb[0].mxu0
    %223 = vmatprep.mubr.f32.mxu0 0.0
    %224 = vmatmul.mubr.f32.gmra.mrb[0].mxu0 %v92
    %v225 = vpop.f32.mrb[0].mxu0
    %v226 = vadd.f32 %v64, %v225
    %v227 = vpop.f32.mrb[0].mxu0
    %228 = vmatprep.mubr.f32.mxu0 0.0
    %229 = vmatmul.mubr.f32.gmra.mrb[0].mxu0 %v95
    %v230 = vpop.f32.mrb[0].mxu0
    %v231 = vadd.f32 %v64, %v230
    %v232 = vpop.f32.mrb[0].mxu0
    %233 = vmatprep.mubr.f32.mxu0 0.0
    %234 = vmatmul.mubr.f32.gmra.mrb[0].mxu0 %v98
    %v235 = vpop.f32.mrb[0].mxu0
    %v236 = vadd.f32 %v64, %v235
    %v237 = vpop.f32.mrb[0].mxu0
    %238 = vmatprep.mubr.f32.mxu0 0.0
    %239 = vmatmul.mubr.f32.gmra.mrb[0].mxu0 %v101
    %v240 = vpop.f32.mrb[0].mxu0
    %v241 = vadd.f32 %v64, %v240
    %v242 = vpop.f32.mrb[0].mxu0
    %243 = vmatprep.mubr.f32.mxu0 0.0
    %244 = vmatmul.mubr.f32.gmra.mrb[0].mxu0 %v104
    %v245 = vpop.f32.mrb[0].mxu0
    %v246 = vadd.f32 %v64, %v245
    %v247 = vpop.f32.mrb[0].mxu0
    %248 = vmatprep.mubr.f32.mxu0 0.0
    %249 = vmatmul.mubr.f32.gmra.mrb[0].mxu0 %v107
    %v250 = vpop.f32.mrb[0].mxu0
    %v251 = vadd.f32 %v64, %v250
    %v252 = vpop.f32.mrb[0].mxu0
    %253 = vmatprep.mubr.f32.mxu0 0.0
    %254 = vmatmul.mubr.f32.gmra.mrb[0].mxu0 %v110
    %v255 = vpop.f32.mrb[0].mxu0
    %v256 = vadd.f32 %v64, %v255
    %v257 = vpop.f32.mrb[0].mxu0
    %258 = vmatprep.mubr.f32.mxu0 0.0
    %259 = vmatmul.mubr.f32.gmra.mrb[0].mxu0 %v113
    %v260 = vpop.f32.mrb[0].mxu0
    %v261 = vadd.f32 %v64, %v260
    %v262 = vpop.f32.mrb[0].mxu0
    %263 = vdwg.mxu0
    %v264 = vmax.f32 %v186, 0.0
    %v265 = vmax.f32 %v191, 0.0
    %v266 = vmax.f32 %v196, 0.0
    %v267 = vmax.f32 %v201, 0.0
    %v268 = vmax.f32 %v206, 0.0
    %v269 = vmax.f32 %v211, 0.0
    %v270 = vmax.f32 %v216, 0.0
    %v271 = vmax.f32 %v221, 0.0
    %v272 = vmax.f32 %v226, 0.0
    %v273 = vmax.f32 %v231, 0.0
    %v274 = vmax.f32 %v236, 0.0
    %v275 = vmax.f32 %v241, 0.0
    %v276 = vmax.f32 %v246, 0.0
    %v277 = vmax.f32 %v251, 0.0
    %v278 = vmax.f32 %v256, 0.0
    %v279 = vmax.f32 %v261, 0.0
    %s280 = scalar_lea.vmem %s0, 128
    %v281 = vld [vmem:[%s280] sm:$0xff]
    %v282 = vld [vmem:[%s280 + $0x8] sm:$0xff]
    %v283 = vld [vmem:[%s280 + $0x10] sm:$0xff]
    %v284 = vld [vmem:[%s280 + $0x18] sm:$0xff]
    %v285 = vld [vmem:[%s280 + $0x20] sm:$0xff]
    %v286 = vld [vmem:[%s280 + $0x28] sm:$0xff]
    %v287 = vld [vmem:[%s280 + $0x30] sm:$0xff]
    %v288 = vld [vmem:[%s280 + $0x38] sm:$0xff]
    %v289 = vld [vmem:[%s280 + $0x40] sm:$0xff]
    %v290 = vld [vmem:[%s280 + $0x48] sm:$0xff]
    %v291 = vld [vmem:[%s280 + $0x50] sm:$0xff]
    %v292 = vld [vmem:[%s280 + $0x58] sm:$0xff]
    %v293 = vld [vmem:[%s280 + $0x60] sm:$0xff]
    %v294 = vld [vmem:[%s280 + $0x68] sm:$0xff]
    %v295 = vld [vmem:[%s280 + $0x70] sm:$0xff]
    %v296 = vld [vmem:[%s280 + $0x78] sm:$0xff]
    %v298 = vsel %vm66, %v281, 0
    %v301 = vsel %vm66, %v282, 0
    %v304 = vsel %vm66, %v283, 0
    %v307 = vsel %vm66, %v284, 0
    %v310 = vsel %vm66, %v285, 0
    %v313 = vsel %vm66, %v286, 0
    %v316 = vsel %vm66, %v287, 0
    %v319 = vsel %vm66, %v288, 0
    %v322 = vsel %vm66, %v289, 0
    %v325 = vsel %vm66, %v290, 0
    %v328 = vsel %vm66, %v291, 0
    %v331 = vsel %vm66, %v292, 0
    %v334 = vsel %vm66, %v293, 0
    %v337 = vsel %vm66, %v294, 0
    %v340 = vsel %vm66, %v295, 0
    %v343 = vsel %vm66, %v296, 0
    %345 = vmatprep.subr.mxu0 0.0
    %346 = vmatpush1.msra.mxu0 %v39
    %347 = vmatprep.subr.mxu0 0.0
    %348 = vmatpush1.msra.mxu0 %v40
    %349 = vmatprep.subr.mxu0 0.0
    %350 = vmatpush1.msra.mxu0 %v41
    %351 = vmatprep.subr.mxu0 0.0
    %352 = vmatpush1.msra.mxu0 %v117
    %353 = vmatprep.subr.mxu0 0.0
    %354 = vmatpush1.msra.mxu0 0.0
    %355 = vmatprep.subr.mxu0 0.0
    %356 = vmatpush1.msra.mxu0 0.0
    %357 = vmatprep.subr.mxu0 0.0
    %358 = vmatpush1.msra.mxu0 0.0
    %359 = vmatprep.subr.mxu0 0.0
    %360 = vmatpush1.msra.mxu0 0.0
    %361 = vmatprep.subr.mxu0 0.0
    %362 = vmatpush1.msra.mxu0 0.0
    %363 = vmatprep.subr.mxu0 0.0
    %364 = vmatpush1.msra.mxu0 0.0
    %365 = vmatprep.subr.mxu0 0.0
    %366 = vmatpush1.msra.mxu0 0.0
    %367 = vmatprep.subr.mxu0 0.0
    %368 = vmatpush1.msra.mxu0 0.0
    %369 = vmatprep.subr.mxu0 0.0
    %370 = vmatpush1.msra.mxu0 0.0
    %371 = vmatprep.subr.mxu0 0.0
    %372 = vmatpush1.msra.mxu0 0.0
    %373 = vmatprep.subr.mxu0 0.0
    %374 = vmatpush1.msra.mxu0 0.0
    %375 = vmatprep.subr.mxu0 0.0
    %376 = vmatpush1.msra.mxu0 0.0
    %377 = vmatprep.subr.mxu0 0.0
    %378 = vmatpush1.msra.mxu0 0.0
    %379 = vmatprep.subr.mxu0 0.0
    %380 = vmatpush1.msra.mxu0 0.0
    %381 = vmatprep.subr.mxu0 0.0
    %382 = vmatpush1.msra.mxu0 0.0
    %383 = vmatprep.subr.mxu0 0.0
    %384 = vmatpush1.msra.mxu0 0.0
    %385 = vmatprep.subr.mxu0 0.0
    %386 = vmatpush1.msra.mxu0 0.0
    %387 = vmatprep.subr.mxu0 0.0
    %388 = vmatpush1.msra.mxu0 0.0
    %389 = vmatprep.subr.mxu0 0.0
    %390 = vmatpush1.msra.mxu0 0.0
    %391 = vmatprep.subr.mxu0 0.0
    %392 = vmatpush1.msra.mxu0 0.0
    %393 = vmatprep.subr.mxu0 0.0
    %394 = vmatpush1.msra.mxu0 0.0
    %395 = vmatprep.subr.mxu0 0.0
    %396 = vmatpush1.msra.mxu0 0.0
    %397 = vmatprep.subr.mxu0 0.0
    %398 = vmatpush1.msra.mxu0 0.0
    %399 = vmatprep.subr.mxu0 0.0
    %400 = vmatpush1.msra.mxu0 0.0
    %401 = vmatprep.subr.mxu0 0.0
    %402 = vmatpush1.msra.mxu0 0.0
    %403 = vmatprep.subr.mxu0 0.0
    %404 = vmatpush1.msra.mxu0 0.0
    %405 = vmatprep.subr.mxu0 0.0
    %406 = vmatpush1.msra.mxu0 0.0
    %407 = vmatprep.subr.mxu0 0.0
    %408 = vmatpush1.msra.mxu0 0.0
    %409 = vmatprep.mubr.f32.mxu0 0.0
    %410 = vmatmul.mubr.f32.gmra.mrb[0].mxu0 %v298
    %v411 = vpop.f32.mrb[0].mxu0
    %v412 = vadd.f32 %v64, %v411
    %v413 = vpop.f32.mrb[0].mxu0
    %414 = vmatprep.mubr.f32.mxu0 0.0
    %415 = vmatmul.mubr.f32.gmra.mrb[0].mxu0 %v301
    %v416 = vpop.f32.mrb[0].mxu0
    %v417 = vadd.f32 %v64, %v416
    %v418 = vpop.f32.mrb[0].mxu0
    %419 = vmatprep.mubr.f32.mxu0 0.0
    %420 = vmatmul.mubr.f32.gmra.mrb[0].mxu0 %v304
    %v421 = vpop.f32.mrb[0].mxu0
    %v422 = vadd.f32 %v64, %v421
    %v423 = vpop.f32.mrb[0].mxu0
    %424 = vmatprep.mubr.f32.mxu0 0.0
    %425 = vmatmul.mubr.f32.gmra.mrb[0].mxu0 %v307
    %v426 = vpop.f32.mrb[0].mxu0
    %v427 = vadd.f32 %v64, %v426
    %v428 = vpop.f32.mrb[0].mxu0
    %429 = vmatprep.mubr.f32.mxu0 0.0
    %430 = vmatmul.mubr.f32.gmra.mrb[0].mxu0 %v310
    %v431 = vpop.f32.mrb[0].mxu0
    %v432 = vadd.f32 %v64, %v431
    %v433 = vpop.f32.mrb[0].mxu0
    %434 = vmatprep.mubr.f32.mxu0 0.0
    %435 = vmatmul.mubr.f32.gmra.mrb[0].mxu0 %v313
    %v436 = vpop.f32.mrb[0].mxu0
    %v437 = vadd.f32 %v64, %v436
    %v438 = vpop.f32.mrb[0].mxu0
    %439 = vmatprep.mubr.f32.mxu0 0.0
    %440 = vmatmul.mubr.f32.gmra.mrb[0].mxu0 %v316
    %v441 = vpop.f32.mrb[0].mxu0
    %v442 = vadd.f32 %v64, %v441
    %v443 = vpop.f32.mrb[0].mxu0
    %444 = vmatprep.mubr.f32.mxu0 0.0
    %445 = vmatmul.mubr.f32.gmra.mrb[0].mxu0 %v319
    %v446 = vpop.f32.mrb[0].mxu0
    %v447 = vadd.f32 %v64, %v446
    %v448 = vpop.f32.mrb[0].mxu0
    %449 = vmatprep.mubr.f32.mxu0 0.0
    %450 = vmatmul.mubr.f32.gmra.mrb[0].mxu0 %v322
    %v451 = vpop.f32.mrb[0].mxu0
    %v452 = vadd.f32 %v64, %v451
    %v453 = vpop.f32.mrb[0].mxu0
    %454 = vmatprep.mubr.f32.mxu0 0.0
    %455 = vmatmul.mubr.f32.gmra.mrb[0].mxu0 %v325
    %v456 = vpop.f32.mrb[0].mxu0
    %v457 = vadd.f32 %v64, %v456
    %v458 = vpop.f32.mrb[0].mxu0
    %459 = vmatprep.mubr.f32.mxu0 0.0
    %460 = vmatmul.mubr.f32.gmra.mrb[0].mxu0 %v328
    %v461 = vpop.f32.mrb[0].mxu0
    %v462 = vadd.f32 %v64, %v461
    %v463 = vpop.f32.mrb[0].mxu0
    %464 = vmatprep.mubr.f32.mxu0 0.0
    %465 = vmatmul.mubr.f32.gmra.mrb[0].mxu0 %v331
    %v466 = vpop.f32.mrb[0].mxu0
    %v467 = vadd.f32 %v64, %v466
    %v468 = vpop.f32.mrb[0].mxu0
    %469 = vmatprep.mubr.f32.mxu0 0.0
    %470 = vmatmul.mubr.f32.gmra.mrb[0].mxu0 %v334
    %v471 = vpop.f32.mrb[0].mxu0
    %v472 = vadd.f32 %v64, %v471
    %v473 = vpop.f32.mrb[0].mxu0
    %474 = vmatprep.mubr.f32.mxu0 0.0
    %475 = vmatmul.mubr.f32.gmra.mrb[0].mxu0 %v337
    %v476 = vpop.f32.mrb[0].mxu0
    %v477 = vadd.f32 %v64, %v476
    %v478 = vpop.f32.mrb[0].mxu0
    %479 = vmatprep.mubr.f32.mxu0 0.0
    %480 = vmatmul.mubr.f32.gmra.mrb[0].mxu0 %v340
    %v481 = vpop.f32.mrb[0].mxu0
    %v482 = vadd.f32 %v64, %v481
    %v483 = vpop.f32.mrb[0].mxu0
    %484 = vmatprep.mubr.f32.mxu0 0.0
    %485 = vmatmul.mubr.f32.gmra.mrb[0].mxu0 %v343
    %v486 = vpop.f32.mrb[0].mxu0
    %v487 = vadd.f32 %v64, %v486
    %v488 = vpop.f32.mrb[0].mxu0
    %489 = vdwg.mxu0
    %v490 = vmax.f32 %v412, 0.0
    %v491 = vmax.f32 %v417, 0.0
    %v492 = vmax.f32 %v422, 0.0
    %v493 = vmax.f32 %v427, 0.0
    %v494 = vmax.f32 %v432, 0.0
    %v495 = vmax.f32 %v437, 0.0
    %v496 = vmax.f32 %v442, 0.0
    %v497 = vmax.f32 %v447, 0.0
    %v498 = vmax.f32 %v452, 0.0
    %v499 = vmax.f32 %v457, 0.0
    %v500 = vmax.f32 %v462, 0.0
    %v501 = vmax.f32 %v467, 0.0
    %v502 = vmax.f32 %v472, 0.0
    %v503 = vmax.f32 %v477, 0.0
    %v504 = vmax.f32 %v482, 0.0
    %v505 = vmax.f32 %v487, 0.0
    %v506 = vmax.f32 %v264, %v490
    %v507 = vmax.f32 %v265, %v491
    %v508 = vmax.f32 %v266, %v492
    %v509 = vmax.f32 %v267, %v493
    %v510 = vmax.f32 %v268, %v494
    %v511 = vmax.f32 %v269, %v495
    %v512 = vmax.f32 %v270, %v496
    %v513 = vmax.f32 %v271, %v497
    %v514 = vmax.f32 %v272, %v498
    %v515 = vmax.f32 %v273, %v499
    %v516 = vmax.f32 %v274, %v500
    %v517 = vmax.f32 %v275, %v501
    %v518 = vmax.f32 %v276, %v502
    %v519 = vmax.f32 %v277, %v503
    %v520 = vmax.f32 %v278, %v504
    %v521 = vmax.f32 %v279, %v505
    %s522 = scalar_lea.vmem %s0, 256
    %v523 = vld [vmem:[%s522] sm:$0xff]
    %v524 = vld [vmem:[%s522 + $0x8] sm:$0xff]
    %v525 = vld [vmem:[%s522 + $0x10] sm:$0xff]
    %v526 = vld [vmem:[%s522 + $0x18] sm:$0xff]
    %v527 = vld [vmem:[%s522 + $0x20] sm:$0xff]
    %v528 = vld [vmem:[%s522 + $0x28] sm:$0xff]
    %v529 = vld [vmem:[%s522 + $0x30] sm:$0xff]
    %v530 = vld [vmem:[%s522 + $0x38] sm:$0xff]
    %v531 = vld [vmem:[%s522 + $0x40] sm:$0xff]
    %v532 = vld [vmem:[%s522 + $0x48] sm:$0xff]
    %v533 = vld [vmem:[%s522 + $0x50] sm:$0xff]
    %v534 = vld [vmem:[%s522 + $0x58] sm:$0xff]
    %v535 = vld [vmem:[%s522 + $0x60] sm:$0xff]
    %v536 = vld [vmem:[%s522 + $0x68] sm:$0xff]
    %v537 = vld [vmem:[%s522 + $0x70] sm:$0xff]
    %v538 = vld [vmem:[%s522 + $0x78] sm:$0xff]
    %v540 = vsel %vm66, %v523, 0
    %v543 = vsel %vm66, %v524, 0
    %v546 = vsel %vm66, %v525, 0
    %v549 = vsel %vm66, %v526, 0
    %v552 = vsel %vm66, %v527, 0
    %v555 = vsel %vm66, %v528, 0
    %v558 = vsel %vm66, %v529, 0
    %v561 = vsel %vm66, %v530, 0
    %v564 = vsel %vm66, %v531, 0
    %v567 = vsel %vm66, %v532, 0
    %v570 = vsel %vm66, %v533, 0
    %v573 = vsel %vm66, %v534, 0
    %v576 = vsel %vm66, %v535, 0
    %v579 = vsel %vm66, %v536, 0
    %v582 = vsel %vm66, %v537, 0
    %v585 = vsel %vm66, %v538, 0
    %587 = vmatprep.subr.mxu0 0.0
    %588 = vmatpush1.msra.mxu0 %v39
    %589 = vmatprep.subr.mxu0 0.0
    %590 = vmatpush1.msra.mxu0 %v40
    %591 = vmatprep.subr.mxu0 0.0
    %592 = vmatpush1.msra.mxu0 %v41
    %593 = vmatprep.subr.mxu0 0.0
    %594 = vmatpush1.msra.mxu0 %v117
    %595 = vmatprep.subr.mxu0 0.0
    %596 = vmatpush1.msra.mxu0 0.0
    %597 = vmatprep.subr.mxu0 0.0
    %598 = vmatpush1.msra.mxu0 0.0
    %599 = vmatprep.subr.mxu0 0.0
    %600 = vmatpush1.msra.mxu0 0.0
    %601 = vmatprep.subr.mxu0 0.0
    %602 = vmatpush1.msra.mxu0 0.0
    %603 = vmatprep.subr.mxu0 0.0
    %604 = vmatpush1.msra.mxu0 0.0
    %605 = vmatprep.subr.mxu0 0.0
    %606 = vmatpush1.msra.mxu0 0.0
    %607 = vmatprep.subr.mxu0 0.0
    %608 = vmatpush1.msra.mxu0 0.0
    %609 = vmatprep.subr.mxu0 0.0
    %610 = vmatpush1.msra.mxu0 0.0
    %611 = vmatprep.subr.mxu0 0.0
    %612 = vmatpush1.msra.mxu0 0.0
    %613 = vmatprep.subr.mxu0 0.0
    %614 = vmatpush1.msra.mxu0 0.0
    %615 = vmatprep.subr.mxu0 0.0
    %616 = vmatpush1.msra.mxu0 0.0
    %617 = vmatprep.subr.mxu0 0.0
    %618 = vmatpush1.msra.mxu0 0.0
    %619 = vmatprep.subr.mxu0 0.0
    %620 = vmatpush1.msra.mxu0 0.0
    %621 = vmatprep.subr.mxu0 0.0
    %622 = vmatpush1.msra.mxu0 0.0
    %623 = vmatprep.subr.mxu0 0.0
    %624 = vmatpush1.msra.mxu0 0.0
    %625 = vmatprep.subr.mxu0 0.0
    %626 = vmatpush1.msra.mxu0 0.0
    %627 = vmatprep.subr.mxu0 0.0
    %628 = vmatpush1.msra.mxu0 0.0
    %629 = vmatprep.subr.mxu0 0.0
    %630 = vmatpush1.msra.mxu0 0.0
    %631 = vmatprep.subr.mxu0 0.0
    %632 = vmatpush1.msra.mxu0 0.0
    %633 = vmatprep.subr.mxu0 0.0
    %634 = vmatpush1.msra.mxu0 0.0
    %635 = vmatprep.subr.mxu0 0.0
    %636 = vmatpush1.msra.mxu0 0.0
    %637 = vmatprep.subr.mxu0 0.0
    %638 = vmatpush1.msra.mxu0 0.0
    %639 = vmatprep.subr.mxu0 0.0
    %640 = vmatpush1.msra.mxu0 0.0
    %641 = vmatprep.subr.mxu0 0.0
    %642 = vmatpush1.msra.mxu0 0.0
    %643 = vmatprep.subr.mxu0 0.0
    %644 = vmatpush1.msra.mxu0 0.0
    %645 = vmatprep.subr.mxu0 0.0
    %646 = vmatpush1.msra.mxu0 0.0
    %647 = vmatprep.subr.mxu0 0.0
    %648 = vmatpush1.msra.mxu0 0.0
    %649 = vmatprep.subr.mxu0 0.0
    %650 = vmatpush1.msra.mxu0 0.0
    %651 = vmatprep.mubr.f32.mxu0 0.0
    %652 = vmatmul.mubr.f32.gmra.mrb[0].mxu0 %v540
    %v653 = vpop.f32.mrb[0].mxu0
    %v654 = vadd.f32 %v64, %v653
    %v655 = vpop.f32.mrb[0].mxu0
    %656 = vmatprep.mubr.f32.mxu0 0.0
    %657 = vmatmul.mubr.f32.gmra.mrb[0].mxu0 %v543
    %v658 = vpop.f32.mrb[0].mxu0
    %v659 = vadd.f32 %v64, %v658
    %v660 = vpop.f32.mrb[0].mxu0
    %661 = vmatprep.mubr.f32.mxu0 0.0
    %662 = vmatmul.mubr.f32.gmra.mrb[0].mxu0 %v546
    %v663 = vpop.f32.mrb[0].mxu0
    %v664 = vadd.f32 %v64, %v663
    %v665 = vpop.f32.mrb[0].mxu0
    %666 = vmatprep.mubr.f32.mxu0 0.0
    %667 = vmatmul.mubr.f32.gmra.mrb[0].mxu0 %v549
    %v668 = vpop.f32.mrb[0].mxu0
    %v669 = vadd.f32 %v64, %v668
    %v670 = vpop.f32.mrb[0].mxu0
    %671 = vmatprep.mubr.f32.mxu0 0.0
    %672 = vmatmul.mubr.f32.gmra.mrb[0].mxu0 %v552
    %v673 = vpop.f32.mrb[0].mxu0
    %v674 = vadd.f32 %v64, %v673
    %v675 = vpop.f32.mrb[0].mxu0
    %676 = vmatprep.mubr.f32.mxu0 0.0
    %677 = vmatmul.mubr.f32.gmra.mrb[0].mxu0 %v555
    %v678 = vpop.f32.mrb[0].mxu0
    %v679 = vadd.f32 %v64, %v678
    %v680 = vpop.f32.mrb[0].mxu0
    %681 = vmatprep.mubr.f32.mxu0 0.0
    %682 = vmatmul.mubr.f32.gmra.mrb[0].mxu0 %v558
    %v683 = vpop.f32.mrb[0].mxu0
    %v684 = vadd.f32 %v64, %v683
    %v685 = vpop.f32.mrb[0].mxu0
    %686 = vmatprep.mubr.f32.mxu0 0.0
    %687 = vmatmul.mubr.f32.gmra.mrb[0].mxu0 %v561
    %v688 = vpop.f32.mrb[0].mxu0
    %v689 = vadd.f32 %v64, %v688
    %v690 = vpop.f32.mrb[0].mxu0
    %691 = vmatprep.mubr.f32.mxu0 0.0
    %692 = vmatmul.mubr.f32.gmra.mrb[0].mxu0 %v564
    %v693 = vpop.f32.mrb[0].mxu0
    %v694 = vadd.f32 %v64, %v693
    %v695 = vpop.f32.mrb[0].mxu0
    %696 = vmatprep.mubr.f32.mxu0 0.0
    %697 = vmatmul.mubr.f32.gmra.mrb[0].mxu0 %v567
    %v698 = vpop.f32.mrb[0].mxu0
    %v699 = vadd.f32 %v64, %v698
    %v700 = vpop.f32.mrb[0].mxu0
    %701 = vmatprep.mubr.f32.mxu0 0.0
    %702 = vmatmul.mubr.f32.gmra.mrb[0].mxu0 %v570
    %v703 = vpop.f32.mrb[0].mxu0
    %v704 = vadd.f32 %v64, %v703
    %v705 = vpop.f32.mrb[0].mxu0
    %706 = vmatprep.mubr.f32.mxu0 0.0
    %707 = vmatmul.mubr.f32.gmra.mrb[0].mxu0 %v573
    %v708 = vpop.f32.mrb[0].mxu0
    %v709 = vadd.f32 %v64, %v708
    %v710 = vpop.f32.mrb[0].mxu0
    %711 = vmatprep.mubr.f32.mxu0 0.0
    %712 = vmatmul.mubr.f32.gmra.mrb[0].mxu0 %v576
    %v713 = vpop.f32.mrb[0].mxu0
    %v714 = vadd.f32 %v64, %v713
    %v715 = vpop.f32.mrb[0].mxu0
    %716 = vmatprep.mubr.f32.mxu0 0.0
    %717 = vmatmul.mubr.f32.gmra.mrb[0].mxu0 %v579
    %v718 = vpop.f32.mrb[0].mxu0
    %v719 = vadd.f32 %v64, %v718
    %v720 = vpop.f32.mrb[0].mxu0
    %721 = vmatprep.mubr.f32.mxu0 0.0
    %722 = vmatmul.mubr.f32.gmra.mrb[0].mxu0 %v582
    %v723 = vpop.f32.mrb[0].mxu0
    %v724 = vadd.f32 %v64, %v723
    %v725 = vpop.f32.mrb[0].mxu0
    %726 = vmatprep.mubr.f32.mxu0 0.0
    %727 = vmatmul.mubr.f32.gmra.mrb[0].mxu0 %v585
    %v728 = vpop.f32.mrb[0].mxu0
    %v729 = vadd.f32 %v64, %v728
    %v730 = vpop.f32.mrb[0].mxu0
    %731 = vdwg.mxu0
    %v732 = vmax.f32 %v654, 0.0
    %v733 = vmax.f32 %v659, 0.0
    %v734 = vmax.f32 %v664, 0.0
    %v735 = vmax.f32 %v669, 0.0
    %v736 = vmax.f32 %v674, 0.0
    %v737 = vmax.f32 %v679, 0.0
    %v738 = vmax.f32 %v684, 0.0
    %v739 = vmax.f32 %v689, 0.0
    %v740 = vmax.f32 %v694, 0.0
    %v741 = vmax.f32 %v699, 0.0
    %v742 = vmax.f32 %v704, 0.0
    %v743 = vmax.f32 %v709, 0.0
    %v744 = vmax.f32 %v714, 0.0
    %v745 = vmax.f32 %v719, 0.0
    %v746 = vmax.f32 %v724, 0.0
    %v747 = vmax.f32 %v729, 0.0
    %v748 = vmax.f32 %v506, %v732
    %v749 = vmax.f32 %v507, %v733
    %v750 = vmax.f32 %v508, %v734
    %v751 = vmax.f32 %v509, %v735
    %v752 = vmax.f32 %v510, %v736
    %v753 = vmax.f32 %v511, %v737
    %v754 = vmax.f32 %v512, %v738
    %v755 = vmax.f32 %v513, %v739
    %v756 = vmax.f32 %v514, %v740
    %v757 = vmax.f32 %v515, %v741
    %v758 = vmax.f32 %v516, %v742
    %v759 = vmax.f32 %v517, %v743
    %v760 = vmax.f32 %v518, %v744
    %v761 = vmax.f32 %v519, %v745
    %v762 = vmax.f32 %v520, %v746
    %v763 = vmax.f32 %v521, %v747
    %s764 = scalar_lea.vmem %s0, 384
    %v765 = vld [vmem:[%s764] sm:$0xff]
    %v766 = vld [vmem:[%s764 + $0x8] sm:$0xff]
    %v767 = vld [vmem:[%s764 + $0x10] sm:$0xff]
    %v768 = vld [vmem:[%s764 + $0x18] sm:$0xff]
    %v769 = vld [vmem:[%s764 + $0x20] sm:$0xff]
    %v770 = vld [vmem:[%s764 + $0x28] sm:$0xff]
    %v771 = vld [vmem:[%s764 + $0x30] sm:$0xff]
    %v772 = vld [vmem:[%s764 + $0x38] sm:$0xff]
    %v773 = vld [vmem:[%s764 + $0x40] sm:$0xff]
    %v774 = vld [vmem:[%s764 + $0x48] sm:$0xff]
    %v775 = vld [vmem:[%s764 + $0x50] sm:$0xff]
    %v776 = vld [vmem:[%s764 + $0x58] sm:$0xff]
    %v777 = vld [vmem:[%s764 + $0x60] sm:$0xff]
    %v778 = vld [vmem:[%s764 + $0x68] sm:$0xff]
    %v779 = vld [vmem:[%s764 + $0x70] sm:$0xff]
    %v780 = vld [vmem:[%s764 + $0x78] sm:$0xff]
    %v782 = vsel %vm66, %v765, 0
    %v785 = vsel %vm66, %v766, 0
    %v788 = vsel %vm66, %v767, 0
    %v791 = vsel %vm66, %v768, 0
    %v794 = vsel %vm66, %v769, 0
    %v797 = vsel %vm66, %v770, 0
    %v800 = vsel %vm66, %v771, 0
    %v803 = vsel %vm66, %v772, 0
    %v806 = vsel %vm66, %v773, 0
    %v809 = vsel %vm66, %v774, 0
    %v812 = vsel %vm66, %v775, 0
    %v815 = vsel %vm66, %v776, 0
    %v818 = vsel %vm66, %v777, 0
    %v821 = vsel %vm66, %v778, 0
    %v824 = vsel %vm66, %v779, 0
    %v827 = vsel %vm66, %v780, 0
    %829 = vmatprep.subr.mxu0 0.0
    %830 = vmatpush1.msra.mxu0 %v39
    %831 = vmatprep.subr.mxu0 0.0
    %832 = vmatpush1.msra.mxu0 %v40
    %833 = vmatprep.subr.mxu0 0.0
    %834 = vmatpush1.msra.mxu0 %v41
    %835 = vmatprep.subr.mxu0 0.0
    %836 = vmatpush1.msra.mxu0 %v117
    %837 = vmatprep.subr.mxu0 0.0
    %838 = vmatpush1.msra.mxu0 0.0
    %839 = vmatprep.subr.mxu0 0.0
    %840 = vmatpush1.msra.mxu0 0.0
    %841 = vmatprep.subr.mxu0 0.0
    %842 = vmatpush1.msra.mxu0 0.0
    %843 = vmatprep.subr.mxu0 0.0
    %844 = vmatpush1.msra.mxu0 0.0
    %845 = vmatprep.subr.mxu0 0.0
    %846 = vmatpush1.msra.mxu0 0.0
    %847 = vmatprep.subr.mxu0 0.0
    %848 = vmatpush1.msra.mxu0 0.0
    %849 = vmatprep.subr.mxu0 0.0
    %850 = vmatpush1.msra.mxu0 0.0
    %851 = vmatprep.subr.mxu0 0.0
    %852 = vmatpush1.msra.mxu0 0.0
    %853 = vmatprep.subr.mxu0 0.0
    %854 = vmatpush1.msra.mxu0 0.0
    %855 = vmatprep.subr.mxu0 0.0
    %856 = vmatpush1.msra.mxu0 0.0
    %857 = vmatprep.subr.mxu0 0.0
    %858 = vmatpush1.msra.mxu0 0.0
    %859 = vmatprep.subr.mxu0 0.0
    %860 = vmatpush1.msra.mxu0 0.0
    %861 = vmatprep.subr.mxu0 0.0
    %862 = vmatpush1.msra.mxu0 0.0
    %863 = vmatprep.subr.mxu0 0.0
    %864 = vmatpush1.msra.mxu0 0.0
    %865 = vmatprep.subr.mxu0 0.0
    %866 = vmatpush1.msra.mxu0 0.0
    %867 = vmatprep.subr.mxu0 0.0
    %868 = vmatpush1.msra.mxu0 0.0
    %869 = vmatprep.subr.mxu0 0.0
    %870 = vmatpush1.msra.mxu0 0.0
    %871 = vmatprep.subr.mxu0 0.0
    %872 = vmatpush1.msra.mxu0 0.0
    %873 = vmatprep.subr.mxu0 0.0
    %874 = vmatpush1.msra.mxu0 0.0
    %875 = vmatprep.subr.mxu0 0.0
    %876 = vmatpush1.msra.mxu0 0.0
    %877 = vmatprep.subr.mxu0 0.0
    %878 = vmatpush1.msra.mxu0 0.0
    %879 = vmatprep.subr.mxu0 0.0
    %880 = vmatpush1.msra.mxu0 0.0
    %881 = vmatprep.subr.mxu0 0.0
    %882 = vmatpush1.msra.mxu0 0.0
    %883 = vmatprep.subr.mxu0 0.0
    %884 = vmatpush1.msra.mxu0 0.0
    %885 = vmatprep.subr.mxu0 0.0
    %886 = vmatpush1.msra.mxu0 0.0
    %887 = vmatprep.subr.mxu0 0.0
    %888 = vmatpush1.msra.mxu0 0.0
    %889 = vmatprep.subr.mxu0 0.0
    %890 = vmatpush1.msra.mxu0 0.0
    %891 = vmatprep.subr.mxu0 0.0
    %892 = vmatpush1.msra.mxu0 0.0
    %893 = vmatprep.mubr.f32.mxu0 0.0
    %894 = vmatmul.mubr.f32.gmra.mrb[0].mxu0 %v782
    %v895 = vpop.f32.mrb[0].mxu0
    %v896 = vadd.f32 %v64, %v895
    %v897 = vpop.f32.mrb[0].mxu0
    %898 = vmatprep.mubr.f32.mxu0 0.0
    %899 = vmatmul.mubr.f32.gmra.mrb[0].mxu0 %v785
    %v900 = vpop.f32.mrb[0].mxu0
    %v901 = vadd.f32 %v64, %v900
    %v902 = vpop.f32.mrb[0].mxu0
    %903 = vmatprep.mubr.f32.mxu0 0.0
    %904 = vmatmul.mubr.f32.gmra.mrb[0].mxu0 %v788
    %v905 = vpop.f32.mrb[0].mxu0
    %v906 = vadd.f32 %v64, %v905
    %v907 = vpop.f32.mrb[0].mxu0
    %908 = vmatprep.mubr.f32.mxu0 0.0
    %909 = vmatmul.mubr.f32.gmra.mrb[0].mxu0 %v791
    %v910 = vpop.f32.mrb[0].mxu0
    %v911 = vadd.f32 %v64, %v910
    %v912 = vpop.f32.mrb[0].mxu0
    %913 = vmatprep.mubr.f32.mxu0 0.0
    %914 = vmatmul.mubr.f32.gmra.mrb[0].mxu0 %v794
    %v915 = vpop.f32.mrb[0].mxu0
    %v916 = vadd.f32 %v64, %v915
    %v917 = vpop.f32.mrb[0].mxu0
    %918 = vmatprep.mubr.f32.mxu0 0.0
    %919 = vmatmul.mubr.f32.gmra.mrb[0].mxu0 %v797
    %v920 = vpop.f32.mrb[0].mxu0
    %v921 = vadd.f32 %v64, %v920
    %v922 = vpop.f32.mrb[0].mxu0
    %923 = vmatprep.mubr.f32.mxu0 0.0
    %924 = vmatmul.mubr.f32.gmra.mrb[0].mxu0 %v800
    %v925 = vpop.f32.mrb[0].mxu0
    %v926 = vadd.f32 %v64, %v925
    %v927 = vpop.f32.mrb[0].mxu0
    %928 = vmatprep.mubr.f32.mxu0 0.0
    %929 = vmatmul.mubr.f32.gmra.mrb[0].mxu0 %v803
    %v930 = vpop.f32.mrb[0].mxu0
    %v931 = vadd.f32 %v64, %v930
    %v932 = vpop.f32.mrb[0].mxu0
    %933 = vmatprep.mubr.f32.mxu0 0.0
    %934 = vmatmul.mubr.f32.gmra.mrb[0].mxu0 %v806
    %v935 = vpop.f32.mrb[0].mxu0
    %v936 = vadd.f32 %v64, %v935
    %v937 = vpop.f32.mrb[0].mxu0
    %938 = vmatprep.mubr.f32.mxu0 0.0
    %939 = vmatmul.mubr.f32.gmra.mrb[0].mxu0 %v809
    %v940 = vpop.f32.mrb[0].mxu0
    %v941 = vadd.f32 %v64, %v940
    %v942 = vpop.f32.mrb[0].mxu0
    %943 = vmatprep.mubr.f32.mxu0 0.0
    %944 = vmatmul.mubr.f32.gmra.mrb[0].mxu0 %v812
    %v945 = vpop.f32.mrb[0].mxu0
    %v946 = vadd.f32 %v64, %v945
    %v947 = vpop.f32.mrb[0].mxu0
    %948 = vmatprep.mubr.f32.mxu0 0.0
    %949 = vmatmul.mubr.f32.gmra.mrb[0].mxu0 %v815
    %v950 = vpop.f32.mrb[0].mxu0
    %v951 = vadd.f32 %v64, %v950
    %v952 = vpop.f32.mrb[0].mxu0
    %953 = vmatprep.mubr.f32.mxu0 0.0
    %954 = vmatmul.mubr.f32.gmra.mrb[0].mxu0 %v818
    %v955 = vpop.f32.mrb[0].mxu0
    %v956 = vadd.f32 %v64, %v955
    %v957 = vpop.f32.mrb[0].mxu0
    %958 = vmatprep.mubr.f32.mxu0 0.0
    %959 = vmatmul.mubr.f32.gmra.mrb[0].mxu0 %v821
    %v960 = vpop.f32.mrb[0].mxu0
    %v961 = vadd.f32 %v64, %v960
    %v962 = vpop.f32.mrb[0].mxu0
    %963 = vmatprep.mubr.f32.mxu0 0.0
    %964 = vmatmul.mubr.f32.gmra.mrb[0].mxu0 %v824
    %v965 = vpop.f32.mrb[0].mxu0
    %v966 = vadd.f32 %v64, %v965
    %v967 = vpop.f32.mrb[0].mxu0
    %968 = vmatprep.mubr.f32.mxu0 0.0
    %969 = vmatmul.mubr.f32.gmra.mrb[0].mxu0 %v827
    %v970 = vpop.f32.mrb[0].mxu0
    %v971 = vadd.f32 %v64, %v970
    %v972 = vpop.f32.mrb[0].mxu0
    %973 = vdwg.mxu0
    %v974 = vmax.f32 %v896, 0.0
    %v975 = vmax.f32 %v901, 0.0
    %v976 = vmax.f32 %v906, 0.0
    %v977 = vmax.f32 %v911, 0.0
    %v978 = vmax.f32 %v916, 0.0
    %v979 = vmax.f32 %v921, 0.0
    %v980 = vmax.f32 %v926, 0.0
    %v981 = vmax.f32 %v931, 0.0
    %v982 = vmax.f32 %v936, 0.0
    %v983 = vmax.f32 %v941, 0.0
    %v984 = vmax.f32 %v946, 0.0
    %v985 = vmax.f32 %v951, 0.0
    %v986 = vmax.f32 %v956, 0.0
    %v987 = vmax.f32 %v961, 0.0
    %v988 = vmax.f32 %v966, 0.0
    %v989 = vmax.f32 %v971, 0.0
    %v990 = vmax.f32 %v748, %v974
    %v991 = vmax.f32 %v749, %v975
    %v992 = vmax.f32 %v750, %v976
    %v993 = vmax.f32 %v751, %v977
    %v994 = vmax.f32 %v752, %v978
    %v995 = vmax.f32 %v753, %v979
    %v996 = vmax.f32 %v754, %v980
    %v997 = vmax.f32 %v755, %v981
    %v998 = vmax.f32 %v756, %v982
    %v999 = vmax.f32 %v757, %v983
    %v1000 = vmax.f32 %v758, %v984
    %v1001 = vmax.f32 %v759, %v985
    %v1002 = vmax.f32 %v760, %v986
    %v1003 = vmax.f32 %v761, %v987
    %v1004 = vmax.f32 %v762, %v988
    %v1005 = vmax.f32 %v763, %v989
    %vm1006 = vcmask 48128
    %1007 = vst.msk [vmem:[#allocation2] sm:$0xff] %vm1006, %v990
    %1008 = vst.msk [vmem:[#allocation2 + $0x8] sm:$0xff] %vm1006, %v991
    %1009 = vst.msk [vmem:[#allocation2 + $0x10] sm:$0xff] %vm1006, %v992
    %1010 = vst.msk [vmem:[#allocation2 + $0x18] sm:$0xff] %vm1006, %v993
    %1011 = vst.msk [vmem:[#allocation2 + $0x20] sm:$0xff] %vm1006, %v994
    %1012 = vst.msk [vmem:[#allocation2 + $0x28] sm:$0xff] %vm1006, %v995
    %1013 = vst.msk [vmem:[#allocation2 + $0x30] sm:$0xff] %vm1006, %v996
    %1014 = vst.msk [vmem:[#allocation2 + $0x38] sm:$0xff] %vm1006, %v997
    %1015 = vst.msk [vmem:[#allocation2 + $0x40] sm:$0xff] %vm1006, %v998
    %1016 = vst.msk [vmem:[#allocation2 + $0x48] sm:$0xff] %vm1006, %v999
    %1017 = vst.msk [vmem:[#allocation2 + $0x50] sm:$0xff] %vm1006, %v1000
    %1018 = vst.msk [vmem:[#allocation2 + $0x58] sm:$0xff] %vm1006, %v1001
    %1019 = vst.msk [vmem:[#allocation2 + $0x60] sm:$0xff] %vm1006, %v1002
    %1020 = vst.msk [vmem:[#allocation2 + $0x68] sm:$0xff] %vm1006, %v1003
    %1021 = vst.msk [vmem:[#allocation2 + $0x70] sm:$0xff] %vm1006, %v1004
    %1022 = vst.msk [vmem:[#allocation2 + $0x78] sm:$0xff] %vm1006, %v1005
    %1023 = vst.msk [vmem:[#allocation2 + $0x80] sm:$0xff] %vm1006, 0.0
    %1024 = vst.msk [vmem:[#allocation2 + $0x88] sm:$0xff] %vm1006, 0.0
    %1025 = vst.msk [vmem:[#allocation2 + $0x90] sm:$0xff] %vm1006, 0.0
    %1026 = vst.msk [vmem:[#allocation2 + $0x98] sm:$0xff] %vm1006, 0.0
    %vm1027 = vcmask 44032
    %1028 = vst.msk [vmem:[#allocation2 + $0xa0] sm:$0xf] %vm1027, 0.0
    %v1029 = vld [vmem:[#allocation2] sm:$0xff]
    %v1030 = vld [vmem:[#allocation2 + $0x8] sm:$0xff]
    %v1031 = vld [vmem:[#allocation2 + $0x10] sm:$0xff]
    %v1032 = vld [vmem:[#allocation2 + $0x18] sm:$0xff]
    %v1033 = vld [vmem:[#allocation2 + $0x20] sm:$0xff]
    %v1034 = vld [vmem:[#allocation2 + $0x28] sm:$0xff]
    %v1035 = vld [vmem:[#allocation2 + $0x30] sm:$0xff]
    %v1036 = vld [vmem:[#allocation2 + $0x38] sm:$0xff]
    %v1037 = vld [vmem:[#allocation2 + $0x40] sm:$0xff]
    %v1038 = vld [vmem:[#allocation2 + $0x48] sm:$0xff]
    %v1039 = vld [vmem:[#allocation2 + $0x50] sm:$0xff]
    %v1040 = vld [vmem:[#allocation2 + $0x58] sm:$0xff]
    %v1041 = vld [vmem:[#allocation2 + $0x60] sm:$0xff]
    %v1042 = vld [vmem:[#allocation2 + $0x68] sm:$0xff]
    %v1043 = vld [vmem:[#allocation2 + $0x70] sm:$0xff]
    %v1044 = vld [vmem:[#allocation2 + $0x78] sm:$0xff]
    %v1045 = vld [vmem:[%s3] sm:$0x3f]
    %v1046 = vld [vmem:[#allocation2 + $0x1] sm:$0xff]
    %v1047 = vld [vmem:[#allocation2 + $0x9] sm:$0xff]
    %v1048 = vld [vmem:[#allocation2 + $0x11] sm:$0xff]
    %v1049 = vld [vmem:[#allocation2 + $0x19] sm:$0xff]
    %v1050 = vld [vmem:[#allocation2 + $0x21] sm:$0xff]
    %v1051 = vld [vmem:[#allocation2 + $0x29] sm:$0xff]
    %v1052 = vld [vmem:[#allocation2 + $0x31] sm:$0xff]
    %v1053 = vld [vmem:[#allocation2 + $0x39] sm:$0xff]
    %v1054 = vld [vmem:[#allocation2 + $0x41] sm:$0xff]
    %v1055 = vld [vmem:[#allocation2 + $0x49] sm:$0xff]
    %v1056 = vld [vmem:[#allocation2 + $0x51] sm:$0xff]
    %v1057 = vld [vmem:[#allocation2 + $0x59] sm:$0xff]
    %v1058 = vld [vmem:[#allocation2 + $0x61] sm:$0xff]
    %v1059 = vld [vmem:[#allocation2 + $0x69] sm:$0xff]
    %v1060 = vld [vmem:[#allocation2 + $0x71] sm:$0xff]
    %v1061 = vld [vmem:[#allocation2 + $0x79] sm:$0xff]
    %s1062 = scalar_lea.vmem %s3, 8
    %v1063 = vld [vmem:[%s1062] sm:$0x3f]
    %v1065 = vsel %vm1006, %v1046, 0
    %v1068 = vsel %vm1006, %v1047, 0
    %v1071 = vsel %vm1006, %v1048, 0
    %v1074 = vsel %vm1006, %v1049, 0
    %v1077 = vsel %vm1006, %v1050, 0
    %v1080 = vsel %vm1006, %v1051, 0
    %v1083 = vsel %vm1006, %v1052, 0
    %v1086 = vsel %vm1006, %v1053, 0
    %v1089 = vsel %vm1006, %v1054, 0
    %v1092 = vsel %vm1006, %v1055, 0
    %v1095 = vsel %vm1006, %v1056, 0
    %v1098 = vsel %vm1006, %v1057, 0
    %v1101 = vsel %vm1006, %v1058, 0
    %v1104 = vsel %vm1006, %v1059, 0
    %v1107 = vsel %vm1006, %v1060, 0
    %v1110 = vsel %vm1006, %v1061, 0
    %vm1112 = vcmask 1045504
    %v1114 = vsel %vm1112, %v1063, 0
    %1116 = vmatprep.subr.mxu0 0.0
    %1117 = vmatpush1.msra.mxu0 %v1114
    %1118 = vmatprep.subr.mxu0 0.0
    %1119 = vmatpush1.msra.mxu0 0.0
    %1120 = vmatprep.subr.mxu0 0.0
    %1121 = vmatpush1.msra.mxu0 0.0
    %1122 = vmatprep.subr.mxu0 0.0
    %1123 = vmatpush1.msra.mxu0 0.0
    %1124 = vmatprep.subr.mxu0 0.0
    %1125 = vmatpush1.msra.mxu0 0.0
    %1126 = vmatprep.subr.mxu0 0.0
    %1127 = vmatpush1.msra.mxu0 0.0
    %1128 = vmatprep.subr.mxu0 0.0
    %1129 = vmatpush1.msra.mxu0 0.0
    %1130 = vmatprep.subr.mxu0 0.0
    %1131 = vmatpush1.msra.mxu0 0.0
    %1132 = vmatprep.subr.mxu0 0.0
    %1133 = vmatpush1.msra.mxu0 0.0
    %1134 = vmatprep.subr.mxu0 0.0
    %1135 = vmatpush1.msra.mxu0 0.0
    %1136 = vmatprep.subr.mxu0 0.0
    %1137 = vmatpush1.msra.mxu0 0.0
    %1138 = vmatprep.subr.mxu0 0.0
    %1139 = vmatpush1.msra.mxu0 0.0
    %1140 = vmatprep.subr.mxu0 0.0
    %1141 = vmatpush1.msra.mxu0 0.0
    %1142 = vmatprep.subr.mxu0 0.0
    %1143 = vmatpush1.msra.mxu0 0.0
    %1144 = vmatprep.subr.mxu0 0.0
    %1145 = vmatpush1.msra.mxu0 0.0
    %1146 = vmatprep.subr.mxu0 0.0
    %1147 = vmatpush1.msra.mxu0 0.0
    %1148 = vmatprep.subr.mxu0 0.0
    %1149 = vmatpush1.msra.mxu0 0.0
    %1150 = vmatprep.subr.mxu0 0.0
    %1151 = vmatpush1.msra.mxu0 0.0
    %1152 = vmatprep.subr.mxu0 0.0
    %1153 = vmatpush1.msra.mxu0 0.0
    %1154 = vmatprep.subr.mxu0 0.0
    %1155 = vmatpush1.msra.mxu0 0.0
    %1156 = vmatprep.subr.mxu0 0.0
    %1157 = vmatpush1.msra.mxu0 0.0
    %1158 = vmatprep.subr.mxu0 0.0
    %1159 = vmatpush1.msra.mxu0 0.0
    %1160 = vmatprep.subr.mxu0 0.0
    %1161 = vmatpush1.msra.mxu0 0.0
    %1162 = vmatprep.subr.mxu0 0.0
    %1163 = vmatpush1.msra.mxu0 0.0
    %1164 = vmatprep.subr.mxu0 0.0
    %1165 = vmatpush1.msra.mxu0 0.0
    %1166 = vmatprep.subr.mxu0 0.0
    %1167 = vmatpush1.msra.mxu0 0.0
    %1168 = vmatprep.subr.mxu0 0.0
    %1169 = vmatpush1.msra.mxu0 0.0
    %1170 = vmatprep.subr.mxu0 0.0
    %1171 = vmatpush1.msra.mxu0 0.0
    %1172 = vmatprep.subr.mxu0 0.0
    %1173 = vmatpush1.msra.mxu0 0.0
    %1174 = vmatprep.subr.mxu0 0.0
    %1175 = vmatpush1.msra.mxu0 0.0
    %1176 = vmatprep.subr.mxu0 0.0
    %1177 = vmatpush1.msra.mxu0 0.0
    %1178 = vmatprep.subr.mxu0 0.0
    %1179 = vmatpush1.msra.mxu0 0.0
    %1180 = vmatprep.mubr.f32.mxu0 0.0
    %1181 = vmatmul.mubr.f32.gmra.mrb[0].mxu0 %v1065
    %v1182 = vpop.f32.mrb[0].mxu0
    %v1183 = vadd.f32 0.0, %v1182
    %v1184 = vpop.f32.mrb[0].mxu0
    %1185 = vmatprep.mubr.f32.mxu0 0.0
    %1186 = vmatmul.mubr.f32.gmra.mrb[0].mxu0 %v1068
    %v1187 = vpop.f32.mrb[0].mxu0
    %v1188 = vadd.f32 0.0, %v1187
    %v1189 = vpop.f32.mrb[0].mxu0
    %1190 = vmatprep.mubr.f32.mxu0 0.0
    %1191 = vmatmul.mubr.f32.gmra.mrb[0].mxu0 %v1071
    %v1192 = vpop.f32.mrb[0].mxu0
    %v1193 = vadd.f32 0.0, %v1192
    %v1194 = vpop.f32.mrb[0].mxu0
    %1195 = vmatprep.mubr.f32.mxu0 0.0
    %1196 = vmatmul.mubr.f32.gmra.mrb[0].mxu0 %v1074
    %v1197 = vpop.f32.mrb[0].mxu0
    %v1198 = vadd.f32 0.0, %v1197
    %v1199 = vpop.f32.mrb[0].mxu0
    %1200 = vmatprep.mubr.f32.mxu0 0.0
    %1201 = vmatmul.mubr.f32.gmra.mrb[0].mxu0 %v1077
    %v1202 = vpop.f32.mrb[0].mxu0
    %v1203 = vadd.f32 0.0, %v1202
    %v1204 = vpop.f32.mrb[0].mxu0
    %1205 = vmatprep.mubr.f32.mxu0 0.0
    %1206 = vmatmul.mubr.f32.gmra.mrb[0].mxu0 %v1080
    %v1207 = vpop.f32.mrb[0].mxu0
    %v1208 = vadd.f32 0.0, %v1207
    %v1209 = vpop.f32.mrb[0].mxu0
    %1210 = vmatprep.mubr.f32.mxu0 0.0
    %1211 = vmatmul.mubr.f32.gmra.mrb[0].mxu0 %v1083
    %v1212 = vpop.f32.mrb[0].mxu0
    %v1213 = vadd.f32 0.0, %v1212
    %v1214 = vpop.f32.mrb[0].mxu0
    %1215 = vmatprep.mubr.f32.mxu0 0.0
    %1216 = vmatmul.mubr.f32.gmra.mrb[0].mxu0 %v1086
    %v1217 = vpop.f32.mrb[0].mxu0
    %v1218 = vadd.f32 0.0, %v1217
    %v1219 = vpop.f32.mrb[0].mxu0
    %1220 = vmatprep.mubr.f32.mxu0 0.0
    %1221 = vmatmul.mubr.f32.gmra.mrb[0].mxu0 %v1089
    %v1222 = vpop.f32.mrb[0].mxu0
    %v1223 = vadd.f32 0.0, %v1222
    %v1224 = vpop.f32.mrb[0].mxu0
    %1225 = vmatprep.mubr.f32.mxu0 0.0
    %1226 = vmatmul.mubr.f32.gmra.mrb[0].mxu0 %v1092
    %v1227 = vpop.f32.mrb[0].mxu0
    %v1228 = vadd.f32 0.0, %v1227
    %v1229 = vpop.f32.mrb[0].mxu0
    %1230 = vmatprep.mubr.f32.mxu0 0.0
    %1231 = vmatmul.mubr.f32.gmra.mrb[0].mxu0 %v1095
    %v1232 = vpop.f32.mrb[0].mxu0
    %v1233 = vadd.f32 0.0, %v1232
    %v1234 = vpop.f32.mrb[0].mxu0
    %1235 = vmatprep.mubr.f32.mxu0 0.0
    %1236 = vmatmul.mubr.f32.gmra.mrb[0].mxu0 %v1098
    %v1237 = vpop.f32.mrb[0].mxu0
    %v1238 = vadd.f32 0.0, %v1237
    %v1239 = vpop.f32.mrb[0].mxu0
    %1240 = vmatprep.mubr.f32.mxu0 0.0
    %1241 = vmatmul.mubr.f32.gmra.mrb[0].mxu0 %v1101
    %v1242 = vpop.f32.mrb[0].mxu0
    %v1243 = vadd.f32 0.0, %v1242
    %v1244 = vpop.f32.mrb[0].mxu0
    %1245 = vmatprep.mubr.f32.mxu0 0.0
    %1246 = vmatmul.mubr.f32.gmra.mrb[0].mxu0 %v1104
    %v1247 = vpop.f32.mrb[0].mxu0
    %v1248 = vadd.f32 0.0, %v1247
    %v1249 = vpop.f32.mrb[0].mxu0
    %1250 = vmatprep.mubr.f32.mxu0 0.0
    %1251 = vmatmul.mubr.f32.gmra.mrb[0].mxu0 %v1107
    %v1252 = vpop.f32.mrb[0].mxu0
    %v1253 = vadd.f32 0.0, %v1252
    %v1254 = vpop.f32.mrb[0].mxu0
    %1255 = vmatprep.mubr.f32.mxu0 0.0
    %1256 = vmatmul.mubr.f32.gmra.mrb[0].mxu0 %v1110
    %v1257 = vpop.f32.mrb[0].mxu0
    %v1258 = vadd.f32 0.0, %v1257
    %v1259 = vpop.f32.mrb[0].mxu0
    %1260 = vdwg.mxu0
    %v1262 = vsel %vm1006, %v1029, 0
    %v1265 = vsel %vm1006, %v1030, 0
    %v1268 = vsel %vm1006, %v1031, 0
    %v1271 = vsel %vm1006, %v1032, 0
    %v1274 = vsel %vm1006, %v1033, 0
    %v1277 = vsel %vm1006, %v1034, 0
    %v1280 = vsel %vm1006, %v1035, 0
    %v1283 = vsel %vm1006, %v1036, 0
    %v1286 = vsel %vm1006, %v1037, 0
    %v1289 = vsel %vm1006, %v1038, 0
    %v1292 = vsel %vm1006, %v1039, 0
    %v1295 = vsel %vm1006, %v1040, 0
    %v1298 = vsel %vm1006, %v1041, 0
    %v1301 = vsel %vm1006, %v1042, 0
    %v1304 = vsel %vm1006, %v1043, 0
    %v1307 = vsel %vm1006, %v1044, 0
    %v1310 = vsel %vm1112, %v1045, 0
    %1312 = vmatprep.subr.mxu0 0.0
    %1313 = vmatpush1.msra.mxu0 %v1310
    %1314 = vmatprep.subr.mxu0 0.0
    %1315 = vmatpush1.msra.mxu0 0.0
    %1316 = vmatprep.subr.mxu0 0.0
    %1317 = vmatpush1.msra.mxu0 0.0
    %1318 = vmatprep.subr.mxu0 0.0
    %1319 = vmatpush1.msra.mxu0 0.0
    %1320 = vmatprep.subr.mxu0 0.0
    %1321 = vmatpush1.msra.mxu0 0.0
    %1322 = vmatprep.subr.mxu0 0.0
    %1323 = vmatpush1.msra.mxu0 0.0
    %1324 = vmatprep.subr.mxu0 0.0
    %1325 = vmatpush1.msra.mxu0 0.0
    %1326 = vmatprep.subr.mxu0 0.0
    %1327 = vmatpush1.msra.mxu0 0.0
    %1328 = vmatprep.subr.mxu0 0.0
    %1329 = vmatpush1.msra.mxu0 0.0
    %1330 = vmatprep.subr.mxu0 0.0
    %1331 = vmatpush1.msra.mxu0 0.0
    %1332 = vmatprep.subr.mxu0 0.0
    %1333 = vmatpush1.msra.mxu0 0.0
    %1334 = vmatprep.subr.mxu0 0.0
    %1335 = vmatpush1.msra.mxu0 0.0
    %1336 = vmatprep.subr.mxu0 0.0
    %1337 = vmatpush1.msra.mxu0 0.0
    %1338 = vmatprep.subr.mxu0 0.0
    %1339 = vmatpush1.msra.mxu0 0.0
    %1340 = vmatprep.subr.mxu0 0.0
    %1341 = vmatpush1.msra.mxu0 0.0
    %1342 = vmatprep.subr.mxu0 0.0
    %1343 = vmatpush1.msra.mxu0 0.0
    %1344 = vmatprep.subr.mxu0 0.0
    %1345 = vmatpush1.msra.mxu0 0.0
    %1346 = vmatprep.subr.mxu0 0.0
    %1347 = vmatpush1.msra.mxu0 0.0
    %1348 = vmatprep.subr.mxu0 0.0
    %1349 = vmatpush1.msra.mxu0 0.0
    %1350 = vmatprep.subr.mxu0 0.0
    %1351 = vmatpush1.msra.mxu0 0.0
    %1352 = vmatprep.subr.mxu0 0.0
    %1353 = vmatpush1.msra.mxu0 0.0
    %1354 = vmatprep.subr.mxu0 0.0
    %1355 = vmatpush1.msra.mxu0 0.0
    %1356 = vmatprep.subr.mxu0 0.0
    %1357 = vmatpush1.msra.mxu0 0.0
    %1358 = vmatprep.subr.mxu0 0.0
    %1359 = vmatpush1.msra.mxu0 0.0
    %1360 = vmatprep.subr.mxu0 0.0
    %1361 = vmatpush1.msra.mxu0 0.0
    %1362 = vmatprep.subr.mxu0 0.0
    %1363 = vmatpush1.msra.mxu0 0.0
    %1364 = vmatprep.subr.mxu0 0.0
    %1365 = vmatpush1.msra.mxu0 0.0
    %1366 = vmatprep.subr.mxu0 0.0
    %1367 = vmatpush1.msra.mxu0 0.0
    %1368 = vmatprep.subr.mxu0 0.0
    %1369 = vmatpush1.msra.mxu0 0.0
    %1370 = vmatprep.subr.mxu0 0.0
    %1371 = vmatpush1.msra.mxu0 0.0
    %1372 = vmatprep.subr.mxu0 0.0
    %1373 = vmatpush1.msra.mxu0 0.0
    %1374 = vmatprep.subr.mxu0 0.0
    %1375 = vmatpush1.msra.mxu0 0.0
    %1376 = vmatprep.mubr.f32.mxu0 0.0
    %1377 = vmatmul.mubr.f32.gmra.mrb[0].mxu0 %v1262
    %v1378 = vpop.f32.mrb[0].mxu0
    %v1379 = vadd.f32 %v1183, %v1378
    %v1380 = vpop.f32.mrb[0].mxu0
    %1381 = vmatprep.mubr.f32.mxu0 0.0
    %1382 = vmatmul.mubr.f32.gmra.mrb[0].mxu0 %v1265
    %v1383 = vpop.f32.mrb[0].mxu0
    %v1384 = vadd.f32 %v1188, %v1383
    %v1385 = vpop.f32.mrb[0].mxu0
    %1386 = vmatprep.mubr.f32.mxu0 0.0
    %1387 = vmatmul.mubr.f32.gmra.mrb[0].mxu0 %v1268
    %v1388 = vpop.f32.mrb[0].mxu0
    %v1389 = vadd.f32 %v1193, %v1388
    %v1390 = vpop.f32.mrb[0].mxu0
    %1391 = vmatprep.mubr.f32.mxu0 0.0
    %1392 = vmatmul.mubr.f32.gmra.mrb[0].mxu0 %v1271
    %v1393 = vpop.f32.mrb[0].mxu0
    %v1394 = vadd.f32 %v1198, %v1393
    %v1395 = vpop.f32.mrb[0].mxu0
    %1396 = vmatprep.mubr.f32.mxu0 0.0
    %1397 = vmatmul.mubr.f32.gmra.mrb[0].mxu0 %v1274
    %v1398 = vpop.f32.mrb[0].mxu0
    %v1399 = vadd.f32 %v1203, %v1398
    %v1400 = vpop.f32.mrb[0].mxu0
    %1401 = vmatprep.mubr.f32.mxu0 0.0
    %1402 = vmatmul.mubr.f32.gmra.mrb[0].mxu0 %v1277
    %v1403 = vpop.f32.mrb[0].mxu0
    %v1404 = vadd.f32 %v1208, %v1403
    %v1405 = vpop.f32.mrb[0].mxu0
    %1406 = vmatprep.mubr.f32.mxu0 0.0
    %1407 = vmatmul.mubr.f32.gmra.mrb[0].mxu0 %v1280
    %v1408 = vpop.f32.mrb[0].mxu0
    %v1409 = vadd.f32 %v1213, %v1408
    %v1410 = vpop.f32.mrb[0].mxu0
    %1411 = vmatprep.mubr.f32.mxu0 0.0
    %1412 = vmatmul.mubr.f32.gmra.mrb[0].mxu0 %v1283
    %v1413 = vpop.f32.mrb[0].mxu0
    %v1414 = vadd.f32 %v1218, %v1413
    %v1415 = vpop.f32.mrb[0].mxu0
    %1416 = vmatprep.mubr.f32.mxu0 0.0
    %1417 = vmatmul.mubr.f32.gmra.mrb[0].mxu0 %v1286
    %v1418 = vpop.f32.mrb[0].mxu0
    %v1419 = vadd.f32 %v1223, %v1418
    %v1420 = vpop.f32.mrb[0].mxu0
    %1421 = vmatprep.mubr.f32.mxu0 0.0
    %1422 = vmatmul.mubr.f32.gmra.mrb[0].mxu0 %v1289
    %v1423 = vpop.f32.mrb[0].mxu0
    %v1424 = vadd.f32 %v1228, %v1423
    %v1425 = vpop.f32.mrb[0].mxu0
    %1426 = vmatprep.mubr.f32.mxu0 0.0
    %1427 = vmatmul.mubr.f32.gmra.mrb[0].mxu0 %v1292
    %v1428 = vpop.f32.mrb[0].mxu0
    %v1429 = vadd.f32 %v1233, %v1428
    %v1430 = vpop.f32.mrb[0].mxu0
    %1431 = vmatprep.mubr.f32.mxu0 0.0
    %1432 = vmatmul.mubr.f32.gmra.mrb[0].mxu0 %v1295
    %v1433 = vpop.f32.mrb[0].mxu0
    %v1434 = vadd.f32 %v1238, %v1433
    %v1435 = vpop.f32.mrb[0].mxu0
    %1436 = vmatprep.mubr.f32.mxu0 0.0
    %1437 = vmatmul.mubr.f32.gmra.mrb[0].mxu0 %v1298
    %v1438 = vpop.f32.mrb[0].mxu0
    %v1439 = vadd.f32 %v1243, %v1438
    %v1440 = vpop.f32.mrb[0].mxu0
    %1441 = vmatprep.mubr.f32.mxu0 0.0
    %1442 = vmatmul.mubr.f32.gmra.mrb[0].mxu0 %v1301
    %v1443 = vpop.f32.mrb[0].mxu0
    %v1444 = vadd.f32 %v1248, %v1443
    %v1445 = vpop.f32.mrb[0].mxu0
    %1446 = vmatprep.mubr.f32.mxu0 0.0
    %1447 = vmatmul.mubr.f32.gmra.mrb[0].mxu0 %v1304
    %v1448 = vpop.f32.mrb[0].mxu0
    %v1449 = vadd.f32 %v1253, %v1448
    %v1450 = vpop.f32.mrb[0].mxu0
    %1451 = vmatprep.mubr.f32.mxu0 0.0
    %1452 = vmatmul.mubr.f32.gmra.mrb[0].mxu0 %v1307
    %v1453 = vpop.f32.mrb[0].mxu0
    %v1454 = vadd.f32 %v1258, %v1453
    %v1455 = vpop.f32.mrb[0].mxu0
    %1456 = vdwg.mxu0
    %v1457 = vld [vmem:[#allocation2 + $0x2] sm:$0xff]
    %v1458 = vld [vmem:[#allocation2 + $0xa] sm:$0xff]
    %v1459 = vld [vmem:[#allocation2 + $0x12] sm:$0xff]
    %v1460 = vld [vmem:[#allocation2 + $0x1a] sm:$0xff]
    %v1461 = vld [vmem:[#allocation2 + $0x22] sm:$0xff]
    %v1462 = vld [vmem:[#allocation2 + $0x2a] sm:$0xff]
    %v1463 = vld [vmem:[#allocation2 + $0x32] sm:$0xff]
    %v1464 = vld [vmem:[#allocation2 + $0x3a] sm:$0xff]
    %v1465 = vld [vmem:[#allocation2 + $0x42] sm:$0xff]
    %v1466 = vld [vmem:[#allocation2 + $0x4a] sm:$0xff]
    %v1467 = vld [vmem:[#allocation2 + $0x52] sm:$0xff]
    %v1468 = vld [vmem:[#allocation2 + $0x5a] sm:$0xff]
    %v1469 = vld [vmem:[#allocation2 + $0x62] sm:$0xff]
    %v1470 = vld [vmem:[#allocation2 + $0x6a] sm:$0xff]
    %v1471 = vld [vmem:[#allocation2 + $0x72] sm:$0xff]
    %v1472 = vld [vmem:[#allocation2 + $0x7a] sm:$0xff]
    %s1473 = scalar_lea.vmem %s3, 16
    %v1474 = vld [vmem:[%s1473] sm:$0x3f]
    %v1476 = vsel %vm1006, %v1457, 0
    %v1479 = vsel %vm1006, %v1458, 0
    %v1482 = vsel %vm1006, %v1459, 0
    %v1485 = vsel %vm1006, %v1460, 0
    %v1488 = vsel %vm1006, %v1461, 0
    %v1491 = vsel %vm1006, %v1462, 0
    %v1494 = vsel %vm1006, %v1463, 0
    %v1497 = vsel %vm1006, %v1464, 0
    %v1500 = vsel %vm1006, %v1465, 0
    %v1503 = vsel %vm1006, %v1466, 0
    %v1506 = vsel %vm1006, %v1467, 0
    %v1509 = vsel %vm1006, %v1468, 0
    %v1512 = vsel %vm1006, %v1469, 0
    %v1515 = vsel %vm1006, %v1470, 0
    %v1518 = vsel %vm1006, %v1471, 0
    %v1521 = vsel %vm1006, %v1472, 0
    %v1524 = vsel %vm1112, %v1474, 0
    %1526 = vmatprep.subr.mxu0 0.0
    %1527 = vmatpush1.msra.mxu0 %v1524
    %1528 = vmatprep.subr.mxu0 0.0
    %1529 = vmatpush1.msra.mxu0 0.0
    %1530 = vmatprep.subr.mxu0 0.0
    %1531 = vmatpush1.msra.mxu0 0.0
    %1532 = vmatprep.subr.mxu0 0.0
    %1533 = vmatpush1.msra.mxu0 0.0
    %1534 = vmatprep.subr.mxu0 0.0
    %1535 = vmatpush1.msra.mxu0 0.0
    %1536 = vmatprep.subr.mxu0 0.0
    %1537 = vmatpush1.msra.mxu0 0.0
    %1538 = vmatprep.subr.mxu0 0.0
    %1539 = vmatpush1.msra.mxu0 0.0
    %1540 = vmatprep.subr.mxu0 0.0
    %1541 = vmatpush1.msra.mxu0 0.0
    %1542 = vmatprep.subr.mxu0 0.0
    %1543 = vmatpush1.msra.mxu0 0.0
    %1544 = vmatprep.subr.mxu0 0.0
    %1545 = vmatpush1.msra.mxu0 0.0
    %1546 = vmatprep.subr.mxu0 0.0
    %1547 = vmatpush1.msra.mxu0 0.0
    %1548 = vmatprep.subr.mxu0 0.0
    %1549 = vmatpush1.msra.mxu0 0.0
    %1550 = vmatprep.subr.mxu0 0.0
    %1551 = vmatpush1.msra.mxu0 0.0
    %1552 = vmatprep.subr.mxu0 0.0
    %1553 = vmatpush1.msra.mxu0 0.0
    %1554 = vmatprep.subr.mxu0 0.0
    %1555 = vmatpush1.msra.mxu0 0.0
    %1556 = vmatprep.subr.mxu0 0.0
    %1557 = vmatpush1.msra.mxu0 0.0
    %1558 = vmatprep.subr.mxu0 0.0
    %1559 = vmatpush1.msra.mxu0 0.0
    %1560 = vmatprep.subr.mxu0 0.0
    %1561 = vmatpush1.msra.mxu0 0.0
    %1562 = vmatprep.subr.mxu0 0.0
    %1563 = vmatpush1.msra.mxu0 0.0
    %1564 = vmatprep.subr.mxu0 0.0
    %1565 = vmatpush1.msra.mxu0 0.0
    %1566 = vmatprep.subr.mxu0 0.0
    %1567 = vmatpush1.msra.mxu0 0.0
    %1568 = vmatprep.subr.mxu0 0.0
    %1569 = vmatpush1.msra.mxu0 0.0
    %1570 = vmatprep.subr.mxu0 0.0
    %1571 = vmatpush1.msra.mxu0 0.0
    %1572 = vmatprep.subr.mxu0 0.0
    %1573 = vmatpush1.msra.mxu0 0.0
    %1574 = vmatprep.subr.mxu0 0.0
    %1575 = vmatpush1.msra.mxu0 0.0
    %1576 = vmatprep.subr.mxu0 0.0
    %1577 = vmatpush1.msra.mxu0 0.0
    %1578 = vmatprep.subr.mxu0 0.0
    %1579 = vmatpush1.msra.mxu0 0.0
    %1580 = vmatprep.subr.mxu0 0.0
    %1581 = vmatpush1.msra.mxu0 0.0
    %1582 = vmatprep.subr.mxu0 0.0
    %1583 = vmatpush1.msra.mxu0 0.0
    %1584 = vmatprep.subr.mxu0 0.0
    %1585 = vmatpush1.msra.mxu0 0.0
    %1586 = vmatprep.subr.mxu0 0.0
    %1587 = vmatpush1.msra.mxu0 0.0
    %1588 = vmatprep.subr.mxu0 0.0
    %1589 = vmatpush1.msra.mxu0 0.0
    %1590 = vmatprep.mubr.f32.mxu0 0.0
    %1591 = vmatmul.mubr.f32.gmra.mrb[0].mxu0 %v1476
    %v1592 = vpop.f32.mrb[0].mxu0
    %v1593 = vadd.f32 0.0, %v1592
    %v1594 = vpop.f32.mrb[0].mxu0
    %1595 = vmatprep.mubr.f32.mxu0 0.0
    %1596 = vmatmul.mubr.f32.gmra.mrb[0].mxu0 %v1479
    %v1597 = vpop.f32.mrb[0].mxu0
    %v1598 = vadd.f32 0.0, %v1597
    %v1599 = vpop.f32.mrb[0].mxu0
    %1600 = vmatprep.mubr.f32.mxu0 0.0
    %1601 = vmatmul.mubr.f32.gmra.mrb[0].mxu0 %v1482
    %v1602 = vpop.f32.mrb[0].mxu0
    %v1603 = vadd.f32 0.0, %v1602
    %v1604 = vpop.f32.mrb[0].mxu0
    %1605 = vmatprep.mubr.f32.mxu0 0.0
    %1606 = vmatmul.mubr.f32.gmra.mrb[0].mxu0 %v1485
    %v1607 = vpop.f32.mrb[0].mxu0
    %v1608 = vadd.f32 0.0, %v1607
    %v1609 = vpop.f32.mrb[0].mxu0
    %1610 = vmatprep.mubr.f32.mxu0 0.0
    %1611 = vmatmul.mubr.f32.gmra.mrb[0].mxu0 %v1488
    %v1612 = vpop.f32.mrb[0].mxu0
    %v1613 = vadd.f32 0.0, %v1612
    %v1614 = vpop.f32.mrb[0].mxu0
    %1615 = vmatprep.mubr.f32.mxu0 0.0
    %1616 = vmatmul.mubr.f32.gmra.mrb[0].mxu0 %v1491
    %v1617 = vpop.f32.mrb[0].mxu0
    %v1618 = vadd.f32 0.0, %v1617
    %v1619 = vpop.f32.mrb[0].mxu0
    %1620 = vmatprep.mubr.f32.mxu0 0.0
    %1621 = vmatmul.mubr.f32.gmra.mrb[0].mxu0 %v1494
    %v1622 = vpop.f32.mrb[0].mxu0
    %v1623 = vadd.f32 0.0, %v1622
    %v1624 = vpop.f32.mrb[0].mxu0
    %1625 = vmatprep.mubr.f32.mxu0 0.0
    %1626 = vmatmul.mubr.f32.gmra.mrb[0].mxu0 %v1497
    %v1627 = vpop.f32.mrb[0].mxu0
    %v1628 = vadd.f32 0.0, %v1627
    %v1629 = vpop.f32.mrb[0].mxu0
    %1630 = vmatprep.mubr.f32.mxu0 0.0
    %1631 = vmatmul.mubr.f32.gmra.mrb[0].mxu0 %v1500
    %v1632 = vpop.f32.mrb[0].mxu0
    %v1633 = vadd.f32 0.0, %v1632
    %v1634 = vpop.f32.mrb[0].mxu0
    %1635 = vmatprep.mubr.f32.mxu0 0.0
    %1636 = vmatmul.mubr.f32.gmra.mrb[0].mxu0 %v1503
    %v1637 = vpop.f32.mrb[0].mxu0
    %v1638 = vadd.f32 0.0, %v1637
    %v1639 = vpop.f32.mrb[0].mxu0
    %1640 = vmatprep.mubr.f32.mxu0 0.0
    %1641 = vmatmul.mubr.f32.gmra.mrb[0].mxu0 %v1506
    %v1642 = vpop.f32.mrb[0].mxu0
    %v1643 = vadd.f32 0.0, %v1642
    %v1644 = vpop.f32.mrb[0].mxu0
    %1645 = vmatprep.mubr.f32.mxu0 0.0
    %1646 = vmatmul.mubr.f32.gmra.mrb[0].mxu0 %v1509
    %v1647 = vpop.f32.mrb[0].mxu0
    %v1648 = vadd.f32 0.0, %v1647
    %v1649 = vpop.f32.mrb[0].mxu0
    %1650 = vmatprep.mubr.f32.mxu0 0.0
    %1651 = vmatmul.mubr.f32.gmra.mrb[0].mxu0 %v1512
    %v1652 = vpop.f32.mrb[0].mxu0
    %v1653 = vadd.f32 0.0, %v1652
    %v1654 = vpop.f32.mrb[0].mxu0
    %1655 = vmatprep.mubr.f32.mxu0 0.0
    %1656 = vmatmul.mubr.f32.gmra.mrb[0].mxu0 %v1515
    %v1657 = vpop.f32.mrb[0].mxu0
    %v1658 = vadd.f32 0.0, %v1657
    %v1659 = vpop.f32.mrb[0].mxu0
    %1660 = vmatprep.mubr.f32.mxu0 0.0
    %1661 = vmatmul.mubr.f32.gmra.mrb[0].mxu0 %v1518
    %v1662 = vpop.f32.mrb[0].mxu0
    %v1663 = vadd.f32 0.0, %v1662
    %v1664 = vpop.f32.mrb[0].mxu0
    %1665 = vmatprep.mubr.f32.mxu0 0.0
    %1666 = vmatmul.mubr.f32.gmra.mrb[0].mxu0 %v1521
    %v1667 = vpop.f32.mrb[0].mxu0
    %v1668 = vadd.f32 0.0, %v1667
    %v1669 = vpop.f32.mrb[0].mxu0
    %1670 = vdwg.mxu0
    %v1671 = vadd.f32 %v1379, %v1593
    %v1672 = vadd.f32 %v1384, %v1598
    %v1673 = vadd.f32 %v1389, %v1603
    %v1674 = vadd.f32 %v1394, %v1608
    %v1675 = vadd.f32 %v1399, %v1613
    %v1676 = vadd.f32 %v1404, %v1618
    %v1677 = vadd.f32 %v1409, %v1623
    %v1678 = vadd.f32 %v1414, %v1628
    %v1679 = vadd.f32 %v1419, %v1633
    %v1680 = vadd.f32 %v1424, %v1638
    %v1681 = vadd.f32 %v1429, %v1643
    %v1682 = vadd.f32 %v1434, %v1648
    %v1683 = vadd.f32 %v1439, %v1653
    %v1684 = vadd.f32 %v1444, %v1658
    %v1685 = vadd.f32 %v1449, %v1663
    %v1686 = vadd.f32 %v1454, %v1668
    %v1687 = vld [vmem:[#allocation2 + $0x3] sm:$0xff]
    %v1688 = vld [vmem:[#allocation2 + $0xb] sm:$0xff]
    %v1689 = vld [vmem:[#allocation2 + $0x13] sm:$0xff]
    %v1690 = vld [vmem:[#allocation2 + $0x1b] sm:$0xff]
    %v1691 = vld [vmem:[#allocation2 + $0x23] sm:$0xff]
    %v1692 = vld [vmem:[#allocation2 + $0x2b] sm:$0xff]
    %v1693 = vld [vmem:[#allocation2 + $0x33] sm:$0xff]
    %v1694 = vld [vmem:[#allocation2 + $0x3b] sm:$0xff]
    %v1695 = vld [vmem:[#allocation2 + $0x43] sm:$0xff]
    %v1696 = vld [vmem:[#allocation2 + $0x4b] sm:$0xff]
    %v1697 = vld [vmem:[#allocation2 + $0x53] sm:$0xff]
    %v1698 = vld [vmem:[#allocation2 + $0x5b] sm:$0xff]
    %v1699 = vld [vmem:[#allocation2 + $0x63] sm:$0xff]
    %v1700 = vld [vmem:[#allocation2 + $0x6b] sm:$0xff]
    %v1701 = vld [vmem:[#allocation2 + $0x73] sm:$0xff]
    %v1702 = vld [vmem:[#allocation2 + $0x7b] sm:$0xff]
    %s1703 = scalar_lea.vmem %s3, 24
    %v1704 = vld [vmem:[%s1703] sm:$0x3f]
    %v1706 = vsel %vm1006, %v1687, 0
    %v1709 = vsel %vm1006, %v1688, 0
    %v1712 = vsel %vm1006, %v1689, 0
    %v1715 = vsel %vm1006, %v1690, 0
    %v1718 = vsel %vm1006, %v1691, 0
    %v1721 = vsel %vm1006, %v1692, 0
    %v1724 = vsel %vm1006, %v1693, 0
    %v1727 = vsel %vm1006, %v1694, 0
    %v1730 = vsel %vm1006, %v1695, 0
    %v1733 = vsel %vm1006, %v1696, 0
    %v1736 = vsel %vm1006, %v1697, 0
    %v1739 = vsel %vm1006, %v1698, 0
    %v1742 = vsel %vm1006, %v1699, 0
    %v1745 = vsel %vm1006, %v1700, 0
    %v1748 = vsel %vm1006, %v1701, 0
    %v1751 = vsel %vm1006, %v1702, 0
    %v1754 = vsel %vm1112, %v1704, 0
    %1756 = vmatprep.subr.mxu0 0.0
    %1757 = vmatpush1.msra.mxu0 %v1754
    %1758 = vmatprep.subr.mxu0 0.0
    %1759 = vmatpush1.msra.mxu0 0.0
    %1760 = vmatprep.subr.mxu0 0.0
    %1761 = vmatpush1.msra.mxu0 0.0
    %1762 = vmatprep.subr.mxu0 0.0
    %1763 = vmatpush1.msra.mxu0 0.0
    %1764 = vmatprep.subr.mxu0 0.0
    %1765 = vmatpush1.msra.mxu0 0.0
    %1766 = vmatprep.subr.mxu0 0.0
    %1767 = vmatpush1.msra.mxu0 0.0
    %1768 = vmatprep.subr.mxu0 0.0
    %1769 = vmatpush1.msra.mxu0 0.0
    %1770 = vmatprep.subr.mxu0 0.0
    %1771 = vmatpush1.msra.mxu0 0.0
    %1772 = vmatprep.subr.mxu0 0.0
    %1773 = vmatpush1.msra.mxu0 0.0
    %1774 = vmatprep.subr.mxu0 0.0
    %1775 = vmatpush1.msra.mxu0 0.0
    %1776 = vmatprep.subr.mxu0 0.0
    %1777 = vmatpush1.msra.mxu0 0.0
    %1778 = vmatprep.subr.mxu0 0.0
    %1779 = vmatpush1.msra.mxu0 0.0
    %1780 = vmatprep.subr.mxu0 0.0
    %1781 = vmatpush1.msra.mxu0 0.0
    %1782 = vmatprep.subr.mxu0 0.0
    %1783 = vmatpush1.msra.mxu0 0.0
    %1784 = vmatprep.subr.mxu0 0.0
    %1785 = vmatpush1.msra.mxu0 0.0
    %1786 = vmatprep.subr.mxu0 0.0
    %1787 = vmatpush1.msra.mxu0 0.0
    %1788 = vmatprep.subr.mxu0 0.0
    %1789 = vmatpush1.msra.mxu0 0.0
    %1790 = vmatprep.subr.mxu0 0.0
    %1791 = vmatpush1.msra.mxu0 0.0
    %1792 = vmatprep.subr.mxu0 0.0
    %1793 = vmatpush1.msra.mxu0 0.0
    %1794 = vmatprep.subr.mxu0 0.0
    %1795 = vmatpush1.msra.mxu0 0.0
    %1796 = vmatprep.subr.mxu0 0.0
    %1797 = vmatpush1.msra.mxu0 0.0
    %1798 = vmatprep.subr.mxu0 0.0
    %1799 = vmatpush1.msra.mxu0 0.0
    %1800 = vmatprep.subr.mxu0 0.0
    %1801 = vmatpush1.msra.mxu0 0.0
    %1802 = vmatprep.subr.mxu0 0.0
    %1803 = vmatpush1.msra.mxu0 0.0
    %1804 = vmatprep.subr.mxu0 0.0
    %1805 = vmatpush1.msra.mxu0 0.0
    %1806 = vmatprep.subr.mxu0 0.0
    %1807 = vmatpush1.msra.mxu0 0.0
    %1808 = vmatprep.subr.mxu0 0.0
    %1809 = vmatpush1.msra.mxu0 0.0
    %1810 = vmatprep.subr.mxu0 0.0
    %1811 = vmatpush1.msra.mxu0 0.0
    %1812 = vmatprep.subr.mxu0 0.0
    %1813 = vmatpush1.msra.mxu0 0.0
    %1814 = vmatprep.subr.mxu0 0.0
    %1815 = vmatpush1.msra.mxu0 0.0
    %1816 = vmatprep.subr.mxu0 0.0
    %1817 = vmatpush1.msra.mxu0 0.0
    %1818 = vmatprep.subr.mxu0 0.0
    %1819 = vmatpush1.msra.mxu0 0.0
    %1820 = vmatprep.mubr.f32.mxu0 0.0
    %1821 = vmatmul.mubr.f32.gmra.mrb[0].mxu0 %v1706
    %v1822 = vpop.f32.mrb[0].mxu0
    %v1823 = vadd.f32 0.0, %v1822
    %v1824 = vpop.f32.mrb[0].mxu0
    %1825 = vmatprep.mubr.f32.mxu0 0.0
    %1826 = vmatmul.mubr.f32.gmra.mrb[0].mxu0 %v1709
    %v1827 = vpop.f32.mrb[0].mxu0
    %v1828 = vadd.f32 0.0, %v1827
    %v1829 = vpop.f32.mrb[0].mxu0
    %1830 = vmatprep.mubr.f32.mxu0 0.0
    %1831 = vmatmul.mubr.f32.gmra.mrb[0].mxu0 %v1712
    %v1832 = vpop.f32.mrb[0].mxu0
    %v1833 = vadd.f32 0.0, %v1832
    %v1834 = vpop.f32.mrb[0].mxu0
    %1835 = vmatprep.mubr.f32.mxu0 0.0
    %1836 = vmatmul.mubr.f32.gmra.mrb[0].mxu0 %v1715
    %v1837 = vpop.f32.mrb[0].mxu0
    %v1838 = vadd.f32 0.0, %v1837
    %v1839 = vpop.f32.mrb[0].mxu0
    %1840 = vmatprep.mubr.f32.mxu0 0.0
    %1841 = vmatmul.mubr.f32.gmra.mrb[0].mxu0 %v1718
    %v1842 = vpop.f32.mrb[0].mxu0
    %v1843 = vadd.f32 0.0, %v1842
    %v1844 = vpop.f32.mrb[0].mxu0
    %1845 = vmatprep.mubr.f32.mxu0 0.0
    %1846 = vmatmul.mubr.f32.gmra.mrb[0].mxu0 %v1721
    %v1847 = vpop.f32.mrb[0].mxu0
    %v1848 = vadd.f32 0.0, %v1847
    %v1849 = vpop.f32.mrb[0].mxu0
    %1850 = vmatprep.mubr.f32.mxu0 0.0
    %1851 = vmatmul.mubr.f32.gmra.mrb[0].mxu0 %v1724
    %v1852 = vpop.f32.mrb[0].mxu0
    %v1853 = vadd.f32 0.0, %v1852
    %v1854 = vpop.f32.mrb[0].mxu0
    %1855 = vmatprep.mubr.f32.mxu0 0.0
    %1856 = vmatmul.mubr.f32.gmra.mrb[0].mxu0 %v1727
    %v1857 = vpop.f32.mrb[0].mxu0
    %v1858 = vadd.f32 0.0, %v1857
    %v1859 = vpop.f32.mrb[0].mxu0
    %1860 = vmatprep.mubr.f32.mxu0 0.0
    %1861 = vmatmul.mubr.f32.gmra.mrb[0].mxu0 %v1730
    %v1862 = vpop.f32.mrb[0].mxu0
    %v1863 = vadd.f32 0.0, %v1862
    %v1864 = vpop.f32.mrb[0].mxu0
    %1865 = vmatprep.mubr.f32.mxu0 0.0
    %1866 = vmatmul.mubr.f32.gmra.mrb[0].mxu0 %v1733
    %v1867 = vpop.f32.mrb[0].mxu0
    %v1868 = vadd.f32 0.0, %v1867
    %v1869 = vpop.f32.mrb[0].mxu0
    %1870 = vmatprep.mubr.f32.mxu0 0.0
    %1871 = vmatmul.mubr.f32.gmra.mrb[0].mxu0 %v1736
    %v1872 = vpop.f32.mrb[0].mxu0
    %v1873 = vadd.f32 0.0, %v1872
    %v1874 = vpop.f32.mrb[0].mxu0
    %1875 = vmatprep.mubr.f32.mxu0 0.0
    %1876 = vmatmul.mubr.f32.gmra.mrb[0].mxu0 %v1739
    %v1877 = vpop.f32.mrb[0].mxu0
    %v1878 = vadd.f32 0.0, %v1877
    %v1879 = vpop.f32.mrb[0].mxu0
    %1880 = vmatprep.mubr.f32.mxu0 0.0
    %1881 = vmatmul.mubr.f32.gmra.mrb[0].mxu0 %v1742
    %v1882 = vpop.f32.mrb[0].mxu0
    %v1883 = vadd.f32 0.0, %v1882
    %v1884 = vpop.f32.mrb[0].mxu0
    %1885 = vmatprep.mubr.f32.mxu0 0.0
    %1886 = vmatmul.mubr.f32.gmra.mrb[0].mxu0 %v1745
    %v1887 = vpop.f32.mrb[0].mxu0
    %v1888 = vadd.f32 0.0, %v1887
    %v1889 = vpop.f32.mrb[0].mxu0
    %1890 = vmatprep.mubr.f32.mxu0 0.0
    %1891 = vmatmul.mubr.f32.gmra.mrb[0].mxu0 %v1748
    %v1892 = vpop.f32.mrb[0].mxu0
    %v1893 = vadd.f32 0.0, %v1892
    %v1894 = vpop.f32.mrb[0].mxu0
    %1895 = vmatprep.mubr.f32.mxu0 0.0
    %1896 = vmatmul.mubr.f32.gmra.mrb[0].mxu0 %v1751
    %v1897 = vpop.f32.mrb[0].mxu0
    %v1898 = vadd.f32 0.0, %v1897
    %v1899 = vpop.f32.mrb[0].mxu0
    %1900 = vdwg.mxu0
    %v1901 = vadd.f32 %v1671, %v1823
    %v1902 = vadd.f32 %v1672, %v1828
    %v1903 = vadd.f32 %v1673, %v1833
    %v1904 = vadd.f32 %v1674, %v1838
    %v1905 = vadd.f32 %v1675, %v1843
    %v1906 = vadd.f32 %v1676, %v1848
    %v1907 = vadd.f32 %v1677, %v1853
    %v1908 = vadd.f32 %v1678, %v1858
    %v1909 = vadd.f32 %v1679, %v1863
    %v1910 = vadd.f32 %v1680, %v1868
    %v1911 = vadd.f32 %v1681, %v1873
    %v1912 = vadd.f32 %v1682, %v1878
    %v1913 = vadd.f32 %v1683, %v1883
    %v1914 = vadd.f32 %v1684, %v1888
    %v1915 = vadd.f32 %v1685, %v1893
    %v1916 = vadd.f32 %v1686, %v1898
    %v1917 = vld [vmem:[#allocation2 + $0x4] sm:$0xff]
    %v1918 = vld [vmem:[#allocation2 + $0xc] sm:$0xff]
    %v1919 = vld [vmem:[#allocation2 + $0x14] sm:$0xff]
    %v1920 = vld [vmem:[#allocation2 + $0x1c] sm:$0xff]
    %v1921 = vld [vmem:[#allocation2 + $0x24] sm:$0xff]
    %v1922 = vld [vmem:[#allocation2 + $0x2c] sm:$0xff]
    %v1923 = vld [vmem:[#allocation2 + $0x34] sm:$0xff]
    %v1924 = vld [vmem:[#allocation2 + $0x3c] sm:$0xff]
    %v1925 = vld [vmem:[#allocation2 + $0x44] sm:$0xff]
    %v1926 = vld [vmem:[#allocation2 + $0x4c] sm:$0xff]
    %v1927 = vld [vmem:[#allocation2 + $0x54] sm:$0xff]
    %v1928 = vld [vmem:[#allocation2 + $0x5c] sm:$0xff]
    %v1929 = vld [vmem:[#allocation2 + $0x64] sm:$0xff]
    %v1930 = vld [vmem:[#allocation2 + $0x6c] sm:$0xff]
    %v1931 = vld [vmem:[#allocation2 + $0x74] sm:$0xff]
    %v1932 = vld [vmem:[#allocation2 + $0x7c] sm:$0xff]
    %s1933 = scalar_lea.vmem %s3, 32
    %v1934 = vld [vmem:[%s1933] sm:$0x3f]
    %v1936 = vsel %vm1006, %v1917, 0
    %v1939 = vsel %vm1006, %v1918, 0
    %v1942 = vsel %vm1006, %v1919, 0
    %v1945 = vsel %vm1006, %v1920, 0
    %v1948 = vsel %vm1006, %v1921, 0
    %v1951 = vsel %vm1006, %v1922, 0
    %v1954 = vsel %vm1006, %v1923, 0
    %v1957 = vsel %vm1006, %v1924, 0
    %v1960 = vsel %vm1006, %v1925, 0
    %v1963 = vsel %vm1006, %v1926, 0
    %v1966 = vsel %vm1006, %v1927, 0
    %v1969 = vsel %vm1006, %v1928, 0
    %v1972 = vsel %vm1006, %v1929, 0
    %v1975 = vsel %vm1006, %v1930, 0
    %v1978 = vsel %vm1006, %v1931, 0
    %v1981 = vsel %vm1006, %v1932, 0
    %v1984 = vsel %vm1112, %v1934, 0
    %1986 = vmatprep.subr.mxu0 0.0
    %1987 = vmatpush1.msra.mxu0 %v1984
    %1988 = vmatprep.subr.mxu0 0.0
    %1989 = vmatpush1.msra.mxu0 0.0
    %1990 = vmatprep.subr.mxu0 0.0
    %1991 = vmatpush1.msra.mxu0 0.0
    %1992 = vmatprep.subr.mxu0 0.0
    %1993 = vmatpush1.msra.mxu0 0.0
    %1994 = vmatprep.subr.mxu0 0.0
    %1995 = vmatpush1.msra.mxu0 0.0
    %1996 = vmatprep.subr.mxu0 0.0
    %1997 = vmatpush1.msra.mxu0 0.0
    %1998 = vmatprep.subr.mxu0 0.0
    %1999 = vmatpush1.msra.mxu0 0.0
    %2000 = vmatprep.subr.mxu0 0.0
    %2001 = vmatpush1.msra.mxu0 0.0
    %2002 = vmatprep.subr.mxu0 0.0
    %2003 = vmatpush1.msra.mxu0 0.0
    %2004 = vmatprep.subr.mxu0 0.0
    %2005 = vmatpush1.msra.mxu0 0.0
    %2006 = vmatprep.subr.mxu0 0.0
    %2007 = vmatpush1.msra.mxu0 0.0
    %2008 = vmatprep.subr.mxu0 0.0
    %2009 = vmatpush1.msra.mxu0 0.0
    %2010 = vmatprep.subr.mxu0 0.0
    %2011 = vmatpush1.msra.mxu0 0.0
    %2012 = vmatprep.subr.mxu0 0.0
    %2013 = vmatpush1.msra.mxu0 0.0
    %2014 = vmatprep.subr.mxu0 0.0
    %2015 = vmatpush1.msra.mxu0 0.0
    %2016 = vmatprep.subr.mxu0 0.0
    %2017 = vmatpush1.msra.mxu0 0.0
    %2018 = vmatprep.subr.mxu0 0.0
    %2019 = vmatpush1.msra.mxu0 0.0
    %2020 = vmatprep.subr.mxu0 0.0
    %2021 = vmatpush1.msra.mxu0 0.0
    %2022 = vmatprep.subr.mxu0 0.0
    %2023 = vmatpush1.msra.mxu0 0.0
    %2024 = vmatprep.subr.mxu0 0.0
    %2025 = vmatpush1.msra.mxu0 0.0
    %2026 = vmatprep.subr.mxu0 0.0
    %2027 = vmatpush1.msra.mxu0 0.0
    %2028 = vmatprep.subr.mxu0 0.0
    %2029 = vmatpush1.msra.mxu0 0.0
    %2030 = vmatprep.subr.mxu0 0.0
    %2031 = vmatpush1.msra.mxu0 0.0
    %2032 = vmatprep.subr.mxu0 0.0
    %2033 = vmatpush1.msra.mxu0 0.0
    %2034 = vmatprep.subr.mxu0 0.0
    %2035 = vmatpush1.msra.mxu0 0.0
    %2036 = vmatprep.subr.mxu0 0.0
    %2037 = vmatpush1.msra.mxu0 0.0
    %2038 = vmatprep.subr.mxu0 0.0
    %2039 = vmatpush1.msra.mxu0 0.0
    %2040 = vmatprep.subr.mxu0 0.0
    %2041 = vmatpush1.msra.mxu0 0.0
    %2042 = vmatprep.subr.mxu0 0.0
    %2043 = vmatpush1.msra.mxu0 0.0
    %2044 = vmatprep.subr.mxu0 0.0
    %2045 = vmatpush1.msra.mxu0 0.0
    %2046 = vmatprep.subr.mxu0 0.0
    %2047 = vmatpush1.msra.mxu0 0.0
    %2048 = vmatprep.subr.mxu0 0.0
    %2049 = vmatpush1.msra.mxu0 0.0
    %2050 = vmatprep.mubr.f32.mxu0 0.0
    %2051 = vmatmul.mubr.f32.gmra.mrb[0].mxu0 %v1936
    %v2052 = vpop.f32.mrb[0].mxu0
    %v2053 = vadd.f32 0.0, %v2052
    %v2054 = vpop.f32.mrb[0].mxu0
    %2055 = vmatprep.mubr.f32.mxu0 0.0
    %2056 = vmatmul.mubr.f32.gmra.mrb[0].mxu0 %v1939
    %v2057 = vpop.f32.mrb[0].mxu0
    %v2058 = vadd.f32 0.0, %v2057
    %v2059 = vpop.f32.mrb[0].mxu0
    %2060 = vmatprep.mubr.f32.mxu0 0.0
    %2061 = vmatmul.mubr.f32.gmra.mrb[0].mxu0 %v1942
    %v2062 = vpop.f32.mrb[0].mxu0
    %v2063 = vadd.f32 0.0, %v2062
    %v2064 = vpop.f32.mrb[0].mxu0
    %2065 = vmatprep.mubr.f32.mxu0 0.0
    %2066 = vmatmul.mubr.f32.gmra.mrb[0].mxu0 %v1945
    %v2067 = vpop.f32.mrb[0].mxu0
    %v2068 = vadd.f32 0.0, %v2067
    %v2069 = vpop.f32.mrb[0].mxu0
    %2070 = vmatprep.mubr.f32.mxu0 0.0
    %2071 = vmatmul.mubr.f32.gmra.mrb[0].mxu0 %v1948
    %v2072 = vpop.f32.mrb[0].mxu0
    %v2073 = vadd.f32 0.0, %v2072
    %v2074 = vpop.f32.mrb[0].mxu0
    %2075 = vmatprep.mubr.f32.mxu0 0.0
    %2076 = vmatmul.mubr.f32.gmra.mrb[0].mxu0 %v1951
    %v2077 = vpop.f32.mrb[0].mxu0
    %v2078 = vadd.f32 0.0, %v2077
    %v2079 = vpop.f32.mrb[0].mxu0
    %2080 = vmatprep.mubr.f32.mxu0 0.0
    %2081 = vmatmul.mubr.f32.gmra.mrb[0].mxu0 %v1954
    %v2082 = vpop.f32.mrb[0].mxu0
    %v2083 = vadd.f32 0.0, %v2082
    %v2084 = vpop.f32.mrb[0].mxu0
    %2085 = vmatprep.mubr.f32.mxu0 0.0
    %2086 = vmatmul.mubr.f32.gmra.mrb[0].mxu0 %v1957
    %v2087 = vpop.f32.mrb[0].mxu0
    %v2088 = vadd.f32 0.0, %v2087
    %v2089 = vpop.f32.mrb[0].mxu0
    %2090 = vmatprep.mubr.f32.mxu0 0.0
    %2091 = vmatmul.mubr.f32.gmra.mrb[0].mxu0 %v1960
    %v2092 = vpop.f32.mrb[0].mxu0
    %v2093 = vadd.f32 0.0, %v2092
    %v2094 = vpop.f32.mrb[0].mxu0
    %2095 = vmatprep.mubr.f32.mxu0 0.0
    %2096 = vmatmul.mubr.f32.gmra.mrb[0].mxu0 %v1963
    %v2097 = vpop.f32.mrb[0].mxu0
    %v2098 = vadd.f32 0.0, %v2097
    %v2099 = vpop.f32.mrb[0].mxu0
    %2100 = vmatprep.mubr.f32.mxu0 0.0
    %2101 = vmatmul.mubr.f32.gmra.mrb[0].mxu0 %v1966
    %v2102 = vpop.f32.mrb[0].mxu0
    %v2103 = vadd.f32 0.0, %v2102
    %v2104 = vpop.f32.mrb[0].mxu0
    %2105 = vmatprep.mubr.f32.mxu0 0.0
    %2106 = vmatmul.mubr.f32.gmra.mrb[0].mxu0 %v1969
    %v2107 = vpop.f32.mrb[0].mxu0
    %v2108 = vadd.f32 0.0, %v2107
    %v2109 = vpop.f32.mrb[0].mxu0
    %2110 = vmatprep.mubr.f32.mxu0 0.0
    %2111 = vmatmul.mubr.f32.gmra.mrb[0].mxu0 %v1972
    %v2112 = vpop.f32.mrb[0].mxu0
    %v2113 = vadd.f32 0.0, %v2112
    %v2114 = vpop.f32.mrb[0].mxu0
    %2115 = vmatprep.mubr.f32.mxu0 0.0
    %2116 = vmatmul.mubr.f32.gmra.mrb[0].mxu0 %v1975
    %v2117 = vpop.f32.mrb[0].mxu0
    %v2118 = vadd.f32 0.0, %v2117
    %v2119 = vpop.f32.mrb[0].mxu0
    %2120 = vmatprep.mubr.f32.mxu0 0.0
    %2121 = vmatmul.mubr.f32.gmra.mrb[0].mxu0 %v1978
    %v2122 = vpop.f32.mrb[0].mxu0
    %v2123 = vadd.f32 0.0, %v2122
    %v2124 = vpop.f32.mrb[0].mxu0
    %2125 = vmatprep.mubr.f32.mxu0 0.0
    %2126 = vmatmul.mubr.f32.gmra.mrb[0].mxu0 %v1981
    %v2127 = vpop.f32.mrb[0].mxu0
    %v2128 = vadd.f32 0.0, %v2127
    %v2129 = vpop.f32.mrb[0].mxu0
    %2130 = vdwg.mxu0
    %v2131 = vadd.f32 %v1901, %v2053
    %v2132 = vadd.f32 %v1902, %v2058
    %v2133 = vadd.f32 %v1903, %v2063
    %v2134 = vadd.f32 %v1904, %v2068
    %v2135 = vadd.f32 %v1905, %v2073
    %v2136 = vadd.f32 %v1906, %v2078
    %v2137 = vadd.f32 %v1907, %v2083
    %v2138 = vadd.f32 %v1908, %v2088
    %v2139 = vadd.f32 %v1909, %v2093
    %v2140 = vadd.f32 %v1910, %v2098
    %v2141 = vadd.f32 %v1911, %v2103
    %v2142 = vadd.f32 %v1912, %v2108
    %v2143 = vadd.f32 %v1913, %v2113
    %v2144 = vadd.f32 %v1914, %v2118
    %v2145 = vadd.f32 %v1915, %v2123
    %v2146 = vadd.f32 %v1916, %v2128
    %v2147 = vld [vmem:[#allocation2 + $0x8] sm:$0xff]
    %v2148 = vld [vmem:[#allocation2 + $0x10] sm:$0xff]
    %v2149 = vld [vmem:[#allocation2 + $0x18] sm:$0xff]
    %v2150 = vld [vmem:[#allocation2 + $0x20] sm:$0xff]
    %v2151 = vld [vmem:[#allocation2 + $0x28] sm:$0xff]
    %v2152 = vld [vmem:[#allocation2 + $0x30] sm:$0xff]
    %v2153 = vld [vmem:[#allocation2 + $0x38] sm:$0xff]
    %v2154 = vld [vmem:[#allocation2 + $0x40] sm:$0xff]
    %v2155 = vld [vmem:[#allocation2 + $0x48] sm:$0xff]
    %v2156 = vld [vmem:[#allocation2 + $0x50] sm:$0xff]
    %v2157 = vld [vmem:[#allocation2 + $0x58] sm:$0xff]
    %v2158 = vld [vmem:[#allocation2 + $0x60] sm:$0xff]
    %v2159 = vld [vmem:[#allocation2 + $0x68] sm:$0xff]
    %v2160 = vld [vmem:[#allocation2 + $0x70] sm:$0xff]
    %v2161 = vld [vmem:[#allocation2 + $0x78] sm:$0xff]
    %v2162 = vld [vmem:[#allocation2 + $0x80] sm:$0xff]
    %s2163 = scalar_lea.vmem %s3, 40
    %v2164 = vld [vmem:[%s2163] sm:$0x3f]
    %v2166 = vsel %vm1006, %v2147, 0
    %v2169 = vsel %vm1006, %v2148, 0
    %v2172 = vsel %vm1006, %v2149, 0
    %v2175 = vsel %vm1006, %v2150, 0
    %v2178 = vsel %vm1006, %v2151, 0
    %v2181 = vsel %vm1006, %v2152, 0
    %v2184 = vsel %vm1006, %v2153, 0
    %v2187 = vsel %vm1006, %v2154, 0
    %v2190 = vsel %vm1006, %v2155, 0
    %v2193 = vsel %vm1006, %v2156, 0
    %v2196 = vsel %vm1006, %v2157, 0
    %v2199 = vsel %vm1006, %v2158, 0
    %v2202 = vsel %vm1006, %v2159, 0
    %v2205 = vsel %vm1006, %v2160, 0
    %v2208 = vsel %vm1006, %v2161, 0
    %v2211 = vsel %vm1006, %v2162, 0
    %v2214 = vsel %vm1112, %v2164, 0
    %2216 = vmatprep.subr.mxu0 0.0
    %2217 = vmatpush1.msra.mxu0 %v2214
    %2218 = vmatprep.subr.mxu0 0.0
    %2219 = vmatpush1.msra.mxu0 0.0
    %2220 = vmatprep.subr.mxu0 0.0
    %2221 = vmatpush1.msra.mxu0 0.0
    %2222 = vmatprep.subr.mxu0 0.0
    %2223 = vmatpush1.msra.mxu0 0.0
    %2224 = vmatprep.subr.mxu0 0.0
    %2225 = vmatpush1.msra.mxu0 0.0
    %2226 = vmatprep.subr.mxu0 0.0
    %2227 = vmatpush1.msra.mxu0 0.0
    %2228 = vmatprep.subr.mxu0 0.0
    %2229 = vmatpush1.msra.mxu0 0.0
    %2230 = vmatprep.subr.mxu0 0.0
    %2231 = vmatpush1.msra.mxu0 0.0
    %2232 = vmatprep.subr.mxu0 0.0
    %2233 = vmatpush1.msra.mxu0 0.0
    %2234 = vmatprep.subr.mxu0 0.0
    %2235 = vmatpush1.msra.mxu0 0.0
    %2236 = vmatprep.subr.mxu0 0.0
    %2237 = vmatpush1.msra.mxu0 0.0
    %2238 = vmatprep.subr.mxu0 0.0
    %2239 = vmatpush1.msra.mxu0 0.0
    %2240 = vmatprep.subr.mxu0 0.0
    %2241 = vmatpush1.msra.mxu0 0.0
    %2242 = vmatprep.subr.mxu0 0.0
    %2243 = vmatpush1.msra.mxu0 0.0
    %2244 = vmatprep.subr.mxu0 0.0
    %2245 = vmatpush1.msra.mxu0 0.0
    %2246 = vmatprep.subr.mxu0 0.0
    %2247 = vmatpush1.msra.mxu0 0.0
    %2248 = vmatprep.subr.mxu0 0.0
    %2249 = vmatpush1.msra.mxu0 0.0
    %2250 = vmatprep.subr.mxu0 0.0
    %2251 = vmatpush1.msra.mxu0 0.0
    %2252 = vmatprep.subr.mxu0 0.0
    %2253 = vmatpush1.msra.mxu0 0.0
    %2254 = vmatprep.subr.mxu0 0.0
    %2255 = vmatpush1.msra.mxu0 0.0
    %2256 = vmatprep.subr.mxu0 0.0
    %2257 = vmatpush1.msra.mxu0 0.0
    %2258 = vmatprep.subr.mxu0 0.0
    %2259 = vmatpush1.msra.mxu0 0.0
    %2260 = vmatprep.subr.mxu0 0.0
    %2261 = vmatpush1.msra.mxu0 0.0
    %2262 = vmatprep.subr.mxu0 0.0
    %2263 = vmatpush1.msra.mxu0 0.0
    %2264 = vmatprep.subr.mxu0 0.0
    %2265 = vmatpush1.msra.mxu0 0.0
    %2266 = vmatprep.subr.mxu0 0.0
    %2267 = vmatpush1.msra.mxu0 0.0
    %2268 = vmatprep.subr.mxu0 0.0
    %2269 = vmatpush1.msra.mxu0 0.0
    %2270 = vmatprep.subr.mxu0 0.0
    %2271 = vmatpush1.msra.mxu0 0.0
    %2272 = vmatprep.subr.mxu0 0.0
    %2273 = vmatpush1.msra.mxu0 0.0
    %2274 = vmatprep.subr.mxu0 0.0
    %2275 = vmatpush1.msra.mxu0 0.0
    %2276 = vmatprep.subr.mxu0 0.0
    %2277 = vmatpush1.msra.mxu0 0.0
    %2278 = vmatprep.subr.mxu0 0.0
    %2279 = vmatpush1.msra.mxu0 0.0
    %2280 = vmatprep.mubr.f32.mxu0 0.0
    %2281 = vmatmul.mubr.f32.gmra.mrb[0].mxu0 %v2166
    %v2282 = vpop.f32.mrb[0].mxu0
    %v2283 = vadd.f32 0.0, %v2282
    %v2284 = vpop.f32.mrb[0].mxu0
    %2285 = vmatprep.mubr.f32.mxu0 0.0
    %2286 = vmatmul.mubr.f32.gmra.mrb[0].mxu0 %v2169
    %v2287 = vpop.f32.mrb[0].mxu0
    %v2288 = vadd.f32 0.0, %v2287
    %v2289 = vpop.f32.mrb[0].mxu0
    %2290 = vmatprep.mubr.f32.mxu0 0.0
    %2291 = vmatmul.mubr.f32.gmra.mrb[0].mxu0 %v2172
    %v2292 = vpop.f32.mrb[0].mxu0
    %v2293 = vadd.f32 0.0, %v2292
    %v2294 = vpop.f32.mrb[0].mxu0
    %2295 = vmatprep.mubr.f32.mxu0 0.0
    %2296 = vmatmul.mubr.f32.gmra.mrb[0].mxu0 %v2175
    %v2297 = vpop.f32.mrb[0].mxu0
    %v2298 = vadd.f32 0.0, %v2297
    %v2299 = vpop.f32.mrb[0].mxu0
    %2300 = vmatprep.mubr.f32.mxu0 0.0
    %2301 = vmatmul.mubr.f32.gmra.mrb[0].mxu0 %v2178
    %v2302 = vpop.f32.mrb[0].mxu0
    %v2303 = vadd.f32 0.0, %v2302
    %v2304 = vpop.f32.mrb[0].mxu0
    %2305 = vmatprep.mubr.f32.mxu0 0.0
    %2306 = vmatmul.mubr.f32.gmra.mrb[0].mxu0 %v2181
    %v2307 = vpop.f32.mrb[0].mxu0
    %v2308 = vadd.f32 0.0, %v2307
    %v2309 = vpop.f32.mrb[0].mxu0
    %2310 = vmatprep.mubr.f32.mxu0 0.0
    %2311 = vmatmul.mubr.f32.gmra.mrb[0].mxu0 %v2184
    %v2312 = vpop.f32.mrb[0].mxu0
    %v2313 = vadd.f32 0.0, %v2312
    %v2314 = vpop.f32.mrb[0].mxu0
    %2315 = vmatprep.mubr.f32.mxu0 0.0
    %2316 = vmatmul.mubr.f32.gmra.mrb[0].mxu0 %v2187
    %v2317 = vpop.f32.mrb[0].mxu0
    %v2318 = vadd.f32 0.0, %v2317
    %v2319 = vpop.f32.mrb[0].mxu0
    %2320 = vmatprep.mubr.f32.mxu0 0.0
    %2321 = vmatmul.mubr.f32.gmra.mrb[0].mxu0 %v2190
    %v2322 = vpop.f32.mrb[0].mxu0
    %v2323 = vadd.f32 0.0, %v2322
    %v2324 = vpop.f32.mrb[0].mxu0
    %2325 = vmatprep.mubr.f32.mxu0 0.0
    %2326 = vmatmul.mubr.f32.gmra.mrb[0].mxu0 %v2193
    %v2327 = vpop.f32.mrb[0].mxu0
    %v2328 = vadd.f32 0.0, %v2327
    %v2329 = vpop.f32.mrb[0].mxu0
    %2330 = vmatprep.mubr.f32.mxu0 0.0
    %2331 = vmatmul.mubr.f32.gmra.mrb[0].mxu0 %v2196
    %v2332 = vpop.f32.mrb[0].mxu0
    %v2333 = vadd.f32 0.0, %v2332
    %v2334 = vpop.f32.mrb[0].mxu0
    %2335 = vmatprep.mubr.f32.mxu0 0.0
    %2336 = vmatmul.mubr.f32.gmra.mrb[0].mxu0 %v2199
    %v2337 = vpop.f32.mrb[0].mxu0
    %v2338 = vadd.f32 0.0, %v2337
    %v2339 = vpop.f32.mrb[0].mxu0
    %2340 = vmatprep.mubr.f32.mxu0 0.0
    %2341 = vmatmul.mubr.f32.gmra.mrb[0].mxu0 %v2202
    %v2342 = vpop.f32.mrb[0].mxu0
    %v2343 = vadd.f32 0.0, %v2342
    %v2344 = vpop.f32.mrb[0].mxu0
    %2345 = vmatprep.mubr.f32.mxu0 0.0
    %2346 = vmatmul.mubr.f32.gmra.mrb[0].mxu0 %v2205
    %v2347 = vpop.f32.mrb[0].mxu0
    %v2348 = vadd.f32 0.0, %v2347
    %v2349 = vpop.f32.mrb[0].mxu0
    %2350 = vmatprep.mubr.f32.mxu0 0.0
    %2351 = vmatmul.mubr.f32.gmra.mrb[0].mxu0 %v2208
    %v2352 = vpop.f32.mrb[0].mxu0
    %v2353 = vadd.f32 0.0, %v2352
    %v2354 = vpop.f32.mrb[0].mxu0
    %2355 = vmatprep.mubr.f32.mxu0 0.0
    %2356 = vmatmul.mubr.f32.gmra.mrb[0].mxu0 %v2211
    %v2357 = vpop.f32.mrb[0].mxu0
    %v2358 = vadd.f32 0.0, %v2357
    %v2359 = vpop.f32.mrb[0].mxu0
    %2360 = vdwg.mxu0
    %v2361 = vadd.f32 %v2131, %v2283
    %v2362 = vadd.f32 %v2132, %v2288
    %v2363 = vadd.f32 %v2133, %v2293
    %v2364 = vadd.f32 %v2134, %v2298
    %v2365 = vadd.f32 %v2135, %v2303
    %v2366 = vadd.f32 %v2136, %v2308
    %v2367 = vadd.f32 %v2137, %v2313
    %v2368 = vadd.f32 %v2138, %v2318
    %v2369 = vadd.f32 %v2139, %v2323
    %v2370 = vadd.f32 %v2140, %v2328
    %v2371 = vadd.f32 %v2141, %v2333
    %v2372 = vadd.f32 %v2142, %v2338
    %v2373 = vadd.f32 %v2143, %v2343
    %v2374 = vadd.f32 %v2144, %v2348
    %v2375 = vadd.f32 %v2145, %v2353
    %v2376 = vadd.f32 %v2146, %v2358
    %v2377 = vld [vmem:[#allocation2 + $0x9] sm:$0xff]
    %v2378 = vld [vmem:[#allocation2 + $0x11] sm:$0xff]
    %v2379 = vld [vmem:[#allocation2 + $0x19] sm:$0xff]
    %v2380 = vld [vmem:[#allocation2 + $0x21] sm:$0xff]
    %v2381 = vld [vmem:[#allocation2 + $0x29] sm:$0xff]
    %v2382 = vld [vmem:[#allocation2 + $0x31] sm:$0xff]
    %v2383 = vld [vmem:[#allocation2 + $0x39] sm:$0xff]
    %v2384 = vld [vmem:[#allocation2 + $0x41] sm:$0xff]
    %v2385 = vld [vmem:[#allocation2 + $0x49] sm:$0xff]
    %v2386 = vld [vmem:[#allocation2 + $0x51] sm:$0xff]
    %v2387 = vld [vmem:[#allocation2 + $0x59] sm:$0xff]
    %v2388 = vld [vmem:[#allocation2 + $0x61] sm:$0xff]
    %v2389 = vld [vmem:[#allocation2 + $0x69] sm:$0xff]
    %v2390 = vld [vmem:[#allocation2 + $0x71] sm:$0xff]
    %v2391 = vld [vmem:[#allocation2 + $0x79] sm:$0xff]
    %v2392 = vld [vmem:[#allocation2 + $0x81] sm:$0xff]
    %s2393 = scalar_lea.vmem %s3, 48
    %v2394 = vld [vmem:[%s2393] sm:$0x3f]
    %v2396 = vsel %vm1006, %v2377, 0
    %v2399 = vsel %vm1006, %v2378, 0
    %v2402 = vsel %vm1006, %v2379, 0
    %v2405 = vsel %vm1006, %v2380, 0
    %v2408 = vsel %vm1006, %v2381, 0
    %v2411 = vsel %vm1006, %v2382, 0
    %v2414 = vsel %vm1006, %v2383, 0
    %v2417 = vsel %vm1006, %v2384, 0
    %v2420 = vsel %vm1006, %v2385, 0
    %v2423 = vsel %vm1006, %v2386, 0
    %v2426 = vsel %vm1006, %v2387, 0
    %v2429 = vsel %vm1006, %v2388, 0
    %v2432 = vsel %vm1006, %v2389, 0
    %v2435 = vsel %vm1006, %v2390, 0
    %v2438 = vsel %vm1006, %v2391, 0
    %v2441 = vsel %vm1006, %v2392, 0
    %v2444 = vsel %vm1112, %v2394, 0
    %2446 = vmatprep.subr.mxu0 0.0
    %2447 = vmatpush1.msra.mxu0 %v2444
    %2448 = vmatprep.subr.mxu0 0.0
    %2449 = vmatpush1.msra.mxu0 0.0
    %2450 = vmatprep.subr.mxu0 0.0
    %2451 = vmatpush1.msra.mxu0 0.0
    %2452 = vmatprep.subr.mxu0 0.0
    %2453 = vmatpush1.msra.mxu0 0.0
    %2454 = vmatprep.subr.mxu0 0.0
    %2455 = vmatpush1.msra.mxu0 0.0
    %2456 = vmatprep.subr.mxu0 0.0
    %2457 = vmatpush1.msra.mxu0 0.0
    %2458 = vmatprep.subr.mxu0 0.0
    %2459 = vmatpush1.msra.mxu0 0.0
    %2460 = vmatprep.subr.mxu0 0.0
    %2461 = vmatpush1.msra.mxu0 0.0
    %2462 = vmatprep.subr.mxu0 0.0
    %2463 = vmatpush1.msra.mxu0 0.0
    %2464 = vmatprep.subr.mxu0 0.0
    %2465 = vmatpush1.msra.mxu0 0.0
    %2466 = vmatprep.subr.mxu0 0.0
    %2467 = vmatpush1.msra.mxu0 0.0
    %2468 = vmatprep.subr.mxu0 0.0
    %2469 = vmatpush1.msra.mxu0 0.0
    %2470 = vmatprep.subr.mxu0 0.0
    %2471 = vmatpush1.msra.mxu0 0.0
    %2472 = vmatprep.subr.mxu0 0.0
    %2473 = vmatpush1.msra.mxu0 0.0
    %2474 = vmatprep.subr.mxu0 0.0
    %2475 = vmatpush1.msra.mxu0 0.0
    %2476 = vmatprep.subr.mxu0 0.0
    %2477 = vmatpush1.msra.mxu0 0.0
    %2478 = vmatprep.subr.mxu0 0.0
    %2479 = vmatpush1.msra.mxu0 0.0
    %2480 = vmatprep.subr.mxu0 0.0
    %2481 = vmatpush1.msra.mxu0 0.0
    %2482 = vmatprep.subr.mxu0 0.0
    %2483 = vmatpush1.msra.mxu0 0.0
    %2484 = vmatprep.subr.mxu0 0.0
    %2485 = vmatpush1.msra.mxu0 0.0
    %2486 = vmatprep.subr.mxu0 0.0
    %2487 = vmatpush1.msra.mxu0 0.0
    %2488 = vmatprep.subr.mxu0 0.0
    %2489 = vmatpush1.msra.mxu0 0.0
    %2490 = vmatprep.subr.mxu0 0.0
    %2491 = vmatpush1.msra.mxu0 0.0
    %2492 = vmatprep.subr.mxu0 0.0
    %2493 = vmatpush1.msra.mxu0 0.0
    %2494 = vmatprep.subr.mxu0 0.0
    %2495 = vmatpush1.msra.mxu0 0.0
    %2496 = vmatprep.subr.mxu0 0.0
    %2497 = vmatpush1.msra.mxu0 0.0
    %2498 = vmatprep.subr.mxu0 0.0
    %2499 = vmatpush1.msra.mxu0 0.0
    %2500 = vmatprep.subr.mxu0 0.0
    %2501 = vmatpush1.msra.mxu0 0.0
    %2502 = vmatprep.subr.mxu0 0.0
    %2503 = vmatpush1.msra.mxu0 0.0
    %2504 = vmatprep.subr.mxu0 0.0
    %2505 = vmatpush1.msra.mxu0 0.0
    %2506 = vmatprep.subr.mxu0 0.0
    %2507 = vmatpush1.msra.mxu0 0.0
    %2508 = vmatprep.subr.mxu0 0.0
    %2509 = vmatpush1.msra.mxu0 0.0
    %2510 = vmatprep.mubr.f32.mxu0 0.0
    %2511 = vmatmul.mubr.f32.gmra.mrb[0].mxu0 %v2396
    %v2512 = vpop.f32.mrb[0].mxu0
    %v2513 = vadd.f32 0.0, %v2512
    %v2514 = vpop.f32.mrb[0].mxu0
    %2515 = vmatprep.mubr.f32.mxu0 0.0
    %2516 = vmatmul.mubr.f32.gmra.mrb[0].mxu0 %v2399
    %v2517 = vpop.f32.mrb[0].mxu0
    %v2518 = vadd.f32 0.0, %v2517
    %v2519 = vpop.f32.mrb[0].mxu0
    %2520 = vmatprep.mubr.f32.mxu0 0.0
    %2521 = vmatmul.mubr.f32.gmra.mrb[0].mxu0 %v2402
    %v2522 = vpop.f32.mrb[0].mxu0
    %v2523 = vadd.f32 0.0, %v2522
    %v2524 = vpop.f32.mrb[0].mxu0
    %2525 = vmatprep.mubr.f32.mxu0 0.0
    %2526 = vmatmul.mubr.f32.gmra.mrb[0].mxu0 %v2405
    %v2527 = vpop.f32.mrb[0].mxu0
    %v2528 = vadd.f32 0.0, %v2527
    %v2529 = vpop.f32.mrb[0].mxu0
    %2530 = vmatprep.mubr.f32.mxu0 0.0
    %2531 = vmatmul.mubr.f32.gmra.mrb[0].mxu0 %v2408
    %v2532 = vpop.f32.mrb[0].mxu0
    %v2533 = vadd.f32 0.0, %v2532
    %v2534 = vpop.f32.mrb[0].mxu0
    %2535 = vmatprep.mubr.f32.mxu0 0.0
    %2536 = vmatmul.mubr.f32.gmra.mrb[0].mxu0 %v2411
    %v2537 = vpop.f32.mrb[0].mxu0
    %v2538 = vadd.f32 0.0, %v2537
    %v2539 = vpop.f32.mrb[0].mxu0
    %2540 = vmatprep.mubr.f32.mxu0 0.0
    %2541 = vmatmul.mubr.f32.gmra.mrb[0].mxu0 %v2414
    %v2542 = vpop.f32.mrb[0].mxu0
    %v2543 = vadd.f32 0.0, %v2542
    %v2544 = vpop.f32.mrb[0].mxu0
    %2545 = vmatprep.mubr.f32.mxu0 0.0
    %2546 = vmatmul.mubr.f32.gmra.mrb[0].mxu0 %v2417
    %v2547 = vpop.f32.mrb[0].mxu0
    %v2548 = vadd.f32 0.0, %v2547
    %v2549 = vpop.f32.mrb[0].mxu0
    %2550 = vmatprep.mubr.f32.mxu0 0.0
    %2551 = vmatmul.mubr.f32.gmra.mrb[0].mxu0 %v2420
    %v2552 = vpop.f32.mrb[0].mxu0
    %v2553 = vadd.f32 0.0, %v2552
    %v2554 = vpop.f32.mrb[0].mxu0
    %2555 = vmatprep.mubr.f32.mxu0 0.0
    %2556 = vmatmul.mubr.f32.gmra.mrb[0].mxu0 %v2423
    %v2557 = vpop.f32.mrb[0].mxu0
    %v2558 = vadd.f32 0.0, %v2557
    %v2559 = vpop.f32.mrb[0].mxu0
    %2560 = vmatprep.mubr.f32.mxu0 0.0
    %2561 = vmatmul.mubr.f32.gmra.mrb[0].mxu0 %v2426
    %v2562 = vpop.f32.mrb[0].mxu0
    %v2563 = vadd.f32 0.0, %v2562
    %v2564 = vpop.f32.mrb[0].mxu0
    %2565 = vmatprep.mubr.f32.mxu0 0.0
    %2566 = vmatmul.mubr.f32.gmra.mrb[0].mxu0 %v2429
    %v2567 = vpop.f32.mrb[0].mxu0
    %v2568 = vadd.f32 0.0, %v2567
    %v2569 = vpop.f32.mrb[0].mxu0
    %2570 = vmatprep.mubr.f32.mxu0 0.0
    %2571 = vmatmul.mubr.f32.gmra.mrb[0].mxu0 %v2432
    %v2572 = vpop.f32.mrb[0].mxu0
    %v2573 = vadd.f32 0.0, %v2572
    %v2574 = vpop.f32.mrb[0].mxu0
    %2575 = vmatprep.mubr.f32.mxu0 0.0
    %2576 = vmatmul.mubr.f32.gmra.mrb[0].mxu0 %v2435
    %v2577 = vpop.f32.mrb[0].mxu0
    %v2578 = vadd.f32 0.0, %v2577
    %v2579 = vpop.f32.mrb[0].mxu0
    %2580 = vmatprep.mubr.f32.mxu0 0.0
    %2581 = vmatmul.mubr.f32.gmra.mrb[0].mxu0 %v2438
    %v2582 = vpop.f32.mrb[0].mxu0
    %v2583 = vadd.f32 0.0, %v2582
    %v2584 = vpop.f32.mrb[0].mxu0
    %2585 = vmatprep.mubr.f32.mxu0 0.0
    %2586 = vmatmul.mubr.f32.gmra.mrb[0].mxu0 %v2441
    %v2587 = vpop.f32.mrb[0].mxu0
    %v2588 = vadd.f32 0.0, %v2587
    %v2589 = vpop.f32.mrb[0].mxu0
    %2590 = vdwg.mxu0
    %v2591 = vadd.f32 %v2361, %v2513
    %v2592 = vadd.f32 %v2362, %v2518
    %v2593 = vadd.f32 %v2363, %v2523
    %v2594 = vadd.f32 %v2364, %v2528
    %v2595 = vadd.f32 %v2365, %v2533
    %v2596 = vadd.f32 %v2366, %v2538
    %v2597 = vadd.f32 %v2367, %v2543
    %v2598 = vadd.f32 %v2368, %v2548
    %v2599 = vadd.f32 %v2369, %v2553
    %v2600 = vadd.f32 %v2370, %v2558
    %v2601 = vadd.f32 %v2371, %v2563
    %v2602 = vadd.f32 %v2372, %v2568
    %v2603 = vadd.f32 %v2373, %v2573
    %v2604 = vadd.f32 %v2374, %v2578
    %v2605 = vadd.f32 %v2375, %v2583
    %v2606 = vadd.f32 %v2376, %v2588
    %v2607 = vld [vmem:[#allocation2 + $0xa] sm:$0xff]
    %v2608 = vld [vmem:[#allocation2 + $0x12] sm:$0xff]
    %v2609 = vld [vmem:[#allocation2 + $0x1a] sm:$0xff]
    %v2610 = vld [vmem:[#allocation2 + $0x22] sm:$0xff]
    %v2611 = vld [vmem:[#allocation2 + $0x2a] sm:$0xff]
    %v2612 = vld [vmem:[#allocation2 + $0x32] sm:$0xff]
    %v2613 = vld [vmem:[#allocation2 + $0x3a] sm:$0xff]
    %v2614 = vld [vmem:[#allocation2 + $0x42] sm:$0xff]
    %v2615 = vld [vmem:[#allocation2 + $0x4a] sm:$0xff]
    %v2616 = vld [vmem:[#allocation2 + $0x52] sm:$0xff]
    %v2617 = vld [vmem:[#allocation2 + $0x5a] sm:$0xff]
    %v2618 = vld [vmem:[#allocation2 + $0x62] sm:$0xff]
    %v2619 = vld [vmem:[#allocation2 + $0x6a] sm:$0xff]
    %v2620 = vld [vmem:[#allocation2 + $0x72] sm:$0xff]
    %v2621 = vld [vmem:[#allocation2 + $0x7a] sm:$0xff]
    %v2622 = vld [vmem:[#allocation2 + $0x82] sm:$0xff]
    %s2623 = scalar_lea.vmem %s3, 56
    %v2624 = vld [vmem:[%s2623] sm:$0x3f]
    %v2626 = vsel %vm1006, %v2607, 0
    %v2629 = vsel %vm1006, %v2608, 0
    %v2632 = vsel %vm1006, %v2609, 0
    %v2635 = vsel %vm1006, %v2610, 0
    %v2638 = vsel %vm1006, %v2611, 0
    %v2641 = vsel %vm1006, %v2612, 0
    %v2644 = vsel %vm1006, %v2613, 0
    %v2647 = vsel %vm1006, %v2614, 0
    %v2650 = vsel %vm1006, %v2615, 0
    %v2653 = vsel %vm1006, %v2616, 0
    %v2656 = vsel %vm1006, %v2617, 0
    %v2659 = vsel %vm1006, %v2618, 0
    %v2662 = vsel %vm1006, %v2619, 0
    %v2665 = vsel %vm1006, %v2620, 0
    %v2668 = vsel %vm1006, %v2621, 0
    %v2671 = vsel %vm1006, %v2622, 0
    %v2674 = vsel %vm1112, %v2624, 0
    %2676 = vmatprep.subr.mxu0 0.0
    %2677 = vmatpush1.msra.mxu0 %v2674
    %2678 = vmatprep.subr.mxu0 0.0
    %2679 = vmatpush1.msra.mxu0 0.0
    %2680 = vmatprep.subr.mxu0 0.0
    %2681 = vmatpush1.msra.mxu0 0.0
    %2682 = vmatprep.subr.mxu0 0.0
    %2683 = vmatpush1.msra.mxu0 0.0
    %2684 = vmatprep.subr.mxu0 0.0
    %2685 = vmatpush1.msra.mxu0 0.0
    %2686 = vmatprep.subr.mxu0 0.0
    %2687 = vmatpush1.msra.mxu0 0.0
    %2688 = vmatprep.subr.mxu0 0.0
    %2689 = vmatpush1.msra.mxu0 0.0
    %2690 = vmatprep.subr.mxu0 0.0
    %2691 = vmatpush1.msra.mxu0 0.0
    %2692 = vmatprep.subr.mxu0 0.0
    %2693 = vmatpush1.msra.mxu0 0.0
    %2694 = vmatprep.subr.mxu0 0.0
    %2695 = vmatpush1.msra.mxu0 0.0
    %2696 = vmatprep.subr.mxu0 0.0
    %2697 = vmatpush1.msra.mxu0 0.0
    %2698 = vmatprep.subr.mxu0 0.0
    %2699 = vmatpush1.msra.mxu0 0.0
    %2700 = vmatprep.subr.mxu0 0.0
    %2701 = vmatpush1.msra.mxu0 0.0
    %2702 = vmatprep.subr.mxu0 0.0
    %2703 = vmatpush1.msra.mxu0 0.0
    %2704 = vmatprep.subr.mxu0 0.0
    %2705 = vmatpush1.msra.mxu0 0.0
    %2706 = vmatprep.subr.mxu0 0.0
    %2707 = vmatpush1.msra.mxu0 0.0
    %2708 = vmatprep.subr.mxu0 0.0
    %2709 = vmatpush1.msra.mxu0 0.0
    %2710 = vmatprep.subr.mxu0 0.0
    %2711 = vmatpush1.msra.mxu0 0.0
    %2712 = vmatprep.subr.mxu0 0.0
    %2713 = vmatpush1.msra.mxu0 0.0
    %2714 = vmatprep.subr.mxu0 0.0
    %2715 = vmatpush1.msra.mxu0 0.0
    %2716 = vmatprep.subr.mxu0 0.0
    %2717 = vmatpush1.msra.mxu0 0.0
    %2718 = vmatprep.subr.mxu0 0.0
    %2719 = vmatpush1.msra.mxu0 0.0
    %2720 = vmatprep.subr.mxu0 0.0
    %2721 = vmatpush1.msra.mxu0 0.0
    %2722 = vmatprep.subr.mxu0 0.0
    %2723 = vmatpush1.msra.mxu0 0.0
    %2724 = vmatprep.subr.mxu0 0.0
    %2725 = vmatpush1.msra.mxu0 0.0
    %2726 = vmatprep.subr.mxu0 0.0
    %2727 = vmatpush1.msra.mxu0 0.0
    %2728 = vmatprep.subr.mxu0 0.0
    %2729 = vmatpush1.msra.mxu0 0.0
    %2730 = vmatprep.subr.mxu0 0.0
    %2731 = vmatpush1.msra.mxu0 0.0
    %2732 = vmatprep.subr.mxu0 0.0
    %2733 = vmatpush1.msra.mxu0 0.0
    %2734 = vmatprep.subr.mxu0 0.0
    %2735 = vmatpush1.msra.mxu0 0.0
    %2736 = vmatprep.subr.mxu0 0.0
    %2737 = vmatpush1.msra.mxu0 0.0
    %2738 = vmatprep.subr.mxu0 0.0
    %2739 = vmatpush1.msra.mxu0 0.0
    %2740 = vmatprep.mubr.f32.mxu0 0.0
    %2741 = vmatmul.mubr.f32.gmra.mrb[0].mxu0 %v2626
    %v2742 = vpop.f32.mrb[0].mxu0
    %v2743 = vadd.f32 0.0, %v2742
    %v2744 = vpop.f32.mrb[0].mxu0
    %2745 = vmatprep.mubr.f32.mxu0 0.0
    %2746 = vmatmul.mubr.f32.gmra.mrb[0].mxu0 %v2629
    %v2747 = vpop.f32.mrb[0].mxu0
    %v2748 = vadd.f32 0.0, %v2747
    %v2749 = vpop.f32.mrb[0].mxu0
    %2750 = vmatprep.mubr.f32.mxu0 0.0
    %2751 = vmatmul.mubr.f32.gmra.mrb[0].mxu0 %v2632
    %v2752 = vpop.f32.mrb[0].mxu0
    %v2753 = vadd.f32 0.0, %v2752
    %v2754 = vpop.f32.mrb[0].mxu0
    %2755 = vmatprep.mubr.f32.mxu0 0.0
    %2756 = vmatmul.mubr.f32.gmra.mrb[0].mxu0 %v2635
    %v2757 = vpop.f32.mrb[0].mxu0
    %v2758 = vadd.f32 0.0, %v2757
    %v2759 = vpop.f32.mrb[0].mxu0
    %2760 = vmatprep.mubr.f32.mxu0 0.0
    %2761 = vmatmul.mubr.f32.gmra.mrb[0].mxu0 %v2638
    %v2762 = vpop.f32.mrb[0].mxu0
    %v2763 = vadd.f32 0.0, %v2762
    %v2764 = vpop.f32.mrb[0].mxu0
    %2765 = vmatprep.mubr.f32.mxu0 0.0
    %2766 = vmatmul.mubr.f32.gmra.mrb[0].mxu0 %v2641
    %v2767 = vpop.f32.mrb[0].mxu0
    %v2768 = vadd.f32 0.0, %v2767
    %v2769 = vpop.f32.mrb[0].mxu0
    %2770 = vmatprep.mubr.f32.mxu0 0.0
    %2771 = vmatmul.mubr.f32.gmra.mrb[0].mxu0 %v2644
    %v2772 = vpop.f32.mrb[0].mxu0
    %v2773 = vadd.f32 0.0, %v2772
    %v2774 = vpop.f32.mrb[0].mxu0
    %2775 = vmatprep.mubr.f32.mxu0 0.0
    %2776 = vmatmul.mubr.f32.gmra.mrb[0].mxu0 %v2647
    %v2777 = vpop.f32.mrb[0].mxu0
    %v2778 = vadd.f32 0.0, %v2777
    %v2779 = vpop.f32.mrb[0].mxu0
    %2780 = vmatprep.mubr.f32.mxu0 0.0
    %2781 = vmatmul.mubr.f32.gmra.mrb[0].mxu0 %v2650
    %v2782 = vpop.f32.mrb[0].mxu0
    %v2783 = vadd.f32 0.0, %v2782
    %v2784 = vpop.f32.mrb[0].mxu0
    %2785 = vmatprep.mubr.f32.mxu0 0.0
    %2786 = vmatmul.mubr.f32.gmra.mrb[0].mxu0 %v2653
    %v2787 = vpop.f32.mrb[0].mxu0
    %v2788 = vadd.f32 0.0, %v2787
    %v2789 = vpop.f32.mrb[0].mxu0
    %2790 = vmatprep.mubr.f32.mxu0 0.0
    %2791 = vmatmul.mubr.f32.gmra.mrb[0].mxu0 %v2656
    %v2792 = vpop.f32.mrb[0].mxu0
    %v2793 = vadd.f32 0.0, %v2792
    %v2794 = vpop.f32.mrb[0].mxu0
    %2795 = vmatprep.mubr.f32.mxu0 0.0
    %2796 = vmatmul.mubr.f32.gmra.mrb[0].mxu0 %v2659
    %v2797 = vpop.f32.mrb[0].mxu0
    %v2798 = vadd.f32 0.0, %v2797
    %v2799 = vpop.f32.mrb[0].mxu0
    %2800 = vmatprep.mubr.f32.mxu0 0.0
    %2801 = vmatmul.mubr.f32.gmra.mrb[0].mxu0 %v2662
    %v2802 = vpop.f32.mrb[0].mxu0
    %v2803 = vadd.f32 0.0, %v2802
    %v2804 = vpop.f32.mrb[0].mxu0
    %2805 = vmatprep.mubr.f32.mxu0 0.0
    %2806 = vmatmul.mubr.f32.gmra.mrb[0].mxu0 %v2665
    %v2807 = vpop.f32.mrb[0].mxu0
    %v2808 = vadd.f32 0.0, %v2807
    %v2809 = vpop.f32.mrb[0].mxu0
    %2810 = vmatprep.mubr.f32.mxu0 0.0
    %2811 = vmatmul.mubr.f32.gmra.mrb[0].mxu0 %v2668
    %v2812 = vpop.f32.mrb[0].mxu0
    %v2813 = vadd.f32 0.0, %v2812
    %v2814 = vpop.f32.mrb[0].mxu0
    %2815 = vmatprep.mubr.f32.mxu0 0.0
    %2816 = vmatmul.mubr.f32.gmra.mrb[0].mxu0 %v2671
    %v2817 = vpop.f32.mrb[0].mxu0
    %v2818 = vadd.f32 0.0, %v2817
    %v2819 = vpop.f32.mrb[0].mxu0
    %2820 = vdwg.mxu0
    %v2821 = vadd.f32 %v2591, %v2743
    %v2822 = vadd.f32 %v2592, %v2748
    %v2823 = vadd.f32 %v2593, %v2753
    %v2824 = vadd.f32 %v2594, %v2758
    %v2825 = vadd.f32 %v2595, %v2763
    %v2826 = vadd.f32 %v2596, %v2768
    %v2827 = vadd.f32 %v2597, %v2773
    %v2828 = vadd.f32 %v2598, %v2778
    %v2829 = vadd.f32 %v2599, %v2783
    %v2830 = vadd.f32 %v2600, %v2788
    %v2831 = vadd.f32 %v2601, %v2793
    %v2832 = vadd.f32 %v2602, %v2798
    %v2833 = vadd.f32 %v2603, %v2803
    %v2834 = vadd.f32 %v2604, %v2808
    %v2835 = vadd.f32 %v2605, %v2813
    %v2836 = vadd.f32 %v2606, %v2818
    %v2837 = vld [vmem:[#allocation2 + $0xb] sm:$0xff]
    %v2838 = vld [vmem:[#allocation2 + $0x13] sm:$0xff]
    %v2839 = vld [vmem:[#allocation2 + $0x1b] sm:$0xff]
    %v2840 = vld [vmem:[#allocation2 + $0x23] sm:$0xff]
    %v2841 = vld [vmem:[#allocation2 + $0x2b] sm:$0xff]
    %v2842 = vld [vmem:[#allocation2 + $0x33] sm:$0xff]
    %v2843 = vld [vmem:[#allocation2 + $0x3b] sm:$0xff]
    %v2844 = vld [vmem:[#allocation2 + $0x43] sm:$0xff]
    %v2845 = vld [vmem:[#allocation2 + $0x4b] sm:$0xff]
    %v2846 = vld [vmem:[#allocation2 + $0x53] sm:$0xff]
    %v2847 = vld [vmem:[#allocation2 + $0x5b] sm:$0xff]
    %v2848 = vld [vmem:[#allocation2 + $0x63] sm:$0xff]
    %v2849 = vld [vmem:[#allocation2 + $0x6b] sm:$0xff]
    %v2850 = vld [vmem:[#allocation2 + $0x73] sm:$0xff]
    %v2851 = vld [vmem:[#allocation2 + $0x7b] sm:$0xff]
    %v2852 = vld [vmem:[#allocation2 + $0x83] sm:$0xff]
    %s2853 = scalar_lea.vmem %s3, 64
    %v2854 = vld [vmem:[%s2853] sm:$0x3f]
    %v2856 = vsel %vm1006, %v2837, 0
    %v2859 = vsel %vm1006, %v2838, 0
    %v2862 = vsel %vm1006, %v2839, 0
    %v2865 = vsel %vm1006, %v2840, 0
    %v2868 = vsel %vm1006, %v2841, 0
    %v2871 = vsel %vm1006, %v2842, 0
    %v2874 = vsel %vm1006, %v2843, 0
    %v2877 = vsel %vm1006, %v2844, 0
    %v2880 = vsel %vm1006, %v2845, 0
    %v2883 = vsel %vm1006, %v2846, 0
    %v2886 = vsel %vm1006, %v2847, 0
    %v2889 = vsel %vm1006, %v2848, 0
    %v2892 = vsel %vm1006, %v2849, 0
    %v2895 = vsel %vm1006, %v2850, 0
    %v2898 = vsel %vm1006, %v2851, 0
    %v2901 = vsel %vm1006, %v2852, 0
    %v2904 = vsel %vm1112, %v2854, 0
    %2906 = vmatprep.subr.mxu0 0.0
    %2907 = vmatpush1.msra.mxu0 %v2904
    %2908 = vmatprep.subr.mxu0 0.0
    %2909 = vmatpush1.msra.mxu0 0.0
    %2910 = vmatprep.subr.mxu0 0.0
    %2911 = vmatpush1.msra.mxu0 0.0
    %2912 = vmatprep.subr.mxu0 0.0
    %2913 = vmatpush1.msra.mxu0 0.0
    %2914 = vmatprep.subr.mxu0 0.0
    %2915 = vmatpush1.msra.mxu0 0.0
    %2916 = vmatprep.subr.mxu0 0.0
    %2917 = vmatpush1.msra.mxu0 0.0
    %2918 = vmatprep.subr.mxu0 0.0
    %2919 = vmatpush1.msra.mxu0 0.0
    %2920 = vmatprep.subr.mxu0 0.0
    %2921 = vmatpush1.msra.mxu0 0.0
    %2922 = vmatprep.subr.mxu0 0.0
    %2923 = vmatpush1.msra.mxu0 0.0
    %2924 = vmatprep.subr.mxu0 0.0
    %2925 = vmatpush1.msra.mxu0 0.0
    %2926 = vmatprep.subr.mxu0 0.0
    %2927 = vmatpush1.msra.mxu0 0.0
    %2928 = vmatprep.subr.mxu0 0.0
    %2929 = vmatpush1.msra.mxu0 0.0
    %2930 = vmatprep.subr.mxu0 0.0
    %2931 = vmatpush1.msra.mxu0 0.0
    %2932 = vmatprep.subr.mxu0 0.0
    %2933 = vmatpush1.msra.mxu0 0.0
    %2934 = vmatprep.subr.mxu0 0.0
    %2935 = vmatpush1.msra.mxu0 0.0
    %2936 = vmatprep.subr.mxu0 0.0
    %2937 = vmatpush1.msra.mxu0 0.0
    %2938 = vmatprep.subr.mxu0 0.0
    %2939 = vmatpush1.msra.mxu0 0.0
    %2940 = vmatprep.subr.mxu0 0.0
    %2941 = vmatpush1.msra.mxu0 0.0
    %2942 = vmatprep.subr.mxu0 0.0
    %2943 = vmatpush1.msra.mxu0 0.0
    %2944 = vmatprep.subr.mxu0 0.0
    %2945 = vmatpush1.msra.mxu0 0.0
    %2946 = vmatprep.subr.mxu0 0.0
    %2947 = vmatpush1.msra.mxu0 0.0
    %2948 = vmatprep.subr.mxu0 0.0
    %2949 = vmatpush1.msra.mxu0 0.0
    %2950 = vmatprep.subr.mxu0 0.0
    %2951 = vmatpush1.msra.mxu0 0.0
    %2952 = vmatprep.subr.mxu0 0.0
    %2953 = vmatpush1.msra.mxu0 0.0
    %2954 = vmatprep.subr.mxu0 0.0
    %2955 = vmatpush1.msra.mxu0 0.0
    %2956 = vmatprep.subr.mxu0 0.0
    %2957 = vmatpush1.msra.mxu0 0.0
    %2958 = vmatprep.subr.mxu0 0.0
    %2959 = vmatpush1.msra.mxu0 0.0
    %2960 = vmatprep.subr.mxu0 0.0
    %2961 = vmatpush1.msra.mxu0 0.0
    %2962 = vmatprep.subr.mxu0 0.0
    %2963 = vmatpush1.msra.mxu0 0.0
    %2964 = vmatprep.subr.mxu0 0.0
    %2965 = vmatpush1.msra.mxu0 0.0
    %2966 = vmatprep.subr.mxu0 0.0
    %2967 = vmatpush1.msra.mxu0 0.0
    %2968 = vmatprep.subr.mxu0 0.0
    %2969 = vmatpush1.msra.mxu0 0.0
    %2970 = vmatprep.mubr.f32.mxu0 0.0
    %2971 = vmatmul.mubr.f32.gmra.mrb[0].mxu0 %v2856
    %v2972 = vpop.f32.mrb[0].mxu0
    %v2973 = vadd.f32 0.0, %v2972
    %v2974 = vpop.f32.mrb[0].mxu0
    %2975 = vmatprep.mubr.f32.mxu0 0.0
    %2976 = vmatmul.mubr.f32.gmra.mrb[0].mxu0 %v2859
    %v2977 = vpop.f32.mrb[0].mxu0
    %v2978 = vadd.f32 0.0, %v2977
    %v2979 = vpop.f32.mrb[0].mxu0
    %2980 = vmatprep.mubr.f32.mxu0 0.0
    %2981 = vmatmul.mubr.f32.gmra.mrb[0].mxu0 %v2862
    %v2982 = vpop.f32.mrb[0].mxu0
    %v2983 = vadd.f32 0.0, %v2982
    %v2984 = vpop.f32.mrb[0].mxu0
    %2985 = vmatprep.mubr.f32.mxu0 0.0
    %2986 = vmatmul.mubr.f32.gmra.mrb[0].mxu0 %v2865
    %v2987 = vpop.f32.mrb[0].mxu0
    %v2988 = vadd.f32 0.0, %v2987
    %v2989 = vpop.f32.mrb[0].mxu0
    %2990 = vmatprep.mubr.f32.mxu0 0.0
    %2991 = vmatmul.mubr.f32.gmra.mrb[0].mxu0 %v2868
    %v2992 = vpop.f32.mrb[0].mxu0
    %v2993 = vadd.f32 0.0, %v2992
    %v2994 = vpop.f32.mrb[0].mxu0
    %2995 = vmatprep.mubr.f32.mxu0 0.0
    %2996 = vmatmul.mubr.f32.gmra.mrb[0].mxu0 %v2871
    %v2997 = vpop.f32.mrb[0].mxu0
    %v2998 = vadd.f32 0.0, %v2997
    %v2999 = vpop.f32.mrb[0].mxu0
    %3000 = vmatprep.mubr.f32.mxu0 0.0
    %3001 = vmatmul.mubr.f32.gmra.mrb[0].mxu0 %v2874
    %v3002 = vpop.f32.mrb[0].mxu0
    %v3003 = vadd.f32 0.0, %v3002
    %v3004 = vpop.f32.mrb[0].mxu0
    %3005 = vmatprep.mubr.f32.mxu0 0.0
    %3006 = vmatmul.mubr.f32.gmra.mrb[0].mxu0 %v2877
    %v3007 = vpop.f32.mrb[0].mxu0
    %v3008 = vadd.f32 0.0, %v3007
    %v3009 = vpop.f32.mrb[0].mxu0
    %3010 = vmatprep.mubr.f32.mxu0 0.0
    %3011 = vmatmul.mubr.f32.gmra.mrb[0].mxu0 %v2880
    %v3012 = vpop.f32.mrb[0].mxu0
    %v3013 = vadd.f32 0.0, %v3012
    %v3014 = vpop.f32.mrb[0].mxu0
    %3015 = vmatprep.mubr.f32.mxu0 0.0
    %3016 = vmatmul.mubr.f32.gmra.mrb[0].mxu0 %v2883
    %v3017 = vpop.f32.mrb[0].mxu0
    %v3018 = vadd.f32 0.0, %v3017
    %v3019 = vpop.f32.mrb[0].mxu0
    %3020 = vmatprep.mubr.f32.mxu0 0.0
    %3021 = vmatmul.mubr.f32.gmra.mrb[0].mxu0 %v2886
    %v3022 = vpop.f32.mrb[0].mxu0
    %v3023 = vadd.f32 0.0, %v3022
    %v3024 = vpop.f32.mrb[0].mxu0
    %3025 = vmatprep.mubr.f32.mxu0 0.0
    %3026 = vmatmul.mubr.f32.gmra.mrb[0].mxu0 %v2889
    %v3027 = vpop.f32.mrb[0].mxu0
    %v3028 = vadd.f32 0.0, %v3027
    %v3029 = vpop.f32.mrb[0].mxu0
    %3030 = vmatprep.mubr.f32.mxu0 0.0
    %3031 = vmatmul.mubr.f32.gmra.mrb[0].mxu0 %v2892
    %v3032 = vpop.f32.mrb[0].mxu0
    %v3033 = vadd.f32 0.0, %v3032
    %v3034 = vpop.f32.mrb[0].mxu0
    %3035 = vmatprep.mubr.f32.mxu0 0.0
    %3036 = vmatmul.mubr.f32.gmra.mrb[0].mxu0 %v2895
    %v3037 = vpop.f32.mrb[0].mxu0
    %v3038 = vadd.f32 0.0, %v3037
    %v3039 = vpop.f32.mrb[0].mxu0
    %3040 = vmatprep.mubr.f32.mxu0 0.0
    %3041 = vmatmul.mubr.f32.gmra.mrb[0].mxu0 %v2898
    %v3042 = vpop.f32.mrb[0].mxu0
    %v3043 = vadd.f32 0.0, %v3042
    %v3044 = vpop.f32.mrb[0].mxu0
    %3045 = vmatprep.mubr.f32.mxu0 0.0
    %3046 = vmatmul.mubr.f32.gmra.mrb[0].mxu0 %v2901
    %v3047 = vpop.f32.mrb[0].mxu0
    %v3048 = vadd.f32 0.0, %v3047
    %v3049 = vpop.f32.mrb[0].mxu0
    %3050 = vdwg.mxu0
    %v3051 = vadd.f32 %v2821, %v2973
    %v3052 = vadd.f32 %v2822, %v2978
    %v3053 = vadd.f32 %v2823, %v2983
    %v3054 = vadd.f32 %v2824, %v2988
    %v3055 = vadd.f32 %v2825, %v2993
    %v3056 = vadd.f32 %v2826, %v2998
    %v3057 = vadd.f32 %v2827, %v3003
    %v3058 = vadd.f32 %v2828, %v3008
    %v3059 = vadd.f32 %v2829, %v3013
    %v3060 = vadd.f32 %v2830, %v3018
    %v3061 = vadd.f32 %v2831, %v3023
    %v3062 = vadd.f32 %v2832, %v3028
    %v3063 = vadd.f32 %v2833, %v3033
    %v3064 = vadd.f32 %v2834, %v3038
    %v3065 = vadd.f32 %v2835, %v3043
    %v3066 = vadd.f32 %v2836, %v3048
    %v3067 = vld [vmem:[#allocation2 + $0xc] sm:$0xff]
    %v3068 = vld [vmem:[#allocation2 + $0x14] sm:$0xff]
    %v3069 = vld [vmem:[#allocation2 + $0x1c] sm:$0xff]
    %v3070 = vld [vmem:[#allocation2 + $0x24] sm:$0xff]
    %v3071 = vld [vmem:[#allocation2 + $0x2c] sm:$0xff]
    %v3072 = vld [vmem:[#allocation2 + $0x34] sm:$0xff]
    %v3073 = vld [vmem:[#allocation2 + $0x3c] sm:$0xff]
    %v3074 = vld [vmem:[#allocation2 + $0x44] sm:$0xff]
    %v3075 = vld [vmem:[#allocation2 + $0x4c] sm:$0xff]
    %v3076 = vld [vmem:[#allocation2 + $0x54] sm:$0xff]
    %v3077 = vld [vmem:[#allocation2 + $0x5c] sm:$0xff]
    %v3078 = vld [vmem:[#allocation2 + $0x64] sm:$0xff]
    %v3079 = vld [vmem:[#allocation2 + $0x6c] sm:$0xff]
    %v3080 = vld [vmem:[#allocation2 + $0x74] sm:$0xff]
    %v3081 = vld [vmem:[#allocation2 + $0x7c] sm:$0xff]
    %v3082 = vld [vmem:[#allocation2 + $0x84] sm:$0xff]
    %s3083 = scalar_lea.vmem %s3, 72
    %v3084 = vld [vmem:[%s3083] sm:$0x3f]
    %v3086 = vsel %vm1006, %v3067, 0
    %v3089 = vsel %vm1006, %v3068, 0
    %v3092 = vsel %vm1006, %v3069, 0
    %v3095 = vsel %vm1006, %v3070, 0
    %v3098 = vsel %vm1006, %v3071, 0
    %v3101 = vsel %vm1006, %v3072, 0
    %v3104 = vsel %vm1006, %v3073, 0
    %v3107 = vsel %vm1006, %v3074, 0
    %v3110 = vsel %vm1006, %v3075, 0
    %v3113 = vsel %vm1006, %v3076, 0
    %v3116 = vsel %vm1006, %v3077, 0
    %v3119 = vsel %vm1006, %v3078, 0
    %v3122 = vsel %vm1006, %v3079, 0
    %v3125 = vsel %vm1006, %v3080, 0
    %v3128 = vsel %vm1006, %v3081, 0
    %v3131 = vsel %vm1006, %v3082, 0
    %v3134 = vsel %vm1112, %v3084, 0
    %3136 = vmatprep.subr.mxu0 0.0
    %3137 = vmatpush1.msra.mxu0 %v3134
    %3138 = vmatprep.subr.mxu0 0.0
    %3139 = vmatpush1.msra.mxu0 0.0
    %3140 = vmatprep.subr.mxu0 0.0
    %3141 = vmatpush1.msra.mxu0 0.0
    %3142 = vmatprep.subr.mxu0 0.0
    %3143 = vmatpush1.msra.mxu0 0.0
    %3144 = vmatprep.subr.mxu0 0.0
    %3145 = vmatpush1.msra.mxu0 0.0
    %3146 = vmatprep.subr.mxu0 0.0
    %3147 = vmatpush1.msra.mxu0 0.0
    %3148 = vmatprep.subr.mxu0 0.0
    %3149 = vmatpush1.msra.mxu0 0.0
    %3150 = vmatprep.subr.mxu0 0.0
    %3151 = vmatpush1.msra.mxu0 0.0
    %3152 = vmatprep.subr.mxu0 0.0
    %3153 = vmatpush1.msra.mxu0 0.0
    %3154 = vmatprep.subr.mxu0 0.0
    %3155 = vmatpush1.msra.mxu0 0.0
    %3156 = vmatprep.subr.mxu0 0.0
    %3157 = vmatpush1.msra.mxu0 0.0
    %3158 = vmatprep.subr.mxu0 0.0
    %3159 = vmatpush1.msra.mxu0 0.0
    %3160 = vmatprep.subr.mxu0 0.0
    %3161 = vmatpush1.msra.mxu0 0.0
    %3162 = vmatprep.subr.mxu0 0.0
    %3163 = vmatpush1.msra.mxu0 0.0
    %3164 = vmatprep.subr.mxu0 0.0
    %3165 = vmatpush1.msra.mxu0 0.0
    %3166 = vmatprep.subr.mxu0 0.0
    %3167 = vmatpush1.msra.mxu0 0.0
    %3168 = vmatprep.subr.mxu0 0.0
    %3169 = vmatpush1.msra.mxu0 0.0
    %3170 = vmatprep.subr.mxu0 0.0
    %3171 = vmatpush1.msra.mxu0 0.0
    %3172 = vmatprep.subr.mxu0 0.0
    %3173 = vmatpush1.msra.mxu0 0.0
    %3174 = vmatprep.subr.mxu0 0.0
    %3175 = vmatpush1.msra.mxu0 0.0
    %3176 = vmatprep.subr.mxu0 0.0
    %3177 = vmatpush1.msra.mxu0 0.0
    %3178 = vmatprep.subr.mxu0 0.0
    %3179 = vmatpush1.msra.mxu0 0.0
    %3180 = vmatprep.subr.mxu0 0.0
    %3181 = vmatpush1.msra.mxu0 0.0
    %3182 = vmatprep.subr.mxu0 0.0
    %3183 = vmatpush1.msra.mxu0 0.0
    %3184 = vmatprep.subr.mxu0 0.0
    %3185 = vmatpush1.msra.mxu0 0.0
    %3186 = vmatprep.subr.mxu0 0.0
    %3187 = vmatpush1.msra.mxu0 0.0
    %3188 = vmatprep.subr.mxu0 0.0
    %3189 = vmatpush1.msra.mxu0 0.0
    %3190 = vmatprep.subr.mxu0 0.0
    %3191 = vmatpush1.msra.mxu0 0.0
    %3192 = vmatprep.subr.mxu0 0.0
    %3193 = vmatpush1.msra.mxu0 0.0
    %3194 = vmatprep.subr.mxu0 0.0
    %3195 = vmatpush1.msra.mxu0 0.0
    %3196 = vmatprep.subr.mxu0 0.0
    %3197 = vmatpush1.msra.mxu0 0.0
    %3198 = vmatprep.subr.mxu0 0.0
    %3199 = vmatpush1.msra.mxu0 0.0
    %3200 = vmatprep.mubr.f32.mxu0 0.0
    %3201 = vmatmul.mubr.f32.gmra.mrb[0].mxu0 %v3086
    %v3202 = vpop.f32.mrb[0].mxu0
    %v3203 = vadd.f32 0.0, %v3202
    %v3204 = vpop.f32.mrb[0].mxu0
    %3205 = vmatprep.mubr.f32.mxu0 0.0
    %3206 = vmatmul.mubr.f32.gmra.mrb[0].mxu0 %v3089
    %v3207 = vpop.f32.mrb[0].mxu0
    %v3208 = vadd.f32 0.0, %v3207
    %v3209 = vpop.f32.mrb[0].mxu0
    %3210 = vmatprep.mubr.f32.mxu0 0.0
    %3211 = vmatmul.mubr.f32.gmra.mrb[0].mxu0 %v3092
    %v3212 = vpop.f32.mrb[0].mxu0
    %v3213 = vadd.f32 0.0, %v3212
    %v3214 = vpop.f32.mrb[0].mxu0
    %3215 = vmatprep.mubr.f32.mxu0 0.0
    %3216 = vmatmul.mubr.f32.gmra.mrb[0].mxu0 %v3095
    %v3217 = vpop.f32.mrb[0].mxu0
    %v3218 = vadd.f32 0.0, %v3217
    %v3219 = vpop.f32.mrb[0].mxu0
    %3220 = vmatprep.mubr.f32.mxu0 0.0
    %3221 = vmatmul.mubr.f32.gmra.mrb[0].mxu0 %v3098
    %v3222 = vpop.f32.mrb[0].mxu0
    %v3223 = vadd.f32 0.0, %v3222
    %v3224 = vpop.f32.mrb[0].mxu0
    %3225 = vmatprep.mubr.f32.mxu0 0.0
    %3226 = vmatmul.mubr.f32.gmra.mrb[0].mxu0 %v3101
    %v3227 = vpop.f32.mrb[0].mxu0
    %v3228 = vadd.f32 0.0, %v3227
    %v3229 = vpop.f32.mrb[0].mxu0
    %3230 = vmatprep.mubr.f32.mxu0 0.0
    %3231 = vmatmul.mubr.f32.gmra.mrb[0].mxu0 %v3104
    %v3232 = vpop.f32.mrb[0].mxu0
    %v3233 = vadd.f32 0.0, %v3232
    %v3234 = vpop.f32.mrb[0].mxu0
    %3235 = vmatprep.mubr.f32.mxu0 0.0
    %3236 = vmatmul.mubr.f32.gmra.mrb[0].mxu0 %v3107
    %v3237 = vpop.f32.mrb[0].mxu0
    %v3238 = vadd.f32 0.0, %v3237
    %v3239 = vpop.f32.mrb[0].mxu0
    %3240 = vmatprep.mubr.f32.mxu0 0.0
    %3241 = vmatmul.mubr.f32.gmra.mrb[0].mxu0 %v3110
    %v3242 = vpop.f32.mrb[0].mxu0
    %v3243 = vadd.f32 0.0, %v3242
    %v3244 = vpop.f32.mrb[0].mxu0
    %3245 = vmatprep.mubr.f32.mxu0 0.0
    %3246 = vmatmul.mubr.f32.gmra.mrb[0].mxu0 %v3113
    %v3247 = vpop.f32.mrb[0].mxu0
    %v3248 = vadd.f32 0.0, %v3247
    %v3249 = vpop.f32.mrb[0].mxu0
    %3250 = vmatprep.mubr.f32.mxu0 0.0
    %3251 = vmatmul.mubr.f32.gmra.mrb[0].mxu0 %v3116
    %v3252 = vpop.f32.mrb[0].mxu0
    %v3253 = vadd.f32 0.0, %v3252
    %v3254 = vpop.f32.mrb[0].mxu0
    %3255 = vmatprep.mubr.f32.mxu0 0.0
    %3256 = vmatmul.mubr.f32.gmra.mrb[0].mxu0 %v3119
    %v3257 = vpop.f32.mrb[0].mxu0
    %v3258 = vadd.f32 0.0, %v3257
    %v3259 = vpop.f32.mrb[0].mxu0
    %3260 = vmatprep.mubr.f32.mxu0 0.0
    %3261 = vmatmul.mubr.f32.gmra.mrb[0].mxu0 %v3122
    %v3262 = vpop.f32.mrb[0].mxu0
    %v3263 = vadd.f32 0.0, %v3262
    %v3264 = vpop.f32.mrb[0].mxu0
    %3265 = vmatprep.mubr.f32.mxu0 0.0
    %3266 = vmatmul.mubr.f32.gmra.mrb[0].mxu0 %v3125
    %v3267 = vpop.f32.mrb[0].mxu0
    %v3268 = vadd.f32 0.0, %v3267
    %v3269 = vpop.f32.mrb[0].mxu0
    %3270 = vmatprep.mubr.f32.mxu0 0.0
    %3271 = vmatmul.mubr.f32.gmra.mrb[0].mxu0 %v3128
    %v3272 = vpop.f32.mrb[0].mxu0
    %v3273 = vadd.f32 0.0, %v3272
    %v3274 = vpop.f32.mrb[0].mxu0
    %3275 = vmatprep.mubr.f32.mxu0 0.0
    %3276 = vmatmul.mubr.f32.gmra.mrb[0].mxu0 %v3131
    %v3277 = vpop.f32.mrb[0].mxu0
    %v3278 = vadd.f32 0.0, %v3277
    %v3279 = vpop.f32.mrb[0].mxu0
    %3280 = vdwg.mxu0
    %v3281 = vadd.f32 %v3051, %v3203
    %v3282 = vadd.f32 %v3052, %v3208
    %v3283 = vadd.f32 %v3053, %v3213
    %v3284 = vadd.f32 %v3054, %v3218
    %v3285 = vadd.f32 %v3055, %v3223
    %v3286 = vadd.f32 %v3056, %v3228
    %v3287 = vadd.f32 %v3057, %v3233
    %v3288 = vadd.f32 %v3058, %v3238
    %v3289 = vadd.f32 %v3059, %v3243
    %v3290 = vadd.f32 %v3060, %v3248
    %v3291 = vadd.f32 %v3061, %v3253
    %v3292 = vadd.f32 %v3062, %v3258
    %v3293 = vadd.f32 %v3063, %v3263
    %v3294 = vadd.f32 %v3064, %v3268
    %v3295 = vadd.f32 %v3065, %v3273
    %v3296 = vadd.f32 %v3066, %v3278
    %v3297 = vld [vmem:[#allocation2 + $0x10] sm:$0xff]
    %v3298 = vld [vmem:[#allocation2 + $0x18] sm:$0xff]
    %v3299 = vld [vmem:[#allocation2 + $0x20] sm:$0xff]
    %v3300 = vld [vmem:[#allocation2 + $0x28] sm:$0xff]
    %v3301 = vld [vmem:[#allocation2 + $0x30] sm:$0xff]
    %v3302 = vld [vmem:[#allocation2 + $0x38] sm:$0xff]
    %v3303 = vld [vmem:[#allocation2 + $0x40] sm:$0xff]
    %v3304 = vld [vmem:[#allocation2 + $0x48] sm:$0xff]
    %v3305 = vld [vmem:[#allocation2 + $0x50] sm:$0xff]
    %v3306 = vld [vmem:[#allocation2 + $0x58] sm:$0xff]
    %v3307 = vld [vmem:[#allocation2 + $0x60] sm:$0xff]
    %v3308 = vld [vmem:[#allocation2 + $0x68] sm:$0xff]
    %v3309 = vld [vmem:[#allocation2 + $0x70] sm:$0xff]
    %v3310 = vld [vmem:[#allocation2 + $0x78] sm:$0xff]
    %v3311 = vld [vmem:[#allocation2 + $0x80] sm:$0xff]
    %v3312 = vld [vmem:[#allocation2 + $0x88] sm:$0xff]
    %s3313 = scalar_lea.vmem %s3, 80
    %v3314 = vld [vmem:[%s3313] sm:$0x3f]
    %v3316 = vsel %vm1006, %v3297, 0
    %v3319 = vsel %vm1006, %v3298, 0
    %v3322 = vsel %vm1006, %v3299, 0
    %v3325 = vsel %vm1006, %v3300, 0
    %v3328 = vsel %vm1006, %v3301, 0
    %v3331 = vsel %vm1006, %v3302, 0
    %v3334 = vsel %vm1006, %v3303, 0
    %v3337 = vsel %vm1006, %v3304, 0
    %v3340 = vsel %vm1006, %v3305, 0
    %v3343 = vsel %vm1006, %v3306, 0
    %v3346 = vsel %vm1006, %v3307, 0
    %v3349 = vsel %vm1006, %v3308, 0
    %v3352 = vsel %vm1006, %v3309, 0
    %v3355 = vsel %vm1006, %v3310, 0
    %v3358 = vsel %vm1006, %v3311, 0
    %v3361 = vsel %vm1006, %v3312, 0
    %v3364 = vsel %vm1112, %v3314, 0
    %3366 = vmatprep.subr.mxu0 0.0
    %3367 = vmatpush1.msra.mxu0 %v3364
    %3368 = vmatprep.subr.mxu0 0.0
    %3369 = vmatpush1.msra.mxu0 0.0
    %3370 = vmatprep.subr.mxu0 0.0
    %3371 = vmatpush1.msra.mxu0 0.0
    %3372 = vmatprep.subr.mxu0 0.0
    %3373 = vmatpush1.msra.mxu0 0.0
    %3374 = vmatprep.subr.mxu0 0.0
    %3375 = vmatpush1.msra.mxu0 0.0
    %3376 = vmatprep.subr.mxu0 0.0
    %3377 = vmatpush1.msra.mxu0 0.0
    %3378 = vmatprep.subr.mxu0 0.0
    %3379 = vmatpush1.msra.mxu0 0.0
    %3380 = vmatprep.subr.mxu0 0.0
    %3381 = vmatpush1.msra.mxu0 0.0
    %3382 = vmatprep.subr.mxu0 0.0
    %3383 = vmatpush1.msra.mxu0 0.0
    %3384 = vmatprep.subr.mxu0 0.0
    %3385 = vmatpush1.msra.mxu0 0.0
    %3386 = vmatprep.subr.mxu0 0.0
    %3387 = vmatpush1.msra.mxu0 0.0
    %3388 = vmatprep.subr.mxu0 0.0
    %3389 = vmatpush1.msra.mxu0 0.0
    %3390 = vmatprep.subr.mxu0 0.0
    %3391 = vmatpush1.msra.mxu0 0.0
    %3392 = vmatprep.subr.mxu0 0.0
    %3393 = vmatpush1.msra.mxu0 0.0
    %3394 = vmatprep.subr.mxu0 0.0
    %3395 = vmatpush1.msra.mxu0 0.0
    %3396 = vmatprep.subr.mxu0 0.0
    %3397 = vmatpush1.msra.mxu0 0.0
    %3398 = vmatprep.subr.mxu0 0.0
    %3399 = vmatpush1.msra.mxu0 0.0
    %3400 = vmatprep.subr.mxu0 0.0
    %3401 = vmatpush1.msra.mxu0 0.0
    %3402 = vmatprep.subr.mxu0 0.0
    %3403 = vmatpush1.msra.mxu0 0.0
    %3404 = vmatprep.subr.mxu0 0.0
    %3405 = vmatpush1.msra.mxu0 0.0
    %3406 = vmatprep.subr.mxu0 0.0
    %3407 = vmatpush1.msra.mxu0 0.0
    %3408 = vmatprep.subr.mxu0 0.0
    %3409 = vmatpush1.msra.mxu0 0.0
    %3410 = vmatprep.subr.mxu0 0.0
    %3411 = vmatpush1.msra.mxu0 0.0
    %3412 = vmatprep.subr.mxu0 0.0
    %3413 = vmatpush1.msra.mxu0 0.0
    %3414 = vmatprep.subr.mxu0 0.0
    %3415 = vmatpush1.msra.mxu0 0.0
    %3416 = vmatprep.subr.mxu0 0.0
    %3417 = vmatpush1.msra.mxu0 0.0
    %3418 = vmatprep.subr.mxu0 0.0
    %3419 = vmatpush1.msra.mxu0 0.0
    %3420 = vmatprep.subr.mxu0 0.0
    %3421 = vmatpush1.msra.mxu0 0.0
    %3422 = vmatprep.subr.mxu0 0.0
    %3423 = vmatpush1.msra.mxu0 0.0
    %3424 = vmatprep.subr.mxu0 0.0
    %3425 = vmatpush1.msra.mxu0 0.0
    %3426 = vmatprep.subr.mxu0 0.0
    %3427 = vmatpush1.msra.mxu0 0.0
    %3428 = vmatprep.subr.mxu0 0.0
    %3429 = vmatpush1.msra.mxu0 0.0
    %3430 = vmatprep.mubr.f32.mxu0 0.0
    %3431 = vmatmul.mubr.f32.gmra.mrb[0].mxu0 %v3316
    %v3432 = vpop.f32.mrb[0].mxu0
    %v3433 = vadd.f32 0.0, %v3432
    %v3434 = vpop.f32.mrb[0].mxu0
    %3435 = vmatprep.mubr.f32.mxu0 0.0
    %3436 = vmatmul.mubr.f32.gmra.mrb[0].mxu0 %v3319
    %v3437 = vpop.f32.mrb[0].mxu0
    %v3438 = vadd.f32 0.0, %v3437
    %v3439 = vpop.f32.mrb[0].mxu0
    %3440 = vmatprep.mubr.f32.mxu0 0.0
    %3441 = vmatmul.mubr.f32.gmra.mrb[0].mxu0 %v3322
    %v3442 = vpop.f32.mrb[0].mxu0
    %v3443 = vadd.f32 0.0, %v3442
    %v3444 = vpop.f32.mrb[0].mxu0
    %3445 = vmatprep.mubr.f32.mxu0 0.0
    %3446 = vmatmul.mubr.f32.gmra.mrb[0].mxu0 %v3325
    %v3447 = vpop.f32.mrb[0].mxu0
    %v3448 = vadd.f32 0.0, %v3447
    %v3449 = vpop.f32.mrb[0].mxu0
    %3450 = vmatprep.mubr.f32.mxu0 0.0
    %3451 = vmatmul.mubr.f32.gmra.mrb[0].mxu0 %v3328
    %v3452 = vpop.f32.mrb[0].mxu0
    %v3453 = vadd.f32 0.0, %v3452
    %v3454 = vpop.f32.mrb[0].mxu0
    %3455 = vmatprep.mubr.f32.mxu0 0.0
    %3456 = vmatmul.mubr.f32.gmra.mrb[0].mxu0 %v3331
    %v3457 = vpop.f32.mrb[0].mxu0
    %v3458 = vadd.f32 0.0, %v3457
    %v3459 = vpop.f32.mrb[0].mxu0
    %3460 = vmatprep.mubr.f32.mxu0 0.0
    %3461 = vmatmul.mubr.f32.gmra.mrb[0].mxu0 %v3334
    %v3462 = vpop.f32.mrb[0].mxu0
    %v3463 = vadd.f32 0.0, %v3462
    %v3464 = vpop.f32.mrb[0].mxu0
    %3465 = vmatprep.mubr.f32.mxu0 0.0
    %3466 = vmatmul.mubr.f32.gmra.mrb[0].mxu0 %v3337
    %v3467 = vpop.f32.mrb[0].mxu0
    %v3468 = vadd.f32 0.0, %v3467
    %v3469 = vpop.f32.mrb[0].mxu0
    %3470 = vmatprep.mubr.f32.mxu0 0.0
    %3471 = vmatmul.mubr.f32.gmra.mrb[0].mxu0 %v3340
    %v3472 = vpop.f32.mrb[0].mxu0
    %v3473 = vadd.f32 0.0, %v3472
    %v3474 = vpop.f32.mrb[0].mxu0
    %3475 = vmatprep.mubr.f32.mxu0 0.0
    %3476 = vmatmul.mubr.f32.gmra.mrb[0].mxu0 %v3343
    %v3477 = vpop.f32.mrb[0].mxu0
    %v3478 = vadd.f32 0.0, %v3477
    %v3479 = vpop.f32.mrb[0].mxu0
    %3480 = vmatprep.mubr.f32.mxu0 0.0
    %3481 = vmatmul.mubr.f32.gmra.mrb[0].mxu0 %v3346
    %v3482 = vpop.f32.mrb[0].mxu0
    %v3483 = vadd.f32 0.0, %v3482
    %v3484 = vpop.f32.mrb[0].mxu0
    %3485 = vmatprep.mubr.f32.mxu0 0.0
    %3486 = vmatmul.mubr.f32.gmra.mrb[0].mxu0 %v3349
    %v3487 = vpop.f32.mrb[0].mxu0
    %v3488 = vadd.f32 0.0, %v3487
    %v3489 = vpop.f32.mrb[0].mxu0
    %3490 = vmatprep.mubr.f32.mxu0 0.0
    %3491 = vmatmul.mubr.f32.gmra.mrb[0].mxu0 %v3352
    %v3492 = vpop.f32.mrb[0].mxu0
    %v3493 = vadd.f32 0.0, %v3492
    %v3494 = vpop.f32.mrb[0].mxu0
    %3495 = vmatprep.mubr.f32.mxu0 0.0
    %3496 = vmatmul.mubr.f32.gmra.mrb[0].mxu0 %v3355
    %v3497 = vpop.f32.mrb[0].mxu0
    %v3498 = vadd.f32 0.0, %v3497
    %v3499 = vpop.f32.mrb[0].mxu0
    %3500 = vmatprep.mubr.f32.mxu0 0.0
    %3501 = vmatmul.mubr.f32.gmra.mrb[0].mxu0 %v3358
    %v3502 = vpop.f32.mrb[0].mxu0
    %v3503 = vadd.f32 0.0, %v3502
    %v3504 = vpop.f32.mrb[0].mxu0
    %3505 = vmatprep.mubr.f32.mxu0 0.0
    %3506 = vmatmul.mubr.f32.gmra.mrb[0].mxu0 %v3361
    %v3507 = vpop.f32.mrb[0].mxu0
    %v3508 = vadd.f32 0.0, %v3507
    %v3509 = vpop.f32.mrb[0].mxu0
    %3510 = vdwg.mxu0
    %v3511 = vadd.f32 %v3281, %v3433
    %v3512 = vadd.f32 %v3282, %v3438
    %v3513 = vadd.f32 %v3283, %v3443
    %v3514 = vadd.f32 %v3284, %v3448
    %v3515 = vadd.f32 %v3285, %v3453
    %v3516 = vadd.f32 %v3286, %v3458
    %v3517 = vadd.f32 %v3287, %v3463
    %v3518 = vadd.f32 %v3288, %v3468
    %v3519 = vadd.f32 %v3289, %v3473
    %v3520 = vadd.f32 %v3290, %v3478
    %v3521 = vadd.f32 %v3291, %v3483
    %v3522 = vadd.f32 %v3292, %v3488
    %v3523 = vadd.f32 %v3293, %v3493
    %v3524 = vadd.f32 %v3294, %v3498
    %v3525 = vadd.f32 %v3295, %v3503
    %v3526 = vadd.f32 %v3296, %v3508
    %v3527 = vld [vmem:[#allocation2 + $0x11] sm:$0xff]
    %v3528 = vld [vmem:[#allocation2 + $0x19] sm:$0xff]
    %v3529 = vld [vmem:[#allocation2 + $0x21] sm:$0xff]
    %v3530 = vld [vmem:[#allocation2 + $0x29] sm:$0xff]
    %v3531 = vld [vmem:[#allocation2 + $0x31] sm:$0xff]
    %v3532 = vld [vmem:[#allocation2 + $0x39] sm:$0xff]
    %v3533 = vld [vmem:[#allocation2 + $0x41] sm:$0xff]
    %v3534 = vld [vmem:[#allocation2 + $0x49] sm:$0xff]
    %v3535 = vld [vmem:[#allocation2 + $0x51] sm:$0xff]
    %v3536 = vld [vmem:[#allocation2 + $0x59] sm:$0xff]
    %v3537 = vld [vmem:[#allocation2 + $0x61] sm:$0xff]
    %v3538 = vld [vmem:[#allocation2 + $0x69] sm:$0xff]
    %v3539 = vld [vmem:[#allocation2 + $0x71] sm:$0xff]
    %v3540 = vld [vmem:[#allocation2 + $0x79] sm:$0xff]
    %v3541 = vld [vmem:[#allocation2 + $0x81] sm:$0xff]
    %v3542 = vld [vmem:[#allocation2 + $0x89] sm:$0xff]
    %s3543 = scalar_lea.vmem %s3, 88
    %v3544 = vld [vmem:[%s3543] sm:$0x3f]
    %v3546 = vsel %vm1006, %v3527, 0
    %v3549 = vsel %vm1006, %v3528, 0
    %v3552 = vsel %vm1006, %v3529, 0
    %v3555 = vsel %vm1006, %v3530, 0
    %v3558 = vsel %vm1006, %v3531, 0
    %v3561 = vsel %vm1006, %v3532, 0
    %v3564 = vsel %vm1006, %v3533, 0
    %v3567 = vsel %vm1006, %v3534, 0
    %v3570 = vsel %vm1006, %v3535, 0
    %v3573 = vsel %vm1006, %v3536, 0
    %v3576 = vsel %vm1006, %v3537, 0
    %v3579 = vsel %vm1006, %v3538, 0
    %v3582 = vsel %vm1006, %v3539, 0
    %v3585 = vsel %vm1006, %v3540, 0
    %v3588 = vsel %vm1006, %v3541, 0
    %v3591 = vsel %vm1006, %v3542, 0
    %v3594 = vsel %vm1112, %v3544, 0
    %3596 = vmatprep.subr.mxu0 0.0
    %3597 = vmatpush1.msra.mxu0 %v3594
    %3598 = vmatprep.subr.mxu0 0.0
    %3599 = vmatpush1.msra.mxu0 0.0
    %3600 = vmatprep.subr.mxu0 0.0
    %3601 = vmatpush1.msra.mxu0 0.0
    %3602 = vmatprep.subr.mxu0 0.0
    %3603 = vmatpush1.msra.mxu0 0.0
    %3604 = vmatprep.subr.mxu0 0.0
    %3605 = vmatpush1.msra.mxu0 0.0
    %3606 = vmatprep.subr.mxu0 0.0
    %3607 = vmatpush1.msra.mxu0 0.0
    %3608 = vmatprep.subr.mxu0 0.0
    %3609 = vmatpush1.msra.mxu0 0.0
    %3610 = vmatprep.subr.mxu0 0.0
    %3611 = vmatpush1.msra.mxu0 0.0
    %3612 = vmatprep.subr.mxu0 0.0
    %3613 = vmatpush1.msra.mxu0 0.0
    %3614 = vmatprep.subr.mxu0 0.0
    %3615 = vmatpush1.msra.mxu0 0.0
    %3616 = vmatprep.subr.mxu0 0.0
    %3617 = vmatpush1.msra.mxu0 0.0
    %3618 = vmatprep.subr.mxu0 0.0
    %3619 = vmatpush1.msra.mxu0 0.0
    %3620 = vmatprep.subr.mxu0 0.0
    %3621 = vmatpush1.msra.mxu0 0.0
    %3622 = vmatprep.subr.mxu0 0.0
    %3623 = vmatpush1.msra.mxu0 0.0
    %3624 = vmatprep.subr.mxu0 0.0
    %3625 = vmatpush1.msra.mxu0 0.0
    %3626 = vmatprep.subr.mxu0 0.0
    %3627 = vmatpush1.msra.mxu0 0.0
    %3628 = vmatprep.subr.mxu0 0.0
    %3629 = vmatpush1.msra.mxu0 0.0
    %3630 = vmatprep.subr.mxu0 0.0
    %3631 = vmatpush1.msra.mxu0 0.0
    %3632 = vmatprep.subr.mxu0 0.0
    %3633 = vmatpush1.msra.mxu0 0.0
    %3634 = vmatprep.subr.mxu0 0.0
    %3635 = vmatpush1.msra.mxu0 0.0
    %3636 = vmatprep.subr.mxu0 0.0
    %3637 = vmatpush1.msra.mxu0 0.0
    %3638 = vmatprep.subr.mxu0 0.0
    %3639 = vmatpush1.msra.mxu0 0.0
    %3640 = vmatprep.subr.mxu0 0.0
    %3641 = vmatpush1.msra.mxu0 0.0
    %3642 = vmatprep.subr.mxu0 0.0
    %3643 = vmatpush1.msra.mxu0 0.0
    %3644 = vmatprep.subr.mxu0 0.0
    %3645 = vmatpush1.msra.mxu0 0.0
    %3646 = vmatprep.subr.mxu0 0.0
    %3647 = vmatpush1.msra.mxu0 0.0
    %3648 = vmatprep.subr.mxu0 0.0
    %3649 = vmatpush1.msra.mxu0 0.0
    %3650 = vmatprep.subr.mxu0 0.0
    %3651 = vmatpush1.msra.mxu0 0.0
    %3652 = vmatprep.subr.mxu0 0.0
    %3653 = vmatpush1.msra.mxu0 0.0
    %3654 = vmatprep.subr.mxu0 0.0
    %3655 = vmatpush1.msra.mxu0 0.0
    %3656 = vmatprep.subr.mxu0 0.0
    %3657 = vmatpush1.msra.mxu0 0.0
    %3658 = vmatprep.subr.mxu0 0.0
    %3659 = vmatpush1.msra.mxu0 0.0
    %3660 = vmatprep.mubr.f32.mxu0 0.0
    %3661 = vmatmul.mubr.f32.gmra.mrb[0].mxu0 %v3546
    %v3662 = vpop.f32.mrb[0].mxu0
    %v3663 = vadd.f32 0.0, %v3662
    %v3664 = vpop.f32.mrb[0].mxu0
    %3665 = vmatprep.mubr.f32.mxu0 0.0
    %3666 = vmatmul.mubr.f32.gmra.mrb[0].mxu0 %v3549
    %v3667 = vpop.f32.mrb[0].mxu0
    %v3668 = vadd.f32 0.0, %v3667
    %v3669 = vpop.f32.mrb[0].mxu0
    %3670 = vmatprep.mubr.f32.mxu0 0.0
    %3671 = vmatmul.mubr.f32.gmra.mrb[0].mxu0 %v3552
    %v3672 = vpop.f32.mrb[0].mxu0
    %v3673 = vadd.f32 0.0, %v3672
    %v3674 = vpop.f32.mrb[0].mxu0
    %3675 = vmatprep.mubr.f32.mxu0 0.0
    %3676 = vmatmul.mubr.f32.gmra.mrb[0].mxu0 %v3555
    %v3677 = vpop.f32.mrb[0].mxu0
    %v3678 = vadd.f32 0.0, %v3677
    %v3679 = vpop.f32.mrb[0].mxu0
    %3680 = vmatprep.mubr.f32.mxu0 0.0
    %3681 = vmatmul.mubr.f32.gmra.mrb[0].mxu0 %v3558
    %v3682 = vpop.f32.mrb[0].mxu0
    %v3683 = vadd.f32 0.0, %v3682
    %v3684 = vpop.f32.mrb[0].mxu0
    %3685 = vmatprep.mubr.f32.mxu0 0.0
    %3686 = vmatmul.mubr.f32.gmra.mrb[0].mxu0 %v3561
    %v3687 = vpop.f32.mrb[0].mxu0
    %v3688 = vadd.f32 0.0, %v3687
    %v3689 = vpop.f32.mrb[0].mxu0
    %3690 = vmatprep.mubr.f32.mxu0 0.0
    %3691 = vmatmul.mubr.f32.gmra.mrb[0].mxu0 %v3564
    %v3692 = vpop.f32.mrb[0].mxu0
    %v3693 = vadd.f32 0.0, %v3692
    %v3694 = vpop.f32.mrb[0].mxu0
    %3695 = vmatprep.mubr.f32.mxu0 0.0
    %3696 = vmatmul.mubr.f32.gmra.mrb[0].mxu0 %v3567
    %v3697 = vpop.f32.mrb[0].mxu0
    %v3698 = vadd.f32 0.0, %v3697
    %v3699 = vpop.f32.mrb[0].mxu0
    %3700 = vmatprep.mubr.f32.mxu0 0.0
    %3701 = vmatmul.mubr.f32.gmra.mrb[0].mxu0 %v3570
    %v3702 = vpop.f32.mrb[0].mxu0
    %v3703 = vadd.f32 0.0, %v3702
    %v3704 = vpop.f32.mrb[0].mxu0
    %3705 = vmatprep.mubr.f32.mxu0 0.0
    %3706 = vmatmul.mubr.f32.gmra.mrb[0].mxu0 %v3573
    %v3707 = vpop.f32.mrb[0].mxu0
    %v3708 = vadd.f32 0.0, %v3707
    %v3709 = vpop.f32.mrb[0].mxu0
    %3710 = vmatprep.mubr.f32.mxu0 0.0
    %3711 = vmatmul.mubr.f32.gmra.mrb[0].mxu0 %v3576
    %v3712 = vpop.f32.mrb[0].mxu0
    %v3713 = vadd.f32 0.0, %v3712
    %v3714 = vpop.f32.mrb[0].mxu0
    %3715 = vmatprep.mubr.f32.mxu0 0.0
    %3716 = vmatmul.mubr.f32.gmra.mrb[0].mxu0 %v3579
    %v3717 = vpop.f32.mrb[0].mxu0
    %v3718 = vadd.f32 0.0, %v3717
    %v3719 = vpop.f32.mrb[0].mxu0
    %3720 = vmatprep.mubr.f32.mxu0 0.0
    %3721 = vmatmul.mubr.f32.gmra.mrb[0].mxu0 %v3582
    %v3722 = vpop.f32.mrb[0].mxu0
    %v3723 = vadd.f32 0.0, %v3722
    %v3724 = vpop.f32.mrb[0].mxu0
    %3725 = vmatprep.mubr.f32.mxu0 0.0
    %3726 = vmatmul.mubr.f32.gmra.mrb[0].mxu0 %v3585
    %v3727 = vpop.f32.mrb[0].mxu0
    %v3728 = vadd.f32 0.0, %v3727
    %v3729 = vpop.f32.mrb[0].mxu0
    %3730 = vmatprep.mubr.f32.mxu0 0.0
    %3731 = vmatmul.mubr.f32.gmra.mrb[0].mxu0 %v3588
    %v3732 = vpop.f32.mrb[0].mxu0
    %v3733 = vadd.f32 0.0, %v3732
    %v3734 = vpop.f32.mrb[0].mxu0
    %3735 = vmatprep.mubr.f32.mxu0 0.0
    %3736 = vmatmul.mubr.f32.gmra.mrb[0].mxu0 %v3591
    %v3737 = vpop.f32.mrb[0].mxu0
    %v3738 = vadd.f32 0.0, %v3737
    %v3739 = vpop.f32.mrb[0].mxu0
    %3740 = vdwg.mxu0
    %v3741 = vadd.f32 %v3511, %v3663
    %v3742 = vadd.f32 %v3512, %v3668
    %v3743 = vadd.f32 %v3513, %v3673
    %v3744 = vadd.f32 %v3514, %v3678
    %v3745 = vadd.f32 %v3515, %v3683
    %v3746 = vadd.f32 %v3516, %v3688
    %v3747 = vadd.f32 %v3517, %v3693
    %v3748 = vadd.f32 %v3518, %v3698
    %v3749 = vadd.f32 %v3519, %v3703
    %v3750 = vadd.f32 %v3520, %v3708
    %v3751 = vadd.f32 %v3521, %v3713
    %v3752 = vadd.f32 %v3522, %v3718
    %v3753 = vadd.f32 %v3523, %v3723
    %v3754 = vadd.f32 %v3524, %v3728
    %v3755 = vadd.f32 %v3525, %v3733
    %v3756 = vadd.f32 %v3526, %v3738
    %v3757 = vld [vmem:[#allocation2 + $0x12] sm:$0xff]
    %v3758 = vld [vmem:[#allocation2 + $0x1a] sm:$0xff]
    %v3759 = vld [vmem:[#allocation2 + $0x22] sm:$0xff]
    %v3760 = vld [vmem:[#allocation2 + $0x2a] sm:$0xff]
    %v3761 = vld [vmem:[#allocation2 + $0x32] sm:$0xff]
    %v3762 = vld [vmem:[#allocation2 + $0x3a] sm:$0xff]
    %v3763 = vld [vmem:[#allocation2 + $0x42] sm:$0xff]
    %v3764 = vld [vmem:[#allocation2 + $0x4a] sm:$0xff]
    %v3765 = vld [vmem:[#allocation2 + $0x52] sm:$0xff]
    %v3766 = vld [vmem:[#allocation2 + $0x5a] sm:$0xff]
    %v3767 = vld [vmem:[#allocation2 + $0x62] sm:$0xff]
    %v3768 = vld [vmem:[#allocation2 + $0x6a] sm:$0xff]
    %v3769 = vld [vmem:[#allocation2 + $0x72] sm:$0xff]
    %v3770 = vld [vmem:[#allocation2 + $0x7a] sm:$0xff]
    %v3771 = vld [vmem:[#allocation2 + $0x82] sm:$0xff]
    %v3772 = vld [vmem:[#allocation2 + $0x8a] sm:$0xff]
    %s3773 = scalar_lea.vmem %s3, 96
    %v3774 = vld [vmem:[%s3773] sm:$0x3f]
    %v3776 = vsel %vm1006, %v3757, 0
    %v3779 = vsel %vm1006, %v3758, 0
    %v3782 = vsel %vm1006, %v3759, 0
    %v3785 = vsel %vm1006, %v3760, 0
    %v3788 = vsel %vm1006, %v3761, 0
    %v3791 = vsel %vm1006, %v3762, 0
    %v3794 = vsel %vm1006, %v3763, 0
    %v3797 = vsel %vm1006, %v3764, 0
    %v3800 = vsel %vm1006, %v3765, 0
    %v3803 = vsel %vm1006, %v3766, 0
    %v3806 = vsel %vm1006, %v3767, 0
    %v3809 = vsel %vm1006, %v3768, 0
    %v3812 = vsel %vm1006, %v3769, 0
    %v3815 = vsel %vm1006, %v3770, 0
    %v3818 = vsel %vm1006, %v3771, 0
    %v3821 = vsel %vm1006, %v3772, 0
    %v3824 = vsel %vm1112, %v3774, 0
    %3826 = vmatprep.subr.mxu0 0.0
    %3827 = vmatpush1.msra.mxu0 %v3824
    %3828 = vmatprep.subr.mxu0 0.0
    %3829 = vmatpush1.msra.mxu0 0.0
    %3830 = vmatprep.subr.mxu0 0.0
    %3831 = vmatpush1.msra.mxu0 0.0
    %3832 = vmatprep.subr.mxu0 0.0
    %3833 = vmatpush1.msra.mxu0 0.0
    %3834 = vmatprep.subr.mxu0 0.0
    %3835 = vmatpush1.msra.mxu0 0.0
    %3836 = vmatprep.subr.mxu0 0.0
    %3837 = vmatpush1.msra.mxu0 0.0
    %3838 = vmatprep.subr.mxu0 0.0
    %3839 = vmatpush1.msra.mxu0 0.0
    %3840 = vmatprep.subr.mxu0 0.0
    %3841 = vmatpush1.msra.mxu0 0.0
    %3842 = vmatprep.subr.mxu0 0.0
    %3843 = vmatpush1.msra.mxu0 0.0
    %3844 = vmatprep.subr.mxu0 0.0
    %3845 = vmatpush1.msra.mxu0 0.0
    %3846 = vmatprep.subr.mxu0 0.0
    %3847 = vmatpush1.msra.mxu0 0.0
    %3848 = vmatprep.subr.mxu0 0.0
    %3849 = vmatpush1.msra.mxu0 0.0
    %3850 = vmatprep.subr.mxu0 0.0
    %3851 = vmatpush1.msra.mxu0 0.0
    %3852 = vmatprep.subr.mxu0 0.0
    %3853 = vmatpush1.msra.mxu0 0.0
    %3854 = vmatprep.subr.mxu0 0.0
    %3855 = vmatpush1.msra.mxu0 0.0
    %3856 = vmatprep.subr.mxu0 0.0
    %3857 = vmatpush1.msra.mxu0 0.0
    %3858 = vmatprep.subr.mxu0 0.0
    %3859 = vmatpush1.msra.mxu0 0.0
    %3860 = vmatprep.subr.mxu0 0.0
    %3861 = vmatpush1.msra.mxu0 0.0
    %3862 = vmatprep.subr.mxu0 0.0
    %3863 = vmatpush1.msra.mxu0 0.0
    %3864 = vmatprep.subr.mxu0 0.0
    %3865 = vmatpush1.msra.mxu0 0.0
    %3866 = vmatprep.subr.mxu0 0.0
    %3867 = vmatpush1.msra.mxu0 0.0
    %3868 = vmatprep.subr.mxu0 0.0
    %3869 = vmatpush1.msra.mxu0 0.0
    %3870 = vmatprep.subr.mxu0 0.0
    %3871 = vmatpush1.msra.mxu0 0.0
    %3872 = vmatprep.subr.mxu0 0.0
    %3873 = vmatpush1.msra.mxu0 0.0
    %3874 = vmatprep.subr.mxu0 0.0
    %3875 = vmatpush1.msra.mxu0 0.0
    %3876 = vmatprep.subr.mxu0 0.0
    %3877 = vmatpush1.msra.mxu0 0.0
    %3878 = vmatprep.subr.mxu0 0.0
    %3879 = vmatpush1.msra.mxu0 0.0
    %3880 = vmatprep.subr.mxu0 0.0
    %3881 = vmatpush1.msra.mxu0 0.0
    %3882 = vmatprep.subr.mxu0 0.0
    %3883 = vmatpush1.msra.mxu0 0.0
    %3884 = vmatprep.subr.mxu0 0.0
    %3885 = vmatpush1.msra.mxu0 0.0
    %3886 = vmatprep.subr.mxu0 0.0
    %3887 = vmatpush1.msra.mxu0 0.0
    %3888 = vmatprep.subr.mxu0 0.0
    %3889 = vmatpush1.msra.mxu0 0.0
    %3890 = vmatprep.mubr.f32.mxu0 0.0
    %3891 = vmatmul.mubr.f32.gmra.mrb[0].mxu0 %v3776
    %v3892 = vpop.f32.mrb[0].mxu0
    %v3893 = vadd.f32 0.0, %v3892
    %v3894 = vpop.f32.mrb[0].mxu0
    %3895 = vmatprep.mubr.f32.mxu0 0.0
    %3896 = vmatmul.mubr.f32.gmra.mrb[0].mxu0 %v3779
    %v3897 = vpop.f32.mrb[0].mxu0
    %v3898 = vadd.f32 0.0, %v3897
    %v3899 = vpop.f32.mrb[0].mxu0
    %3900 = vmatprep.mubr.f32.mxu0 0.0
    %3901 = vmatmul.mubr.f32.gmra.mrb[0].mxu0 %v3782
    %v3902 = vpop.f32.mrb[0].mxu0
    %v3903 = vadd.f32 0.0, %v3902
    %v3904 = vpop.f32.mrb[0].mxu0
    %3905 = vmatprep.mubr.f32.mxu0 0.0
    %3906 = vmatmul.mubr.f32.gmra.mrb[0].mxu0 %v3785
    %v3907 = vpop.f32.mrb[0].mxu0
    %v3908 = vadd.f32 0.0, %v3907
    %v3909 = vpop.f32.mrb[0].mxu0
    %3910 = vmatprep.mubr.f32.mxu0 0.0
    %3911 = vmatmul.mubr.f32.gmra.mrb[0].mxu0 %v3788
    %v3912 = vpop.f32.mrb[0].mxu0
    %v3913 = vadd.f32 0.0, %v3912
    %v3914 = vpop.f32.mrb[0].mxu0
    %3915 = vmatprep.mubr.f32.mxu0 0.0
    %3916 = vmatmul.mubr.f32.gmra.mrb[0].mxu0 %v3791
    %v3917 = vpop.f32.mrb[0].mxu0
    %v3918 = vadd.f32 0.0, %v3917
    %v3919 = vpop.f32.mrb[0].mxu0
    %3920 = vmatprep.mubr.f32.mxu0 0.0
    %3921 = vmatmul.mubr.f32.gmra.mrb[0].mxu0 %v3794
    %v3922 = vpop.f32.mrb[0].mxu0
    %v3923 = vadd.f32 0.0, %v3922
    %v3924 = vpop.f32.mrb[0].mxu0
    %3925 = vmatprep.mubr.f32.mxu0 0.0
    %3926 = vmatmul.mubr.f32.gmra.mrb[0].mxu0 %v3797
    %v3927 = vpop.f32.mrb[0].mxu0
    %v3928 = vadd.f32 0.0, %v3927
    %v3929 = vpop.f32.mrb[0].mxu0
    %3930 = vmatprep.mubr.f32.mxu0 0.0
    %3931 = vmatmul.mubr.f32.gmra.mrb[0].mxu0 %v3800
    %v3932 = vpop.f32.mrb[0].mxu0
    %v3933 = vadd.f32 0.0, %v3932
    %v3934 = vpop.f32.mrb[0].mxu0
    %3935 = vmatprep.mubr.f32.mxu0 0.0
    %3936 = vmatmul.mubr.f32.gmra.mrb[0].mxu0 %v3803
    %v3937 = vpop.f32.mrb[0].mxu0
    %v3938 = vadd.f32 0.0, %v3937
    %v3939 = vpop.f32.mrb[0].mxu0
    %3940 = vmatprep.mubr.f32.mxu0 0.0
    %3941 = vmatmul.mubr.f32.gmra.mrb[0].mxu0 %v3806
    %v3942 = vpop.f32.mrb[0].mxu0
    %v3943 = vadd.f32 0.0, %v3942
    %v3944 = vpop.f32.mrb[0].mxu0
    %3945 = vmatprep.mubr.f32.mxu0 0.0
    %3946 = vmatmul.mubr.f32.gmra.mrb[0].mxu0 %v3809
    %v3947 = vpop.f32.mrb[0].mxu0
    %v3948 = vadd.f32 0.0, %v3947
    %v3949 = vpop.f32.mrb[0].mxu0
    %3950 = vmatprep.mubr.f32.mxu0 0.0
    %3951 = vmatmul.mubr.f32.gmra.mrb[0].mxu0 %v3812
    %v3952 = vpop.f32.mrb[0].mxu0
    %v3953 = vadd.f32 0.0, %v3952
    %v3954 = vpop.f32.mrb[0].mxu0
    %3955 = vmatprep.mubr.f32.mxu0 0.0
    %3956 = vmatmul.mubr.f32.gmra.mrb[0].mxu0 %v3815
    %v3957 = vpop.f32.mrb[0].mxu0
    %v3958 = vadd.f32 0.0, %v3957
    %v3959 = vpop.f32.mrb[0].mxu0
    %3960 = vmatprep.mubr.f32.mxu0 0.0
    %3961 = vmatmul.mubr.f32.gmra.mrb[0].mxu0 %v3818
    %v3962 = vpop.f32.mrb[0].mxu0
    %v3963 = vadd.f32 0.0, %v3962
    %v3964 = vpop.f32.mrb[0].mxu0
    %3965 = vmatprep.mubr.f32.mxu0 0.0
    %3966 = vmatmul.mubr.f32.gmra.mrb[0].mxu0 %v3821
    %v3967 = vpop.f32.mrb[0].mxu0
    %v3968 = vadd.f32 0.0, %v3967
    %v3969 = vpop.f32.mrb[0].mxu0
    %3970 = vdwg.mxu0
    %v3971 = vadd.f32 %v3741, %v3893
    %v3972 = vadd.f32 %v3742, %v3898
    %v3973 = vadd.f32 %v3743, %v3903
    %v3974 = vadd.f32 %v3744, %v3908
    %v3975 = vadd.f32 %v3745, %v3913
    %v3976 = vadd.f32 %v3746, %v3918
    %v3977 = vadd.f32 %v3747, %v3923
    %v3978 = vadd.f32 %v3748, %v3928
    %v3979 = vadd.f32 %v3749, %v3933
    %v3980 = vadd.f32 %v3750, %v3938
    %v3981 = vadd.f32 %v3751, %v3943
    %v3982 = vadd.f32 %v3752, %v3948
    %v3983 = vadd.f32 %v3753, %v3953
    %v3984 = vadd.f32 %v3754, %v3958
    %v3985 = vadd.f32 %v3755, %v3963
    %v3986 = vadd.f32 %v3756, %v3968
    %v3987 = vld [vmem:[#allocation2 + $0x13] sm:$0xff]
    %v3988 = vld [vmem:[#allocation2 + $0x1b] sm:$0xff]
    %v3989 = vld [vmem:[#allocation2 + $0x23] sm:$0xff]
    %v3990 = vld [vmem:[#allocation2 + $0x2b] sm:$0xff]
    %v3991 = vld [vmem:[#allocation2 + $0x33] sm:$0xff]
    %v3992 = vld [vmem:[#allocation2 + $0x3b] sm:$0xff]
    %v3993 = vld [vmem:[#allocation2 + $0x43] sm:$0xff]
    %v3994 = vld [vmem:[#allocation2 + $0x4b] sm:$0xff]
    %v3995 = vld [vmem:[#allocation2 + $0x53] sm:$0xff]
    %v3996 = vld [vmem:[#allocation2 + $0x5b] sm:$0xff]
    %v3997 = vld [vmem:[#allocation2 + $0x63] sm:$0xff]
    %v3998 = vld [vmem:[#allocation2 + $0x6b] sm:$0xff]
    %v3999 = vld [vmem:[#allocation2 + $0x73] sm:$0xff]
    %v4000 = vld [vmem:[#allocation2 + $0x7b] sm:$0xff]
    %v4001 = vld [vmem:[#allocation2 + $0x83] sm:$0xff]
    %v4002 = vld [vmem:[#allocation2 + $0x8b] sm:$0xff]
    %s4003 = scalar_lea.vmem %s3, 104
    %v4004 = vld [vmem:[%s4003] sm:$0x3f]
    %v4006 = vsel %vm1006, %v3987, 0
    %v4009 = vsel %vm1006, %v3988, 0
    %v4012 = vsel %vm1006, %v3989, 0
    %v4015 = vsel %vm1006, %v3990, 0
    %v4018 = vsel %vm1006, %v3991, 0
    %v4021 = vsel %vm1006, %v3992, 0
    %v4024 = vsel %vm1006, %v3993, 0
    %v4027 = vsel %vm1006, %v3994, 0
    %v4030 = vsel %vm1006, %v3995, 0
    %v4033 = vsel %vm1006, %v3996, 0
    %v4036 = vsel %vm1006, %v3997, 0
    %v4039 = vsel %vm1006, %v3998, 0
    %v4042 = vsel %vm1006, %v3999, 0
    %v4045 = vsel %vm1006, %v4000, 0
    %v4048 = vsel %vm1006, %v4001, 0
    %v4051 = vsel %vm1006, %v4002, 0
    %v4054 = vsel %vm1112, %v4004, 0
    %4056 = vmatprep.subr.mxu0 0.0
    %4057 = vmatpush1.msra.mxu0 %v4054
    %4058 = vmatprep.subr.mxu0 0.0
    %4059 = vmatpush1.msra.mxu0 0.0
    %4060 = vmatprep.subr.mxu0 0.0
    %4061 = vmatpush1.msra.mxu0 0.0
    %4062 = vmatprep.subr.mxu0 0.0
    %4063 = vmatpush1.msra.mxu0 0.0
    %4064 = vmatprep.subr.mxu0 0.0
    %4065 = vmatpush1.msra.mxu0 0.0
    %4066 = vmatprep.subr.mxu0 0.0
    %4067 = vmatpush1.msra.mxu0 0.0
    %4068 = vmatprep.subr.mxu0 0.0
    %4069 = vmatpush1.msra.mxu0 0.0
    %4070 = vmatprep.subr.mxu0 0.0
    %4071 = vmatpush1.msra.mxu0 0.0
    %4072 = vmatprep.subr.mxu0 0.0
    %4073 = vmatpush1.msra.mxu0 0.0
    %4074 = vmatprep.subr.mxu0 0.0
    %4075 = vmatpush1.msra.mxu0 0.0
    %4076 = vmatprep.subr.mxu0 0.0
    %4077 = vmatpush1.msra.mxu0 0.0
    %4078 = vmatprep.subr.mxu0 0.0
    %4079 = vmatpush1.msra.mxu0 0.0
    %4080 = vmatprep.subr.mxu0 0.0
    %4081 = vmatpush1.msra.mxu0 0.0
    %4082 = vmatprep.subr.mxu0 0.0
    %4083 = vmatpush1.msra.mxu0 0.0
    %4084 = vmatprep.subr.mxu0 0.0
    %4085 = vmatpush1.msra.mxu0 0.0
    %4086 = vmatprep.subr.mxu0 0.0
    %4087 = vmatpush1.msra.mxu0 0.0
    %4088 = vmatprep.subr.mxu0 0.0
    %4089 = vmatpush1.msra.mxu0 0.0
    %4090 = vmatprep.subr.mxu0 0.0
    %4091 = vmatpush1.msra.mxu0 0.0
    %4092 = vmatprep.subr.mxu0 0.0
    %4093 = vmatpush1.msra.mxu0 0.0
    %4094 = vmatprep.subr.mxu0 0.0
    %4095 = vmatpush1.msra.mxu0 0.0
    %4096 = vmatprep.subr.mxu0 0.0
    %4097 = vmatpush1.msra.mxu0 0.0
    %4098 = vmatprep.subr.mxu0 0.0
    %4099 = vmatpush1.msra.mxu0 0.0
    %4100 = vmatprep.subr.mxu0 0.0
    %4101 = vmatpush1.msra.mxu0 0.0
    %4102 = vmatprep.subr.mxu0 0.0
    %4103 = vmatpush1.msra.mxu0 0.0
    %4104 = vmatprep.subr.mxu0 0.0
    %4105 = vmatpush1.msra.mxu0 0.0
    %4106 = vmatprep.subr.mxu0 0.0
    %4107 = vmatpush1.msra.mxu0 0.0
    %4108 = vmatprep.subr.mxu0 0.0
    %4109 = vmatpush1.msra.mxu0 0.0
    %4110 = vmatprep.subr.mxu0 0.0
    %4111 = vmatpush1.msra.mxu0 0.0
    %4112 = vmatprep.subr.mxu0 0.0
    %4113 = vmatpush1.msra.mxu0 0.0
    %4114 = vmatprep.subr.mxu0 0.0
    %4115 = vmatpush1.msra.mxu0 0.0
    %4116 = vmatprep.subr.mxu0 0.0
    %4117 = vmatpush1.msra.mxu0 0.0
    %4118 = vmatprep.subr.mxu0 0.0
    %4119 = vmatpush1.msra.mxu0 0.0
    %4120 = vmatprep.mubr.f32.mxu0 0.0
    %4121 = vmatmul.mubr.f32.gmra.mrb[0].mxu0 %v4006
    %v4122 = vpop.f32.mrb[0].mxu0
    %v4123 = vadd.f32 0.0, %v4122
    %v4124 = vpop.f32.mrb[0].mxu0
    %4125 = vmatprep.mubr.f32.mxu0 0.0
    %4126 = vmatmul.mubr.f32.gmra.mrb[0].mxu0 %v4009
    %v4127 = vpop.f32.mrb[0].mxu0
    %v4128 = vadd.f32 0.0, %v4127
    %v4129 = vpop.f32.mrb[0].mxu0
    %4130 = vmatprep.mubr.f32.mxu0 0.0
    %4131 = vmatmul.mubr.f32.gmra.mrb[0].mxu0 %v4012
    %v4132 = vpop.f32.mrb[0].mxu0
    %v4133 = vadd.f32 0.0, %v4132
    %v4134 = vpop.f32.mrb[0].mxu0
    %4135 = vmatprep.mubr.f32.mxu0 0.0
    %4136 = vmatmul.mubr.f32.gmra.mrb[0].mxu0 %v4015
    %v4137 = vpop.f32.mrb[0].mxu0
    %v4138 = vadd.f32 0.0, %v4137
    %v4139 = vpop.f32.mrb[0].mxu0
    %4140 = vmatprep.mubr.f32.mxu0 0.0
    %4141 = vmatmul.mubr.f32.gmra.mrb[0].mxu0 %v4018
    %v4142 = vpop.f32.mrb[0].mxu0
    %v4143 = vadd.f32 0.0, %v4142
    %v4144 = vpop.f32.mrb[0].mxu0
    %4145 = vmatprep.mubr.f32.mxu0 0.0
    %4146 = vmatmul.mubr.f32.gmra.mrb[0].mxu0 %v4021
    %v4147 = vpop.f32.mrb[0].mxu0
    %v4148 = vadd.f32 0.0, %v4147
    %v4149 = vpop.f32.mrb[0].mxu0
    %4150 = vmatprep.mubr.f32.mxu0 0.0
    %4151 = vmatmul.mubr.f32.gmra.mrb[0].mxu0 %v4024
    %v4152 = vpop.f32.mrb[0].mxu0
    %v4153 = vadd.f32 0.0, %v4152
    %v4154 = vpop.f32.mrb[0].mxu0
    %4155 = vmatprep.mubr.f32.mxu0 0.0
    %4156 = vmatmul.mubr.f32.gmra.mrb[0].mxu0 %v4027
    %v4157 = vpop.f32.mrb[0].mxu0
    %v4158 = vadd.f32 0.0, %v4157
    %v4159 = vpop.f32.mrb[0].mxu0
    %4160 = vmatprep.mubr.f32.mxu0 0.0
    %4161 = vmatmul.mubr.f32.gmra.mrb[0].mxu0 %v4030
    %v4162 = vpop.f32.mrb[0].mxu0
    %v4163 = vadd.f32 0.0, %v4162
    %v4164 = vpop.f32.mrb[0].mxu0
    %4165 = vmatprep.mubr.f32.mxu0 0.0
    %4166 = vmatmul.mubr.f32.gmra.mrb[0].mxu0 %v4033
    %v4167 = vpop.f32.mrb[0].mxu0
    %v4168 = vadd.f32 0.0, %v4167
    %v4169 = vpop.f32.mrb[0].mxu0
    %4170 = vmatprep.mubr.f32.mxu0 0.0
    %4171 = vmatmul.mubr.f32.gmra.mrb[0].mxu0 %v4036
    %v4172 = vpop.f32.mrb[0].mxu0
    %v4173 = vadd.f32 0.0, %v4172
    %v4174 = vpop.f32.mrb[0].mxu0
    %4175 = vmatprep.mubr.f32.mxu0 0.0
    %4176 = vmatmul.mubr.f32.gmra.mrb[0].mxu0 %v4039
    %v4177 = vpop.f32.mrb[0].mxu0
    %v4178 = vadd.f32 0.0, %v4177
    %v4179 = vpop.f32.mrb[0].mxu0
    %4180 = vmatprep.mubr.f32.mxu0 0.0
    %4181 = vmatmul.mubr.f32.gmra.mrb[0].mxu0 %v4042
    %v4182 = vpop.f32.mrb[0].mxu0
    %v4183 = vadd.f32 0.0, %v4182
    %v4184 = vpop.f32.mrb[0].mxu0
    %4185 = vmatprep.mubr.f32.mxu0 0.0
    %4186 = vmatmul.mubr.f32.gmra.mrb[0].mxu0 %v4045
    %v4187 = vpop.f32.mrb[0].mxu0
    %v4188 = vadd.f32 0.0, %v4187
    %v4189 = vpop.f32.mrb[0].mxu0
    %4190 = vmatprep.mubr.f32.mxu0 0.0
    %4191 = vmatmul.mubr.f32.gmra.mrb[0].mxu0 %v4048
    %v4192 = vpop.f32.mrb[0].mxu0
    %v4193 = vadd.f32 0.0, %v4192
    %v4194 = vpop.f32.mrb[0].mxu0
    %4195 = vmatprep.mubr.f32.mxu0 0.0
    %4196 = vmatmul.mubr.f32.gmra.mrb[0].mxu0 %v4051
    %v4197 = vpop.f32.mrb[0].mxu0
    %v4198 = vadd.f32 0.0, %v4197
    %v4199 = vpop.f32.mrb[0].mxu0
    %4200 = vdwg.mxu0
    %v4201 = vadd.f32 %v3971, %v4123
    %v4202 = vadd.f32 %v3972, %v4128
    %v4203 = vadd.f32 %v3973, %v4133
    %v4204 = vadd.f32 %v3974, %v4138
    %v4205 = vadd.f32 %v3975, %v4143
    %v4206 = vadd.f32 %v3976, %v4148
    %v4207 = vadd.f32 %v3977, %v4153
    %v4208 = vadd.f32 %v3978, %v4158
    %v4209 = vadd.f32 %v3979, %v4163
    %v4210 = vadd.f32 %v3980, %v4168
    %v4211 = vadd.f32 %v3981, %v4173
    %v4212 = vadd.f32 %v3982, %v4178
    %v4213 = vadd.f32 %v3983, %v4183
    %v4214 = vadd.f32 %v3984, %v4188
    %v4215 = vadd.f32 %v3985, %v4193
    %v4216 = vadd.f32 %v3986, %v4198
    %v4217 = vld [vmem:[#allocation2 + $0x14] sm:$0xff]
    %v4218 = vld [vmem:[#allocation2 + $0x1c] sm:$0xff]
    %v4219 = vld [vmem:[#allocation2 + $0x24] sm:$0xff]
    %v4220 = vld [vmem:[#allocation2 + $0x2c] sm:$0xff]
    %v4221 = vld [vmem:[#allocation2 + $0x34] sm:$0xff]
    %v4222 = vld [vmem:[#allocation2 + $0x3c] sm:$0xff]
    %v4223 = vld [vmem:[#allocation2 + $0x44] sm:$0xff]
    %v4224 = vld [vmem:[#allocation2 + $0x4c] sm:$0xff]
    %v4225 = vld [vmem:[#allocation2 + $0x54] sm:$0xff]
    %v4226 = vld [vmem:[#allocation2 + $0x5c] sm:$0xff]
    %v4227 = vld [vmem:[#allocation2 + $0x64] sm:$0xff]
    %v4228 = vld [vmem:[#allocation2 + $0x6c] sm:$0xff]
    %v4229 = vld [vmem:[#allocation2 + $0x74] sm:$0xff]
    %v4230 = vld [vmem:[#allocation2 + $0x7c] sm:$0xff]
    %v4231 = vld [vmem:[#allocation2 + $0x84] sm:$0xff]
    %v4232 = vld [vmem:[#allocation2 + $0x8c] sm:$0xff]
    %s4233 = scalar_lea.vmem %s3, 112
    %v4234 = vld [vmem:[%s4233] sm:$0x3f]
    %v4236 = vsel %vm1006, %v4217, 0
    %v4239 = vsel %vm1006, %v4218, 0
    %v4242 = vsel %vm1006, %v4219, 0
    %v4245 = vsel %vm1006, %v4220, 0
    %v4248 = vsel %vm1006, %v4221, 0
    %v4251 = vsel %vm1006, %v4222, 0
    %v4254 = vsel %vm1006, %v4223, 0
    %v4257 = vsel %vm1006, %v4224, 0
    %v4260 = vsel %vm1006, %v4225, 0
    %v4263 = vsel %vm1006, %v4226, 0
    %v4266 = vsel %vm1006, %v4227, 0
    %v4269 = vsel %vm1006, %v4228, 0
    %v4272 = vsel %vm1006, %v4229, 0
    %v4275 = vsel %vm1006, %v4230, 0
    %v4278 = vsel %vm1006, %v4231, 0
    %v4281 = vsel %vm1006, %v4232, 0
    %v4284 = vsel %vm1112, %v4234, 0
    %4286 = vmatprep.subr.mxu0 0.0
    %4287 = vmatpush1.msra.mxu0 %v4284
    %4288 = vmatprep.subr.mxu0 0.0
    %4289 = vmatpush1.msra.mxu0 0.0
    %4290 = vmatprep.subr.mxu0 0.0
    %4291 = vmatpush1.msra.mxu0 0.0
    %4292 = vmatprep.subr.mxu0 0.0
    %4293 = vmatpush1.msra.mxu0 0.0
    %4294 = vmatprep.subr.mxu0 0.0
    %4295 = vmatpush1.msra.mxu0 0.0
    %4296 = vmatprep.subr.mxu0 0.0
    %4297 = vmatpush1.msra.mxu0 0.0
    %4298 = vmatprep.subr.mxu0 0.0
    %4299 = vmatpush1.msra.mxu0 0.0
    %4300 = vmatprep.subr.mxu0 0.0
    %4301 = vmatpush1.msra.mxu0 0.0
    %4302 = vmatprep.subr.mxu0 0.0
    %4303 = vmatpush1.msra.mxu0 0.0
    %4304 = vmatprep.subr.mxu0 0.0
    %4305 = vmatpush1.msra.mxu0 0.0
    %4306 = vmatprep.subr.mxu0 0.0
    %4307 = vmatpush1.msra.mxu0 0.0
    %4308 = vmatprep.subr.mxu0 0.0
    %4309 = vmatpush1.msra.mxu0 0.0
    %4310 = vmatprep.subr.mxu0 0.0
    %4311 = vmatpush1.msra.mxu0 0.0
    %4312 = vmatprep.subr.mxu0 0.0
    %4313 = vmatpush1.msra.mxu0 0.0
    %4314 = vmatprep.subr.mxu0 0.0
    %4315 = vmatpush1.msra.mxu0 0.0
    %4316 = vmatprep.subr.mxu0 0.0
    %4317 = vmatpush1.msra.mxu0 0.0
    %4318 = vmatprep.subr.mxu0 0.0
    %4319 = vmatpush1.msra.mxu0 0.0
    %4320 = vmatprep.subr.mxu0 0.0
    %4321 = vmatpush1.msra.mxu0 0.0
    %4322 = vmatprep.subr.mxu0 0.0
    %4323 = vmatpush1.msra.mxu0 0.0
    %4324 = vmatprep.subr.mxu0 0.0
    %4325 = vmatpush1.msra.mxu0 0.0
    %4326 = vmatprep.subr.mxu0 0.0
    %4327 = vmatpush1.msra.mxu0 0.0
    %4328 = vmatprep.subr.mxu0 0.0
    %4329 = vmatpush1.msra.mxu0 0.0
    %4330 = vmatprep.subr.mxu0 0.0
    %4331 = vmatpush1.msra.mxu0 0.0
    %4332 = vmatprep.subr.mxu0 0.0
    %4333 = vmatpush1.msra.mxu0 0.0
    %4334 = vmatprep.subr.mxu0 0.0
    %4335 = vmatpush1.msra.mxu0 0.0
    %4336 = vmatprep.subr.mxu0 0.0
    %4337 = vmatpush1.msra.mxu0 0.0
    %4338 = vmatprep.subr.mxu0 0.0
    %4339 = vmatpush1.msra.mxu0 0.0
    %4340 = vmatprep.subr.mxu0 0.0
    %4341 = vmatpush1.msra.mxu0 0.0
    %4342 = vmatprep.subr.mxu0 0.0
    %4343 = vmatpush1.msra.mxu0 0.0
    %4344 = vmatprep.subr.mxu0 0.0
    %4345 = vmatpush1.msra.mxu0 0.0
    %4346 = vmatprep.subr.mxu0 0.0
    %4347 = vmatpush1.msra.mxu0 0.0
    %4348 = vmatprep.subr.mxu0 0.0
    %4349 = vmatpush1.msra.mxu0 0.0
    %4350 = vmatprep.mubr.f32.mxu0 0.0
    %4351 = vmatmul.mubr.f32.gmra.mrb[0].mxu0 %v4236
    %v4352 = vpop.f32.mrb[0].mxu0
    %v4353 = vadd.f32 0.0, %v4352
    %v4354 = vpop.f32.mrb[0].mxu0
    %4355 = vmatprep.mubr.f32.mxu0 0.0
    %4356 = vmatmul.mubr.f32.gmra.mrb[0].mxu0 %v4239
    %v4357 = vpop.f32.mrb[0].mxu0
    %v4358 = vadd.f32 0.0, %v4357
    %v4359 = vpop.f32.mrb[0].mxu0
    %4360 = vmatprep.mubr.f32.mxu0 0.0
    %4361 = vmatmul.mubr.f32.gmra.mrb[0].mxu0 %v4242
    %v4362 = vpop.f32.mrb[0].mxu0
    %v4363 = vadd.f32 0.0, %v4362
    %v4364 = vpop.f32.mrb[0].mxu0
    %4365 = vmatprep.mubr.f32.mxu0 0.0
    %4366 = vmatmul.mubr.f32.gmra.mrb[0].mxu0 %v4245
    %v4367 = vpop.f32.mrb[0].mxu0
    %v4368 = vadd.f32 0.0, %v4367
    %v4369 = vpop.f32.mrb[0].mxu0
    %4370 = vmatprep.mubr.f32.mxu0 0.0
    %4371 = vmatmul.mubr.f32.gmra.mrb[0].mxu0 %v4248
    %v4372 = vpop.f32.mrb[0].mxu0
    %v4373 = vadd.f32 0.0, %v4372
    %v4374 = vpop.f32.mrb[0].mxu0
    %4375 = vmatprep.mubr.f32.mxu0 0.0
    %4376 = vmatmul.mubr.f32.gmra.mrb[0].mxu0 %v4251
    %v4377 = vpop.f32.mrb[0].mxu0
    %v4378 = vadd.f32 0.0, %v4377
    %v4379 = vpop.f32.mrb[0].mxu0
    %4380 = vmatprep.mubr.f32.mxu0 0.0
    %4381 = vmatmul.mubr.f32.gmra.mrb[0].mxu0 %v4254
    %v4382 = vpop.f32.mrb[0].mxu0
    %v4383 = vadd.f32 0.0, %v4382
    %v4384 = vpop.f32.mrb[0].mxu0
    %4385 = vmatprep.mubr.f32.mxu0 0.0
    %4386 = vmatmul.mubr.f32.gmra.mrb[0].mxu0 %v4257
    %v4387 = vpop.f32.mrb[0].mxu0
    %v4388 = vadd.f32 0.0, %v4387
    %v4389 = vpop.f32.mrb[0].mxu0
    %4390 = vmatprep.mubr.f32.mxu0 0.0
    %4391 = vmatmul.mubr.f32.gmra.mrb[0].mxu0 %v4260
    %v4392 = vpop.f32.mrb[0].mxu0
    %v4393 = vadd.f32 0.0, %v4392
    %v4394 = vpop.f32.mrb[0].mxu0
    %4395 = vmatprep.mubr.f32.mxu0 0.0
    %4396 = vmatmul.mubr.f32.gmra.mrb[0].mxu0 %v4263
    %v4397 = vpop.f32.mrb[0].mxu0
    %v4398 = vadd.f32 0.0, %v4397
    %v4399 = vpop.f32.mrb[0].mxu0
    %4400 = vmatprep.mubr.f32.mxu0 0.0
    %4401 = vmatmul.mubr.f32.gmra.mrb[0].mxu0 %v4266
    %v4402 = vpop.f32.mrb[0].mxu0
    %v4403 = vadd.f32 0.0, %v4402
    %v4404 = vpop.f32.mrb[0].mxu0
    %4405 = vmatprep.mubr.f32.mxu0 0.0
    %4406 = vmatmul.mubr.f32.gmra.mrb[0].mxu0 %v4269
    %v4407 = vpop.f32.mrb[0].mxu0
    %v4408 = vadd.f32 0.0, %v4407
    %v4409 = vpop.f32.mrb[0].mxu0
    %4410 = vmatprep.mubr.f32.mxu0 0.0
    %4411 = vmatmul.mubr.f32.gmra.mrb[0].mxu0 %v4272
    %v4412 = vpop.f32.mrb[0].mxu0
    %v4413 = vadd.f32 0.0, %v4412
    %v4414 = vpop.f32.mrb[0].mxu0
    %4415 = vmatprep.mubr.f32.mxu0 0.0
    %4416 = vmatmul.mubr.f32.gmra.mrb[0].mxu0 %v4275
    %v4417 = vpop.f32.mrb[0].mxu0
    %v4418 = vadd.f32 0.0, %v4417
    %v4419 = vpop.f32.mrb[0].mxu0
    %4420 = vmatprep.mubr.f32.mxu0 0.0
    %4421 = vmatmul.mubr.f32.gmra.mrb[0].mxu0 %v4278
    %v4422 = vpop.f32.mrb[0].mxu0
    %v4423 = vadd.f32 0.0, %v4422
    %v4424 = vpop.f32.mrb[0].mxu0
    %4425 = vmatprep.mubr.f32.mxu0 0.0
    %4426 = vmatmul.mubr.f32.gmra.mrb[0].mxu0 %v4281
    %v4427 = vpop.f32.mrb[0].mxu0
    %v4428 = vadd.f32 0.0, %v4427
    %v4429 = vpop.f32.mrb[0].mxu0
    %4430 = vdwg.mxu0
    %v4431 = vadd.f32 %v4201, %v4353
    %v4432 = vadd.f32 %v4202, %v4358
    %v4433 = vadd.f32 %v4203, %v4363
    %v4434 = vadd.f32 %v4204, %v4368
    %v4435 = vadd.f32 %v4205, %v4373
    %v4436 = vadd.f32 %v4206, %v4378
    %v4437 = vadd.f32 %v4207, %v4383
    %v4438 = vadd.f32 %v4208, %v4388
    %v4439 = vadd.f32 %v4209, %v4393
    %v4440 = vadd.f32 %v4210, %v4398
    %v4441 = vadd.f32 %v4211, %v4403
    %v4442 = vadd.f32 %v4212, %v4408
    %v4443 = vadd.f32 %v4213, %v4413
    %v4444 = vadd.f32 %v4214, %v4418
    %v4445 = vadd.f32 %v4215, %v4423
    %v4446 = vadd.f32 %v4216, %v4428
    %v4447 = vld [vmem:[#allocation2 + $0x18] sm:$0xff]
    %v4448 = vld [vmem:[#allocation2 + $0x20] sm:$0xff]
    %v4449 = vld [vmem:[#allocation2 + $0x28] sm:$0xff]
    %v4450 = vld [vmem:[#allocation2 + $0x30] sm:$0xff]
    %v4451 = vld [vmem:[#allocation2 + $0x38] sm:$0xff]
    %v4452 = vld [vmem:[#allocation2 + $0x40] sm:$0xff]
    %v4453 = vld [vmem:[#allocation2 + $0x48] sm:$0xff]
    %v4454 = vld [vmem:[#allocation2 + $0x50] sm:$0xff]
    %v4455 = vld [vmem:[#allocation2 + $0x58] sm:$0xff]
    %v4456 = vld [vmem:[#allocation2 + $0x60] sm:$0xff]
    %v4457 = vld [vmem:[#allocation2 + $0x68] sm:$0xff]
    %v4458 = vld [vmem:[#allocation2 + $0x70] sm:$0xff]
    %v4459 = vld [vmem:[#allocation2 + $0x78] sm:$0xff]
    %v4460 = vld [vmem:[#allocation2 + $0x80] sm:$0xff]
    %v4461 = vld [vmem:[#allocation2 + $0x88] sm:$0xff]
    %v4462 = vld [vmem:[#allocation2 + $0x90] sm:$0xff]
    %s4463 = scalar_lea.vmem %s3, 120
    %v4464 = vld [vmem:[%s4463] sm:$0x3f]
    %v4466 = vsel %vm1006, %v4447, 0
    %v4469 = vsel %vm1006, %v4448, 0
    %v4472 = vsel %vm1006, %v4449, 0
    %v4475 = vsel %vm1006, %v4450, 0
    %v4478 = vsel %vm1006, %v4451, 0
    %v4481 = vsel %vm1006, %v4452, 0
    %v4484 = vsel %vm1006, %v4453, 0
    %v4487 = vsel %vm1006, %v4454, 0
    %v4490 = vsel %vm1006, %v4455, 0
    %v4493 = vsel %vm1006, %v4456, 0
    %v4496 = vsel %vm1006, %v4457, 0
    %v4499 = vsel %vm1006, %v4458, 0
    %v4502 = vsel %vm1006, %v4459, 0
    %v4505 = vsel %vm1006, %v4460, 0
    %v4508 = vsel %vm1006, %v4461, 0
    %v4511 = vsel %vm1006, %v4462, 0
    %v4514 = vsel %vm1112, %v4464, 0
    %4516 = vmatprep.subr.mxu0 0.0
    %4517 = vmatpush1.msra.mxu0 %v4514
    %4518 = vmatprep.subr.mxu0 0.0
    %4519 = vmatpush1.msra.mxu0 0.0
    %4520 = vmatprep.subr.mxu0 0.0
    %4521 = vmatpush1.msra.mxu0 0.0
    %4522 = vmatprep.subr.mxu0 0.0
    %4523 = vmatpush1.msra.mxu0 0.0
    %4524 = vmatprep.subr.mxu0 0.0
    %4525 = vmatpush1.msra.mxu0 0.0
    %4526 = vmatprep.subr.mxu0 0.0
    %4527 = vmatpush1.msra.mxu0 0.0
    %4528 = vmatprep.subr.mxu0 0.0
    %4529 = vmatpush1.msra.mxu0 0.0
    %4530 = vmatprep.subr.mxu0 0.0
    %4531 = vmatpush1.msra.mxu0 0.0
    %4532 = vmatprep.subr.mxu0 0.0
    %4533 = vmatpush1.msra.mxu0 0.0
    %4534 = vmatprep.subr.mxu0 0.0
    %4535 = vmatpush1.msra.mxu0 0.0
    %4536 = vmatprep.subr.mxu0 0.0
    %4537 = vmatpush1.msra.mxu0 0.0
    %4538 = vmatprep.subr.mxu0 0.0
    %4539 = vmatpush1.msra.mxu0 0.0
    %4540 = vmatprep.subr.mxu0 0.0
    %4541 = vmatpush1.msra.mxu0 0.0
    %4542 = vmatprep.subr.mxu0 0.0
    %4543 = vmatpush1.msra.mxu0 0.0
    %4544 = vmatprep.subr.mxu0 0.0
    %4545 = vmatpush1.msra.mxu0 0.0
    %4546 = vmatprep.subr.mxu0 0.0
    %4547 = vmatpush1.msra.mxu0 0.0
    %4548 = vmatprep.subr.mxu0 0.0
    %4549 = vmatpush1.msra.mxu0 0.0
    %4550 = vmatprep.subr.mxu0 0.0
    %4551 = vmatpush1.msra.mxu0 0.0
    %4552 = vmatprep.subr.mxu0 0.0
    %4553 = vmatpush1.msra.mxu0 0.0
    %4554 = vmatprep.subr.mxu0 0.0
    %4555 = vmatpush1.msra.mxu0 0.0
    %4556 = vmatprep.subr.mxu0 0.0
    %4557 = vmatpush1.msra.mxu0 0.0
    %4558 = vmatprep.subr.mxu0 0.0
    %4559 = vmatpush1.msra.mxu0 0.0
    %4560 = vmatprep.subr.mxu0 0.0
    %4561 = vmatpush1.msra.mxu0 0.0
    %4562 = vmatprep.subr.mxu0 0.0
    %4563 = vmatpush1.msra.mxu0 0.0
    %4564 = vmatprep.subr.mxu0 0.0
    %4565 = vmatpush1.msra.mxu0 0.0
    %4566 = vmatprep.subr.mxu0 0.0
    %4567 = vmatpush1.msra.mxu0 0.0
    %4568 = vmatprep.subr.mxu0 0.0
    %4569 = vmatpush1.msra.mxu0 0.0
    %4570 = vmatprep.subr.mxu0 0.0
    %4571 = vmatpush1.msra.mxu0 0.0
    %4572 = vmatprep.subr.mxu0 0.0
    %4573 = vmatpush1.msra.mxu0 0.0
    %4574 = vmatprep.subr.mxu0 0.0
    %4575 = vmatpush1.msra.mxu0 0.0
    %4576 = vmatprep.subr.mxu0 0.0
    %4577 = vmatpush1.msra.mxu0 0.0
    %4578 = vmatprep.subr.mxu0 0.0
    %4579 = vmatpush1.msra.mxu0 0.0
    %4580 = vmatprep.mubr.f32.mxu0 0.0
    %4581 = vmatmul.mubr.f32.gmra.mrb[0].mxu0 %v4466
    %v4582 = vpop.f32.mrb[0].mxu0
    %v4583 = vadd.f32 0.0, %v4582
    %v4584 = vpop.f32.mrb[0].mxu0
    %4585 = vmatprep.mubr.f32.mxu0 0.0
    %4586 = vmatmul.mubr.f32.gmra.mrb[0].mxu0 %v4469
    %v4587 = vpop.f32.mrb[0].mxu0
    %v4588 = vadd.f32 0.0, %v4587
    %v4589 = vpop.f32.mrb[0].mxu0
    %4590 = vmatprep.mubr.f32.mxu0 0.0
    %4591 = vmatmul.mubr.f32.gmra.mrb[0].mxu0 %v4472
    %v4592 = vpop.f32.mrb[0].mxu0
    %v4593 = vadd.f32 0.0, %v4592
    %v4594 = vpop.f32.mrb[0].mxu0
    %4595 = vmatprep.mubr.f32.mxu0 0.0
    %4596 = vmatmul.mubr.f32.gmra.mrb[0].mxu0 %v4475
    %v4597 = vpop.f32.mrb[0].mxu0
    %v4598 = vadd.f32 0.0, %v4597
    %v4599 = vpop.f32.mrb[0].mxu0
    %4600 = vmatprep.mubr.f32.mxu0 0.0
    %4601 = vmatmul.mubr.f32.gmra.mrb[0].mxu0 %v4478
    %v4602 = vpop.f32.mrb[0].mxu0
    %v4603 = vadd.f32 0.0, %v4602
    %v4604 = vpop.f32.mrb[0].mxu0
    %4605 = vmatprep.mubr.f32.mxu0 0.0
    %4606 = vmatmul.mubr.f32.gmra.mrb[0].mxu0 %v4481
    %v4607 = vpop.f32.mrb[0].mxu0
    %v4608 = vadd.f32 0.0, %v4607
    %v4609 = vpop.f32.mrb[0].mxu0
    %4610 = vmatprep.mubr.f32.mxu0 0.0
    %4611 = vmatmul.mubr.f32.gmra.mrb[0].mxu0 %v4484
    %v4612 = vpop.f32.mrb[0].mxu0
    %v4613 = vadd.f32 0.0, %v4612
    %v4614 = vpop.f32.mrb[0].mxu0
    %4615 = vmatprep.mubr.f32.mxu0 0.0
    %4616 = vmatmul.mubr.f32.gmra.mrb[0].mxu0 %v4487
    %v4617 = vpop.f32.mrb[0].mxu0
    %v4618 = vadd.f32 0.0, %v4617
    %v4619 = vpop.f32.mrb[0].mxu0
    %4620 = vmatprep.mubr.f32.mxu0 0.0
    %4621 = vmatmul.mubr.f32.gmra.mrb[0].mxu0 %v4490
    %v4622 = vpop.f32.mrb[0].mxu0
    %v4623 = vadd.f32 0.0, %v4622
    %v4624 = vpop.f32.mrb[0].mxu0
    %4625 = vmatprep.mubr.f32.mxu0 0.0
    %4626 = vmatmul.mubr.f32.gmra.mrb[0].mxu0 %v4493
    %v4627 = vpop.f32.mrb[0].mxu0
    %v4628 = vadd.f32 0.0, %v4627
    %v4629 = vpop.f32.mrb[0].mxu0
    %4630 = vmatprep.mubr.f32.mxu0 0.0
    %4631 = vmatmul.mubr.f32.gmra.mrb[0].mxu0 %v4496
    %v4632 = vpop.f32.mrb[0].mxu0
    %v4633 = vadd.f32 0.0, %v4632
    %v4634 = vpop.f32.mrb[0].mxu0
    %4635 = vmatprep.mubr.f32.mxu0 0.0
    %4636 = vmatmul.mubr.f32.gmra.mrb[0].mxu0 %v4499
    %v4637 = vpop.f32.mrb[0].mxu0
    %v4638 = vadd.f32 0.0, %v4637
    %v4639 = vpop.f32.mrb[0].mxu0
    %4640 = vmatprep.mubr.f32.mxu0 0.0
    %4641 = vmatmul.mubr.f32.gmra.mrb[0].mxu0 %v4502
    %v4642 = vpop.f32.mrb[0].mxu0
    %v4643 = vadd.f32 0.0, %v4642
    %v4644 = vpop.f32.mrb[0].mxu0
    %4645 = vmatprep.mubr.f32.mxu0 0.0
    %4646 = vmatmul.mubr.f32.gmra.mrb[0].mxu0 %v4505
    %v4647 = vpop.f32.mrb[0].mxu0
    %v4648 = vadd.f32 0.0, %v4647
    %v4649 = vpop.f32.mrb[0].mxu0
    %4650 = vmatprep.mubr.f32.mxu0 0.0
    %4651 = vmatmul.mubr.f32.gmra.mrb[0].mxu0 %v4508
    %v4652 = vpop.f32.mrb[0].mxu0
    %v4653 = vadd.f32 0.0, %v4652
    %v4654 = vpop.f32.mrb[0].mxu0
    %4655 = vmatprep.mubr.f32.mxu0 0.0
    %4656 = vmatmul.mubr.f32.gmra.mrb[0].mxu0 %v4511
    %v4657 = vpop.f32.mrb[0].mxu0
    %v4658 = vadd.f32 0.0, %v4657
    %v4659 = vpop.f32.mrb[0].mxu0
    %4660 = vdwg.mxu0
    %v4661 = vadd.f32 %v4431, %v4583
    %v4662 = vadd.f32 %v4432, %v4588
    %v4663 = vadd.f32 %v4433, %v4593
    %v4664 = vadd.f32 %v4434, %v4598
    %v4665 = vadd.f32 %v4435, %v4603
    %v4666 = vadd.f32 %v4436, %v4608
    %v4667 = vadd.f32 %v4437, %v4613
    %v4668 = vadd.f32 %v4438, %v4618
    %v4669 = vadd.f32 %v4439, %v4623
    %v4670 = vadd.f32 %v4440, %v4628
    %v4671 = vadd.f32 %v4441, %v4633
    %v4672 = vadd.f32 %v4442, %v4638
    %v4673 = vadd.f32 %v4443, %v4643
    %v4674 = vadd.f32 %v4444, %v4648
    %v4675 = vadd.f32 %v4445, %v4653
    %v4676 = vadd.f32 %v4446, %v4658
    %v4677 = vld [vmem:[#allocation2 + $0x19] sm:$0xff]
    %v4678 = vld [vmem:[#allocation2 + $0x21] sm:$0xff]
    %v4679 = vld [vmem:[#allocation2 + $0x29] sm:$0xff]
    %v4680 = vld [vmem:[#allocation2 + $0x31] sm:$0xff]
    %v4681 = vld [vmem:[#allocation2 + $0x39] sm:$0xff]
    %v4682 = vld [vmem:[#allocation2 + $0x41] sm:$0xff]
    %v4683 = vld [vmem:[#allocation2 + $0x49] sm:$0xff]
    %v4684 = vld [vmem:[#allocation2 + $0x51] sm:$0xff]
    %v4685 = vld [vmem:[#allocation2 + $0x59] sm:$0xff]
    %v4686 = vld [vmem:[#allocation2 + $0x61] sm:$0xff]
    %v4687 = vld [vmem:[#allocation2 + $0x69] sm:$0xff]
    %v4688 = vld [vmem:[#allocation2 + $0x71] sm:$0xff]
    %v4689 = vld [vmem:[#allocation2 + $0x79] sm:$0xff]
    %v4690 = vld [vmem:[#allocation2 + $0x81] sm:$0xff]
    %v4691 = vld [vmem:[#allocation2 + $0x89] sm:$0xff]
    %v4692 = vld [vmem:[#allocation2 + $0x91] sm:$0xff]
    %s4693 = scalar_lea.vmem %s3, 128
    %v4694 = vld [vmem:[%s4693] sm:$0x3f]
    %v4696 = vsel %vm1006, %v4677, 0
    %v4699 = vsel %vm1006, %v4678, 0
    %v4702 = vsel %vm1006, %v4679, 0
    %v4705 = vsel %vm1006, %v4680, 0
    %v4708 = vsel %vm1006, %v4681, 0
    %v4711 = vsel %vm1006, %v4682, 0
    %v4714 = vsel %vm1006, %v4683, 0
    %v4717 = vsel %vm1006, %v4684, 0
    %v4720 = vsel %vm1006, %v4685, 0
    %v4723 = vsel %vm1006, %v4686, 0
    %v4726 = vsel %vm1006, %v4687, 0
    %v4729 = vsel %vm1006, %v4688, 0
    %v4732 = vsel %vm1006, %v4689, 0
    %v4735 = vsel %vm1006, %v4690, 0
    %v4738 = vsel %vm1006, %v4691, 0
    %v4741 = vsel %vm1006, %v4692, 0
    %v4744 = vsel %vm1112, %v4694, 0
    %4746 = vmatprep.subr.mxu0 0.0
    %4747 = vmatpush1.msra.mxu0 %v4744
    %4748 = vmatprep.subr.mxu0 0.0
    %4749 = vmatpush1.msra.mxu0 0.0
    %4750 = vmatprep.subr.mxu0 0.0
    %4751 = vmatpush1.msra.mxu0 0.0
    %4752 = vmatprep.subr.mxu0 0.0
    %4753 = vmatpush1.msra.mxu0 0.0
    %4754 = vmatprep.subr.mxu0 0.0
    %4755 = vmatpush1.msra.mxu0 0.0
    %4756 = vmatprep.subr.mxu0 0.0
    %4757 = vmatpush1.msra.mxu0 0.0
    %4758 = vmatprep.subr.mxu0 0.0
    %4759 = vmatpush1.msra.mxu0 0.0
    %4760 = vmatprep.subr.mxu0 0.0
    %4761 = vmatpush1.msra.mxu0 0.0
    %4762 = vmatprep.subr.mxu0 0.0
    %4763 = vmatpush1.msra.mxu0 0.0
    %4764 = vmatprep.subr.mxu0 0.0
    %4765 = vmatpush1.msra.mxu0 0.0
    %4766 = vmatprep.subr.mxu0 0.0
    %4767 = vmatpush1.msra.mxu0 0.0
    %4768 = vmatprep.subr.mxu0 0.0
    %4769 = vmatpush1.msra.mxu0 0.0
    %4770 = vmatprep.subr.mxu0 0.0
    %4771 = vmatpush1.msra.mxu0 0.0
    %4772 = vmatprep.subr.mxu0 0.0
    %4773 = vmatpush1.msra.mxu0 0.0
    %4774 = vmatprep.subr.mxu0 0.0
    %4775 = vmatpush1.msra.mxu0 0.0
    %4776 = vmatprep.subr.mxu0 0.0
    %4777 = vmatpush1.msra.mxu0 0.0
    %4778 = vmatprep.subr.mxu0 0.0
    %4779 = vmatpush1.msra.mxu0 0.0
    %4780 = vmatprep.subr.mxu0 0.0
    %4781 = vmatpush1.msra.mxu0 0.0
    %4782 = vmatprep.subr.mxu0 0.0
    %4783 = vmatpush1.msra.mxu0 0.0
    %4784 = vmatprep.subr.mxu0 0.0
    %4785 = vmatpush1.msra.mxu0 0.0
    %4786 = vmatprep.subr.mxu0 0.0
    %4787 = vmatpush1.msra.mxu0 0.0
    %4788 = vmatprep.subr.mxu0 0.0
    %4789 = vmatpush1.msra.mxu0 0.0
    %4790 = vmatprep.subr.mxu0 0.0
    %4791 = vmatpush1.msra.mxu0 0.0
    %4792 = vmatprep.subr.mxu0 0.0
    %4793 = vmatpush1.msra.mxu0 0.0
    %4794 = vmatprep.subr.mxu0 0.0
    %4795 = vmatpush1.msra.mxu0 0.0
    %4796 = vmatprep.subr.mxu0 0.0
    %4797 = vmatpush1.msra.mxu0 0.0
    %4798 = vmatprep.subr.mxu0 0.0
    %4799 = vmatpush1.msra.mxu0 0.0
    %4800 = vmatprep.subr.mxu0 0.0
    %4801 = vmatpush1.msra.mxu0 0.0
    %4802 = vmatprep.subr.mxu0 0.0
    %4803 = vmatpush1.msra.mxu0 0.0
    %4804 = vmatprep.subr.mxu0 0.0
    %4805 = vmatpush1.msra.mxu0 0.0
    %4806 = vmatprep.subr.mxu0 0.0
    %4807 = vmatpush1.msra.mxu0 0.0
    %4808 = vmatprep.subr.mxu0 0.0
    %4809 = vmatpush1.msra.mxu0 0.0
    %4810 = vmatprep.mubr.f32.mxu0 0.0
    %4811 = vmatmul.mubr.f32.gmra.mrb[0].mxu0 %v4696
    %v4812 = vpop.f32.mrb[0].mxu0
    %v4813 = vadd.f32 0.0, %v4812
    %v4814 = vpop.f32.mrb[0].mxu0
    %4815 = vmatprep.mubr.f32.mxu0 0.0
    %4816 = vmatmul.mubr.f32.gmra.mrb[0].mxu0 %v4699
    %v4817 = vpop.f32.mrb[0].mxu0
    %v4818 = vadd.f32 0.0, %v4817
    %v4819 = vpop.f32.mrb[0].mxu0
    %4820 = vmatprep.mubr.f32.mxu0 0.0
    %4821 = vmatmul.mubr.f32.gmra.mrb[0].mxu0 %v4702
    %v4822 = vpop.f32.mrb[0].mxu0
    %v4823 = vadd.f32 0.0, %v4822
    %v4824 = vpop.f32.mrb[0].mxu0
    %4825 = vmatprep.mubr.f32.mxu0 0.0
    %4826 = vmatmul.mubr.f32.gmra.mrb[0].mxu0 %v4705
    %v4827 = vpop.f32.mrb[0].mxu0
    %v4828 = vadd.f32 0.0, %v4827
    %v4829 = vpop.f32.mrb[0].mxu0
    %4830 = vmatprep.mubr.f32.mxu0 0.0
    %4831 = vmatmul.mubr.f32.gmra.mrb[0].mxu0 %v4708
    %v4832 = vpop.f32.mrb[0].mxu0
    %v4833 = vadd.f32 0.0, %v4832
    %v4834 = vpop.f32.mrb[0].mxu0
    %4835 = vmatprep.mubr.f32.mxu0 0.0
    %4836 = vmatmul.mubr.f32.gmra.mrb[0].mxu0 %v4711
    %v4837 = vpop.f32.mrb[0].mxu0
    %v4838 = vadd.f32 0.0, %v4837
    %v4839 = vpop.f32.mrb[0].mxu0
    %4840 = vmatprep.mubr.f32.mxu0 0.0
    %4841 = vmatmul.mubr.f32.gmra.mrb[0].mxu0 %v4714
    %v4842 = vpop.f32.mrb[0].mxu0
    %v4843 = vadd.f32 0.0, %v4842
    %v4844 = vpop.f32.mrb[0].mxu0
    %4845 = vmatprep.mubr.f32.mxu0 0.0
    %4846 = vmatmul.mubr.f32.gmra.mrb[0].mxu0 %v4717
    %v4847 = vpop.f32.mrb[0].mxu0
    %v4848 = vadd.f32 0.0, %v4847
    %v4849 = vpop.f32.mrb[0].mxu0
    %4850 = vmatprep.mubr.f32.mxu0 0.0
    %4851 = vmatmul.mubr.f32.gmra.mrb[0].mxu0 %v4720
    %v4852 = vpop.f32.mrb[0].mxu0
    %v4853 = vadd.f32 0.0, %v4852
    %v4854 = vpop.f32.mrb[0].mxu0
    %4855 = vmatprep.mubr.f32.mxu0 0.0
    %4856 = vmatmul.mubr.f32.gmra.mrb[0].mxu0 %v4723
    %v4857 = vpop.f32.mrb[0].mxu0
    %v4858 = vadd.f32 0.0, %v4857
    %v4859 = vpop.f32.mrb[0].mxu0
    %4860 = vmatprep.mubr.f32.mxu0 0.0
    %4861 = vmatmul.mubr.f32.gmra.mrb[0].mxu0 %v4726
    %v4862 = vpop.f32.mrb[0].mxu0
    %v4863 = vadd.f32 0.0, %v4862
    %v4864 = vpop.f32.mrb[0].mxu0
    %4865 = vmatprep.mubr.f32.mxu0 0.0
    %4866 = vmatmul.mubr.f32.gmra.mrb[0].mxu0 %v4729
    %v4867 = vpop.f32.mrb[0].mxu0
    %v4868 = vadd.f32 0.0, %v4867
    %v4869 = vpop.f32.mrb[0].mxu0
    %4870 = vmatprep.mubr.f32.mxu0 0.0
    %4871 = vmatmul.mubr.f32.gmra.mrb[0].mxu0 %v4732
    %v4872 = vpop.f32.mrb[0].mxu0
    %v4873 = vadd.f32 0.0, %v4872
    %v4874 = vpop.f32.mrb[0].mxu0
    %4875 = vmatprep.mubr.f32.mxu0 0.0
    %4876 = vmatmul.mubr.f32.gmra.mrb[0].mxu0 %v4735
    %v4877 = vpop.f32.mrb[0].mxu0
    %v4878 = vadd.f32 0.0, %v4877
    %v4879 = vpop.f32.mrb[0].mxu0
    %4880 = vmatprep.mubr.f32.mxu0 0.0
    %4881 = vmatmul.mubr.f32.gmra.mrb[0].mxu0 %v4738
    %v4882 = vpop.f32.mrb[0].mxu0
    %v4883 = vadd.f32 0.0, %v4882
    %v4884 = vpop.f32.mrb[0].mxu0
    %4885 = vmatprep.mubr.f32.mxu0 0.0
    %4886 = vmatmul.mubr.f32.gmra.mrb[0].mxu0 %v4741
    %v4887 = vpop.f32.mrb[0].mxu0
    %v4888 = vadd.f32 0.0, %v4887
    %v4889 = vpop.f32.mrb[0].mxu0
    %4890 = vdwg.mxu0
    %v4891 = vadd.f32 %v4661, %v4813
    %v4892 = vadd.f32 %v4662, %v4818
    %v4893 = vadd.f32 %v4663, %v4823
    %v4894 = vadd.f32 %v4664, %v4828
    %v4895 = vadd.f32 %v4665, %v4833
    %v4896 = vadd.f32 %v4666, %v4838
    %v4897 = vadd.f32 %v4667, %v4843
    %v4898 = vadd.f32 %v4668, %v4848
    %v4899 = vadd.f32 %v4669, %v4853
    %v4900 = vadd.f32 %v4670, %v4858
    %v4901 = vadd.f32 %v4671, %v4863
    %v4902 = vadd.f32 %v4672, %v4868
    %v4903 = vadd.f32 %v4673, %v4873
    %v4904 = vadd.f32 %v4674, %v4878
    %v4905 = vadd.f32 %v4675, %v4883
    %v4906 = vadd.f32 %v4676, %v4888
    %v4907 = vld [vmem:[#allocation2 + $0x1a] sm:$0xff]
    %v4908 = vld [vmem:[#allocation2 + $0x22] sm:$0xff]
    %v4909 = vld [vmem:[#allocation2 + $0x2a] sm:$0xff]
    %v4910 = vld [vmem:[#allocation2 + $0x32] sm:$0xff]
    %v4911 = vld [vmem:[#allocation2 + $0x3a] sm:$0xff]
    %v4912 = vld [vmem:[#allocation2 + $0x42] sm:$0xff]
    %v4913 = vld [vmem:[#allocation2 + $0x4a] sm:$0xff]
    %v4914 = vld [vmem:[#allocation2 + $0x52] sm:$0xff]
    %v4915 = vld [vmem:[#allocation2 + $0x5a] sm:$0xff]
    %v4916 = vld [vmem:[#allocation2 + $0x62] sm:$0xff]
    %v4917 = vld [vmem:[#allocation2 + $0x6a] sm:$0xff]
    %v4918 = vld [vmem:[#allocation2 + $0x72] sm:$0xff]
    %v4919 = vld [vmem:[#allocation2 + $0x7a] sm:$0xff]
    %v4920 = vld [vmem:[#allocation2 + $0x82] sm:$0xff]
    %v4921 = vld [vmem:[#allocation2 + $0x8a] sm:$0xff]
    %v4922 = vld [vmem:[#allocation2 + $0x92] sm:$0xff]
    %s4923 = scalar_lea.vmem %s3, 136
    %v4924 = vld [vmem:[%s4923] sm:$0x3f]
    %v4926 = vsel %vm1006, %v4907, 0
    %v4929 = vsel %vm1006, %v4908, 0
    %v4932 = vsel %vm1006, %v4909, 0
    %v4935 = vsel %vm1006, %v4910, 0
    %v4938 = vsel %vm1006, %v4911, 0
    %v4941 = vsel %vm1006, %v4912, 0
    %v4944 = vsel %vm1006, %v4913, 0
    %v4947 = vsel %vm1006, %v4914, 0
    %v4950 = vsel %vm1006, %v4915, 0
    %v4953 = vsel %vm1006, %v4916, 0
    %v4956 = vsel %vm1006, %v4917, 0
    %v4959 = vsel %vm1006, %v4918, 0
    %v4962 = vsel %vm1006, %v4919, 0
    %v4965 = vsel %vm1006, %v4920, 0
    %v4968 = vsel %vm1006, %v4921, 0
    %v4971 = vsel %vm1006, %v4922, 0
    %v4974 = vsel %vm1112, %v4924, 0
    %4976 = vmatprep.subr.mxu0 0.0
    %4977 = vmatpush1.msra.mxu0 %v4974
    %4978 = vmatprep.subr.mxu0 0.0
    %4979 = vmatpush1.msra.mxu0 0.0
    %4980 = vmatprep.subr.mxu0 0.0
    %4981 = vmatpush1.msra.mxu0 0.0
    %4982 = vmatprep.subr.mxu0 0.0
    %4983 = vmatpush1.msra.mxu0 0.0
    %4984 = vmatprep.subr.mxu0 0.0
    %4985 = vmatpush1.msra.mxu0 0.0
    %4986 = vmatprep.subr.mxu0 0.0
    %4987 = vmatpush1.msra.mxu0 0.0
    %4988 = vmatprep.subr.mxu0 0.0
    %4989 = vmatpush1.msra.mxu0 0.0
    %4990 = vmatprep.subr.mxu0 0.0
    %4991 = vmatpush1.msra.mxu0 0.0
    %4992 = vmatprep.subr.mxu0 0.0
    %4993 = vmatpush1.msra.mxu0 0.0
    %4994 = vmatprep.subr.mxu0 0.0
    %4995 = vmatpush1.msra.mxu0 0.0
    %4996 = vmatprep.subr.mxu0 0.0
    %4997 = vmatpush1.msra.mxu0 0.0
    %4998 = vmatprep.subr.mxu0 0.0
    %4999 = vmatpush1.msra.mxu0 0.0
    %5000 = vmatprep.subr.mxu0 0.0
    %5001 = vmatpush1.msra.mxu0 0.0
    %5002 = vmatprep.subr.mxu0 0.0
    %5003 = vmatpush1.msra.mxu0 0.0
    %5004 = vmatprep.subr.mxu0 0.0
    %5005 = vmatpush1.msra.mxu0 0.0
    %5006 = vmatprep.subr.mxu0 0.0
    %5007 = vmatpush1.msra.mxu0 0.0
    %5008 = vmatprep.subr.mxu0 0.0
    %5009 = vmatpush1.msra.mxu0 0.0
    %5010 = vmatprep.subr.mxu0 0.0
    %5011 = vmatpush1.msra.mxu0 0.0
    %5012 = vmatprep.subr.mxu0 0.0
    %5013 = vmatpush1.msra.mxu0 0.0
    %5014 = vmatprep.subr.mxu0 0.0
    %5015 = vmatpush1.msra.mxu0 0.0
    %5016 = vmatprep.subr.mxu0 0.0
    %5017 = vmatpush1.msra.mxu0 0.0
    %5018 = vmatprep.subr.mxu0 0.0
    %5019 = vmatpush1.msra.mxu0 0.0
    %5020 = vmatprep.subr.mxu0 0.0
    %5021 = vmatpush1.msra.mxu0 0.0
    %5022 = vmatprep.subr.mxu0 0.0
    %5023 = vmatpush1.msra.mxu0 0.0
    %5024 = vmatprep.subr.mxu0 0.0
    %5025 = vmatpush1.msra.mxu0 0.0
    %5026 = vmatprep.subr.mxu0 0.0
    %5027 = vmatpush1.msra.mxu0 0.0
    %5028 = vmatprep.subr.mxu0 0.0
    %5029 = vmatpush1.msra.mxu0 0.0
    %5030 = vmatprep.subr.mxu0 0.0
    %5031 = vmatpush1.msra.mxu0 0.0
    %5032 = vmatprep.subr.mxu0 0.0
    %5033 = vmatpush1.msra.mxu0 0.0
    %5034 = vmatprep.subr.mxu0 0.0
    %5035 = vmatpush1.msra.mxu0 0.0
    %5036 = vmatprep.subr.mxu0 0.0
    %5037 = vmatpush1.msra.mxu0 0.0
    %5038 = vmatprep.subr.mxu0 0.0
    %5039 = vmatpush1.msra.mxu0 0.0
    %5040 = vmatprep.mubr.f32.mxu0 0.0
    %5041 = vmatmul.mubr.f32.gmra.mrb[0].mxu0 %v4926
    %v5042 = vpop.f32.mrb[0].mxu0
    %v5043 = vadd.f32 0.0, %v5042
    %v5044 = vpop.f32.mrb[0].mxu0
    %5045 = vmatprep.mubr.f32.mxu0 0.0
    %5046 = vmatmul.mubr.f32.gmra.mrb[0].mxu0 %v4929
    %v5047 = vpop.f32.mrb[0].mxu0
    %v5048 = vadd.f32 0.0, %v5047
    %v5049 = vpop.f32.mrb[0].mxu0
    %5050 = vmatprep.mubr.f32.mxu0 0.0
    %5051 = vmatmul.mubr.f32.gmra.mrb[0].mxu0 %v4932
    %v5052 = vpop.f32.mrb[0].mxu0
    %v5053 = vadd.f32 0.0, %v5052
    %v5054 = vpop.f32.mrb[0].mxu0
    %5055 = vmatprep.mubr.f32.mxu0 0.0
    %5056 = vmatmul.mubr.f32.gmra.mrb[0].mxu0 %v4935
    %v5057 = vpop.f32.mrb[0].mxu0
    %v5058 = vadd.f32 0.0, %v5057
    %v5059 = vpop.f32.mrb[0].mxu0
    %5060 = vmatprep.mubr.f32.mxu0 0.0
    %5061 = vmatmul.mubr.f32.gmra.mrb[0].mxu0 %v4938
    %v5062 = vpop.f32.mrb[0].mxu0
    %v5063 = vadd.f32 0.0, %v5062
    %v5064 = vpop.f32.mrb[0].mxu0
    %5065 = vmatprep.mubr.f32.mxu0 0.0
    %5066 = vmatmul.mubr.f32.gmra.mrb[0].mxu0 %v4941
    %v5067 = vpop.f32.mrb[0].mxu0
    %v5068 = vadd.f32 0.0, %v5067
    %v5069 = vpop.f32.mrb[0].mxu0
    %5070 = vmatprep.mubr.f32.mxu0 0.0
    %5071 = vmatmul.mubr.f32.gmra.mrb[0].mxu0 %v4944
    %v5072 = vpop.f32.mrb[0].mxu0
    %v5073 = vadd.f32 0.0, %v5072
    %v5074 = vpop.f32.mrb[0].mxu0
    %5075 = vmatprep.mubr.f32.mxu0 0.0
    %5076 = vmatmul.mubr.f32.gmra.mrb[0].mxu0 %v4947
    %v5077 = vpop.f32.mrb[0].mxu0
    %v5078 = vadd.f32 0.0, %v5077
    %v5079 = vpop.f32.mrb[0].mxu0
    %5080 = vmatprep.mubr.f32.mxu0 0.0
    %5081 = vmatmul.mubr.f32.gmra.mrb[0].mxu0 %v4950
    %v5082 = vpop.f32.mrb[0].mxu0
    %v5083 = vadd.f32 0.0, %v5082
    %v5084 = vpop.f32.mrb[0].mxu0
    %5085 = vmatprep.mubr.f32.mxu0 0.0
    %5086 = vmatmul.mubr.f32.gmra.mrb[0].mxu0 %v4953
    %v5087 = vpop.f32.mrb[0].mxu0
    %v5088 = vadd.f32 0.0, %v5087
    %v5089 = vpop.f32.mrb[0].mxu0
    %5090 = vmatprep.mubr.f32.mxu0 0.0
    %5091 = vmatmul.mubr.f32.gmra.mrb[0].mxu0 %v4956
    %v5092 = vpop.f32.mrb[0].mxu0
    %v5093 = vadd.f32 0.0, %v5092
    %v5094 = vpop.f32.mrb[0].mxu0
    %5095 = vmatprep.mubr.f32.mxu0 0.0
    %5096 = vmatmul.mubr.f32.gmra.mrb[0].mxu0 %v4959
    %v5097 = vpop.f32.mrb[0].mxu0
    %v5098 = vadd.f32 0.0, %v5097
    %v5099 = vpop.f32.mrb[0].mxu0
    %5100 = vmatprep.mubr.f32.mxu0 0.0
    %5101 = vmatmul.mubr.f32.gmra.mrb[0].mxu0 %v4962
    %v5102 = vpop.f32.mrb[0].mxu0
    %v5103 = vadd.f32 0.0, %v5102
    %v5104 = vpop.f32.mrb[0].mxu0
    %5105 = vmatprep.mubr.f32.mxu0 0.0
    %5106 = vmatmul.mubr.f32.gmra.mrb[0].mxu0 %v4965
    %v5107 = vpop.f32.mrb[0].mxu0
    %v5108 = vadd.f32 0.0, %v5107
    %v5109 = vpop.f32.mrb[0].mxu0
    %5110 = vmatprep.mubr.f32.mxu0 0.0
    %5111 = vmatmul.mubr.f32.gmra.mrb[0].mxu0 %v4968
    %v5112 = vpop.f32.mrb[0].mxu0
    %v5113 = vadd.f32 0.0, %v5112
    %v5114 = vpop.f32.mrb[0].mxu0
    %5115 = vmatprep.mubr.f32.mxu0 0.0
    %5116 = vmatmul.mubr.f32.gmra.mrb[0].mxu0 %v4971
    %v5117 = vpop.f32.mrb[0].mxu0
    %v5118 = vadd.f32 0.0, %v5117
    %v5119 = vpop.f32.mrb[0].mxu0
    %5120 = vdwg.mxu0
    %v5121 = vadd.f32 %v4891, %v5043
    %v5122 = vadd.f32 %v4892, %v5048
    %v5123 = vadd.f32 %v4893, %v5053
    %v5124 = vadd.f32 %v4894, %v5058
    %v5125 = vadd.f32 %v4895, %v5063
    %v5126 = vadd.f32 %v4896, %v5068
    %v5127 = vadd.f32 %v4897, %v5073
    %v5128 = vadd.f32 %v4898, %v5078
    %v5129 = vadd.f32 %v4899, %v5083
    %v5130 = vadd.f32 %v4900, %v5088
    %v5131 = vadd.f32 %v4901, %v5093
    %v5132 = vadd.f32 %v4902, %v5098
    %v5133 = vadd.f32 %v4903, %v5103
    %v5134 = vadd.f32 %v4904, %v5108
    %v5135 = vadd.f32 %v4905, %v5113
    %v5136 = vadd.f32 %v4906, %v5118
    %v5137 = vld [vmem:[#allocation2 + $0x1b] sm:$0xff]
    %v5138 = vld [vmem:[#allocation2 + $0x23] sm:$0xff]
    %v5139 = vld [vmem:[#allocation2 + $0x2b] sm:$0xff]
    %v5140 = vld [vmem:[#allocation2 + $0x33] sm:$0xff]
    %v5141 = vld [vmem:[#allocation2 + $0x3b] sm:$0xff]
    %v5142 = vld [vmem:[#allocation2 + $0x43] sm:$0xff]
    %v5143 = vld [vmem:[#allocation2 + $0x4b] sm:$0xff]
    %v5144 = vld [vmem:[#allocation2 + $0x53] sm:$0xff]
    %v5145 = vld [vmem:[#allocation2 + $0x5b] sm:$0xff]
    %v5146 = vld [vmem:[#allocation2 + $0x63] sm:$0xff]
    %v5147 = vld [vmem:[#allocation2 + $0x6b] sm:$0xff]
    %v5148 = vld [vmem:[#allocation2 + $0x73] sm:$0xff]
    %v5149 = vld [vmem:[#allocation2 + $0x7b] sm:$0xff]
    %v5150 = vld [vmem:[#allocation2 + $0x83] sm:$0xff]
    %v5151 = vld [vmem:[#allocation2 + $0x8b] sm:$0xff]
    %v5152 = vld [vmem:[#allocation2 + $0x93] sm:$0xff]
    %s5153 = scalar_lea.vmem %s3, 144
    %v5154 = vld [vmem:[%s5153] sm:$0x3f]
    %v5156 = vsel %vm1006, %v5137, 0
    %v5159 = vsel %vm1006, %v5138, 0
    %v5162 = vsel %vm1006, %v5139, 0
    %v5165 = vsel %vm1006, %v5140, 0
    %v5168 = vsel %vm1006, %v5141, 0
    %v5171 = vsel %vm1006, %v5142, 0
    %v5174 = vsel %vm1006, %v5143, 0
    %v5177 = vsel %vm1006, %v5144, 0
    %v5180 = vsel %vm1006, %v5145, 0
    %v5183 = vsel %vm1006, %v5146, 0
    %v5186 = vsel %vm1006, %v5147, 0
    %v5189 = vsel %vm1006, %v5148, 0
    %v5192 = vsel %vm1006, %v5149, 0
    %v5195 = vsel %vm1006, %v5150, 0
    %v5198 = vsel %vm1006, %v5151, 0
    %v5201 = vsel %vm1006, %v5152, 0
    %v5204 = vsel %vm1112, %v5154, 0
    %5206 = vmatprep.subr.mxu0 0.0
    %5207 = vmatpush1.msra.mxu0 %v5204
    %5208 = vmatprep.subr.mxu0 0.0
    %5209 = vmatpush1.msra.mxu0 0.0
    %5210 = vmatprep.subr.mxu0 0.0
    %5211 = vmatpush1.msra.mxu0 0.0
    %5212 = vmatprep.subr.mxu0 0.0
    %5213 = vmatpush1.msra.mxu0 0.0
    %5214 = vmatprep.subr.mxu0 0.0
    %5215 = vmatpush1.msra.mxu0 0.0
    %5216 = vmatprep.subr.mxu0 0.0
    %5217 = vmatpush1.msra.mxu0 0.0
    %5218 = vmatprep.subr.mxu0 0.0
    %5219 = vmatpush1.msra.mxu0 0.0
    %5220 = vmatprep.subr.mxu0 0.0
    %5221 = vmatpush1.msra.mxu0 0.0
    %5222 = vmatprep.subr.mxu0 0.0
    %5223 = vmatpush1.msra.mxu0 0.0
    %5224 = vmatprep.subr.mxu0 0.0
    %5225 = vmatpush1.msra.mxu0 0.0
    %5226 = vmatprep.subr.mxu0 0.0
    %5227 = vmatpush1.msra.mxu0 0.0
    %5228 = vmatprep.subr.mxu0 0.0
    %5229 = vmatpush1.msra.mxu0 0.0
    %5230 = vmatprep.subr.mxu0 0.0
    %5231 = vmatpush1.msra.mxu0 0.0
    %5232 = vmatprep.subr.mxu0 0.0
    %5233 = vmatpush1.msra.mxu0 0.0
    %5234 = vmatprep.subr.mxu0 0.0
    %5235 = vmatpush1.msra.mxu0 0.0
    %5236 = vmatprep.subr.mxu0 0.0
    %5237 = vmatpush1.msra.mxu0 0.0
    %5238 = vmatprep.subr.mxu0 0.0
    %5239 = vmatpush1.msra.mxu0 0.0
    %5240 = vmatprep.subr.mxu0 0.0
    %5241 = vmatpush1.msra.mxu0 0.0
    %5242 = vmatprep.subr.mxu0 0.0
    %5243 = vmatpush1.msra.mxu0 0.0
    %5244 = vmatprep.subr.mxu0 0.0
    %5245 = vmatpush1.msra.mxu0 0.0
    %5246 = vmatprep.subr.mxu0 0.0
    %5247 = vmatpush1.msra.mxu0 0.0
    %5248 = vmatprep.subr.mxu0 0.0
    %5249 = vmatpush1.msra.mxu0 0.0
    %5250 = vmatprep.subr.mxu0 0.0
    %5251 = vmatpush1.msra.mxu0 0.0
    %5252 = vmatprep.subr.mxu0 0.0
    %5253 = vmatpush1.msra.mxu0 0.0
    %5254 = vmatprep.subr.mxu0 0.0
    %5255 = vmatpush1.msra.mxu0 0.0
    %5256 = vmatprep.subr.mxu0 0.0
    %5257 = vmatpush1.msra.mxu0 0.0
    %5258 = vmatprep.subr.mxu0 0.0
    %5259 = vmatpush1.msra.mxu0 0.0
    %5260 = vmatprep.subr.mxu0 0.0
    %5261 = vmatpush1.msra.mxu0 0.0
    %5262 = vmatprep.subr.mxu0 0.0
    %5263 = vmatpush1.msra.mxu0 0.0
    %5264 = vmatprep.subr.mxu0 0.0
    %5265 = vmatpush1.msra.mxu0 0.0
    %5266 = vmatprep.subr.mxu0 0.0
    %5267 = vmatpush1.msra.mxu0 0.0
    %5268 = vmatprep.subr.mxu0 0.0
    %5269 = vmatpush1.msra.mxu0 0.0
    %5270 = vmatprep.mubr.f32.mxu0 0.0
    %5271 = vmatmul.mubr.f32.gmra.mrb[0].mxu0 %v5156
    %v5272 = vpop.f32.mrb[0].mxu0
    %v5273 = vadd.f32 0.0, %v5272
    %v5274 = vpop.f32.mrb[0].mxu0
    %5275 = vmatprep.mubr.f32.mxu0 0.0
    %5276 = vmatmul.mubr.f32.gmra.mrb[0].mxu0 %v5159
    %v5277 = vpop.f32.mrb[0].mxu0
    %v5278 = vadd.f32 0.0, %v5277
    %v5279 = vpop.f32.mrb[0].mxu0
    %5280 = vmatprep.mubr.f32.mxu0 0.0
    %5281 = vmatmul.mubr.f32.gmra.mrb[0].mxu0 %v5162
    %v5282 = vpop.f32.mrb[0].mxu0
    %v5283 = vadd.f32 0.0, %v5282
    %v5284 = vpop.f32.mrb[0].mxu0
    %5285 = vmatprep.mubr.f32.mxu0 0.0
    %5286 = vmatmul.mubr.f32.gmra.mrb[0].mxu0 %v5165
    %v5287 = vpop.f32.mrb[0].mxu0
    %v5288 = vadd.f32 0.0, %v5287
    %v5289 = vpop.f32.mrb[0].mxu0
    %5290 = vmatprep.mubr.f32.mxu0 0.0
    %5291 = vmatmul.mubr.f32.gmra.mrb[0].mxu0 %v5168
    %v5292 = vpop.f32.mrb[0].mxu0
    %v5293 = vadd.f32 0.0, %v5292
    %v5294 = vpop.f32.mrb[0].mxu0
    %5295 = vmatprep.mubr.f32.mxu0 0.0
    %5296 = vmatmul.mubr.f32.gmra.mrb[0].mxu0 %v5171
    %v5297 = vpop.f32.mrb[0].mxu0
    %v5298 = vadd.f32 0.0, %v5297
    %v5299 = vpop.f32.mrb[0].mxu0
    %5300 = vmatprep.mubr.f32.mxu0 0.0
    %5301 = vmatmul.mubr.f32.gmra.mrb[0].mxu0 %v5174
    %v5302 = vpop.f32.mrb[0].mxu0
    %v5303 = vadd.f32 0.0, %v5302
    %v5304 = vpop.f32.mrb[0].mxu0
    %5305 = vmatprep.mubr.f32.mxu0 0.0
    %5306 = vmatmul.mubr.f32.gmra.mrb[0].mxu0 %v5177
    %v5307 = vpop.f32.mrb[0].mxu0
    %v5308 = vadd.f32 0.0, %v5307
    %v5309 = vpop.f32.mrb[0].mxu0
    %5310 = vmatprep.mubr.f32.mxu0 0.0
    %5311 = vmatmul.mubr.f32.gmra.mrb[0].mxu0 %v5180
    %v5312 = vpop.f32.mrb[0].mxu0
    %v5313 = vadd.f32 0.0, %v5312
    %v5314 = vpop.f32.mrb[0].mxu0
    %5315 = vmatprep.mubr.f32.mxu0 0.0
    %5316 = vmatmul.mubr.f32.gmra.mrb[0].mxu0 %v5183
    %v5317 = vpop.f32.mrb[0].mxu0
    %v5318 = vadd.f32 0.0, %v5317
    %v5319 = vpop.f32.mrb[0].mxu0
    %5320 = vmatprep.mubr.f32.mxu0 0.0
    %5321 = vmatmul.mubr.f32.gmra.mrb[0].mxu0 %v5186
    %v5322 = vpop.f32.mrb[0].mxu0
    %v5323 = vadd.f32 0.0, %v5322
    %v5324 = vpop.f32.mrb[0].mxu0
    %5325 = vmatprep.mubr.f32.mxu0 0.0
    %5326 = vmatmul.mubr.f32.gmra.mrb[0].mxu0 %v5189
    %v5327 = vpop.f32.mrb[0].mxu0
    %v5328 = vadd.f32 0.0, %v5327
    %v5329 = vpop.f32.mrb[0].mxu0
    %5330 = vmatprep.mubr.f32.mxu0 0.0
    %5331 = vmatmul.mubr.f32.gmra.mrb[0].mxu0 %v5192
    %v5332 = vpop.f32.mrb[0].mxu0
    %v5333 = vadd.f32 0.0, %v5332
    %v5334 = vpop.f32.mrb[0].mxu0
    %5335 = vmatprep.mubr.f32.mxu0 0.0
    %5336 = vmatmul.mubr.f32.gmra.mrb[0].mxu0 %v5195
    %v5337 = vpop.f32.mrb[0].mxu0
    %v5338 = vadd.f32 0.0, %v5337
    %v5339 = vpop.f32.mrb[0].mxu0
    %5340 = vmatprep.mubr.f32.mxu0 0.0
    %5341 = vmatmul.mubr.f32.gmra.mrb[0].mxu0 %v5198
    %v5342 = vpop.f32.mrb[0].mxu0
    %v5343 = vadd.f32 0.0, %v5342
    %v5344 = vpop.f32.mrb[0].mxu0
    %5345 = vmatprep.mubr.f32.mxu0 0.0
    %5346 = vmatmul.mubr.f32.gmra.mrb[0].mxu0 %v5201
    %v5347 = vpop.f32.mrb[0].mxu0
    %v5348 = vadd.f32 0.0, %v5347
    %v5349 = vpop.f32.mrb[0].mxu0
    %5350 = vdwg.mxu0
    %v5351 = vadd.f32 %v5121, %v5273
    %v5352 = vadd.f32 %v5122, %v5278
    %v5353 = vadd.f32 %v5123, %v5283
    %v5354 = vadd.f32 %v5124, %v5288
    %v5355 = vadd.f32 %v5125, %v5293
    %v5356 = vadd.f32 %v5126, %v5298
    %v5357 = vadd.f32 %v5127, %v5303
    %v5358 = vadd.f32 %v5128, %v5308
    %v5359 = vadd.f32 %v5129, %v5313
    %v5360 = vadd.f32 %v5130, %v5318
    %v5361 = vadd.f32 %v5131, %v5323
    %v5362 = vadd.f32 %v5132, %v5328
    %v5363 = vadd.f32 %v5133, %v5333
    %v5364 = vadd.f32 %v5134, %v5338
    %v5365 = vadd.f32 %v5135, %v5343
    %v5366 = vadd.f32 %v5136, %v5348
    %v5367 = vld [vmem:[#allocation2 + $0x1c] sm:$0xff]
    %v5368 = vld [vmem:[#allocation2 + $0x24] sm:$0xff]
    %v5369 = vld [vmem:[#allocation2 + $0x2c] sm:$0xff]
    %v5370 = vld [vmem:[#allocation2 + $0x34] sm:$0xff]
    %v5371 = vld [vmem:[#allocation2 + $0x3c] sm:$0xff]
    %v5372 = vld [vmem:[#allocation2 + $0x44] sm:$0xff]
    %v5373 = vld [vmem:[#allocation2 + $0x4c] sm:$0xff]
    %v5374 = vld [vmem:[#allocation2 + $0x54] sm:$0xff]
    %v5375 = vld [vmem:[#allocation2 + $0x5c] sm:$0xff]
    %v5376 = vld [vmem:[#allocation2 + $0x64] sm:$0xff]
    %v5377 = vld [vmem:[#allocation2 + $0x6c] sm:$0xff]
    %v5378 = vld [vmem:[#allocation2 + $0x74] sm:$0xff]
    %v5379 = vld [vmem:[#allocation2 + $0x7c] sm:$0xff]
    %v5380 = vld [vmem:[#allocation2 + $0x84] sm:$0xff]
    %v5381 = vld [vmem:[#allocation2 + $0x8c] sm:$0xff]
    %v5382 = vld [vmem:[#allocation2 + $0x94] sm:$0xff]
    %s5383 = scalar_lea.vmem %s3, 152
    %v5384 = vld [vmem:[%s5383] sm:$0x3f]
    %v5386 = vsel %vm1006, %v5367, 0
    %v5389 = vsel %vm1006, %v5368, 0
    %v5392 = vsel %vm1006, %v5369, 0
    %v5395 = vsel %vm1006, %v5370, 0
    %v5398 = vsel %vm1006, %v5371, 0
    %v5401 = vsel %vm1006, %v5372, 0
    %v5404 = vsel %vm1006, %v5373, 0
    %v5407 = vsel %vm1006, %v5374, 0
    %v5410 = vsel %vm1006, %v5375, 0
    %v5413 = vsel %vm1006, %v5376, 0
    %v5416 = vsel %vm1006, %v5377, 0
    %v5419 = vsel %vm1006, %v5378, 0
    %v5422 = vsel %vm1006, %v5379, 0
    %v5425 = vsel %vm1006, %v5380, 0
    %v5428 = vsel %vm1006, %v5381, 0
    %v5431 = vsel %vm1006, %v5382, 0
    %v5434 = vsel %vm1112, %v5384, 0
    %5436 = vmatprep.subr.mxu0 0.0
    %5437 = vmatpush1.msra.mxu0 %v5434
    %5438 = vmatprep.subr.mxu0 0.0
    %5439 = vmatpush1.msra.mxu0 0.0
    %5440 = vmatprep.subr.mxu0 0.0
    %5441 = vmatpush1.msra.mxu0 0.0
    %5442 = vmatprep.subr.mxu0 0.0
    %5443 = vmatpush1.msra.mxu0 0.0
    %5444 = vmatprep.subr.mxu0 0.0
    %5445 = vmatpush1.msra.mxu0 0.0
    %5446 = vmatprep.subr.mxu0 0.0
    %5447 = vmatpush1.msra.mxu0 0.0
    %5448 = vmatprep.subr.mxu0 0.0
    %5449 = vmatpush1.msra.mxu0 0.0
    %5450 = vmatprep.subr.mxu0 0.0
    %5451 = vmatpush1.msra.mxu0 0.0
    %5452 = vmatprep.subr.mxu0 0.0
    %5453 = vmatpush1.msra.mxu0 0.0
    %5454 = vmatprep.subr.mxu0 0.0
    %5455 = vmatpush1.msra.mxu0 0.0
    %5456 = vmatprep.subr.mxu0 0.0
    %5457 = vmatpush1.msra.mxu0 0.0
    %5458 = vmatprep.subr.mxu0 0.0
    %5459 = vmatpush1.msra.mxu0 0.0
    %5460 = vmatprep.subr.mxu0 0.0
    %5461 = vmatpush1.msra.mxu0 0.0
    %5462 = vmatprep.subr.mxu0 0.0
    %5463 = vmatpush1.msra.mxu0 0.0
    %5464 = vmatprep.subr.mxu0 0.0
    %5465 = vmatpush1.msra.mxu0 0.0
    %5466 = vmatprep.subr.mxu0 0.0
    %5467 = vmatpush1.msra.mxu0 0.0
    %5468 = vmatprep.subr.mxu0 0.0
    %5469 = vmatpush1.msra.mxu0 0.0
    %5470 = vmatprep.subr.mxu0 0.0
    %5471 = vmatpush1.msra.mxu0 0.0
    %5472 = vmatprep.subr.mxu0 0.0
    %5473 = vmatpush1.msra.mxu0 0.0
    %5474 = vmatprep.subr.mxu0 0.0
    %5475 = vmatpush1.msra.mxu0 0.0
    %5476 = vmatprep.subr.mxu0 0.0
    %5477 = vmatpush1.msra.mxu0 0.0
    %5478 = vmatprep.subr.mxu0 0.0
    %5479 = vmatpush1.msra.mxu0 0.0
    %5480 = vmatprep.subr.mxu0 0.0
    %5481 = vmatpush1.msra.mxu0 0.0
    %5482 = vmatprep.subr.mxu0 0.0
    %5483 = vmatpush1.msra.mxu0 0.0
    %5484 = vmatprep.subr.mxu0 0.0
    %5485 = vmatpush1.msra.mxu0 0.0
    %5486 = vmatprep.subr.mxu0 0.0
    %5487 = vmatpush1.msra.mxu0 0.0
    %5488 = vmatprep.subr.mxu0 0.0
    %5489 = vmatpush1.msra.mxu0 0.0
    %5490 = vmatprep.subr.mxu0 0.0
    %5491 = vmatpush1.msra.mxu0 0.0
    %5492 = vmatprep.subr.mxu0 0.0
    %5493 = vmatpush1.msra.mxu0 0.0
    %5494 = vmatprep.subr.mxu0 0.0
    %5495 = vmatpush1.msra.mxu0 0.0
    %5496 = vmatprep.subr.mxu0 0.0
    %5497 = vmatpush1.msra.mxu0 0.0
    %5498 = vmatprep.subr.mxu0 0.0
    %5499 = vmatpush1.msra.mxu0 0.0
    %5500 = vmatprep.mubr.f32.mxu0 0.0
    %5501 = vmatmul.mubr.f32.gmra.mrb[0].mxu0 %v5386
    %v5502 = vpop.f32.mrb[0].mxu0
    %v5503 = vadd.f32 0.0, %v5502
    %v5504 = vpop.f32.mrb[0].mxu0
    %5505 = vmatprep.mubr.f32.mxu0 0.0
    %5506 = vmatmul.mubr.f32.gmra.mrb[0].mxu0 %v5389
    %v5507 = vpop.f32.mrb[0].mxu0
    %v5508 = vadd.f32 0.0, %v5507
    %v5509 = vpop.f32.mrb[0].mxu0
    %5510 = vmatprep.mubr.f32.mxu0 0.0
    %5511 = vmatmul.mubr.f32.gmra.mrb[0].mxu0 %v5392
    %v5512 = vpop.f32.mrb[0].mxu0
    %v5513 = vadd.f32 0.0, %v5512
    %v5514 = vpop.f32.mrb[0].mxu0
    %5515 = vmatprep.mubr.f32.mxu0 0.0
    %5516 = vmatmul.mubr.f32.gmra.mrb[0].mxu0 %v5395
    %v5517 = vpop.f32.mrb[0].mxu0
    %v5518 = vadd.f32 0.0, %v5517
    %v5519 = vpop.f32.mrb[0].mxu0
    %5520 = vmatprep.mubr.f32.mxu0 0.0
    %5521 = vmatmul.mubr.f32.gmra.mrb[0].mxu0 %v5398
    %v5522 = vpop.f32.mrb[0].mxu0
    %v5523 = vadd.f32 0.0, %v5522
    %v5524 = vpop.f32.mrb[0].mxu0
    %5525 = vmatprep.mubr.f32.mxu0 0.0
    %5526 = vmatmul.mubr.f32.gmra.mrb[0].mxu0 %v5401
    %v5527 = vpop.f32.mrb[0].mxu0
    %v5528 = vadd.f32 0.0, %v5527
    %v5529 = vpop.f32.mrb[0].mxu0
    %5530 = vmatprep.mubr.f32.mxu0 0.0
    %5531 = vmatmul.mubr.f32.gmra.mrb[0].mxu0 %v5404
    %v5532 = vpop.f32.mrb[0].mxu0
    %v5533 = vadd.f32 0.0, %v5532
    %v5534 = vpop.f32.mrb[0].mxu0
    %5535 = vmatprep.mubr.f32.mxu0 0.0
    %5536 = vmatmul.mubr.f32.gmra.mrb[0].mxu0 %v5407
    %v5537 = vpop.f32.mrb[0].mxu0
    %v5538 = vadd.f32 0.0, %v5537
    %v5539 = vpop.f32.mrb[0].mxu0
    %5540 = vmatprep.mubr.f32.mxu0 0.0
    %5541 = vmatmul.mubr.f32.gmra.mrb[0].mxu0 %v5410
    %v5542 = vpop.f32.mrb[0].mxu0
    %v5543 = vadd.f32 0.0, %v5542
    %v5544 = vpop.f32.mrb[0].mxu0
    %5545 = vmatprep.mubr.f32.mxu0 0.0
    %5546 = vmatmul.mubr.f32.gmra.mrb[0].mxu0 %v5413
    %v5547 = vpop.f32.mrb[0].mxu0
    %v5548 = vadd.f32 0.0, %v5547
    %v5549 = vpop.f32.mrb[0].mxu0
    %5550 = vmatprep.mubr.f32.mxu0 0.0
    %5551 = vmatmul.mubr.f32.gmra.mrb[0].mxu0 %v5416
    %v5552 = vpop.f32.mrb[0].mxu0
    %v5553 = vadd.f32 0.0, %v5552
    %v5554 = vpop.f32.mrb[0].mxu0
    %5555 = vmatprep.mubr.f32.mxu0 0.0
    %5556 = vmatmul.mubr.f32.gmra.mrb[0].mxu0 %v5419
    %v5557 = vpop.f32.mrb[0].mxu0
    %v5558 = vadd.f32 0.0, %v5557
    %v5559 = vpop.f32.mrb[0].mxu0
    %5560 = vmatprep.mubr.f32.mxu0 0.0
    %5561 = vmatmul.mubr.f32.gmra.mrb[0].mxu0 %v5422
    %v5562 = vpop.f32.mrb[0].mxu0
    %v5563 = vadd.f32 0.0, %v5562
    %v5564 = vpop.f32.mrb[0].mxu0
    %5565 = vmatprep.mubr.f32.mxu0 0.0
    %5566 = vmatmul.mubr.f32.gmra.mrb[0].mxu0 %v5425
    %v5567 = vpop.f32.mrb[0].mxu0
    %v5568 = vadd.f32 0.0, %v5567
    %v5569 = vpop.f32.mrb[0].mxu0
    %5570 = vmatprep.mubr.f32.mxu0 0.0
    %5571 = vmatmul.mubr.f32.gmra.mrb[0].mxu0 %v5428
    %v5572 = vpop.f32.mrb[0].mxu0
    %v5573 = vadd.f32 0.0, %v5572
    %v5574 = vpop.f32.mrb[0].mxu0
    %5575 = vmatprep.mubr.f32.mxu0 0.0
    %5576 = vmatmul.mubr.f32.gmra.mrb[0].mxu0 %v5431
    %v5577 = vpop.f32.mrb[0].mxu0
    %v5578 = vadd.f32 0.0, %v5577
    %v5579 = vpop.f32.mrb[0].mxu0
    %5580 = vdwg.mxu0
    %v5581 = vadd.f32 %v5351, %v5503
    %v5582 = vadd.f32 %v5352, %v5508
    %v5583 = vadd.f32 %v5353, %v5513
    %v5584 = vadd.f32 %v5354, %v5518
    %v5585 = vadd.f32 %v5355, %v5523
    %v5586 = vadd.f32 %v5356, %v5528
    %v5587 = vadd.f32 %v5357, %v5533
    %v5588 = vadd.f32 %v5358, %v5538
    %v5589 = vadd.f32 %v5359, %v5543
    %v5590 = vadd.f32 %v5360, %v5548
    %v5591 = vadd.f32 %v5361, %v5553
    %v5592 = vadd.f32 %v5362, %v5558
    %v5593 = vadd.f32 %v5363, %v5563
    %v5594 = vadd.f32 %v5364, %v5568
    %v5595 = vadd.f32 %v5365, %v5573
    %v5596 = vadd.f32 %v5366, %v5578
    %v5597 = vld [vmem:[#allocation2 + $0x20] sm:$0xff]
    %v5598 = vld [vmem:[#allocation2 + $0x28] sm:$0xff]
    %v5599 = vld [vmem:[#allocation2 + $0x30] sm:$0xff]
    %v5600 = vld [vmem:[#allocation2 + $0x38] sm:$0xff]
    %v5601 = vld [vmem:[#allocation2 + $0x40] sm:$0xff]
    %v5602 = vld [vmem:[#allocation2 + $0x48] sm:$0xff]
    %v5603 = vld [vmem:[#allocation2 + $0x50] sm:$0xff]
    %v5604 = vld [vmem:[#allocation2 + $0x58] sm:$0xff]
    %v5605 = vld [vmem:[#allocation2 + $0x60] sm:$0xff]
    %v5606 = vld [vmem:[#allocation2 + $0x68] sm:$0xff]
    %v5607 = vld [vmem:[#allocation2 + $0x70] sm:$0xff]
    %v5608 = vld [vmem:[#allocation2 + $0x78] sm:$0xff]
    %v5609 = vld [vmem:[#allocation2 + $0x80] sm:$0xff]
    %v5610 = vld [vmem:[#allocation2 + $0x88] sm:$0xff]
    %v5611 = vld [vmem:[#allocation2 + $0x90] sm:$0xff]
    %v5612 = vld [vmem:[#allocation2 + $0x98] sm:$0xff]
    %s5613 = scalar_lea.vmem %s3, 160
    %v5614 = vld [vmem:[%s5613] sm:$0x3f]
    %v5616 = vsel %vm1006, %v5597, 0
    %v5619 = vsel %vm1006, %v5598, 0
    %v5622 = vsel %vm1006, %v5599, 0
    %v5625 = vsel %vm1006, %v5600, 0
    %v5628 = vsel %vm1006, %v5601, 0
    %v5631 = vsel %vm1006, %v5602, 0
    %v5634 = vsel %vm1006, %v5603, 0
    %v5637 = vsel %vm1006, %v5604, 0
    %v5640 = vsel %vm1006, %v5605, 0
    %v5643 = vsel %vm1006, %v5606, 0
    %v5646 = vsel %vm1006, %v5607, 0
    %v5649 = vsel %vm1006, %v5608, 0
    %v5652 = vsel %vm1006, %v5609, 0
    %v5655 = vsel %vm1006, %v5610, 0
    %v5658 = vsel %vm1006, %v5611, 0
    %v5661 = vsel %vm1006, %v5612, 0
    %v5664 = vsel %vm1112, %v5614, 0
    %5666 = vmatprep.subr.mxu0 0.0
    %5667 = vmatpush1.msra.mxu0 %v5664
    %5668 = vmatprep.subr.mxu0 0.0
    %5669 = vmatpush1.msra.mxu0 0.0
    %5670 = vmatprep.subr.mxu0 0.0
    %5671 = vmatpush1.msra.mxu0 0.0
    %5672 = vmatprep.subr.mxu0 0.0
    %5673 = vmatpush1.msra.mxu0 0.0
    %5674 = vmatprep.subr.mxu0 0.0
    %5675 = vmatpush1.msra.mxu0 0.0
    %5676 = vmatprep.subr.mxu0 0.0
    %5677 = vmatpush1.msra.mxu0 0.0
    %5678 = vmatprep.subr.mxu0 0.0
    %5679 = vmatpush1.msra.mxu0 0.0
    %5680 = vmatprep.subr.mxu0 0.0
    %5681 = vmatpush1.msra.mxu0 0.0
    %5682 = vmatprep.subr.mxu0 0.0
    %5683 = vmatpush1.msra.mxu0 0.0
    %5684 = vmatprep.subr.mxu0 0.0
    %5685 = vmatpush1.msra.mxu0 0.0
    %5686 = vmatprep.subr.mxu0 0.0
    %5687 = vmatpush1.msra.mxu0 0.0
    %5688 = vmatprep.subr.mxu0 0.0
    %5689 = vmatpush1.msra.mxu0 0.0
    %5690 = vmatprep.subr.mxu0 0.0
    %5691 = vmatpush1.msra.mxu0 0.0
    %5692 = vmatprep.subr.mxu0 0.0
    %5693 = vmatpush1.msra.mxu0 0.0
    %5694 = vmatprep.subr.mxu0 0.0
    %5695 = vmatpush1.msra.mxu0 0.0
    %5696 = vmatprep.subr.mxu0 0.0
    %5697 = vmatpush1.msra.mxu0 0.0
    %5698 = vmatprep.subr.mxu0 0.0
    %5699 = vmatpush1.msra.mxu0 0.0
    %5700 = vmatprep.subr.mxu0 0.0
    %5701 = vmatpush1.msra.mxu0 0.0
    %5702 = vmatprep.subr.mxu0 0.0
    %5703 = vmatpush1.msra.mxu0 0.0
    %5704 = vmatprep.subr.mxu0 0.0
    %5705 = vmatpush1.msra.mxu0 0.0
    %5706 = vmatprep.subr.mxu0 0.0
    %5707 = vmatpush1.msra.mxu0 0.0
    %5708 = vmatprep.subr.mxu0 0.0
    %5709 = vmatpush1.msra.mxu0 0.0
    %5710 = vmatprep.subr.mxu0 0.0
    %5711 = vmatpush1.msra.mxu0 0.0
    %5712 = vmatprep.subr.mxu0 0.0
    %5713 = vmatpush1.msra.mxu0 0.0
    %5714 = vmatprep.subr.mxu0 0.0
    %5715 = vmatpush1.msra.mxu0 0.0
    %5716 = vmatprep.subr.mxu0 0.0
    %5717 = vmatpush1.msra.mxu0 0.0
    %5718 = vmatprep.subr.mxu0 0.0
    %5719 = vmatpush1.msra.mxu0 0.0
    %5720 = vmatprep.subr.mxu0 0.0
    %5721 = vmatpush1.msra.mxu0 0.0
    %5722 = vmatprep.subr.mxu0 0.0
    %5723 = vmatpush1.msra.mxu0 0.0
    %5724 = vmatprep.subr.mxu0 0.0
    %5725 = vmatpush1.msra.mxu0 0.0
    %5726 = vmatprep.subr.mxu0 0.0
    %5727 = vmatpush1.msra.mxu0 0.0
    %5728 = vmatprep.subr.mxu0 0.0
    %5729 = vmatpush1.msra.mxu0 0.0
    %5730 = vmatprep.mubr.f32.mxu0 0.0
    %5731 = vmatmul.mubr.f32.gmra.mrb[0].mxu0 %v5616
    %v5732 = vpop.f32.mrb[0].mxu0
    %v5733 = vadd.f32 0.0, %v5732
    %v5734 = vpop.f32.mrb[0].mxu0
    %5735 = vmatprep.mubr.f32.mxu0 0.0
    %5736 = vmatmul.mubr.f32.gmra.mrb[0].mxu0 %v5619
    %v5737 = vpop.f32.mrb[0].mxu0
    %v5738 = vadd.f32 0.0, %v5737
    %v5739 = vpop.f32.mrb[0].mxu0
    %5740 = vmatprep.mubr.f32.mxu0 0.0
    %5741 = vmatmul.mubr.f32.gmra.mrb[0].mxu0 %v5622
    %v5742 = vpop.f32.mrb[0].mxu0
    %v5743 = vadd.f32 0.0, %v5742
    %v5744 = vpop.f32.mrb[0].mxu0
    %5745 = vmatprep.mubr.f32.mxu0 0.0
    %5746 = vmatmul.mubr.f32.gmra.mrb[0].mxu0 %v5625
    %v5747 = vpop.f32.mrb[0].mxu0
    %v5748 = vadd.f32 0.0, %v5747
    %v5749 = vpop.f32.mrb[0].mxu0
    %5750 = vmatprep.mubr.f32.mxu0 0.0
    %5751 = vmatmul.mubr.f32.gmra.mrb[0].mxu0 %v5628
    %v5752 = vpop.f32.mrb[0].mxu0
    %v5753 = vadd.f32 0.0, %v5752
    %v5754 = vpop.f32.mrb[0].mxu0
    %5755 = vmatprep.mubr.f32.mxu0 0.0
    %5756 = vmatmul.mubr.f32.gmra.mrb[0].mxu0 %v5631
    %v5757 = vpop.f32.mrb[0].mxu0
    %v5758 = vadd.f32 0.0, %v5757
    %v5759 = vpop.f32.mrb[0].mxu0
    %5760 = vmatprep.mubr.f32.mxu0 0.0
    %5761 = vmatmul.mubr.f32.gmra.mrb[0].mxu0 %v5634
    %v5762 = vpop.f32.mrb[0].mxu0
    %v5763 = vadd.f32 0.0, %v5762
    %v5764 = vpop.f32.mrb[0].mxu0
    %5765 = vmatprep.mubr.f32.mxu0 0.0
    %5766 = vmatmul.mubr.f32.gmra.mrb[0].mxu0 %v5637
    %v5767 = vpop.f32.mrb[0].mxu0
    %v5768 = vadd.f32 0.0, %v5767
    %v5769 = vpop.f32.mrb[0].mxu0
    %5770 = vmatprep.mubr.f32.mxu0 0.0
    %5771 = vmatmul.mubr.f32.gmra.mrb[0].mxu0 %v5640
    %v5772 = vpop.f32.mrb[0].mxu0
    %v5773 = vadd.f32 0.0, %v5772
    %v5774 = vpop.f32.mrb[0].mxu0
    %5775 = vmatprep.mubr.f32.mxu0 0.0
    %5776 = vmatmul.mubr.f32.gmra.mrb[0].mxu0 %v5643
    %v5777 = vpop.f32.mrb[0].mxu0
    %v5778 = vadd.f32 0.0, %v5777
    %v5779 = vpop.f32.mrb[0].mxu0
    %5780 = vmatprep.mubr.f32.mxu0 0.0
    %5781 = vmatmul.mubr.f32.gmra.mrb[0].mxu0 %v5646
    %v5782 = vpop.f32.mrb[0].mxu0
    %v5783 = vadd.f32 0.0, %v5782
    %v5784 = vpop.f32.mrb[0].mxu0
    %5785 = vmatprep.mubr.f32.mxu0 0.0
    %5786 = vmatmul.mubr.f32.gmra.mrb[0].mxu0 %v5649
    %v5787 = vpop.f32.mrb[0].mxu0
    %v5788 = vadd.f32 0.0, %v5787
    %v5789 = vpop.f32.mrb[0].mxu0
    %5790 = vmatprep.mubr.f32.mxu0 0.0
    %5791 = vmatmul.mubr.f32.gmra.mrb[0].mxu0 %v5652
    %v5792 = vpop.f32.mrb[0].mxu0
    %v5793 = vadd.f32 0.0, %v5792
    %v5794 = vpop.f32.mrb[0].mxu0
    %5795 = vmatprep.mubr.f32.mxu0 0.0
    %5796 = vmatmul.mubr.f32.gmra.mrb[0].mxu0 %v5655
    %v5797 = vpop.f32.mrb[0].mxu0
    %v5798 = vadd.f32 0.0, %v5797
    %v5799 = vpop.f32.mrb[0].mxu0
    %5800 = vmatprep.mubr.f32.mxu0 0.0
    %5801 = vmatmul.mubr.f32.gmra.mrb[0].mxu0 %v5658
    %v5802 = vpop.f32.mrb[0].mxu0
    %v5803 = vadd.f32 0.0, %v5802
    %v5804 = vpop.f32.mrb[0].mxu0
    %5805 = vmatprep.mubr.f32.mxu0 0.0
    %5806 = vmatmul.mubr.f32.gmra.mrb[0].mxu0 %v5661
    %v5807 = vpop.f32.mrb[0].mxu0
    %v5808 = vadd.f32 0.0, %v5807
    %v5809 = vpop.f32.mrb[0].mxu0
    %5810 = vdwg.mxu0
    %v5811 = vadd.f32 %v5581, %v5733
    %v5812 = vadd.f32 %v5582, %v5738
    %v5813 = vadd.f32 %v5583, %v5743
    %v5814 = vadd.f32 %v5584, %v5748
    %v5815 = vadd.f32 %v5585, %v5753
    %v5816 = vadd.f32 %v5586, %v5758
    %v5817 = vadd.f32 %v5587, %v5763
    %v5818 = vadd.f32 %v5588, %v5768
    %v5819 = vadd.f32 %v5589, %v5773
    %v5820 = vadd.f32 %v5590, %v5778
    %v5821 = vadd.f32 %v5591, %v5783
    %v5822 = vadd.f32 %v5592, %v5788
    %v5823 = vadd.f32 %v5593, %v5793
    %v5824 = vadd.f32 %v5594, %v5798
    %v5825 = vadd.f32 %v5595, %v5803
    %v5826 = vadd.f32 %v5596, %v5808
    %v5827 = vld [vmem:[#allocation2 + $0x21] sm:$0xff]
    %v5828 = vld [vmem:[#allocation2 + $0x29] sm:$0xff]
    %v5829 = vld [vmem:[#allocation2 + $0x31] sm:$0xff]
    %v5830 = vld [vmem:[#allocation2 + $0x39] sm:$0xff]
    %v5831 = vld [vmem:[#allocation2 + $0x41] sm:$0xff]
    %v5832 = vld [vmem:[#allocation2 + $0x49] sm:$0xff]
    %v5833 = vld [vmem:[#allocation2 + $0x51] sm:$0xff]
    %v5834 = vld [vmem:[#allocation2 + $0x59] sm:$0xff]
    %v5835 = vld [vmem:[#allocation2 + $0x61] sm:$0xff]
    %v5836 = vld [vmem:[#allocation2 + $0x69] sm:$0xff]
    %v5837 = vld [vmem:[#allocation2 + $0x71] sm:$0xff]
    %v5838 = vld [vmem:[#allocation2 + $0x79] sm:$0xff]
    %v5839 = vld [vmem:[#allocation2 + $0x81] sm:$0xff]
    %v5840 = vld [vmem:[#allocation2 + $0x89] sm:$0xff]
    %v5841 = vld [vmem:[#allocation2 + $0x91] sm:$0xff]
    %v5842 = vld [vmem:[#allocation2 + $0x99] sm:$0xff]
    %s5843 = scalar_lea.vmem %s3, 168
    %v5844 = vld [vmem:[%s5843] sm:$0x3f]
    %v5846 = vsel %vm1006, %v5827, 0
    %v5849 = vsel %vm1006, %v5828, 0
    %v5852 = vsel %vm1006, %v5829, 0
    %v5855 = vsel %vm1006, %v5830, 0
    %v5858 = vsel %vm1006, %v5831, 0
    %v5861 = vsel %vm1006, %v5832, 0
    %v5864 = vsel %vm1006, %v5833, 0
    %v5867 = vsel %vm1006, %v5834, 0
    %v5870 = vsel %vm1006, %v5835, 0
    %v5873 = vsel %vm1006, %v5836, 0
    %v5876 = vsel %vm1006, %v5837, 0
    %v5879 = vsel %vm1006, %v5838, 0
    %v5882 = vsel %vm1006, %v5839, 0
    %v5885 = vsel %vm1006, %v5840, 0
    %v5888 = vsel %vm1006, %v5841, 0
    %v5891 = vsel %vm1006, %v5842, 0
    %v5894 = vsel %vm1112, %v5844, 0
    %5896 = vmatprep.subr.mxu0 0.0
    %5897 = vmatpush1.msra.mxu0 %v5894
    %5898 = vmatprep.subr.mxu0 0.0
    %5899 = vmatpush1.msra.mxu0 0.0
    %5900 = vmatprep.subr.mxu0 0.0
    %5901 = vmatpush1.msra.mxu0 0.0
    %5902 = vmatprep.subr.mxu0 0.0
    %5903 = vmatpush1.msra.mxu0 0.0
    %5904 = vmatprep.subr.mxu0 0.0
    %5905 = vmatpush1.msra.mxu0 0.0
    %5906 = vmatprep.subr.mxu0 0.0
    %5907 = vmatpush1.msra.mxu0 0.0
    %5908 = vmatprep.subr.mxu0 0.0
    %5909 = vmatpush1.msra.mxu0 0.0
    %5910 = vmatprep.subr.mxu0 0.0
    %5911 = vmatpush1.msra.mxu0 0.0
    %5912 = vmatprep.subr.mxu0 0.0
    %5913 = vmatpush1.msra.mxu0 0.0
    %5914 = vmatprep.subr.mxu0 0.0
    %5915 = vmatpush1.msra.mxu0 0.0
    %5916 = vmatprep.subr.mxu0 0.0
    %5917 = vmatpush1.msra.mxu0 0.0
    %5918 = vmatprep.subr.mxu0 0.0
    %5919 = vmatpush1.msra.mxu0 0.0
    %5920 = vmatprep.subr.mxu0 0.0
    %5921 = vmatpush1.msra.mxu0 0.0
    %5922 = vmatprep.subr.mxu0 0.0
    %5923 = vmatpush1.msra.mxu0 0.0
    %5924 = vmatprep.subr.mxu0 0.0
    %5925 = vmatpush1.msra.mxu0 0.0
    %5926 = vmatprep.subr.mxu0 0.0
    %5927 = vmatpush1.msra.mxu0 0.0
    %5928 = vmatprep.subr.mxu0 0.0
    %5929 = vmatpush1.msra.mxu0 0.0
    %5930 = vmatprep.subr.mxu0 0.0
    %5931 = vmatpush1.msra.mxu0 0.0
    %5932 = vmatprep.subr.mxu0 0.0
    %5933 = vmatpush1.msra.mxu0 0.0
    %5934 = vmatprep.subr.mxu0 0.0
    %5935 = vmatpush1.msra.mxu0 0.0
    %5936 = vmatprep.subr.mxu0 0.0
    %5937 = vmatpush1.msra.mxu0 0.0
    %5938 = vmatprep.subr.mxu0 0.0
    %5939 = vmatpush1.msra.mxu0 0.0
    %5940 = vmatprep.subr.mxu0 0.0
    %5941 = vmatpush1.msra.mxu0 0.0
    %5942 = vmatprep.subr.mxu0 0.0
    %5943 = vmatpush1.msra.mxu0 0.0
    %5944 = vmatprep.subr.mxu0 0.0
    %5945 = vmatpush1.msra.mxu0 0.0
    %5946 = vmatprep.subr.mxu0 0.0
    %5947 = vmatpush1.msra.mxu0 0.0
    %5948 = vmatprep.subr.mxu0 0.0
    %5949 = vmatpush1.msra.mxu0 0.0
    %5950 = vmatprep.subr.mxu0 0.0
    %5951 = vmatpush1.msra.mxu0 0.0
    %5952 = vmatprep.subr.mxu0 0.0
    %5953 = vmatpush1.msra.mxu0 0.0
    %5954 = vmatprep.subr.mxu0 0.0
    %5955 = vmatpush1.msra.mxu0 0.0
    %5956 = vmatprep.subr.mxu0 0.0
    %5957 = vmatpush1.msra.mxu0 0.0
    %5958 = vmatprep.subr.mxu0 0.0
    %5959 = vmatpush1.msra.mxu0 0.0
    %5960 = vmatprep.mubr.f32.mxu0 0.0
    %5961 = vmatmul.mubr.f32.gmra.mrb[0].mxu0 %v5846
    %v5962 = vpop.f32.mrb[0].mxu0
    %v5963 = vadd.f32 0.0, %v5962
    %v5964 = vpop.f32.mrb[0].mxu0
    %5965 = vmatprep.mubr.f32.mxu0 0.0
    %5966 = vmatmul.mubr.f32.gmra.mrb[0].mxu0 %v5849
    %v5967 = vpop.f32.mrb[0].mxu0
    %v5968 = vadd.f32 0.0, %v5967
    %v5969 = vpop.f32.mrb[0].mxu0
    %5970 = vmatprep.mubr.f32.mxu0 0.0
    %5971 = vmatmul.mubr.f32.gmra.mrb[0].mxu0 %v5852
    %v5972 = vpop.f32.mrb[0].mxu0
    %v5973 = vadd.f32 0.0, %v5972
    %v5974 = vpop.f32.mrb[0].mxu0
    %5975 = vmatprep.mubr.f32.mxu0 0.0
    %5976 = vmatmul.mubr.f32.gmra.mrb[0].mxu0 %v5855
    %v5977 = vpop.f32.mrb[0].mxu0
    %v5978 = vadd.f32 0.0, %v5977
    %v5979 = vpop.f32.mrb[0].mxu0
    %5980 = vmatprep.mubr.f32.mxu0 0.0
    %5981 = vmatmul.mubr.f32.gmra.mrb[0].mxu0 %v5858
    %v5982 = vpop.f32.mrb[0].mxu0
    %v5983 = vadd.f32 0.0, %v5982
    %v5984 = vpop.f32.mrb[0].mxu0
    %5985 = vmatprep.mubr.f32.mxu0 0.0
    %5986 = vmatmul.mubr.f32.gmra.mrb[0].mxu0 %v5861
    %v5987 = vpop.f32.mrb[0].mxu0
    %v5988 = vadd.f32 0.0, %v5987
    %v5989 = vpop.f32.mrb[0].mxu0
    %5990 = vmatprep.mubr.f32.mxu0 0.0
    %5991 = vmatmul.mubr.f32.gmra.mrb[0].mxu0 %v5864
    %v5992 = vpop.f32.mrb[0].mxu0
    %v5993 = vadd.f32 0.0, %v5992
    %v5994 = vpop.f32.mrb[0].mxu0
    %5995 = vmatprep.mubr.f32.mxu0 0.0
    %5996 = vmatmul.mubr.f32.gmra.mrb[0].mxu0 %v5867
    %v5997 = vpop.f32.mrb[0].mxu0
    %v5998 = vadd.f32 0.0, %v5997
    %v5999 = vpop.f32.mrb[0].mxu0
    %6000 = vmatprep.mubr.f32.mxu0 0.0
    %6001 = vmatmul.mubr.f32.gmra.mrb[0].mxu0 %v5870
    %v6002 = vpop.f32.mrb[0].mxu0
    %v6003 = vadd.f32 0.0, %v6002
    %v6004 = vpop.f32.mrb[0].mxu0
    %6005 = vmatprep.mubr.f32.mxu0 0.0
    %6006 = vmatmul.mubr.f32.gmra.mrb[0].mxu0 %v5873
    %v6007 = vpop.f32.mrb[0].mxu0
    %v6008 = vadd.f32 0.0, %v6007
    %v6009 = vpop.f32.mrb[0].mxu0
    %6010 = vmatprep.mubr.f32.mxu0 0.0
    %6011 = vmatmul.mubr.f32.gmra.mrb[0].mxu0 %v5876
    %v6012 = vpop.f32.mrb[0].mxu0
    %v6013 = vadd.f32 0.0, %v6012
    %v6014 = vpop.f32.mrb[0].mxu0
    %6015 = vmatprep.mubr.f32.mxu0 0.0
    %6016 = vmatmul.mubr.f32.gmra.mrb[0].mxu0 %v5879
    %v6017 = vpop.f32.mrb[0].mxu0
    %v6018 = vadd.f32 0.0, %v6017
    %v6019 = vpop.f32.mrb[0].mxu0
    %6020 = vmatprep.mubr.f32.mxu0 0.0
    %6021 = vmatmul.mubr.f32.gmra.mrb[0].mxu0 %v5882
    %v6022 = vpop.f32.mrb[0].mxu0
    %v6023 = vadd.f32 0.0, %v6022
    %v6024 = vpop.f32.mrb[0].mxu0
    %6025 = vmatprep.mubr.f32.mxu0 0.0
    %6026 = vmatmul.mubr.f32.gmra.mrb[0].mxu0 %v5885
    %v6027 = vpop.f32.mrb[0].mxu0
    %v6028 = vadd.f32 0.0, %v6027
    %v6029 = vpop.f32.mrb[0].mxu0
    %6030 = vmatprep.mubr.f32.mxu0 0.0
    %6031 = vmatmul.mubr.f32.gmra.mrb[0].mxu0 %v5888
    %v6032 = vpop.f32.mrb[0].mxu0
    %v6033 = vadd.f32 0.0, %v6032
    %v6034 = vpop.f32.mrb[0].mxu0
    %6035 = vmatprep.mubr.f32.mxu0 0.0
    %6036 = vmatmul.mubr.f32.gmra.mrb[0].mxu0 %v5891
    %v6037 = vpop.f32.mrb[0].mxu0
    %v6038 = vadd.f32 0.0, %v6037
    %v6039 = vpop.f32.mrb[0].mxu0
    %6040 = vdwg.mxu0
    %v6041 = vadd.f32 %v5811, %v5963
    %v6042 = vadd.f32 %v5812, %v5968
    %v6043 = vadd.f32 %v5813, %v5973
    %v6044 = vadd.f32 %v5814, %v5978
    %v6045 = vadd.f32 %v5815, %v5983
    %v6046 = vadd.f32 %v5816, %v5988
    %v6047 = vadd.f32 %v5817, %v5993
    %v6048 = vadd.f32 %v5818, %v5998
    %v6049 = vadd.f32 %v5819, %v6003
    %v6050 = vadd.f32 %v5820, %v6008
    %v6051 = vadd.f32 %v5821, %v6013
    %v6052 = vadd.f32 %v5822, %v6018
    %v6053 = vadd.f32 %v5823, %v6023
    %v6054 = vadd.f32 %v5824, %v6028
    %v6055 = vadd.f32 %v5825, %v6033
    %v6056 = vadd.f32 %v5826, %v6038
    %v6057 = vld [vmem:[#allocation2 + $0x22] sm:$0xff]
    %v6058 = vld [vmem:[#allocation2 + $0x2a] sm:$0xff]
    %v6059 = vld [vmem:[#allocation2 + $0x32] sm:$0xff]
    %v6060 = vld [vmem:[#allocation2 + $0x3a] sm:$0xff]
    %v6061 = vld [vmem:[#allocation2 + $0x42] sm:$0xff]
    %v6062 = vld [vmem:[#allocation2 + $0x4a] sm:$0xff]
    %v6063 = vld [vmem:[#allocation2 + $0x52] sm:$0xff]
    %v6064 = vld [vmem:[#allocation2 + $0x5a] sm:$0xff]
    %v6065 = vld [vmem:[#allocation2 + $0x62] sm:$0xff]
    %v6066 = vld [vmem:[#allocation2 + $0x6a] sm:$0xff]
    %v6067 = vld [vmem:[#allocation2 + $0x72] sm:$0xff]
    %v6068 = vld [vmem:[#allocation2 + $0x7a] sm:$0xff]
    %v6069 = vld [vmem:[#allocation2 + $0x82] sm:$0xff]
    %v6070 = vld [vmem:[#allocation2 + $0x8a] sm:$0xff]
    %v6071 = vld [vmem:[#allocation2 + $0x92] sm:$0xff]
    %v6072 = vld [vmem:[#allocation2 + $0x9a] sm:$0xff]
    %s6073 = scalar_lea.vmem %s3, 176
    %v6074 = vld [vmem:[%s6073] sm:$0x3f]
    %v6076 = vsel %vm1006, %v6057, 0
    %v6079 = vsel %vm1006, %v6058, 0
    %v6082 = vsel %vm1006, %v6059, 0
    %v6085 = vsel %vm1006, %v6060, 0
    %v6088 = vsel %vm1006, %v6061, 0
    %v6091 = vsel %vm1006, %v6062, 0
    %v6094 = vsel %vm1006, %v6063, 0
    %v6097 = vsel %vm1006, %v6064, 0
    %v6100 = vsel %vm1006, %v6065, 0
    %v6103 = vsel %vm1006, %v6066, 0
    %v6106 = vsel %vm1006, %v6067, 0
    %v6109 = vsel %vm1006, %v6068, 0
    %v6112 = vsel %vm1006, %v6069, 0
    %v6115 = vsel %vm1006, %v6070, 0
    %v6118 = vsel %vm1006, %v6071, 0
    %v6121 = vsel %vm1006, %v6072, 0
    %v6124 = vsel %vm1112, %v6074, 0
    %6126 = vmatprep.subr.mxu0 0.0
    %6127 = vmatpush1.msra.mxu0 %v6124
    %6128 = vmatprep.subr.mxu0 0.0
    %6129 = vmatpush1.msra.mxu0 0.0
    %6130 = vmatprep.subr.mxu0 0.0
    %6131 = vmatpush1.msra.mxu0 0.0
    %6132 = vmatprep.subr.mxu0 0.0
    %6133 = vmatpush1.msra.mxu0 0.0
    %6134 = vmatprep.subr.mxu0 0.0
    %6135 = vmatpush1.msra.mxu0 0.0
    %6136 = vmatprep.subr.mxu0 0.0
    %6137 = vmatpush1.msra.mxu0 0.0
    %6138 = vmatprep.subr.mxu0 0.0
    %6139 = vmatpush1.msra.mxu0 0.0
    %6140 = vmatprep.subr.mxu0 0.0
    %6141 = vmatpush1.msra.mxu0 0.0
    %6142 = vmatprep.subr.mxu0 0.0
    %6143 = vmatpush1.msra.mxu0 0.0
    %6144 = vmatprep.subr.mxu0 0.0
    %6145 = vmatpush1.msra.mxu0 0.0
    %6146 = vmatprep.subr.mxu0 0.0
    %6147 = vmatpush1.msra.mxu0 0.0
    %6148 = vmatprep.subr.mxu0 0.0
    %6149 = vmatpush1.msra.mxu0 0.0
    %6150 = vmatprep.subr.mxu0 0.0
    %6151 = vmatpush1.msra.mxu0 0.0
    %6152 = vmatprep.subr.mxu0 0.0
    %6153 = vmatpush1.msra.mxu0 0.0
    %6154 = vmatprep.subr.mxu0 0.0
    %6155 = vmatpush1.msra.mxu0 0.0
    %6156 = vmatprep.subr.mxu0 0.0
    %6157 = vmatpush1.msra.mxu0 0.0
    %6158 = vmatprep.subr.mxu0 0.0
    %6159 = vmatpush1.msra.mxu0 0.0
    %6160 = vmatprep.subr.mxu0 0.0
    %6161 = vmatpush1.msra.mxu0 0.0
    %6162 = vmatprep.subr.mxu0 0.0
    %6163 = vmatpush1.msra.mxu0 0.0
    %6164 = vmatprep.subr.mxu0 0.0
    %6165 = vmatpush1.msra.mxu0 0.0
    %6166 = vmatprep.subr.mxu0 0.0
    %6167 = vmatpush1.msra.mxu0 0.0
    %6168 = vmatprep.subr.mxu0 0.0
    %6169 = vmatpush1.msra.mxu0 0.0
    %6170 = vmatprep.subr.mxu0 0.0
    %6171 = vmatpush1.msra.mxu0 0.0
    %6172 = vmatprep.subr.mxu0 0.0
    %6173 = vmatpush1.msra.mxu0 0.0
    %6174 = vmatprep.subr.mxu0 0.0
    %6175 = vmatpush1.msra.mxu0 0.0
    %6176 = vmatprep.subr.mxu0 0.0
    %6177 = vmatpush1.msra.mxu0 0.0
    %6178 = vmatprep.subr.mxu0 0.0
    %6179 = vmatpush1.msra.mxu0 0.0
    %6180 = vmatprep.subr.mxu0 0.0
    %6181 = vmatpush1.msra.mxu0 0.0
    %6182 = vmatprep.subr.mxu0 0.0
    %6183 = vmatpush1.msra.mxu0 0.0
    %6184 = vmatprep.subr.mxu0 0.0
    %6185 = vmatpush1.msra.mxu0 0.0
    %6186 = vmatprep.subr.mxu0 0.0
    %6187 = vmatpush1.msra.mxu0 0.0
    %6188 = vmatprep.subr.mxu0 0.0
    %6189 = vmatpush1.msra.mxu0 0.0
    %6190 = vmatprep.mubr.f32.mxu0 0.0
    %6191 = vmatmul.mubr.f32.gmra.mrb[0].mxu0 %v6076
    %v6192 = vpop.f32.mrb[0].mxu0
    %v6193 = vadd.f32 0.0, %v6192
    %v6194 = vpop.f32.mrb[0].mxu0
    %6195 = vmatprep.mubr.f32.mxu0 0.0
    %6196 = vmatmul.mubr.f32.gmra.mrb[0].mxu0 %v6079
    %v6197 = vpop.f32.mrb[0].mxu0
    %v6198 = vadd.f32 0.0, %v6197
    %v6199 = vpop.f32.mrb[0].mxu0
    %6200 = vmatprep.mubr.f32.mxu0 0.0
    %6201 = vmatmul.mubr.f32.gmra.mrb[0].mxu0 %v6082
    %v6202 = vpop.f32.mrb[0].mxu0
    %v6203 = vadd.f32 0.0, %v6202
    %v6204 = vpop.f32.mrb[0].mxu0
    %6205 = vmatprep.mubr.f32.mxu0 0.0
    %6206 = vmatmul.mubr.f32.gmra.mrb[0].mxu0 %v6085
    %v6207 = vpop.f32.mrb[0].mxu0
    %v6208 = vadd.f32 0.0, %v6207
    %v6209 = vpop.f32.mrb[0].mxu0
    %6210 = vmatprep.mubr.f32.mxu0 0.0
    %6211 = vmatmul.mubr.f32.gmra.mrb[0].mxu0 %v6088
    %v6212 = vpop.f32.mrb[0].mxu0
    %v6213 = vadd.f32 0.0, %v6212
    %v6214 = vpop.f32.mrb[0].mxu0
    %6215 = vmatprep.mubr.f32.mxu0 0.0
    %6216 = vmatmul.mubr.f32.gmra.mrb[0].mxu0 %v6091
    %v6217 = vpop.f32.mrb[0].mxu0
    %v6218 = vadd.f32 0.0, %v6217
    %v6219 = vpop.f32.mrb[0].mxu0
    %6220 = vmatprep.mubr.f32.mxu0 0.0
    %6221 = vmatmul.mubr.f32.gmra.mrb[0].mxu0 %v6094
    %v6222 = vpop.f32.mrb[0].mxu0
    %v6223 = vadd.f32 0.0, %v6222
    %v6224 = vpop.f32.mrb[0].mxu0
    %6225 = vmatprep.mubr.f32.mxu0 0.0
    %6226 = vmatmul.mubr.f32.gmra.mrb[0].mxu0 %v6097
    %v6227 = vpop.f32.mrb[0].mxu0
    %v6228 = vadd.f32 0.0, %v6227
    %v6229 = vpop.f32.mrb[0].mxu0
    %6230 = vmatprep.mubr.f32.mxu0 0.0
    %6231 = vmatmul.mubr.f32.gmra.mrb[0].mxu0 %v6100
    %v6232 = vpop.f32.mrb[0].mxu0
    %v6233 = vadd.f32 0.0, %v6232
    %v6234 = vpop.f32.mrb[0].mxu0
    %6235 = vmatprep.mubr.f32.mxu0 0.0
    %6236 = vmatmul.mubr.f32.gmra.mrb[0].mxu0 %v6103
    %v6237 = vpop.f32.mrb[0].mxu0
    %v6238 = vadd.f32 0.0, %v6237
    %v6239 = vpop.f32.mrb[0].mxu0
    %6240 = vmatprep.mubr.f32.mxu0 0.0
    %6241 = vmatmul.mubr.f32.gmra.mrb[0].mxu0 %v6106
    %v6242 = vpop.f32.mrb[0].mxu0
    %v6243 = vadd.f32 0.0, %v6242
    %v6244 = vpop.f32.mrb[0].mxu0
    %6245 = vmatprep.mubr.f32.mxu0 0.0
    %6246 = vmatmul.mubr.f32.gmra.mrb[0].mxu0 %v6109
    %v6247 = vpop.f32.mrb[0].mxu0
    %v6248 = vadd.f32 0.0, %v6247
    %v6249 = vpop.f32.mrb[0].mxu0
    %6250 = vmatprep.mubr.f32.mxu0 0.0
    %6251 = vmatmul.mubr.f32.gmra.mrb[0].mxu0 %v6112
    %v6252 = vpop.f32.mrb[0].mxu0
    %v6253 = vadd.f32 0.0, %v6252
    %v6254 = vpop.f32.mrb[0].mxu0
    %6255 = vmatprep.mubr.f32.mxu0 0.0
    %6256 = vmatmul.mubr.f32.gmra.mrb[0].mxu0 %v6115
    %v6257 = vpop.f32.mrb[0].mxu0
    %v6258 = vadd.f32 0.0, %v6257
    %v6259 = vpop.f32.mrb[0].mxu0
    %6260 = vmatprep.mubr.f32.mxu0 0.0
    %6261 = vmatmul.mubr.f32.gmra.mrb[0].mxu0 %v6118
    %v6262 = vpop.f32.mrb[0].mxu0
    %v6263 = vadd.f32 0.0, %v6262
    %v6264 = vpop.f32.mrb[0].mxu0
    %6265 = vmatprep.mubr.f32.mxu0 0.0
    %6266 = vmatmul.mubr.f32.gmra.mrb[0].mxu0 %v6121
    %v6267 = vpop.f32.mrb[0].mxu0
    %v6268 = vadd.f32 0.0, %v6267
    %v6269 = vpop.f32.mrb[0].mxu0
    %6270 = vdwg.mxu0
    %v6271 = vadd.f32 %v6041, %v6193
    %v6272 = vadd.f32 %v6042, %v6198
    %v6273 = vadd.f32 %v6043, %v6203
    %v6274 = vadd.f32 %v6044, %v6208
    %v6275 = vadd.f32 %v6045, %v6213
    %v6276 = vadd.f32 %v6046, %v6218
    %v6277 = vadd.f32 %v6047, %v6223
    %v6278 = vadd.f32 %v6048, %v6228
    %v6279 = vadd.f32 %v6049, %v6233
    %v6280 = vadd.f32 %v6050, %v6238
    %v6281 = vadd.f32 %v6051, %v6243
    %v6282 = vadd.f32 %v6052, %v6248
    %v6283 = vadd.f32 %v6053, %v6253
    %v6284 = vadd.f32 %v6054, %v6258
    %v6285 = vadd.f32 %v6055, %v6263
    %v6286 = vadd.f32 %v6056, %v6268
    %v6287 = vld [vmem:[#allocation2 + $0x23] sm:$0xff]
    %v6288 = vld [vmem:[#allocation2 + $0x2b] sm:$0xff]
    %v6289 = vld [vmem:[#allocation2 + $0x33] sm:$0xff]
    %v6290 = vld [vmem:[#allocation2 + $0x3b] sm:$0xff]
    %v6291 = vld [vmem:[#allocation2 + $0x43] sm:$0xff]
    %v6292 = vld [vmem:[#allocation2 + $0x4b] sm:$0xff]
    %v6293 = vld [vmem:[#allocation2 + $0x53] sm:$0xff]
    %v6294 = vld [vmem:[#allocation2 + $0x5b] sm:$0xff]
    %v6295 = vld [vmem:[#allocation2 + $0x63] sm:$0xff]
    %v6296 = vld [vmem:[#allocation2 + $0x6b] sm:$0xff]
    %v6297 = vld [vmem:[#allocation2 + $0x73] sm:$0xff]
    %v6298 = vld [vmem:[#allocation2 + $0x7b] sm:$0xff]
    %v6299 = vld [vmem:[#allocation2 + $0x83] sm:$0xff]
    %v6300 = vld [vmem:[#allocation2 + $0x8b] sm:$0xff]
    %v6301 = vld [vmem:[#allocation2 + $0x93] sm:$0xff]
    %v6302 = vld [vmem:[#allocation2 + $0x9b] sm:$0xff]
    %s6303 = scalar_lea.vmem %s3, 184
    %v6304 = vld [vmem:[%s6303] sm:$0x3f]
    %v6306 = vsel %vm1006, %v6287, 0
    %v6309 = vsel %vm1006, %v6288, 0
    %v6312 = vsel %vm1006, %v6289, 0
    %v6315 = vsel %vm1006, %v6290, 0
    %v6318 = vsel %vm1006, %v6291, 0
    %v6321 = vsel %vm1006, %v6292, 0
    %v6324 = vsel %vm1006, %v6293, 0
    %v6327 = vsel %vm1006, %v6294, 0
    %v6330 = vsel %vm1006, %v6295, 0
    %v6333 = vsel %vm1006, %v6296, 0
    %v6336 = vsel %vm1006, %v6297, 0
    %v6339 = vsel %vm1006, %v6298, 0
    %v6342 = vsel %vm1006, %v6299, 0
    %v6345 = vsel %vm1006, %v6300, 0
    %v6348 = vsel %vm1006, %v6301, 0
    %v6351 = vsel %vm1006, %v6302, 0
    %v6354 = vsel %vm1112, %v6304, 0
    %6356 = vmatprep.subr.mxu0 0.0
    %6357 = vmatpush1.msra.mxu0 %v6354
    %6358 = vmatprep.subr.mxu0 0.0
    %6359 = vmatpush1.msra.mxu0 0.0
    %6360 = vmatprep.subr.mxu0 0.0
    %6361 = vmatpush1.msra.mxu0 0.0
    %6362 = vmatprep.subr.mxu0 0.0
    %6363 = vmatpush1.msra.mxu0 0.0
    %6364 = vmatprep.subr.mxu0 0.0
    %6365 = vmatpush1.msra.mxu0 0.0
    %6366 = vmatprep.subr.mxu0 0.0
    %6367 = vmatpush1.msra.mxu0 0.0
    %6368 = vmatprep.subr.mxu0 0.0
    %6369 = vmatpush1.msra.mxu0 0.0
    %6370 = vmatprep.subr.mxu0 0.0
    %6371 = vmatpush1.msra.mxu0 0.0
    %6372 = vmatprep.subr.mxu0 0.0
    %6373 = vmatpush1.msra.mxu0 0.0
    %6374 = vmatprep.subr.mxu0 0.0
    %6375 = vmatpush1.msra.mxu0 0.0
    %6376 = vmatprep.subr.mxu0 0.0
    %6377 = vmatpush1.msra.mxu0 0.0
    %6378 = vmatprep.subr.mxu0 0.0
    %6379 = vmatpush1.msra.mxu0 0.0
    %6380 = vmatprep.subr.mxu0 0.0
    %6381 = vmatpush1.msra.mxu0 0.0
    %6382 = vmatprep.subr.mxu0 0.0
    %6383 = vmatpush1.msra.mxu0 0.0
    %6384 = vmatprep.subr.mxu0 0.0
    %6385 = vmatpush1.msra.mxu0 0.0
    %6386 = vmatprep.subr.mxu0 0.0
    %6387 = vmatpush1.msra.mxu0 0.0
    %6388 = vmatprep.subr.mxu0 0.0
    %6389 = vmatpush1.msra.mxu0 0.0
    %6390 = vmatprep.subr.mxu0 0.0
    %6391 = vmatpush1.msra.mxu0 0.0
    %6392 = vmatprep.subr.mxu0 0.0
    %6393 = vmatpush1.msra.mxu0 0.0
    %6394 = vmatprep.subr.mxu0 0.0
    %6395 = vmatpush1.msra.mxu0 0.0
    %6396 = vmatprep.subr.mxu0 0.0
    %6397 = vmatpush1.msra.mxu0 0.0
    %6398 = vmatprep.subr.mxu0 0.0
    %6399 = vmatpush1.msra.mxu0 0.0
    %6400 = vmatprep.subr.mxu0 0.0
    %6401 = vmatpush1.msra.mxu0 0.0
    %6402 = vmatprep.subr.mxu0 0.0
    %6403 = vmatpush1.msra.mxu0 0.0
    %6404 = vmatprep.subr.mxu0 0.0
    %6405 = vmatpush1.msra.mxu0 0.0
    %6406 = vmatprep.subr.mxu0 0.0
    %6407 = vmatpush1.msra.mxu0 0.0
    %6408 = vmatprep.subr.mxu0 0.0
    %6409 = vmatpush1.msra.mxu0 0.0
    %6410 = vmatprep.subr.mxu0 0.0
    %6411 = vmatpush1.msra.mxu0 0.0
    %6412 = vmatprep.subr.mxu0 0.0
    %6413 = vmatpush1.msra.mxu0 0.0
    %6414 = vmatprep.subr.mxu0 0.0
    %6415 = vmatpush1.msra.mxu0 0.0
    %6416 = vmatprep.subr.mxu0 0.0
    %6417 = vmatpush1.msra.mxu0 0.0
    %6418 = vmatprep.subr.mxu0 0.0
    %6419 = vmatpush1.msra.mxu0 0.0
    %6420 = vmatprep.mubr.f32.mxu0 0.0
    %6421 = vmatmul.mubr.f32.gmra.mrb[0].mxu0 %v6306
    %v6422 = vpop.f32.mrb[0].mxu0
    %v6423 = vadd.f32 0.0, %v6422
    %v6424 = vpop.f32.mrb[0].mxu0
    %6425 = vmatprep.mubr.f32.mxu0 0.0
    %6426 = vmatmul.mubr.f32.gmra.mrb[0].mxu0 %v6309
    %v6427 = vpop.f32.mrb[0].mxu0
    %v6428 = vadd.f32 0.0, %v6427
    %v6429 = vpop.f32.mrb[0].mxu0
    %6430 = vmatprep.mubr.f32.mxu0 0.0
    %6431 = vmatmul.mubr.f32.gmra.mrb[0].mxu0 %v6312
    %v6432 = vpop.f32.mrb[0].mxu0
    %v6433 = vadd.f32 0.0, %v6432
    %v6434 = vpop.f32.mrb[0].mxu0
    %6435 = vmatprep.mubr.f32.mxu0 0.0
    %6436 = vmatmul.mubr.f32.gmra.mrb[0].mxu0 %v6315
    %v6437 = vpop.f32.mrb[0].mxu0
    %v6438 = vadd.f32 0.0, %v6437
    %v6439 = vpop.f32.mrb[0].mxu0
    %6440 = vmatprep.mubr.f32.mxu0 0.0
    %6441 = vmatmul.mubr.f32.gmra.mrb[0].mxu0 %v6318
    %v6442 = vpop.f32.mrb[0].mxu0
    %v6443 = vadd.f32 0.0, %v6442
    %v6444 = vpop.f32.mrb[0].mxu0
    %6445 = vmatprep.mubr.f32.mxu0 0.0
    %6446 = vmatmul.mubr.f32.gmra.mrb[0].mxu0 %v6321
    %v6447 = vpop.f32.mrb[0].mxu0
    %v6448 = vadd.f32 0.0, %v6447
    %v6449 = vpop.f32.mrb[0].mxu0
    %6450 = vmatprep.mubr.f32.mxu0 0.0
    %6451 = vmatmul.mubr.f32.gmra.mrb[0].mxu0 %v6324
    %v6452 = vpop.f32.mrb[0].mxu0
    %v6453 = vadd.f32 0.0, %v6452
    %v6454 = vpop.f32.mrb[0].mxu0
    %6455 = vmatprep.mubr.f32.mxu0 0.0
    %6456 = vmatmul.mubr.f32.gmra.mrb[0].mxu0 %v6327
    %v6457 = vpop.f32.mrb[0].mxu0
    %v6458 = vadd.f32 0.0, %v6457
    %v6459 = vpop.f32.mrb[0].mxu0
    %6460 = vmatprep.mubr.f32.mxu0 0.0
    %6461 = vmatmul.mubr.f32.gmra.mrb[0].mxu0 %v6330
    %v6462 = vpop.f32.mrb[0].mxu0
    %v6463 = vadd.f32 0.0, %v6462
    %v6464 = vpop.f32.mrb[0].mxu0
    %6465 = vmatprep.mubr.f32.mxu0 0.0
    %6466 = vmatmul.mubr.f32.gmra.mrb[0].mxu0 %v6333
    %v6467 = vpop.f32.mrb[0].mxu0
    %v6468 = vadd.f32 0.0, %v6467
    %v6469 = vpop.f32.mrb[0].mxu0
    %6470 = vmatprep.mubr.f32.mxu0 0.0
    %6471 = vmatmul.mubr.f32.gmra.mrb[0].mxu0 %v6336
    %v6472 = vpop.f32.mrb[0].mxu0
    %v6473 = vadd.f32 0.0, %v6472
    %v6474 = vpop.f32.mrb[0].mxu0
    %6475 = vmatprep.mubr.f32.mxu0 0.0
    %6476 = vmatmul.mubr.f32.gmra.mrb[0].mxu0 %v6339
    %v6477 = vpop.f32.mrb[0].mxu0
    %v6478 = vadd.f32 0.0, %v6477
    %v6479 = vpop.f32.mrb[0].mxu0
    %6480 = vmatprep.mubr.f32.mxu0 0.0
    %6481 = vmatmul.mubr.f32.gmra.mrb[0].mxu0 %v6342
    %v6482 = vpop.f32.mrb[0].mxu0
    %v6483 = vadd.f32 0.0, %v6482
    %v6484 = vpop.f32.mrb[0].mxu0
    %6485 = vmatprep.mubr.f32.mxu0 0.0
    %6486 = vmatmul.mubr.f32.gmra.mrb[0].mxu0 %v6345
    %v6487 = vpop.f32.mrb[0].mxu0
    %v6488 = vadd.f32 0.0, %v6487
    %v6489 = vpop.f32.mrb[0].mxu0
    %6490 = vmatprep.mubr.f32.mxu0 0.0
    %6491 = vmatmul.mubr.f32.gmra.mrb[0].mxu0 %v6348
    %v6492 = vpop.f32.mrb[0].mxu0
    %v6493 = vadd.f32 0.0, %v6492
    %v6494 = vpop.f32.mrb[0].mxu0
    %6495 = vmatprep.mubr.f32.mxu0 0.0
    %6496 = vmatmul.mubr.f32.gmra.mrb[0].mxu0 %v6351
    %v6497 = vpop.f32.mrb[0].mxu0
    %v6498 = vadd.f32 0.0, %v6497
    %v6499 = vpop.f32.mrb[0].mxu0
    %6500 = vdwg.mxu0
    %v6501 = vadd.f32 %v6271, %v6423
    %v6502 = vadd.f32 %v6272, %v6428
    %v6503 = vadd.f32 %v6273, %v6433
    %v6504 = vadd.f32 %v6274, %v6438
    %v6505 = vadd.f32 %v6275, %v6443
    %v6506 = vadd.f32 %v6276, %v6448
    %v6507 = vadd.f32 %v6277, %v6453
    %v6508 = vadd.f32 %v6278, %v6458
    %v6509 = vadd.f32 %v6279, %v6463
    %v6510 = vadd.f32 %v6280, %v6468
    %v6511 = vadd.f32 %v6281, %v6473
    %v6512 = vadd.f32 %v6282, %v6478
    %v6513 = vadd.f32 %v6283, %v6483
    %v6514 = vadd.f32 %v6284, %v6488
    %v6515 = vadd.f32 %v6285, %v6493
    %v6516 = vadd.f32 %v6286, %v6498
    %v6517 = vld [vmem:[#allocation2 + $0x24] sm:$0xff]
    %v6518 = vld [vmem:[#allocation2 + $0x2c] sm:$0xff]
    %v6519 = vld [vmem:[#allocation2 + $0x34] sm:$0xff]
    %v6520 = vld [vmem:[#allocation2 + $0x3c] sm:$0xff]
    %v6521 = vld [vmem:[#allocation2 + $0x44] sm:$0xff]
    %v6522 = vld [vmem:[#allocation2 + $0x4c] sm:$0xff]
    %v6523 = vld [vmem:[#allocation2 + $0x54] sm:$0xff]
    %v6524 = vld [vmem:[#allocation2 + $0x5c] sm:$0xff]
    %v6525 = vld [vmem:[#allocation2 + $0x64] sm:$0xff]
    %v6526 = vld [vmem:[#allocation2 + $0x6c] sm:$0xff]
    %v6527 = vld [vmem:[#allocation2 + $0x74] sm:$0xff]
    %v6528 = vld [vmem:[#allocation2 + $0x7c] sm:$0xff]
    %v6529 = vld [vmem:[#allocation2 + $0x84] sm:$0xff]
    %v6530 = vld [vmem:[#allocation2 + $0x8c] sm:$0xff]
    %v6531 = vld [vmem:[#allocation2 + $0x94] sm:$0xff]
    %v6532 = vld [vmem:[#allocation2 + $0x9c] sm:$0xff]
    %s6533 = scalar_lea.vmem %s3, 192
    %v6534 = vld [vmem:[%s6533] sm:$0x3f]
    %v6536 = vsel %vm1006, %v6517, 0
    %v6539 = vsel %vm1006, %v6518, 0
    %v6542 = vsel %vm1006, %v6519, 0
    %v6545 = vsel %vm1006, %v6520, 0
    %v6548 = vsel %vm1006, %v6521, 0
    %v6551 = vsel %vm1006, %v6522, 0
    %v6554 = vsel %vm1006, %v6523, 0
    %v6557 = vsel %vm1006, %v6524, 0
    %v6560 = vsel %vm1006, %v6525, 0
    %v6563 = vsel %vm1006, %v6526, 0
    %v6566 = vsel %vm1006, %v6527, 0
    %v6569 = vsel %vm1006, %v6528, 0
    %v6572 = vsel %vm1006, %v6529, 0
    %v6575 = vsel %vm1006, %v6530, 0
    %v6578 = vsel %vm1006, %v6531, 0
    %v6581 = vsel %vm1006, %v6532, 0
    %v6584 = vsel %vm1112, %v6534, 0
    %6586 = vmatprep.subr.mxu0 0.0
    %6587 = vmatpush1.msra.mxu0 %v6584
    %6588 = vmatprep.subr.mxu0 0.0
    %6589 = vmatpush1.msra.mxu0 0.0
    %6590 = vmatprep.subr.mxu0 0.0
    %6591 = vmatpush1.msra.mxu0 0.0
    %6592 = vmatprep.subr.mxu0 0.0
    %6593 = vmatpush1.msra.mxu0 0.0
    %6594 = vmatprep.subr.mxu0 0.0
    %6595 = vmatpush1.msra.mxu0 0.0
    %6596 = vmatprep.subr.mxu0 0.0
    %6597 = vmatpush1.msra.mxu0 0.0
    %6598 = vmatprep.subr.mxu0 0.0
    %6599 = vmatpush1.msra.mxu0 0.0
    %6600 = vmatprep.subr.mxu0 0.0
    %6601 = vmatpush1.msra.mxu0 0.0
    %6602 = vmatprep.subr.mxu0 0.0
    %6603 = vmatpush1.msra.mxu0 0.0
    %6604 = vmatprep.subr.mxu0 0.0
    %6605 = vmatpush1.msra.mxu0 0.0
    %6606 = vmatprep.subr.mxu0 0.0
    %6607 = vmatpush1.msra.mxu0 0.0
    %6608 = vmatprep.subr.mxu0 0.0
    %6609 = vmatpush1.msra.mxu0 0.0
    %6610 = vmatprep.subr.mxu0 0.0
    %6611 = vmatpush1.msra.mxu0 0.0
    %6612 = vmatprep.subr.mxu0 0.0
    %6613 = vmatpush1.msra.mxu0 0.0
    %6614 = vmatprep.subr.mxu0 0.0
    %6615 = vmatpush1.msra.mxu0 0.0
    %6616 = vmatprep.subr.mxu0 0.0
    %6617 = vmatpush1.msra.mxu0 0.0
    %6618 = vmatprep.subr.mxu0 0.0
    %6619 = vmatpush1.msra.mxu0 0.0
    %6620 = vmatprep.subr.mxu0 0.0
    %6621 = vmatpush1.msra.mxu0 0.0
    %6622 = vmatprep.subr.mxu0 0.0
    %6623 = vmatpush1.msra.mxu0 0.0
    %6624 = vmatprep.subr.mxu0 0.0
    %6625 = vmatpush1.msra.mxu0 0.0
    %6626 = vmatprep.subr.mxu0 0.0
    %6627 = vmatpush1.msra.mxu0 0.0
    %6628 = vmatprep.subr.mxu0 0.0
    %6629 = vmatpush1.msra.mxu0 0.0
    %6630 = vmatprep.subr.mxu0 0.0
    %6631 = vmatpush1.msra.mxu0 0.0
    %6632 = vmatprep.subr.mxu0 0.0
    %6633 = vmatpush1.msra.mxu0 0.0
    %6634 = vmatprep.subr.mxu0 0.0
    %6635 = vmatpush1.msra.mxu0 0.0
    %6636 = vmatprep.subr.mxu0 0.0
    %6637 = vmatpush1.msra.mxu0 0.0
    %6638 = vmatprep.subr.mxu0 0.0
    %6639 = vmatpush1.msra.mxu0 0.0
    %6640 = vmatprep.subr.mxu0 0.0
    %6641 = vmatpush1.msra.mxu0 0.0
    %6642 = vmatprep.subr.mxu0 0.0
    %6643 = vmatpush1.msra.mxu0 0.0
    %6644 = vmatprep.subr.mxu0 0.0
    %6645 = vmatpush1.msra.mxu0 0.0
    %6646 = vmatprep.subr.mxu0 0.0
    %6647 = vmatpush1.msra.mxu0 0.0
    %6648 = vmatprep.subr.mxu0 0.0
    %6649 = vmatpush1.msra.mxu0 0.0
    %6650 = vmatprep.mubr.f32.mxu0 0.0
    %6651 = vmatmul.mubr.f32.gmra.mrb[0].mxu0 %v6536
    %v6652 = vpop.f32.mrb[0].mxu0
    %v6653 = vadd.f32 0.0, %v6652
    %v6654 = vpop.f32.mrb[0].mxu0
    %6655 = vmatprep.mubr.f32.mxu0 0.0
    %6656 = vmatmul.mubr.f32.gmra.mrb[0].mxu0 %v6539
    %v6657 = vpop.f32.mrb[0].mxu0
    %v6658 = vadd.f32 0.0, %v6657
    %v6659 = vpop.f32.mrb[0].mxu0
    %6660 = vmatprep.mubr.f32.mxu0 0.0
    %6661 = vmatmul.mubr.f32.gmra.mrb[0].mxu0 %v6542
    %v6662 = vpop.f32.mrb[0].mxu0
    %v6663 = vadd.f32 0.0, %v6662
    %v6664 = vpop.f32.mrb[0].mxu0
    %6665 = vmatprep.mubr.f32.mxu0 0.0
    %6666 = vmatmul.mubr.f32.gmra.mrb[0].mxu0 %v6545
    %v6667 = vpop.f32.mrb[0].mxu0
    %v6668 = vadd.f32 0.0, %v6667
    %v6669 = vpop.f32.mrb[0].mxu0
    %6670 = vmatprep.mubr.f32.mxu0 0.0
    %6671 = vmatmul.mubr.f32.gmra.mrb[0].mxu0 %v6548
    %v6672 = vpop.f32.mrb[0].mxu0
    %v6673 = vadd.f32 0.0, %v6672
    %v6674 = vpop.f32.mrb[0].mxu0
    %6675 = vmatprep.mubr.f32.mxu0 0.0
    %6676 = vmatmul.mubr.f32.gmra.mrb[0].mxu0 %v6551
    %v6677 = vpop.f32.mrb[0].mxu0
    %v6678 = vadd.f32 0.0, %v6677
    %v6679 = vpop.f32.mrb[0].mxu0
    %6680 = vmatprep.mubr.f32.mxu0 0.0
    %6681 = vmatmul.mubr.f32.gmra.mrb[0].mxu0 %v6554
    %v6682 = vpop.f32.mrb[0].mxu0
    %v6683 = vadd.f32 0.0, %v6682
    %v6684 = vpop.f32.mrb[0].mxu0
    %6685 = vmatprep.mubr.f32.mxu0 0.0
    %6686 = vmatmul.mubr.f32.gmra.mrb[0].mxu0 %v6557
    %v6687 = vpop.f32.mrb[0].mxu0
    %v6688 = vadd.f32 0.0, %v6687
    %v6689 = vpop.f32.mrb[0].mxu0
    %6690 = vmatprep.mubr.f32.mxu0 0.0
    %6691 = vmatmul.mubr.f32.gmra.mrb[0].mxu0 %v6560
    %v6692 = vpop.f32.mrb[0].mxu0
    %v6693 = vadd.f32 0.0, %v6692
    %v6694 = vpop.f32.mrb[0].mxu0
    %6695 = vmatprep.mubr.f32.mxu0 0.0
    %6696 = vmatmul.mubr.f32.gmra.mrb[0].mxu0 %v6563
    %v6697 = vpop.f32.mrb[0].mxu0
    %v6698 = vadd.f32 0.0, %v6697
    %v6699 = vpop.f32.mrb[0].mxu0
    %6700 = vmatprep.mubr.f32.mxu0 0.0
    %6701 = vmatmul.mubr.f32.gmra.mrb[0].mxu0 %v6566
    %v6702 = vpop.f32.mrb[0].mxu0
    %v6703 = vadd.f32 0.0, %v6702
    %v6704 = vpop.f32.mrb[0].mxu0
    %6705 = vmatprep.mubr.f32.mxu0 0.0
    %6706 = vmatmul.mubr.f32.gmra.mrb[0].mxu0 %v6569
    %v6707 = vpop.f32.mrb[0].mxu0
    %v6708 = vadd.f32 0.0, %v6707
    %v6709 = vpop.f32.mrb[0].mxu0
    %6710 = vmatprep.mubr.f32.mxu0 0.0
    %6711 = vmatmul.mubr.f32.gmra.mrb[0].mxu0 %v6572
    %v6712 = vpop.f32.mrb[0].mxu0
    %v6713 = vadd.f32 0.0, %v6712
    %v6714 = vpop.f32.mrb[0].mxu0
    %6715 = vmatprep.mubr.f32.mxu0 0.0
    %6716 = vmatmul.mubr.f32.gmra.mrb[0].mxu0 %v6575
    %v6717 = vpop.f32.mrb[0].mxu0
    %v6718 = vadd.f32 0.0, %v6717
    %v6719 = vpop.f32.mrb[0].mxu0
    %6720 = vmatprep.mubr.f32.mxu0 0.0
    %6721 = vmatmul.mubr.f32.gmra.mrb[0].mxu0 %v6578
    %v6722 = vpop.f32.mrb[0].mxu0
    %v6723 = vadd.f32 0.0, %v6722
    %v6724 = vpop.f32.mrb[0].mxu0
    %6725 = vmatprep.mubr.f32.mxu0 0.0
    %6726 = vmatmul.mubr.f32.gmra.mrb[0].mxu0 %v6581
    %v6727 = vpop.f32.mrb[0].mxu0
    %v6728 = vadd.f32 0.0, %v6727
    %v6729 = vpop.f32.mrb[0].mxu0
    %6730 = vdwg.mxu0
    %v6731 = vadd.f32 %v6501, %v6653
    %v6732 = vadd.f32 %v6502, %v6658
    %v6733 = vadd.f32 %v6503, %v6663
    %v6734 = vadd.f32 %v6504, %v6668
    %v6735 = vadd.f32 %v6505, %v6673
    %v6736 = vadd.f32 %v6506, %v6678
    %v6737 = vadd.f32 %v6507, %v6683
    %v6738 = vadd.f32 %v6508, %v6688
    %v6739 = vadd.f32 %v6509, %v6693
    %v6740 = vadd.f32 %v6510, %v6698
    %v6741 = vadd.f32 %v6511, %v6703
    %v6742 = vadd.f32 %v6512, %v6708
    %v6743 = vadd.f32 %v6513, %v6713
    %v6744 = vadd.f32 %v6514, %v6718
    %v6745 = vadd.f32 %v6515, %v6723
    %v6746 = vadd.f32 %v6516, %v6728
    %v6747 = vld [vmem:[%s4] sm:$0x1]
    %v6749 = vlaneseq
    %v6750 = vshrl.u32 %v6749, 7
    %v6751 = vsub.s32 0, %v6750
    %v6752 = vrot.slane %v6747, %v6751
    %v6754 = vadd.f32 %v6731, %v6752
    %v6755 = vadd.f32 %v6732, %v6752
    %v6756 = vadd.f32 %v6733, %v6752
    %v6757 = vadd.f32 %v6734, %v6752
    %v6758 = vadd.f32 %v6735, %v6752
    %v6759 = vadd.f32 %v6736, %v6752
    %v6760 = vadd.f32 %v6737, %v6752
    %v6761 = vadd.f32 %v6738, %v6752
    %v6762 = vadd.f32 %v6739, %v6752
    %v6763 = vadd.f32 %v6740, %v6752
    %v6764 = vadd.f32 %v6741, %v6752
    %v6765 = vadd.f32 %v6742, %v6752
    %v6766 = vadd.f32 %v6743, %v6752
    %v6767 = vadd.f32 %v6744, %v6752
    %v6768 = vadd.f32 %v6745, %v6752
    %v6769 = vadd.f32 %v6746, %v6752
    %v6770 = vmax.f32 %v6754, 0.0
    %v6771 = vmax.f32 %v6755, 0.0
    %v6772 = vmax.f32 %v6756, 0.0
    %v6773 = vmax.f32 %v6757, 0.0
    %v6774 = vmax.f32 %v6758, 0.0
    %v6775 = vmax.f32 %v6759, 0.0
    %v6776 = vmax.f32 %v6760, 0.0
    %v6777 = vmax.f32 %v6761, 0.0
    %v6778 = vmax.f32 %v6762, 0.0
    %v6779 = vmax.f32 %v6763, 0.0
    %v6780 = vmax.f32 %v6764, 0.0
    %v6781 = vmax.f32 %v6765, 0.0
    %v6782 = vmax.f32 %v6766, 0.0
    %v6783 = vmax.f32 %v6767, 0.0
    %v6784 = vmax.f32 %v6768, 0.0
    %v6785 = vmax.f32 %v6769, 0.0
    %vm6786 = vcmask 130048
    %6787 = vst.msk [vmem:[#allocation3] sm:$0xff] %vm6786, %v6770
    %6788 = vst.msk [vmem:[#allocation3 + $0x8] sm:$0xff] %vm6786, %v6771
    %6789 = vst.msk [vmem:[#allocation3 + $0x10] sm:$0xff] %vm6786, %v6772
    %6790 = vst.msk [vmem:[#allocation3 + $0x18] sm:$0xff] %vm6786, %v6773
    %6791 = vst.msk [vmem:[#allocation3 + $0x20] sm:$0xff] %vm6786, %v6774
    %6792 = vst.msk [vmem:[#allocation3 + $0x28] sm:$0xff] %vm6786, %v6775
    %6793 = vst.msk [vmem:[#allocation3 + $0x30] sm:$0xff] %vm6786, %v6776
    %6794 = vst.msk [vmem:[#allocation3 + $0x38] sm:$0xff] %vm6786, %v6777
    %6795 = vst.msk [vmem:[#allocation3 + $0x40] sm:$0xff] %vm6786, %v6778
    %6796 = vst.msk [vmem:[#allocation3 + $0x48] sm:$0xff] %vm6786, %v6779
    %6797 = vst.msk [vmem:[#allocation3 + $0x50] sm:$0xff] %vm6786, %v6780
    %6798 = vst.msk [vmem:[#allocation3 + $0x58] sm:$0xff] %vm6786, %v6781
    %6799 = vst.msk [vmem:[#allocation3 + $0x60] sm:$0xff] %vm6786, %v6782
    %6800 = vst.msk [vmem:[#allocation3 + $0x68] sm:$0xff] %vm6786, %v6783
    %6801 = vst.msk [vmem:[#allocation3 + $0x70] sm:$0xff] %vm6786, %v6784
    %6802 = vst.msk [vmem:[#allocation3 + $0x78] sm:$0xff] %vm6786, %v6785
    %6803 = vst.msk [vmem:[#allocation3 + $0x80] sm:$0xff] %vm6786, 0.0
    %vm6804 = vcmask 122880
    %6805 = vst.msk [vmem:[#allocation3 + $0x88] sm:$0x1] %vm6804, 0.0
    %v6806 = vld [vmem:[#allocation3] sm:$0xff]
    %v6807 = vld [vmem:[#allocation3 + $0x8] sm:$0xff]
    %v6808 = vld [vmem:[#allocation3 + $0x10] sm:$0xff]
    %v6809 = vld [vmem:[#allocation3 + $0x18] sm:$0xff]
    %v6810 = vld [vmem:[#allocation3 + $0x20] sm:$0xff]
    %v6811 = vld [vmem:[#allocation3 + $0x28] sm:$0xff]
    %v6812 = vld [vmem:[#allocation3 + $0x30] sm:$0xff]
    %v6813 = vld [vmem:[#allocation3 + $0x38] sm:$0xff]
    %v6814 = vld [vmem:[#allocation3 + $0x40] sm:$0xff]
    %v6815 = vld [vmem:[#allocation3 + $0x48] sm:$0xff]
    %v6816 = vld [vmem:[#allocation3 + $0x50] sm:$0xff]
    %v6817 = vld [vmem:[#allocation3 + $0x58] sm:$0xff]
    %v6818 = vld [vmem:[#allocation3 + $0x60] sm:$0xff]
    %v6819 = vld [vmem:[#allocation3 + $0x68] sm:$0xff]
    %v6820 = vld [vmem:[#allocation3 + $0x70] sm:$0xff]
    %v6821 = vld [vmem:[#allocation3 + $0x78] sm:$0xff]
    %v6822 = vld [vmem:[#allocation3 + $0x1] sm:$0xff]
    %v6823 = vld [vmem:[#allocation3 + $0x9] sm:$0xff]
    %v6824 = vld [vmem:[#allocation3 + $0x11] sm:$0xff]
    %v6825 = vld [vmem:[#allocation3 + $0x19] sm:$0xff]
    %v6826 = vld [vmem:[#allocation3 + $0x21] sm:$0xff]
    %v6827 = vld [vmem:[#allocation3 + $0x29] sm:$0xff]
    %v6828 = vld [vmem:[#allocation3 + $0x31] sm:$0xff]
    %v6829 = vld [vmem:[#allocation3 + $0x39] sm:$0xff]
    %v6830 = vld [vmem:[#allocation3 + $0x41] sm:$0xff]
    %v6831 = vld [vmem:[#allocation3 + $0x49] sm:$0xff]
    %v6832 = vld [vmem:[#allocation3 + $0x51] sm:$0xff]
    %v6833 = vld [vmem:[#allocation3 + $0x59] sm:$0xff]
    %v6834 = vld [vmem:[#allocation3 + $0x61] sm:$0xff]
    %v6835 = vld [vmem:[#allocation3 + $0x69] sm:$0xff]
    %v6836 = vld [vmem:[#allocation3 + $0x71] sm:$0xff]
    %v6837 = vld [vmem:[#allocation3 + $0x79] sm:$0xff]
    %v6838 = vmax.f32 %v6806, %v6822
    %v6839 = vmax.f32 %v6807, %v6823
    %v6840 = vmax.f32 %v6808, %v6824
    %v6841 = vmax.f32 %v6809, %v6825
    %v6842 = vmax.f32 %v6810, %v6826
    %v6843 = vmax.f32 %v6811, %v6827
    %v6844 = vmax.f32 %v6812, %v6828
    %v6845 = vmax.f32 %v6813, %v6829
    %v6846 = vmax.f32 %v6814, %v6830
    %v6847 = vmax.f32 %v6815, %v6831
    %v6848 = vmax.f32 %v6816, %v6832
    %v6849 = vmax.f32 %v6817, %v6833
    %v6850 = vmax.f32 %v6818, %v6834
    %v6851 = vmax.f32 %v6819, %v6835
    %v6852 = vmax.f32 %v6820, %v6836
    %v6853 = vmax.f32 %v6821, %v6837
    %v6854 = vld [vmem:[#allocation3 + $0x80] sm:$0xff]
    %v6855 = vld [vmem:[#allocation3 + $0x81] sm:$0xff]
    %v6856 = vmax.f32 %v6854, %v6855
    %v6857 = vmax.f32 %v6838, %v6839
    %v6858 = vmax.f32 %v6839, %v6840
    %v6859 = vmax.f32 %v6840, %v6841
    %v6860 = vmax.f32 %v6841, %v6842
    %v6861 = vmax.f32 %v6842, %v6843
    %v6862 = vmax.f32 %v6843, %v6844
    %v6863 = vmax.f32 %v6844, %v6845
    %v6864 = vmax.f32 %v6845, %v6846
    %v6865 = vmax.f32 %v6846, %v6847
    %v6866 = vmax.f32 %v6847, %v6848
    %v6867 = vmax.f32 %v6848, %v6849
    %v6868 = vmax.f32 %v6849, %v6850
    %v6869 = vmax.f32 %v6850, %v6851
    %v6870 = vmax.f32 %v6851, %v6852
    %v6871 = vmax.f32 %v6852, %v6853
    %v6872 = vmax.f32 %v6853, %v6856
    %v6873 = vlaneseq
    %v6874 = vand.u32 %v6873, 127
    %v6875 = vlaneseq
    %v6876 = vshrl.u32 %v6875, 7
    %v6877 = vmul.u32 %v6876, 64
    %vm6878 = vcmp.eq.s32.totalorder %v6874, %v6877
    %v6879 = vsel %vm6878, 1.0, 0.0
    %6880 = vmatprep.subr.mxu0 0.0
    %6881 = vmatpush1.msra.mxu0 %v6857
    %6882 = vmatprep.subr.mxu0 0.0
    %6883 = vmatpush1.msra.mxu0 %v6858
    %6884 = vmatprep.subr.mxu0 0.0
    %6885 = vmatpush1.msra.mxu0 %v6859
    %6886 = vmatprep.subr.mxu0 0.0
    %6887 = vmatpush1.msra.mxu0 %v6860
    %6888 = vmatprep.subr.mxu0 0.0
    %6889 = vmatpush1.msra.mxu0 %v6861
    %6890 = vmatprep.subr.mxu0 0.0
    %6891 = vmatpush1.msra.mxu0 %v6862
    %6892 = vmatprep.subr.mxu0 0.0
    %6893 = vmatpush1.msra.mxu0 %v6863
    %6894 = vmatprep.subr.mxu0 0.0
    %6895 = vmatpush1.msra.mxu0 %v6864
    %6896 = vmatprep.subr.mxu0 0.0
    %6897 = vmatpush1.msra.mxu0 %v6865
    %6898 = vmatprep.subr.mxu0 0.0
    %6899 = vmatpush1.msra.mxu0 %v6866
    %6900 = vmatprep.subr.mxu0 0.0
    %6901 = vmatpush1.msra.mxu0 %v6867
    %6902 = vmatprep.subr.mxu0 0.0
    %6903 = vmatpush1.msra.mxu0 %v6868
    %6904 = vmatprep.subr.mxu0 0.0
    %6905 = vmatpush1.msra.mxu0 %v6869
    %6906 = vmatprep.subr.mxu0 0.0
    %6907 = vmatpush1.msra.mxu0 %v6870
    %6908 = vmatprep.subr.mxu0 0.0
    %6909 = vmatpush1.msra.mxu0 %v6871
    %6910 = vmatprep.subr.mxu0 0.0
    %6911 = vmatpush1.msra.mxu0 %v6872
    %6912 = vmatprep.subr.mxu0 0.0
    %6913 = vmatpush1.msra.mxu0 0.0
    %6914 = vmatprep.subr.mxu0 0.0
    %6915 = vmatpush1.msra.mxu0 0.0
    %6916 = vmatprep.subr.mxu0 0.0
    %6917 = vmatpush1.msra.mxu0 0.0
    %6918 = vmatprep.subr.mxu0 0.0
    %6919 = vmatpush1.msra.mxu0 0.0
    %6920 = vmatprep.subr.mxu0 0.0
    %6921 = vmatpush1.msra.mxu0 0.0
    %6922 = vmatprep.subr.mxu0 0.0
    %6923 = vmatpush1.msra.mxu0 0.0
    %6924 = vmatprep.subr.mxu0 0.0
    %6925 = vmatpush1.msra.mxu0 0.0
    %6926 = vmatprep.subr.mxu0 0.0
    %6927 = vmatpush1.msra.mxu0 0.0
    %6928 = vmatprep.subr.mxu0 0.0
    %6929 = vmatpush1.msra.mxu0 0.0
    %6930 = vmatprep.subr.mxu0 0.0
    %6931 = vmatpush1.msra.mxu0 0.0
    %6932 = vmatprep.subr.mxu0 0.0
    %6933 = vmatpush1.msra.mxu0 0.0
    %6934 = vmatprep.subr.mxu0 0.0
    %6935 = vmatpush1.msra.mxu0 0.0
    %6936 = vmatprep.subr.mxu0 0.0
    %6937 = vmatpush1.msra.mxu0 0.0
    %6938 = vmatprep.subr.mxu0 0.0
    %6939 = vmatpush1.msra.mxu0 0.0
    %6940 = vmatprep.subr.mxu0 0.0
    %6941 = vmatpush1.msra.mxu0 0.0
    %6942 = vmatprep.subr.mxu0 0.0
    %6943 = vmatpush1.msra.mxu0 0.0
    %6944 = vmatprep.mubr.f32.mxu0 0.0
    %6945 = vmatmul.mubr.f32.gmra.mrb[0].mxu0 %v6879
    %v6946 = vpop.f32.mrb[0].mxu0
    %v6947 = vadd.f32 0.0, %v6946
    %v6948 = vpop.f32.mrb[0].mxu0
    %6949 = vdwg.mxu0
    %v6950 = vld [vmem:[%s5] sm:$0xff]
    %v6951 = vld [vmem:[%s5 + $0x8] sm:$0xff]
    %v6952 = vadd.s32 %v6877, 2
    %vm6953 = vcmp.eq.s32.totalorder %v6874, %v6952
    %v6954 = vsel %vm6953, 1.0, 0.0
    %6955 = vmatprep.subr.mxu0 0.0
    %6956 = vmatpush1.msra.mxu0 %v6857
    %6957 = vmatprep.subr.mxu0 0.0
    %6958 = vmatpush1.msra.mxu0 %v6858
    %6959 = vmatprep.subr.mxu0 0.0
    %6960 = vmatpush1.msra.mxu0 %v6859
    %6961 = vmatprep.subr.mxu0 0.0
    %6962 = vmatpush1.msra.mxu0 %v6860
    %6963 = vmatprep.subr.mxu0 0.0
    %6964 = vmatpush1.msra.mxu0 %v6861
    %6965 = vmatprep.subr.mxu0 0.0
    %6966 = vmatpush1.msra.mxu0 %v6862
    %6967 = vmatprep.subr.mxu0 0.0
    %6968 = vmatpush1.msra.mxu0 %v6863
    %6969 = vmatprep.subr.mxu0 0.0
    %6970 = vmatpush1.msra.mxu0 %v6864
    %6971 = vmatprep.subr.mxu0 0.0
    %6972 = vmatpush1.msra.mxu0 %v6865
    %6973 = vmatprep.subr.mxu0 0.0
    %6974 = vmatpush1.msra.mxu0 %v6866
    %6975 = vmatprep.subr.mxu0 0.0
    %6976 = vmatpush1.msra.mxu0 %v6867
    %6977 = vmatprep.subr.mxu0 0.0
    %6978 = vmatpush1.msra.mxu0 %v6868
    %6979 = vmatprep.subr.mxu0 0.0
    %6980 = vmatpush1.msra.mxu0 %v6869
    %6981 = vmatprep.subr.mxu0 0.0
    %6982 = vmatpush1.msra.mxu0 %v6870
    %6983 = vmatprep.subr.mxu0 0.0
    %6984 = vmatpush1.msra.mxu0 %v6871
    %6985 = vmatprep.subr.mxu0 0.0
    %6986 = vmatpush1.msra.mxu0 %v6872
    %6987 = vmatprep.subr.mxu0 0.0
    %6988 = vmatpush1.msra.mxu0 0.0
    %6989 = vmatprep.subr.mxu0 0.0
    %6990 = vmatpush1.msra.mxu0 0.0
    %6991 = vmatprep.subr.mxu0 0.0
    %6992 = vmatpush1.msra.mxu0 0.0
    %6993 = vmatprep.subr.mxu0 0.0
    %6994 = vmatpush1.msra.mxu0 0.0
    %6995 = vmatprep.subr.mxu0 0.0
    %6996 = vmatpush1.msra.mxu0 0.0
    %6997 = vmatprep.subr.mxu0 0.0
    %6998 = vmatpush1.msra.mxu0 0.0
    %6999 = vmatprep.subr.mxu0 0.0
    %7000 = vmatpush1.msra.mxu0 0.0
    %7001 = vmatprep.subr.mxu0 0.0
    %7002 = vmatpush1.msra.mxu0 0.0
    %7003 = vmatprep.subr.mxu0 0.0
    %7004 = vmatpush1.msra.mxu0 0.0
    %7005 = vmatprep.subr.mxu0 0.0
    %7006 = vmatpush1.msra.mxu0 0.0
    %7007 = vmatprep.subr.mxu0 0.0
    %7008 = vmatpush1.msra.mxu0 0.0
    %7009 = vmatprep.subr.mxu0 0.0
    %7010 = vmatpush1.msra.mxu0 0.0
    %7011 = vmatprep.subr.mxu0 0.0
    %7012 = vmatpush1.msra.mxu0 0.0
    %7013 = vmatprep.subr.mxu0 0.0
    %7014 = vmatpush1.msra.mxu0 0.0
    %7015 = vmatprep.subr.mxu0 0.0
    %7016 = vmatpush1.msra.mxu0 0.0
    %7017 = vmatprep.subr.mxu0 0.0
    %7018 = vmatpush1.msra.mxu0 0.0
    %7019 = vmatprep.mubr.f32.mxu0 0.0
    %7020 = vmatmul.mubr.f32.gmra.mrb[0].mxu0 %v6954
    %v7021 = vpop.f32.mrb[0].mxu0
    %v7022 = vadd.f32 0.0, %v7021
    %v7023 = vpop.f32.mrb[0].mxu0
    %7024 = vdwg.mxu0
    %s7025 = scalar_lea.vmem %s5, 16
    %v7026 = vld [vmem:[%s7025] sm:$0xff]
    %v7027 = vld [vmem:[%s7025 + $0x8] sm:$0xff]
    %v7029 = vsel %vm6786, %v7022, 0
    %7031 = vmatprep.subr.mxu0 0.0
    %7032 = vmatpush1.msra.mxu0 %v7026
    %7033 = vmatprep.subr.mxu0 0.0
    %7034 = vmatpush1.msra.mxu0 %v7027
    %7035 = vmatprep.subr.mxu0 0.0
    %7036 = vmatpush1.msra.mxu0 0.0
    %7037 = vmatprep.subr.mxu0 0.0
    %7038 = vmatpush1.msra.mxu0 0.0
    %7039 = vmatprep.subr.mxu0 0.0
    %7040 = vmatpush1.msra.mxu0 0.0
    %7041 = vmatprep.subr.mxu0 0.0
    %7042 = vmatpush1.msra.mxu0 0.0
    %7043 = vmatprep.subr.mxu0 0.0
    %7044 = vmatpush1.msra.mxu0 0.0
    %7045 = vmatprep.subr.mxu0 0.0
    %7046 = vmatpush1.msra.mxu0 0.0
    %7047 = vmatprep.subr.mxu0 0.0
    %7048 = vmatpush1.msra.mxu0 0.0
    %7049 = vmatprep.subr.mxu0 0.0
    %7050 = vmatpush1.msra.mxu0 0.0
    %7051 = vmatprep.subr.mxu0 0.0
    %7052 = vmatpush1.msra.mxu0 0.0
    %7053 = vmatprep.subr.mxu0 0.0
    %7054 = vmatpush1.msra.mxu0 0.0
    %7055 = vmatprep.subr.mxu0 0.0
    %7056 = vmatpush1.msra.mxu0 0.0
    %7057 = vmatprep.subr.mxu0 0.0
    %7058 = vmatpush1.msra.mxu0 0.0
    %7059 = vmatprep.subr.mxu0 0.0
    %7060 = vmatpush1.msra.mxu0 0.0
    %7061 = vmatprep.subr.mxu0 0.0
    %7062 = vmatpush1.msra.mxu0 0.0
    %7063 = vmatprep.subr.mxu0 0.0
    %7064 = vmatpush1.msra.mxu0 0.0
    %7065 = vmatprep.subr.mxu0 0.0
    %7066 = vmatpush1.msra.mxu0 0.0
    %7067 = vmatprep.subr.mxu0 0.0
    %7068 = vmatpush1.msra.mxu0 0.0
    %7069 = vmatprep.subr.mxu0 0.0
    %7070 = vmatpush1.msra.mxu0 0.0
    %7071 = vmatprep.subr.mxu0 0.0
    %7072 = vmatpush1.msra.mxu0 0.0
    %7073 = vmatprep.subr.mxu0 0.0
    %7074 = vmatpush1.msra.mxu0 0.0
    %7075 = vmatprep.subr.mxu0 0.0
    %7076 = vmatpush1.msra.mxu0 0.0
    %7077 = vmatprep.subr.mxu0 0.0
    %7078 = vmatpush1.msra.mxu0 0.0
    %7079 = vmatprep.subr.mxu0 0.0
    %7080 = vmatpush1.msra.mxu0 0.0
    %7081 = vmatprep.subr.mxu0 0.0
    %7082 = vmatpush1.msra.mxu0 0.0
    %7083 = vmatprep.subr.mxu0 0.0
    %7084 = vmatpush1.msra.mxu0 0.0
    %7085 = vmatprep.subr.mxu0 0.0
    %7086 = vmatpush1.msra.mxu0 0.0
    %7087 = vmatprep.subr.mxu0 0.0
    %7088 = vmatpush1.msra.mxu0 0.0
    %7089 = vmatprep.subr.mxu0 0.0
    %7090 = vmatpush1.msra.mxu0 0.0
    %7091 = vmatprep.subr.mxu0 0.0
    %7092 = vmatpush1.msra.mxu0 0.0
    %7093 = vmatprep.subr.mxu0 0.0
    %7094 = vmatpush1.msra.mxu0 0.0
    %7095 = vmatprep.mubr.f32.mxu0 0.0
    %7096 = vmatmul.mubr.f32.gmra.mrb[0].mxu0 %v7029
    %v7097 = vpop.f32.mrb[0].mxu0
    %v7098 = vadd.f32 0.0, %v7097
    %v7099 = vpop.f32.mrb[0].mxu0
    %7100 = vdwg.mxu0
    %v7102 = vsel %vm6786, %v6947, 0
    %7104 = vmatprep.subr.mxu0 0.0
    %7105 = vmatpush1.msra.mxu0 %v6950
    %7106 = vmatprep.subr.mxu0 0.0
    %7107 = vmatpush1.msra.mxu0 %v6951
    %7108 = vmatprep.subr.mxu0 0.0
    %7109 = vmatpush1.msra.mxu0 0.0
    %7110 = vmatprep.subr.mxu0 0.0
    %7111 = vmatpush1.msra.mxu0 0.0
    %7112 = vmatprep.subr.mxu0 0.0
    %7113 = vmatpush1.msra.mxu0 0.0
    %7114 = vmatprep.subr.mxu0 0.0
    %7115 = vmatpush1.msra.mxu0 0.0
    %7116 = vmatprep.subr.mxu0 0.0
    %7117 = vmatpush1.msra.mxu0 0.0
    %7118 = vmatprep.subr.mxu0 0.0
    %7119 = vmatpush1.msra.mxu0 0.0
    %7120 = vmatprep.subr.mxu0 0.0
    %7121 = vmatpush1.msra.mxu0 0.0
    %7122 = vmatprep.subr.mxu0 0.0
    %7123 = vmatpush1.msra.mxu0 0.0
    %7124 = vmatprep.subr.mxu0 0.0
    %7125 = vmatpush1.msra.mxu0 0.0
    %7126 = vmatprep.subr.mxu0 0.0
    %7127 = vmatpush1.msra.mxu0 0.0
    %7128 = vmatprep.subr.mxu0 0.0
    %7129 = vmatpush1.msra.mxu0 0.0
    %7130 = vmatprep.subr.mxu0 0.0
    %7131 = vmatpush1.msra.mxu0 0.0
    %7132 = vmatprep.subr.mxu0 0.0
    %7133 = vmatpush1.msra.mxu0 0.0
    %7134 = vmatprep.subr.mxu0 0.0
    %7135 = vmatpush1.msra.mxu0 0.0
    %7136 = vmatprep.subr.mxu0 0.0
    %7137 = vmatpush1.msra.mxu0 0.0
    %7138 = vmatprep.subr.mxu0 0.0
    %7139 = vmatpush1.msra.mxu0 0.0
    %7140 = vmatprep.subr.mxu0 0.0
    %7141 = vmatpush1.msra.mxu0 0.0
    %7142 = vmatprep.subr.mxu0 0.0
    %7143 = vmatpush1.msra.mxu0 0.0
    %7144 = vmatprep.subr.mxu0 0.0
    %7145 = vmatpush1.msra.mxu0 0.0
    %7146 = vmatprep.subr.mxu0 0.0
    %7147 = vmatpush1.msra.mxu0 0.0
    %7148 = vmatprep.subr.mxu0 0.0
    %7149 = vmatpush1.msra.mxu0 0.0
    %7150 = vmatprep.subr.mxu0 0.0
    %7151 = vmatpush1.msra.mxu0 0.0
    %7152 = vmatprep.subr.mxu0 0.0
    %7153 = vmatpush1.msra.mxu0 0.0
    %7154 = vmatprep.subr.mxu0 0.0
    %7155 = vmatpush1.msra.mxu0 0.0
    %7156 = vmatprep.subr.mxu0 0.0
    %7157 = vmatpush1.msra.mxu0 0.0
    %7158 = vmatprep.subr.mxu0 0.0
    %7159 = vmatpush1.msra.mxu0 0.0
    %7160 = vmatprep.subr.mxu0 0.0
    %7161 = vmatpush1.msra.mxu0 0.0
    %7162 = vmatprep.subr.mxu0 0.0
    %7163 = vmatpush1.msra.mxu0 0.0
    %7164 = vmatprep.subr.mxu0 0.0
    %7165 = vmatpush1.msra.mxu0 0.0
    %7166 = vmatprep.subr.mxu0 0.0
    %7167 = vmatpush1.msra.mxu0 0.0
    %7168 = vmatprep.mubr.f32.mxu0 0.0
    %7169 = vmatmul.mubr.f32.gmra.mrb[0].mxu0 %v7102
    %v7170 = vpop.f32.mrb[0].mxu0
    %v7171 = vadd.f32 %v7098, %v7170
    %v7172 = vpop.f32.mrb[0].mxu0
    %7173 = vdwg.mxu0
    %v7174 = vadd.s32 %v6877, 16
    %vm7175 = vcmp.eq.s32.totalorder %v6874, %v7174
    %v7176 = vsel %vm7175, 1.0, 0.0
    %7177 = vmatprep.subr.mxu0 0.0
    %7178 = vmatpush1.msra.mxu0 %v6857
    %7179 = vmatprep.subr.mxu0 0.0
    %7180 = vmatpush1.msra.mxu0 %v6858
    %7181 = vmatprep.subr.mxu0 0.0
    %7182 = vmatpush1.msra.mxu0 %v6859
    %7183 = vmatprep.subr.mxu0 0.0
    %7184 = vmatpush1.msra.mxu0 %v6860
    %7185 = vmatprep.subr.mxu0 0.0
    %7186 = vmatpush1.msra.mxu0 %v6861
    %7187 = vmatprep.subr.mxu0 0.0
    %7188 = vmatpush1.msra.mxu0 %v6862
    %7189 = vmatprep.subr.mxu0 0.0
    %7190 = vmatpush1.msra.mxu0 %v6863
    %7191 = vmatprep.subr.mxu0 0.0
    %7192 = vmatpush1.msra.mxu0 %v6864
    %7193 = vmatprep.subr.mxu0 0.0
    %7194 = vmatpush1.msra.mxu0 %v6865
    %7195 = vmatprep.subr.mxu0 0.0
    %7196 = vmatpush1.msra.mxu0 %v6866
    %7197 = vmatprep.subr.mxu0 0.0
    %7198 = vmatpush1.msra.mxu0 %v6867
    %7199 = vmatprep.subr.mxu0 0.0
    %7200 = vmatpush1.msra.mxu0 %v6868
    %7201 = vmatprep.subr.mxu0 0.0
    %7202 = vmatpush1.msra.mxu0 %v6869
    %7203 = vmatprep.subr.mxu0 0.0
    %7204 = vmatpush1.msra.mxu0 %v6870
    %7205 = vmatprep.subr.mxu0 0.0
    %7206 = vmatpush1.msra.mxu0 %v6871
    %7207 = vmatprep.subr.mxu0 0.0
    %7208 = vmatpush1.msra.mxu0 %v6872
    %7209 = vmatprep.subr.mxu0 0.0
    %7210 = vmatpush1.msra.mxu0 0.0
    %7211 = vmatprep.subr.mxu0 0.0
    %7212 = vmatpush1.msra.mxu0 0.0
    %7213 = vmatprep.subr.mxu0 0.0
    %7214 = vmatpush1.msra.mxu0 0.0
    %7215 = vmatprep.subr.mxu0 0.0
    %7216 = vmatpush1.msra.mxu0 0.0
    %7217 = vmatprep.subr.mxu0 0.0
    %7218 = vmatpush1.msra.mxu0 0.0
    %7219 = vmatprep.subr.mxu0 0.0
    %7220 = vmatpush1.msra.mxu0 0.0
    %7221 = vmatprep.subr.mxu0 0.0
    %7222 = vmatpush1.msra.mxu0 0.0
    %7223 = vmatprep.subr.mxu0 0.0
    %7224 = vmatpush1.msra.mxu0 0.0
    %7225 = vmatprep.subr.mxu0 0.0
    %7226 = vmatpush1.msra.mxu0 0.0
    %7227 = vmatprep.subr.mxu0 0.0
    %7228 = vmatpush1.msra.mxu0 0.0
    %7229 = vmatprep.subr.mxu0 0.0
    %7230 = vmatpush1.msra.mxu0 0.0
    %7231 = vmatprep.subr.mxu0 0.0
    %7232 = vmatpush1.msra.mxu0 0.0
    %7233 = vmatprep.subr.mxu0 0.0
    %7234 = vmatpush1.msra.mxu0 0.0
    %7235 = vmatprep.subr.mxu0 0.0
    %7236 = vmatpush1.msra.mxu0 0.0
    %7237 = vmatprep.subr.mxu0 0.0
    %7238 = vmatpush1.msra.mxu0 0.0
    %7239 = vmatprep.subr.mxu0 0.0
    %7240 = vmatpush1.msra.mxu0 0.0
    %7241 = vmatprep.mubr.f32.mxu0 0.0
    %7242 = vmatmul.mubr.f32.gmra.mrb[0].mxu0 %v7176
    %v7243 = vpop.f32.mrb[0].mxu0
    %v7244 = vadd.f32 0.0, %v7243
    %v7245 = vpop.f32.mrb[0].mxu0
    %7246 = vdwg.mxu0
    %s7247 = scalar_lea.vmem %s5, 32
    %v7248 = vld [vmem:[%s7247] sm:$0xff]
    %v7249 = vld [vmem:[%s7247 + $0x8] sm:$0xff]
    %v7251 = vsel %vm6786, %v7244, 0
    %7253 = vmatprep.subr.mxu0 0.0
    %7254 = vmatpush1.msra.mxu0 %v7248
    %7255 = vmatprep.subr.mxu0 0.0
    %7256 = vmatpush1.msra.mxu0 %v7249
    %7257 = vmatprep.subr.mxu0 0.0
    %7258 = vmatpush1.msra.mxu0 0.0
    %7259 = vmatprep.subr.mxu0 0.0
    %7260 = vmatpush1.msra.mxu0 0.0
    %7261 = vmatprep.subr.mxu0 0.0
    %7262 = vmatpush1.msra.mxu0 0.0
    %7263 = vmatprep.subr.mxu0 0.0
    %7264 = vmatpush1.msra.mxu0 0.0
    %7265 = vmatprep.subr.mxu0 0.0
    %7266 = vmatpush1.msra.mxu0 0.0
    %7267 = vmatprep.subr.mxu0 0.0
    %7268 = vmatpush1.msra.mxu0 0.0
    %7269 = vmatprep.subr.mxu0 0.0
    %7270 = vmatpush1.msra.mxu0 0.0
    %7271 = vmatprep.subr.mxu0 0.0
    %7272 = vmatpush1.msra.mxu0 0.0
    %7273 = vmatprep.subr.mxu0 0.0
    %7274 = vmatpush1.msra.mxu0 0.0
    %7275 = vmatprep.subr.mxu0 0.0
    %7276 = vmatpush1.msra.mxu0 0.0
    %7277 = vmatprep.subr.mxu0 0.0
    %7278 = vmatpush1.msra.mxu0 0.0
    %7279 = vmatprep.subr.mxu0 0.0
    %7280 = vmatpush1.msra.mxu0 0.0
    %7281 = vmatprep.subr.mxu0 0.0
    %7282 = vmatpush1.msra.mxu0 0.0
    %7283 = vmatprep.subr.mxu0 0.0
    %7284 = vmatpush1.msra.mxu0 0.0
    %7285 = vmatprep.subr.mxu0 0.0
    %7286 = vmatpush1.msra.mxu0 0.0
    %7287 = vmatprep.subr.mxu0 0.0
    %7288 = vmatpush1.msra.mxu0 0.0
    %7289 = vmatprep.subr.mxu0 0.0
    %7290 = vmatpush1.msra.mxu0 0.0
    %7291 = vmatprep.subr.mxu0 0.0
    %7292 = vmatpush1.msra.mxu0 0.0
    %7293 = vmatprep.subr.mxu0 0.0
    %7294 = vmatpush1.msra.mxu0 0.0
    %7295 = vmatprep.subr.mxu0 0.0
    %7296 = vmatpush1.msra.mxu0 0.0
    %7297 = vmatprep.subr.mxu0 0.0
    %7298 = vmatpush1.msra.mxu0 0.0
    %7299 = vmatprep.subr.mxu0 0.0
    %7300 = vmatpush1.msra.mxu0 0.0
    %7301 = vmatprep.subr.mxu0 0.0
    %7302 = vmatpush1.msra.mxu0 0.0
    %7303 = vmatprep.subr.mxu0 0.0
    %7304 = vmatpush1.msra.mxu0 0.0
    %7305 = vmatprep.subr.mxu0 0.0
    %7306 = vmatpush1.msra.mxu0 0.0
    %7307 = vmatprep.subr.mxu0 0.0
    %7308 = vmatpush1.msra.mxu0 0.0
    %7309 = vmatprep.subr.mxu0 0.0
    %7310 = vmatpush1.msra.mxu0 0.0
    %7311 = vmatprep.subr.mxu0 0.0
    %7312 = vmatpush1.msra.mxu0 0.0
    %7313 = vmatprep.subr.mxu0 0.0
    %7314 = vmatpush1.msra.mxu0 0.0
    %7315 = vmatprep.subr.mxu0 0.0
    %7316 = vmatpush1.msra.mxu0 0.0
    %7317 = vmatprep.mubr.f32.mxu0 0.0
    %7318 = vmatmul.mubr.f32.gmra.mrb[0].mxu0 %v7251
    %v7319 = vpop.f32.mrb[0].mxu0
    %v7320 = vadd.f32 0.0, %v7319
    %v7321 = vpop.f32.mrb[0].mxu0
    %7322 = vdwg.mxu0
    %v7323 = vadd.f32 %v7171, %v7320
    %v7324 = vadd.s32 %v6877, 18
    %vm7325 = vcmp.eq.s32.totalorder %v6874, %v7324
    %v7326 = vsel %vm7325, 1.0, 0.0
    %7327 = vmatprep.subr.mxu0 0.0
    %7328 = vmatpush1.msra.mxu0 %v6857
    %7329 = vmatprep.subr.mxu0 0.0
    %7330 = vmatpush1.msra.mxu0 %v6858
    %7331 = vmatprep.subr.mxu0 0.0
    %7332 = vmatpush1.msra.mxu0 %v6859
    %7333 = vmatprep.subr.mxu0 0.0
    %7334 = vmatpush1.msra.mxu0 %v6860
    %7335 = vmatprep.subr.mxu0 0.0
    %7336 = vmatpush1.msra.mxu0 %v6861
    %7337 = vmatprep.subr.mxu0 0.0
    %7338 = vmatpush1.msra.mxu0 %v6862
    %7339 = vmatprep.subr.mxu0 0.0
    %7340 = vmatpush1.msra.mxu0 %v6863
    %7341 = vmatprep.subr.mxu0 0.0
    %7342 = vmatpush1.msra.mxu0 %v6864
    %7343 = vmatprep.subr.mxu0 0.0
    %7344 = vmatpush1.msra.mxu0 %v6865
    %7345 = vmatprep.subr.mxu0 0.0
    %7346 = vmatpush1.msra.mxu0 %v6866
    %7347 = vmatprep.subr.mxu0 0.0
    %7348 = vmatpush1.msra.mxu0 %v6867
    %7349 = vmatprep.subr.mxu0 0.0
    %7350 = vmatpush1.msra.mxu0 %v6868
    %7351 = vmatprep.subr.mxu0 0.0
    %7352 = vmatpush1.msra.mxu0 %v6869
    %7353 = vmatprep.subr.mxu0 0.0
    %7354 = vmatpush1.msra.mxu0 %v6870
    %7355 = vmatprep.subr.mxu0 0.0
    %7356 = vmatpush1.msra.mxu0 %v6871
    %7357 = vmatprep.subr.mxu0 0.0
    %7358 = vmatpush1.msra.mxu0 %v6872
    %7359 = vmatprep.subr.mxu0 0.0
    %7360 = vmatpush1.msra.mxu0 0.0
    %7361 = vmatprep.subr.mxu0 0.0
    %7362 = vmatpush1.msra.mxu0 0.0
    %7363 = vmatprep.subr.mxu0 0.0
    %7364 = vmatpush1.msra.mxu0 0.0
    %7365 = vmatprep.subr.mxu0 0.0
    %7366 = vmatpush1.msra.mxu0 0.0
    %7367 = vmatprep.subr.mxu0 0.0
    %7368 = vmatpush1.msra.mxu0 0.0
    %7369 = vmatprep.subr.mxu0 0.0
    %7370 = vmatpush1.msra.mxu0 0.0
    %7371 = vmatprep.subr.mxu0 0.0
    %7372 = vmatpush1.msra.mxu0 0.0
    %7373 = vmatprep.subr.mxu0 0.0
    %7374 = vmatpush1.msra.mxu0 0.0
    %7375 = vmatprep.subr.mxu0 0.0
    %7376 = vmatpush1.msra.mxu0 0.0
    %7377 = vmatprep.subr.mxu0 0.0
    %7378 = vmatpush1.msra.mxu0 0.0
    %7379 = vmatprep.subr.mxu0 0.0
    %7380 = vmatpush1.msra.mxu0 0.0
    %7381 = vmatprep.subr.mxu0 0.0
    %7382 = vmatpush1.msra.mxu0 0.0
    %7383 = vmatprep.subr.mxu0 0.0
    %7384 = vmatpush1.msra.mxu0 0.0
    %7385 = vmatprep.subr.mxu0 0.0
    %7386 = vmatpush1.msra.mxu0 0.0
    %7387 = vmatprep.subr.mxu0 0.0
    %7388 = vmatpush1.msra.mxu0 0.0
    %7389 = vmatprep.subr.mxu0 0.0
    %7390 = vmatpush1.msra.mxu0 0.0
    %7391 = vmatprep.mubr.f32.mxu0 0.0
    %7392 = vmatmul.mubr.f32.gmra.mrb[0].mxu0 %v7326
    %v7393 = vpop.f32.mrb[0].mxu0
    %v7394 = vadd.f32 0.0, %v7393
    %v7395 = vpop.f32.mrb[0].mxu0
    %7396 = vdwg.mxu0
    %s7397 = scalar_lea.vmem %s5, 48
    %v7398 = vld [vmem:[%s7397] sm:$0xff]
    %v7399 = vld [vmem:[%s7397 + $0x8] sm:$0xff]
    %v7401 = vsel %vm6786, %v7394, 0
    %7403 = vmatprep.subr.mxu0 0.0
    %7404 = vmatpush1.msra.mxu0 %v7398
    %7405 = vmatprep.subr.mxu0 0.0
    %7406 = vmatpush1.msra.mxu0 %v7399
    %7407 = vmatprep.subr.mxu0 0.0
    %7408 = vmatpush1.msra.mxu0 0.0
    %7409 = vmatprep.subr.mxu0 0.0
    %7410 = vmatpush1.msra.mxu0 0.0
    %7411 = vmatprep.subr.mxu0 0.0
    %7412 = vmatpush1.msra.mxu0 0.0
    %7413 = vmatprep.subr.mxu0 0.0
    %7414 = vmatpush1.msra.mxu0 0.0
    %7415 = vmatprep.subr.mxu0 0.0
    %7416 = vmatpush1.msra.mxu0 0.0
    %7417 = vmatprep.subr.mxu0 0.0
    %7418 = vmatpush1.msra.mxu0 0.0
    %7419 = vmatprep.subr.mxu0 0.0
    %7420 = vmatpush1.msra.mxu0 0.0
    %7421 = vmatprep.subr.mxu0 0.0
    %7422 = vmatpush1.msra.mxu0 0.0
    %7423 = vmatprep.subr.mxu0 0.0
    %7424 = vmatpush1.msra.mxu0 0.0
    %7425 = vmatprep.subr.mxu0 0.0
    %7426 = vmatpush1.msra.mxu0 0.0
    %7427 = vmatprep.subr.mxu0 0.0
    %7428 = vmatpush1.msra.mxu0 0.0
    %7429 = vmatprep.subr.mxu0 0.0
    %7430 = vmatpush1.msra.mxu0 0.0
    %7431 = vmatprep.subr.mxu0 0.0
    %7432 = vmatpush1.msra.mxu0 0.0
    %7433 = vmatprep.subr.mxu0 0.0
    %7434 = vmatpush1.msra.mxu0 0.0
    %7435 = vmatprep.subr.mxu0 0.0
    %7436 = vmatpush1.msra.mxu0 0.0
    %7437 = vmatprep.subr.mxu0 0.0
    %7438 = vmatpush1.msra.mxu0 0.0
    %7439 = vmatprep.subr.mxu0 0.0
    %7440 = vmatpush1.msra.mxu0 0.0
    %7441 = vmatprep.subr.mxu0 0.0
    %7442 = vmatpush1.msra.mxu0 0.0
    %7443 = vmatprep.subr.mxu0 0.0
    %7444 = vmatpush1.msra.mxu0 0.0
    %7445 = vmatprep.subr.mxu0 0.0
    %7446 = vmatpush1.msra.mxu0 0.0
    %7447 = vmatprep.subr.mxu0 0.0
    %7448 = vmatpush1.msra.mxu0 0.0
    %7449 = vmatprep.subr.mxu0 0.0
    %7450 = vmatpush1.msra.mxu0 0.0
    %7451 = vmatprep.subr.mxu0 0.0
    %7452 = vmatpush1.msra.mxu0 0.0
    %7453 = vmatprep.subr.mxu0 0.0
    %7454 = vmatpush1.msra.mxu0 0.0
    %7455 = vmatprep.subr.mxu0 0.0
    %7456 = vmatpush1.msra.mxu0 0.0
    %7457 = vmatprep.subr.mxu0 0.0
    %7458 = vmatpush1.msra.mxu0 0.0
    %7459 = vmatprep.subr.mxu0 0.0
    %7460 = vmatpush1.msra.mxu0 0.0
    %7461 = vmatprep.subr.mxu0 0.0
    %7462 = vmatpush1.msra.mxu0 0.0
    %7463 = vmatprep.subr.mxu0 0.0
    %7464 = vmatpush1.msra.mxu0 0.0
    %7465 = vmatprep.subr.mxu0 0.0
    %7466 = vmatpush1.msra.mxu0 0.0
    %7467 = vmatprep.mubr.f32.mxu0 0.0
    %7468 = vmatmul.mubr.f32.gmra.mrb[0].mxu0 %v7401
    %v7469 = vpop.f32.mrb[0].mxu0
    %v7470 = vadd.f32 0.0, %v7469
    %v7471 = vpop.f32.mrb[0].mxu0
    %7472 = vdwg.mxu0
    %v7473 = vadd.f32 %v7323, %v7470
    %v7474 = vld [vmem:[%s6] sm:$0x1]
    %v7476 = vlaneseq
    %v7477 = vshrl.u32 %v7476, 7
    %v7478 = vsub.s32 0, %v7477
    %v7479 = vrot.slane %v7474, %v7478
    %v7481 = vadd.f32 %v7473, %v7479
    %v7482 = vmax.f32 %v7481, 0.0
    %v7483 = vld [vmem:[%s7] sm:$0xff]
    %v7484 = vld [vmem:[%s7 + $0x8] sm:$0xff]
    %v7485 = vld [vmem:[%s7 + $0x10] sm:$0xff]
    %v7486 = vld [vmem:[%s7 + $0x18] sm:$0xff]
    %v7487 = vld [vmem:[%s7 + $0x20] sm:$0xff]
    %v7488 = vld [vmem:[%s7 + $0x28] sm:$0xff]
    %v7489 = vld [vmem:[%s7 + $0x30] sm:$0xff]
    %v7490 = vld [vmem:[%s7 + $0x38] sm:$0xff]
    %v7491 = vld [vmem:[%s7 + $0x40] sm:$0xff]
    %v7492 = vld [vmem:[%s7 + $0x48] sm:$0xff]
    %v7493 = vld [vmem:[%s7 + $0x50] sm:$0xff]
    %v7494 = vld [vmem:[%s7 + $0x58] sm:$0xff]
    %v7495 = vld [vmem:[%s7 + $0x60] sm:$0xff]
    %v7496 = vld [vmem:[%s7 + $0x68] sm:$0xff]
    %v7497 = vld [vmem:[%s7 + $0x70] sm:$0xff]
    %v7498 = vld [vmem:[%s8] sm:$0x1]
    %v7500 = vlaneseq
    %v7501 = vshrl.u32 %v7500, 7
    %v7502 = vsub.s32 0, %v7501
    %v7503 = vrot.slane %v7498, %v7502
    %vm7505 = vcmask 982016
    %v7507 = vsel %vm7505, %v7482, 0
    %7509 = vmatprep.subr.mxu0 0.0
    %7510 = vmatpush1.msra.mxu0 %v7483
    %7511 = vmatprep.subr.mxu0 0.0
    %7512 = vmatpush1.msra.mxu0 %v7484
    %7513 = vmatprep.subr.mxu0 0.0
    %7514 = vmatpush1.msra.mxu0 %v7485
    %7515 = vmatprep.subr.mxu0 0.0
    %7516 = vmatpush1.msra.mxu0 %v7486
    %7517 = vmatprep.subr.mxu0 0.0
    %7518 = vmatpush1.msra.mxu0 %v7487
    %7519 = vmatprep.subr.mxu0 0.0
    %7520 = vmatpush1.msra.mxu0 %v7488
    %7521 = vmatprep.subr.mxu0 0.0
    %7522 = vmatpush1.msra.mxu0 %v7489
    %7523 = vmatprep.subr.mxu0 0.0
    %7524 = vmatpush1.msra.mxu0 %v7490
    %7525 = vmatprep.subr.mxu0 0.0
    %7526 = vmatpush1.msra.mxu0 %v7491
    %7527 = vmatprep.subr.mxu0 0.0
    %7528 = vmatpush1.msra.mxu0 %v7492
    %7529 = vmatprep.subr.mxu0 0.0
    %7530 = vmatpush1.msra.mxu0 %v7493
    %7531 = vmatprep.subr.mxu0 0.0
    %7532 = vmatpush1.msra.mxu0 %v7494
    %7533 = vmatprep.subr.mxu0 0.0
    %7534 = vmatpush1.msra.mxu0 %v7495
    %7535 = vmatprep.subr.mxu0 0.0
    %7536 = vmatpush1.msra.mxu0 %v7496
    %7537 = vmatprep.subr.mxu0 0.0
    %7538 = vmatpush1.msra.mxu0 %v7497
    %7539 = vmatprep.subr.mxu0 0.0
    %7540 = vmatpush1.msra.mxu0 0.0
    %7541 = vmatprep.subr.mxu0 0.0
    %7542 = vmatpush1.msra.mxu0 0.0
    %7543 = vmatprep.subr.mxu0 0.0
    %7544 = vmatpush1.msra.mxu0 0.0
    %7545 = vmatprep.subr.mxu0 0.0
    %7546 = vmatpush1.msra.mxu0 0.0
    %7547 = vmatprep.subr.mxu0 0.0
    %7548 = vmatpush1.msra.mxu0 0.0
    %7549 = vmatprep.subr.mxu0 0.0
    %7550 = vmatpush1.msra.mxu0 0.0
    %7551 = vmatprep.subr.mxu0 0.0
    %7552 = vmatpush1.msra.mxu0 0.0
    %7553 = vmatprep.subr.mxu0 0.0
    %7554 = vmatpush1.msra.mxu0 0.0
    %7555 = vmatprep.subr.mxu0 0.0
    %7556 = vmatpush1.msra.mxu0 0.0
    %7557 = vmatprep.subr.mxu0 0.0
    %7558 = vmatpush1.msra.mxu0 0.0
    %7559 = vmatprep.subr.mxu0 0.0
    %7560 = vmatpush1.msra.mxu0 0.0
    %7561 = vmatprep.subr.mxu0 0.0
    %7562 = vmatpush1.msra.mxu0 0.0
    %7563 = vmatprep.subr.mxu0 0.0
    %7564 = vmatpush1.msra.mxu0 0.0
    %7565 = vmatprep.subr.mxu0 0.0
    %7566 = vmatpush1.msra.mxu0 0.0
    %7567 = vmatprep.subr.mxu0 0.0
    %7568 = vmatpush1.msra.mxu0 0.0
    %7569 = vmatprep.subr.mxu0 0.0
    %7570 = vmatpush1.msra.mxu0 0.0
    %7571 = vmatprep.subr.mxu0 0.0
    %7572 = vmatpush1.msra.mxu0 0.0
    %7573 = vmatprep.mubr.f32.mxu0 0.0
    %7574 = vmatmul.mubr.f32.gmra.mrb[0].mxu0 %v7507
    %v7575 = vpop.f32.mrb[0].mxu0
    %v7576 = vadd.f32 %v7503, %v7575
    %v7577 = vpop.f32.mrb[0].mxu0
    %7578 = vdwg.mxu0
    %v7579 = vmax.f32 %v7576, 0.0
    %v7580 = vld [vmem:[%s9] sm:$0xff]
    %v7581 = vld [vmem:[%s9 + $0x8] sm:$0xff]
    %v7582 = vld [vmem:[%s9 + $0x10] sm:$0xff]
    %v7583 = vld [vmem:[%s9 + $0x18] sm:$0xff]
    %v7584 = vld [vmem:[%s9 + $0x20] sm:$0xff]
    %v7585 = vld [vmem:[%s9 + $0x28] sm:$0xff]
    %v7586 = vld [vmem:[%s9 + $0x30] sm:$0xff]
    %v7587 = vld [vmem:[%s9 + $0x38] sm:$0xff]
    %v7588 = vld [vmem:[%s9 + $0x40] sm:$0xff]
    %v7589 = vld [vmem:[%s9 + $0x48] sm:$0xff]
    %v7590 = vld [vmem:[%s9 + $0x50] sm:$0xf]
    %v7591 = vld [vmem:[%s10] sm:$0x1]
    %v7593 = vlaneseq
    %v7594 = vshrl.u32 %v7593, 7
    %v7595 = vsub.s32 0, %v7594
    %v7596 = vrot.slane %v7591, %v7595
    %vm7598 = vcmask 687104
    %v7600 = vsel %vm7598, %v7579, 0
    %vm7602 = vcmask 1043456
    %v7604 = vsel %vm7602, %v7590, 0
    %7606 = vmatprep.subr.mxu0 0.0
    %7607 = vmatpush1.msra.mxu0 %v7580
    %7608 = vmatprep.subr.mxu0 0.0
    %7609 = vmatpush1.msra.mxu0 %v7581
    %7610 = vmatprep.subr.mxu0 0.0
    %7611 = vmatpush1.msra.mxu0 %v7582
    %7612 = vmatprep.subr.mxu0 0.0
    %7613 = vmatpush1.msra.mxu0 %v7583
    %7614 = vmatprep.subr.mxu0 0.0
    %7615 = vmatpush1.msra.mxu0 %v7584
    %7616 = vmatprep.subr.mxu0 0.0
    %7617 = vmatpush1.msra.mxu0 %v7585
    %7618 = vmatprep.subr.mxu0 0.0
    %7619 = vmatpush1.msra.mxu0 %v7586
    %7620 = vmatprep.subr.mxu0 0.0
    %7621 = vmatpush1.msra.mxu0 %v7587
    %7622 = vmatprep.subr.mxu0 0.0
    %7623 = vmatpush1.msra.mxu0 %v7588
    %7624 = vmatprep.subr.mxu0 0.0
    %7625 = vmatpush1.msra.mxu0 %v7589
    %7626 = vmatprep.subr.mxu0 0.0
    %7627 = vmatpush1.msra.mxu0 %v7604
    %7628 = vmatprep.subr.mxu0 0.0
    %7629 = vmatpush1.msra.mxu0 0.0
    %7630 = vmatprep.subr.mxu0 0.0
    %7631 = vmatpush1.msra.mxu0 0.0
    %7632 = vmatprep.subr.mxu0 0.0
    %7633 = vmatpush1.msra.mxu0 0.0
    %7634 = vmatprep.subr.mxu0 0.0
    %7635 = vmatpush1.msra.mxu0 0.0
    %7636 = vmatprep.subr.mxu0 0.0
    %7637 = vmatpush1.msra.mxu0 0.0
    %7638 = vmatprep.subr.mxu0 0.0
    %7639 = vmatpush1.msra.mxu0 0.0
    %7640 = vmatprep.subr.mxu0 0.0
    %7641 = vmatpush1.msra.mxu0 0.0
    %7642 = vmatprep.subr.mxu0 0.0
    %7643 = vmatpush1.msra.mxu0 0.0
    %7644 = vmatprep.subr.mxu0 0.0
    %7645 = vmatpush1.msra.mxu0 0.0
    %7646 = vmatprep.subr.mxu0 0.0
    %7647 = vmatpush1.msra.mxu0 0.0
    %7648 = vmatprep.subr.mxu0 0.0
    %7649 = vmatpush1.msra.mxu0 0.0
    %7650 = vmatprep.subr.mxu0 0.0
    %7651 = vmatpush1.msra.mxu0 0.0
    %7652 = vmatprep.subr.mxu0 0.0
    %7653 = vmatpush1.msra.mxu0 0.0
    %7654 = vmatprep.subr.mxu0 0.0
    %7655 = vmatpush1.msra.mxu0 0.0
    %7656 = vmatprep.subr.mxu0 0.0
    %7657 = vmatpush1.msra.mxu0 0.0
    %7658 = vmatprep.subr.mxu0 0.0
    %7659 = vmatpush1.msra.mxu0 0.0
    %7660 = vmatprep.subr.mxu0 0.0
    %7661 = vmatpush1.msra.mxu0 0.0
    %7662 = vmatprep.subr.mxu0 0.0
    %7663 = vmatpush1.msra.mxu0 0.0
    %7664 = vmatprep.subr.mxu0 0.0
    %7665 = vmatpush1.msra.mxu0 0.0
    %7666 = vmatprep.subr.mxu0 0.0
    %7667 = vmatpush1.msra.mxu0 0.0
    %7668 = vmatprep.subr.mxu0 0.0
    %7669 = vmatpush1.msra.mxu0 0.0
    %7670 = vmatprep.mubr.f32.mxu0 0.0
    %7671 = vmatmul.mubr.f32.gmra.mrb[0].mxu0 %v7600
    %v7672 = vpop.f32.mrb[0].mxu0
    %v7673 = vadd.f32 %v7596, %v7672
    %v7674 = vpop.f32.mrb[0].mxu0
    %7675 = vdwg.mxu0
    %vm7676 = vcmask 74752
    %7677 = vst.msk [vmem:[#allocation4] sm:$0x3] %vm7676, %v7673
    // Predicated region
    $region46: #{net_forward.1} parent=1 // pred_check
      _
    $region47: #{net_forward.1} parent=1 // pred_check_branch
      %7679 = sbr.rel (0) target = $region49
    $region48: #{net_forward.1} parent=1 // pred_region
      %s7681 = ssub.s32 32, 32
      %7682 = vsyncadd [#allocation5], %s7681
      %s7684 = sshll.u32 [#allocation4], 4
      %s7685 = int_to_ptr.vmem [resolvable:$true] %s7684
      %7687 = dma.vmem_to_hbm [thread:$0]  %s7685, 32, %s11, [#allocation5]
    $region49: #{net_forward.1} parent=1 // pred_fallthru
      _
    // Predicated region
    $region50: #{net_forward.1} parent=1 // pred_check
      _
    $region51: #{net_forward.1} parent=1 // pred_check_branch
      %7689 = sbr.rel (0) target = $region53
    $region52: #{net_forward.1} parent=1 // pred_region
      %7690 = dma.done [#allocation5], 32
    $region53: #{net_forward.1} parent=1 // pred_fallthru
      _
    %7691 = vsyncpa [#allocation5], 1

</llo_original>
